<compile_context>
chip_gen: v7x
topology: tpu7x:2x2x1
jax: 0.10.0
libtpu: 0.0.40
codegen_flags: <defaults>
</compile_context>

<pallas_src>
import math
from functools import partial
from typing import NamedTuple

import jax
import jax.numpy as jnp
from jax.experimental import pallas as pl
from jax.experimental.pallas import tpu as pltpu


def _default_vmem_limit():
    # Per-generation scoped-VMEM budget with headroom for double-buffered I/O tiles and
    # compiler-internal scratch (v7x only has 64 MiB physical per TensorCore).
    try:
        cap = int(pltpu.get_tpu_info().vmem_capacity_bytes)
        return min((cap * 3) // 4, 100 * 1024 * 1024)
    except Exception:
        return 48 * 1024 * 1024


VMEM_LIMIT = _default_vmem_limit()


def _pick_tile(n, cap, gran):
    """Largest tile <= cap that divides n and is a multiple of gran (or n itself)."""
    if n <= cap:
        return n
    t = (cap // gran) * gran
    while t >= gran:
        if n % t == 0:
            return t
        t -= gran
    return n


# --------------------------- Pallas kernels ----------------------------------

def _rmsnorm_kernel(x_ref, g_ref, o_ref, *, eps):
    # Writes the normalized bf16 activation once; consuming matmuls are plain matmuls.
    x = x_ref[...].astype(jnp.float32)
    ms = jnp.mean(x * x, axis=-1, keepdims=True)
    o_ref[...] = (x * jax.lax.rsqrt(ms + eps) * g_ref[...]).astype(o_ref.dtype)


def _matmul_kernel(x_ref, w_ref, o_ref, acc_ref):
    # o = x @ W, bf16 MXU inputs, f32 accumulator.
    @pl.when(pl.program_id(2) == 0)
    def _():
        acc_ref[...] = jnp.zeros_like(acc_ref)

    acc_ref[...] += jnp.dot(x_ref[...], w_ref[...], preferred_element_type=jnp.float32)

    @pl.when(pl.program_id(2) == pl.num_programs(2) - 1)
    def _():
        o_ref[...] = acc_ref[...].astype(o_ref.dtype)


def _matmul_residual_kernel(x_ref, w_ref, r_ref, o_ref, acc_ref):
    # o = residual + x @ W (residual add fused as epilogue, done in f32).
    @pl.when(pl.program_id(2) == 0)
    def _():
        acc_ref[...] = jnp.zeros_like(acc_ref)

    acc_ref[...] += jnp.dot(x_ref[...], w_ref[...], preferred_element_type=jnp.float32)

    @pl.when(pl.program_id(2) == pl.num_programs(2) - 1)
    def _():
        o_ref[...] = (acc_ref[...] + r_ref[...].astype(jnp.float32)).astype(o_ref.dtype)


def _swiglu_kernel(x_ref, w1_ref, w3_ref, o_ref, acc1_ref, acc3_ref):
    # o = silu(x @ w1) * (x @ w3): one pass over the shared x tile, two f32 accumulators.
    @pl.when(pl.program_id(2) == 0)
    def _():
        acc1_ref[...] = jnp.zeros_like(acc1_ref)
        acc3_ref[...] = jnp.zeros_like(acc3_ref)

    x = x_ref[...]
    acc1_ref[...] += jnp.dot(x, w1_ref[...], preferred_element_type=jnp.float32)
    acc3_ref[...] += jnp.dot(x, w3_ref[...], preferred_element_type=jnp.float32)

    @pl.when(pl.program_id(2) == pl.num_programs(2) - 1)
    def _():
        h1 = acc1_ref[...]
        o_ref[...] = (h1 * jax.nn.sigmoid(h1) * acc3_ref[...]).astype(o_ref.dtype)


def _rope_rotate(x, cos, sin):
    # llama interleaved-pair rotation (torch view_as_complex convention):
    #   out[2i]   = x[2i]   * cos_i - x[2i+1] * sin_i
    #   out[2i+1] = x[2i+1] * cos_i + x[2i]   * sin_i
    # cos / sin are pair-duplicated along the last dim.  Pair swap via two static lane
    # rotations (XLU) + parity select (VPU).
    d = x.shape[-1]
    axis = x.ndim - 1
    lane = jax.lax.broadcasted_iota(jnp.int32, x.shape, axis)
    even = (lane % 2) == 0
    nxt = pltpu.roll(x, d - 1, axis)   # nxt[j] = x[(j + 1) % d]
    prv = pltpu.roll(x, 1, axis)       # prv[j] = x[(j - 1) % d]
    swapped = jnp.where(even, nxt, prv)
    rot = jnp.where(even, -swapped, swapped)
    return x * cos + rot * sin


def _rope_split_kernel(q_ref, k_ref, v_ref, cos_ref, sin_ref, oq_ref, ok_ref, ov_ref, *,
                       n_heads, n_kv_heads, head_dim, scale):
    # Reads Q/K/V columns of the fused QKV activation in place, applies RoPE per head
    # with a single (ts, Dh) cos/sin block (broadcast across heads in-kernel, no tiled
    # HBM tables), folds 1/sqrt(Dh) into q, and writes:
    #   oq: (1, H,   ts, Dh)  head-major (attention kernel layout)
    #   ok: (1, KVH, ts, Dh)  KV-cache layout
    #   ov: (1, KVH, ts, Dh)  KV-cache layout
    cos = cos_ref[...]
    sin = sin_ref[...]
    for h in range(n_heads):
        qh = q_ref[0, :, h * head_dim:(h + 1) * head_dim].astype(jnp.float32)
        oq_ref[0, h] = (_rope_rotate(qh, cos, sin) * scale).astype(oq_ref.dtype)
    for j in range(n_kv_heads):
        kh = k_ref[0, :, j * head_dim:(j + 1) * head_dim].astype(jnp.float32)
        ok_ref[0, j] = _rope_rotate(kh, cos, sin).astype(ok_ref.dtype)
        ov_ref[0, j] = v_ref[0, :, j * head_dim:(j + 1) * head_dim].astype(ov_ref.dtype)


def _flash_attn_kernel(q_ref, k_ref, v_ref, o_ref, m_scr, l_scr, acc_scr, *,
                       start_pos, n_rep, tq, head_dim):
    qi = pl.program_id(2)
    kv = pl.program_id(3)
    tkv = k_ref.shape[2]

    @pl.when(kv == 0)
    def _():
        m_scr[...] = jnp.full_like(m_scr, -1e30)
        l_scr[...] = jnp.zeros_like(l_scr)
        acc_scr[...] = jnp.zeros_like(acc_scr)

    # Skip KV tiles entirely above the causal diagonal for this query tile.  Tile kv=0 is
    # never skipped, so every query row sees at least one unmasked key before finalize.
    run = (kv * tkv) <= (start_pos + (qi + 1) * tq - 1)

    @pl.when(run)
    def _():
        R = n_rep * tq
        # All n_rep query heads share this KV head -> one stacked (R, Dh) matmul.
        q = q_ref[...].reshape(R, head_dim)            # bf16, already scaled by 1/sqrt(Dh)
        k = k_ref[0, 0]                                # (tkv, Dh) bf16
        v = v_ref[0, 0]
        s = jax.lax.dot_general(q, k, (((1,), (1,)), ((), ())),
                                preferred_element_type=jnp.float32)    # (R, tkv), f32
        # Causal mask built in-kernel (f32 math; no HBM mask array).
        pos_in_tile = jax.lax.broadcasted_iota(jnp.int32, (n_rep, tq, tkv), 1).reshape(R, tkv)
        col = jax.lax.broadcasted_iota(jnp.int32, (R, tkv), 1)
        q_pos = start_pos + qi * tq + pos_in_tile
        k_pos = kv * tkv + col
        s = jnp.where(k_pos <= q_pos, s, -1e30)

        m_old = m_scr[...]
        m_new = jnp.maximum(m_old, jnp.max(s, axis=-1, keepdims=True))
        alpha = jnp.exp(m_old - m_new)
        p = jnp.exp(s - m_new)
        l_scr[...] = alpha * l_scr[...] + jnp.sum(p, axis=-1, keepdims=True)
        acc_scr[...] = alpha * acc_scr[...] + jnp.dot(p.astype(jnp.bfloat16), v,
                                                      preferred_element_type=jnp.float32)
        m_scr[...] = m_new

    @pl.when(kv == pl.num_programs(3) - 1)
    def _():
        out = acc_scr[...] * pl.reciprocal(l_scr[...], approx=True)
        for h in range(n_rep):   # lane-dense (B, S, H*Dh) store, per-head static slices
            o_ref[0, :, h * head_dim:(h + 1) * head_dim] = \
                out[h * tq:(h + 1) * tq, :].astype(o_ref.dtype)


# --------------------------- pallas_call wrappers -----------------------------

def rmsnorm(x, gamma, eps, *, tm_cap=256):
    m, d = x.shape
    tm = _pick_tile(m, tm_cap, 8)
    # TODO(synk): tile D for model dims whose (tm, D) f32 working set exceeds VMEM.
    return pl.pallas_call(
        partial(_rmsnorm_kernel, eps=eps),
        out_shape=jax.ShapeDtypeStruct((m, d), jnp.bfloat16),
        grid=(m // tm,),
        in_specs=[pl.BlockSpec((tm, d), lambda i: (i, 0)),
                  pl.BlockSpec((1, d), lambda i: (0, 0))],
        out_specs=pl.BlockSpec((tm, d), lambda i: (i, 0)),
        compiler_params=pltpu.CompilerParams(
            dimension_semantics=("parallel",),
            vmem_limit_bytes=VMEM_LIMIT),
    )(x, gamma.reshape(1, -1))


def _matmul_grid(m, kdim, n, tm_cap, tn_cap, tk_cap):
    tm = _pick_tile(m, tm_cap, 8)
    tn = _pick_tile(n, tn_cap, 128)
    tk = _pick_tile(kdim, tk_cap, 128)
    return tm, tn, tk


def matmul(x, w, *, out_dtype=jnp.bfloat16, tm_cap=256, tn_cap=512, tk_cap=1024):
    m, kdim = x.shape
    _, n = w.shape
    tm, tn, tk = _matmul_grid(m, kdim, n, tm_cap, tn_cap, tk_cap)
    return pl.pallas_call(
        _matmul_kernel,
        out_shape=jax.ShapeDtypeStruct((m, n), out_dtype),
        grid=(m // tm, n // tn, kdim // tk),
        in_specs=[
            pl.BlockSpec((tm, tk), lambda i, j, k: (i, k)),
            pl.BlockSpec((tk, tn), lambda i, j, k: (k, j)),
        ],
        out_specs=pl.BlockSpec((tm, tn), lambda i, j, k: (i, j)),
        scratch_shapes=[pltpu.VMEM((tm, tn), jnp.float32)],
        compiler_params=pltpu.CompilerParams(
            dimension_semantics=("parallel", "parallel", "arbitrary"),
            vmem_limit_bytes=VMEM_LIMIT),
    )(x, w)


def matmul_residual(x, w, residual, *, out_dtype=None, tm_cap=256, tn_cap=512, tk_cap=1024):
    m, kdim = x.shape
    _, n = w.shape
    if out_dtype is None:
        out_dtype = residual.dtype
    tm, tn, tk = _matmul_grid(m, kdim, n, tm_cap, tn_cap, tk_cap)
    return pl.pallas_call(
        _matmul_residual_kernel,
        out_shape=jax.ShapeDtypeStruct((m, n), out_dtype),
        grid=(m // tm, n // tn, kdim // tk),
        in_specs=[
            pl.BlockSpec((tm, tk), lambda i, j, k: (i, k)),
            pl.BlockSpec((tk, tn), lambda i, j, k: (k, j)),
            pl.BlockSpec((tm, tn), lambda i, j, k: (i, j)),
        ],
        out_specs=pl.BlockSpec((tm, tn), lambda i, j, k: (i, j)),
        scratch_shapes=[pltpu.VMEM((tm, tn), jnp.float32)],
        compiler_params=pltpu.CompilerParams(
            dimension_semantics=("parallel", "parallel", "arbitrary"),
            vmem_limit_bytes=VMEM_LIMIT),
    )(x, w, residual)


def swiglu(x, w1, w3, *, tm_cap=256, tn_cap=512, tk_cap=1024):
    m, kdim = x.shape
    _, n = w1.shape
    tm, tn, tk = _matmul_grid(m, kdim, n, tm_cap, tn_cap, tk_cap)
    return pl.pallas_call(
        _swiglu_kernel,
        out_shape=jax.ShapeDtypeStruct((m, n), jnp.bfloat16),   # bf16 gate intermediate
        grid=(m // tm, n // tn, kdim // tk),
        in_specs=[
            pl.BlockSpec((tm, tk), lambda i, j, k: (i, k)),
            pl.BlockSpec((tk, tn), lambda i, j, k: (k, j)),
            pl.BlockSpec((tk, tn), lambda i, j, k: (k, j)),
        ],
        out_specs=pl.BlockSpec((tm, tn), lambda i, j, k: (i, j)),
        scratch_shapes=[pltpu.VMEM((tm, tn), jnp.float32),
                        pltpu.VMEM((tm, tn), jnp.float32)],
        compiler_params=pltpu.CompilerParams(
            dimension_semantics=("parallel", "parallel", "arbitrary"),
            vmem_limit_bytes=VMEM_LIMIT),
    )(x, w1, w3)


def apply_rope_split(qkv3d, cos, sin, *, n_heads, n_kv_heads, head_dim, ts_cap=256):
    b, s, _ = qkv3d.shape
    n_rep = n_heads // n_kv_heads
    wq = n_heads * head_dim
    wk = n_kv_heads * head_dim
    ts = _pick_tile(s, ts_cap, 8)
    scale = 1.0 / math.sqrt(head_dim)
    kernel = partial(_rope_split_kernel, n_heads=n_heads, n_kv_heads=n_kv_heads,
                     head_dim=head_dim, scale=scale)
    return pl.pallas_call(
        kernel,
        out_shape=(jax.ShapeDtypeStruct((b, n_heads, s, head_dim), jnp.bfloat16),
                   jax.ShapeDtypeStruct((b, n_kv_heads, s, head_dim), jnp.bfloat16),
                   jax.ShapeDtypeStruct((b, n_kv_heads, s, head_dim), jnp.bfloat16)),
        grid=(b, s // ts),
        in_specs=[
            pl.BlockSpec((1, ts, wq), lambda bi, si: (bi, si, 0)),            # Q columns
            pl.BlockSpec((1, ts, wk), lambda bi, si: (bi, si, n_rep)),        # K columns
            pl.BlockSpec((1, ts, wk), lambda bi, si: (bi, si, n_rep + 1)),    # V columns
            pl.BlockSpec((ts, head_dim), lambda bi, si: (si, 0)),             # cos (ts, Dh)
            pl.BlockSpec((ts, head_dim), lambda bi, si: (si, 0)),             # sin (ts, Dh)
        ],
        out_specs=(pl.BlockSpec((1, n_heads, ts, head_dim), lambda bi, si: (bi, 0, si, 0)),
                   pl.BlockSpec((1, n_kv_heads, ts, head_dim), lambda bi, si: (bi, 0, si, 0)),
                   pl.BlockSpec((1, n_kv_heads, ts, head_dim), lambda bi, si: (bi, 0, si, 0))),
        compiler_params=pltpu.CompilerParams(
            dimension_semantics=("parallel", "parallel"),
            vmem_limit_bytes=VMEM_LIMIT),
    )(qkv3d, qkv3d, qkv3d, cos, sin)


def flash_attention(q, cache_k, cache_v, *, start_pos, kv_len, n_heads, n_kv_heads,
                    head_dim, q_tile_cap=256, kv_tile_cap=512):
    # q: (B, H, S, Dh) bf16, pre-scaled by 1/sqrt(Dh).  Caches: (maxB, KVH, maxS, Dh) bf16.
    b, _, s, _ = q.shape
    n_rep = n_heads // n_kv_heads
    tq = _pick_tile(s, q_tile_cap, 8)
    tkv = _pick_tile(kv_len, kv_tile_cap, 8)
    assert kv_len % tkv == 0 and s % tq == 0
    kernel = partial(_flash_attn_kernel, start_pos=start_pos, n_rep=n_rep,
                     tq=tq, head_dim=head_dim)
    return pl.pallas_call(
        kernel,
        out_shape=jax.ShapeDtypeStruct((b, s, n_heads * head_dim), jnp.bfloat16),
        grid=(b, n_kv_heads, s // tq, kv_len // tkv),
        in_specs=[
            pl.BlockSpec((1, n_rep, tq, head_dim), lambda bi, g, qi, kv: (bi, g, qi, 0)),
            pl.BlockSpec((1, 1, tkv, head_dim), lambda bi, g, qi, kv: (bi, g, kv, 0)),
            pl.BlockSpec((1, 1, tkv, head_dim), lambda bi, g, qi, kv: (bi, g, kv, 0)),
        ],
        out_specs=pl.BlockSpec((1, tq, n_rep * head_dim), lambda bi, g, qi, kv: (bi, qi, g)),
        scratch_shapes=[
            pltpu.VMEM((n_rep * tq, 1), jnp.float32),          # running max
            pltpu.VMEM((n_rep * tq, 1), jnp.float32),          # running denom
            pltpu.VMEM((n_rep * tq, head_dim), jnp.float32),   # output accumulator
        ],
        compiler_params=pltpu.CompilerParams(
            dimension_semantics=("parallel", "parallel", "parallel", "arbitrary"),
            vmem_limit_bytes=VMEM_LIMIT),
    )(q, cache_k, cache_v)


# --------------------------- module forward ----------------------------------

class BlockConfig(NamedTuple):
    n_heads: int
    n_kv_heads: int
    head_dim: int
    norm_eps: float
    rope_theta: float
    q_tile_cap: int
    kv_tile_cap: int


def ffn_hidden_dim(dim, multiple_of, ffn_dim_multiplier=None):
    hidden = 4 * dim
    hidden = int(2 * hidden / 3)
    if ffn_dim_multiplier is not None:
        hidden = int(ffn_dim_multiplier * hidden)
    return multiple_of * ((hidden + multiple_of - 1) // multiple_of)


def precompute_rope(head_dim, start_pos, seqlen, theta):
    inv = 1.0 / (theta ** (jnp.arange(0, head_dim, 2, dtype=jnp.float32) / head_dim))
    t = jnp.arange(start_pos, start_pos + seqlen, dtype=jnp.float32)
    ang = jnp.outer(t, inv)                      # (S, Dh//2)
    cos = jnp.repeat(jnp.cos(ang), 2, axis=-1)   # (S, Dh), pair-duplicated
    sin = jnp.repeat(jnp.sin(ang), 2, axis=-1)
    return cos, sin


def init_params(key, dim, n_heads, n_kv_heads, head_dim, hidden_dim):
    ks = jax.random.split(key, 7)
    s_in = 1.0 / math.sqrt(dim)
    s_hid = 1.0 / math.sqrt(hidden_dim)
    wq = jax.random.normal(ks[0], (dim, n_heads * head_dim), jnp.float32) * s_in
    wk = jax.random.normal(ks[1], (dim, n_kv_heads * head_dim), jnp.float32) * s_in
    wv = jax.random.normal(ks[2], (dim, n_kv_heads * head_dim), jnp.float32) * s_in
    return {
        # Weights live in bf16 in HBM (halves weight DMA / VMEM tile footprint).
        "wqkv": jnp.concatenate([wq, wk, wv], axis=1).astype(jnp.bfloat16),
        "wo": (jax.random.normal(ks[3], (n_heads * head_dim, dim), jnp.float32) * s_in
               ).astype(jnp.bfloat16),
        "w1": (jax.random.normal(ks[4], (dim, hidden_dim), jnp.float32) * s_in
               ).astype(jnp.bfloat16),
        "w3": (jax.random.normal(ks[5], (dim, hidden_dim), jnp.float32) * s_in
               ).astype(jnp.bfloat16),
        "w2": (jax.random.normal(ks[6], (hidden_dim, dim), jnp.float32) * s_hid
               ).astype(jnp.bfloat16),
        "attention_norm": jnp.ones((dim,), jnp.float32),
        "ffn_norm": jnp.ones((dim,), jnp.float32),
    }


def transformer_block_forward(x, params, cache_k, cache_v, *, cfg, start_pos):
    b, s, d = x.shape
    h_, kvh, dh = cfg.n_heads, cfg.n_kv_heads, cfg.head_dim
    m = b * s
    x2d = x.reshape(m, d)

    # ---- attention branch: h = x + wo(attn(rope(q, k), v)) ----
    xn_attn = rmsnorm(x2d, params["attention_norm"], cfg.norm_eps)
    qkv = matmul(xn_attn, params["wqkv"])                  # bf16 (m, (H+2KVH)*Dh)
    qkv3d = qkv.reshape(b, s, (h_ + 2 * kvh) * dh)

    cos, sin = precompute_rope(dh, start_pos, s, cfg.rope_theta)
    # q: (B, H, S, Dh) pre-scaled; k, v: (B, KVH, S, Dh) already in cache layout.
    q_rope, k_rope, v_new = apply_rope_split(qkv3d, cos, sin,
                                             n_heads=h_, n_kv_heads=kvh, head_dim=dh)

    # Persistent bf16 KV cache (max_b, KVH, max_s, Dh); no XLA transposes needed since the
    # RoPE kernel emits K/V head-major.  Updated in place when the caller donates it.
    cache_k = jax.lax.dynamic_update_slice(cache_k, k_rope.astype(cache_k.dtype),
                                           (0, 0, start_pos, 0))
    cache_v = jax.lax.dynamic_update_slice(cache_v, v_new.astype(cache_v.dtype),
                                           (0, 0, start_pos, 0))

    kv_len = start_pos + s
    attn = flash_attention(q_rope, cache_k, cache_v, start_pos=start_pos, kv_len=kv_len,
                           n_heads=h_, n_kv_heads=kvh, head_dim=dh,
                           q_tile_cap=cfg.q_tile_cap, kv_tile_cap=cfg.kv_tile_cap)
    h2d = matmul_residual(attn.reshape(m, h_ * dh), params["wo"], x2d,
                          out_dtype=jnp.bfloat16)          # bf16 residual stream

    # ---- FFN branch: out = h + w2(silu(w1(norm(h))) * w3(norm(h))) ----
    xn_ffn = rmsnorm(h2d, params["ffn_norm"], cfg.norm_eps)
    gate = swiglu(xn_ffn, params["w1"], params["w3"])
    out2d = matmul_residual(gate, params["w2"], h2d, out_dtype=x.dtype)

    return out2d.reshape(b, s, d), cache_k, cache_v


# --------------------------- pure-JAX reference -------------------------------

def reference_block(x, params, cache_k, cache_v, *, cfg, start_pos):
    b, s, d = x.shape
    h_, kvh, dh = cfg.n_heads, cfg.n_kv_heads, cfg.head_dim
    n_rep = h_ // kvh
    eps = cfg.norm_eps

    def rmsnorm_ref(t, w):
        t32 = t.astype(jnp.float32)
        return t32 * jax.lax.rsqrt(jnp.mean(t32 * t32, axis=-1, keepdims=True) + eps) * w

    wq = params["wqkv"][:, :h_ * dh].astype(jnp.float32)
    wk = params["wqkv"][:, h_ * dh:(h_ + kvh) * dh].astype(jnp.float32)
    wv = params["wqkv"][:, (h_ + kvh) * dh:].astype(jnp.float32)
    wo = params["wo"].astype(jnp.float32)
    w1 = params["w1"].astype(jnp.float32)
    w2 = params["w2"].astype(jnp.float32)
    w3 = params["w3"].astype(jnp.float32)

    xn = rmsnorm_ref(x, params["attention_norm"])
    xq = (xn @ wq).reshape(b, s, h_, dh)
    xk = (xn @ wk).reshape(b, s, kvh, dh)
    xv = (xn @ wv).reshape(b, s, kvh, dh)

    inv = 1.0 / (cfg.rope_theta ** (jnp.arange(0, dh, 2, dtype=jnp.float32) / dh))
    t = jnp.arange(start_pos, start_pos + s, dtype=jnp.float32)
    ang = jnp.outer(t, inv)
    cos = jnp.cos(ang)[None, :, None, :]
    sin = jnp.sin(ang)[None, :, None, :]

    def rope(v):
        vr = v.reshape(*v.shape[:-1], dh // 2, 2)
        ve, vo = vr[..., 0], vr[..., 1]
        return jnp.stack([ve * cos - vo * sin, ve * sin + vo * cos], axis=-1).reshape(v.shape)

    xq, xk = rope(xq), rope(xk)

    ck = cache_k.astype(jnp.float32).at[:b, :, start_pos:start_pos + s, :].set(
        jnp.transpose(xk, (0, 2, 1, 3)))
    cv = cache_v.astype(jnp.float32).at[:b, :, start_pos:start_pos + s, :].set(
        jnp.transpose(xv, (0, 2, 1, 3)))
    keys = jnp.repeat(ck[:b, :, :start_pos + s, :], n_rep, axis=1)   # (B, H, Skv, Dh)
    vals = jnp.repeat(cv[:b, :, :start_pos + s, :], n_rep, axis=1)
    q = jnp.transpose(xq, (0, 2, 1, 3))                              # (B, H, S, Dh)

    scores = jnp.einsum("bhqd,bhkd->bhqk", q, keys) / math.sqrt(dh)
    qpos = start_pos + jnp.arange(s)[:, None]
    kpos = jnp.arange(start_pos + s)[None, :]
    scores = jnp.where((kpos <= qpos)[None, None], scores, -1e30)
    probs = jax.nn.softmax(scores, axis=-1)
    attn = jnp.einsum("bhqk,bhkd->bhqd", probs, vals)
    attn = jnp.transpose(attn, (0, 2, 1, 3)).reshape(b, s, h_ * dh)
    h = x + attn @ wo

    hn = rmsnorm_ref(h, params["ffn_norm"])
    g = jax.nn.silu(hn @ w1) * (hn @ w3)
    return h + g @ w2


# --------------------------- main ---------------------------------------------

if __name__ == "__main__":
    # Small Llama-style config: dim=256, 4 query heads / 2 KV heads (GQA n_rep=2),
    # head_dim=64, SwiGLU hidden=768, batch=2, seq=32, cache sized 4 x 64 tokens.
    batch, seqlen = 2, 32
    dim, n_heads, n_kv_heads = 256, 4, 2
    multiple_of = 256
    max_batch_size, max_seq_len = 4, 64
    norm_eps = 1e-5
    rope_theta = 10000.0
    start_pos = 0

    head_dim = dim // n_heads
    hidden_dim = ffn_hidden_dim(dim, multiple_of)

    # Small tile caps so the toy run exercises >1 query tile, >1 KV tile and the causal
    # KV-tile skip path.
    cfg = BlockConfig(n_heads=n_heads, n_kv_heads=n_kv_heads, head_dim=head_dim,
                      norm_eps=norm_eps, rope_theta=rope_theta,
                      q_tile_cap=16, kv_tile_cap=16)

    key = jax.random.PRNGKey(0)
    kx, kp = jax.random.split(key)
    x = jax.random.normal(kx, (batch, seqlen, dim), jnp.float32)
    params = init_params(kp, dim, n_heads, n_kv_heads, head_dim, hidden_dim)

    cache_k = jnp.zeros((max_batch_size, n_kv_heads, max_seq_len, head_dim), jnp.bfloat16)
    cache_v = jnp.zeros_like(cache_k)

    # Pure-JAX reference (computed before the caches are donated to the kernel call).
    ref = reference_block(x, params, cache_k, cache_v, cfg=cfg, start_pos=start_pos)

    fwd = jax.jit(transformer_block_forward,
                  static_argnames=("cfg", "start_pos"),
                  donate_argnames=("cache_k", "cache_v"))
    out, cache_k, cache_v = fwd(x, params, cache_k=cache_k, cache_v=cache_v,
                                cfg=cfg, start_pos=start_pos)
    out = jax.block_until_ready(out)

    assert out.shape == (batch, seqlen, dim)
    assert bool(jnp.all(jnp.isfinite(out)))
    rel = float(jnp.linalg.norm((out - ref).astype(jnp.float32)) /
                jnp.linalg.norm(ref.astype(jnp.float32)))
    assert rel < 5e-2, f"mismatch vs pure-JAX reference: rel L2 error = {rel:.3e}"
    print("KERNEL_OK")
</pallas_src>

<mosaic_0001>
module attributes {stable_mosaic.version = 11 : i64} {
  func.func @_rmsnorm_kernel(%arg0: i32, %arg1: memref<64x256xf32, #tpu.memory_space<vmem>>, %arg2: memref<1x256xf32, #tpu.memory_space<vmem>>, %arg3: memref<64x256xbf16, #tpu.memory_space<vmem>>) attributes {dimension_semantics = [#tpu.dimension_semantics<parallel>], iteration_bounds = array<i64: 1>, scalar_prefetch = 0 : i64, scratch_operands = 0 : i64, tpu.core_type = #tpu.core_type<tc>, window_params = [{transform_indices = @transform_0, window_bounds = array<i64: 64, 256>}, {pipeline_mode = #tpu.pipeline_mode<synchronous>, transform_indices = @transform_1, window_bounds = array<i64: 1, 256>}, {transform_indices = @transform_2, window_bounds = array<i64: 64, 256>}]} {
    %c0 = arith.constant 0 : index
    %c0_0 = arith.constant 0 : index
    %0 = vector.load %arg1[%c0, %c0_0] : memref<64x256xf32, #tpu.memory_space<vmem>>, vector<64x256xf32>
    %1 = arith.mulf %0, %0 : vector<64x256xf32>
    %cst = arith.constant dense<0.000000e+00> : vector<64xf32>
    %2 = vector.multi_reduction <add>, %1, %cst [1] : vector<64x256xf32> to vector<64xf32>
    %3 = vector.shape_cast %2 : vector<64xf32> to vector<64x1xf32>
    %cst_1 = arith.constant 2.560000e+02 : f32
    %4 = vector.broadcast %cst_1 : f32 to vector<64x1xf32>
    %5 = arith.divf %3, %4 : vector<64x1xf32>
    %cst_2 = arith.constant 9.99999974E-6 : f32
    %6 = vector.broadcast %cst_2 : f32 to vector<64x1xf32>
    %7 = arith.addf %5, %6 : vector<64x1xf32>
    %8 = math.rsqrt %7 : vector<64x1xf32>
    %9 = vector.broadcast %8 : vector<64x1xf32> to vector<64x256xf32>
    %10 = arith.mulf %0, %9 : vector<64x256xf32>
    %c0_3 = arith.constant 0 : index
    %c0_4 = arith.constant 0 : index
    %11 = vector.load %arg2[%c0_3, %c0_4] : memref<1x256xf32, #tpu.memory_space<vmem>>, vector<1x256xf32>
    %12 = vector.broadcast %11 : vector<1x256xf32> to vector<64x256xf32>
    %13 = arith.mulf %10, %12 : vector<64x256xf32>
    %14 = arith.truncf %13 : vector<64x256xf32> to vector<64x256xbf16>
    %c0_5 = arith.constant 0 : index
    %c0_6 = arith.constant 0 : index
    %15 = vector.load %arg3[%c0_5, %c0_6] : memref<64x256xbf16, #tpu.memory_space<vmem>>, vector<64x256xbf16>
    tpu.vector_store %arg3[%c0_5, %c0_6], %14 {strides = array<i32>} : memref<64x256xbf16, #tpu.memory_space<vmem>>, vector<64x256xbf16>,
    return
  }
  func.func @transform_0(%arg0: i32) -> (i32, i32) {
    %c0_i32 = arith.constant 0 : i32
    %c0_i32_0 = arith.constant 0 : i32
    return %arg0, %c0_i32 : i32, i32
  }
  func.func @transform_1(%arg0: i32) -> (i32, i32) {
    %c0_i32 = arith.constant 0 : i32
    %c0_i32_0 = arith.constant 0 : i32
    %c0_i32_1 = arith.constant 0 : i32
    return %c0_i32, %c0_i32_0 : i32, i32
  }
  func.func @transform_2(%arg0: i32) -> (i32, i32) {
    %c0_i32 = arith.constant 0 : i32
    %c0_i32_0 = arith.constant 0 : i32
    return %arg0, %c0_i32 : i32, i32
  }
}

module attributes {stable_mosaic.version = 11 : i64} {
  func.func @_matmul_kernel(%arg0: i32, %arg1: i32, %arg2: i32, %arg3: memref<64x256xbf16, #tpu.memory_space<vmem>>, %arg4: memref<256x512xbf16, #tpu.memory_space<vmem>>, %arg5: memref<64x512xbf16, #tpu.memory_space<vmem>>, %arg6: memref<64x512xf32, #tpu.memory_space<vmem>>) attributes {dimension_semantics = [#tpu.dimension_semantics<parallel>, #tpu.dimension_semantics<parallel>, #tpu.dimension_semantics<arbitrary>], iteration_bounds = array<i64: 1, 1, 1>, scalar_prefetch = 0 : i64, scratch_operands = 1 : i64, tpu.core_type = #tpu.core_type<tc>, window_params = [{transform_indices = @transform_0, window_bounds = array<i64: 64, 256>}, {transform_indices = @transform_1, window_bounds = array<i64: 256, 512>}, {transform_indices = @transform_2, window_bounds = array<i64: 64, 512>}]} {
    %c0_i32 = arith.constant 0 : i32
    %0 = arith.cmpi eq, %arg2, %c0_i32 : i32
    %1 = arith.extui %0 : i1 to i32
    %c0_i32_0 = arith.constant 0 : i32
    %2 = arith.cmpi ne, %1, %c0_i32_0 : i32
    scf.if %2 {
      %cst_10 = arith.constant 0.000000e+00 : f32
      %12 = vector.broadcast %cst_10 : f32 to vector<64x512xf32>
      %c0_11 = arith.constant 0 : index
      %c0_12 = arith.constant 0 : index
      %13 = vector.load %arg6[%c0_11, %c0_12] : memref<64x512xf32, #tpu.memory_space<vmem>>, vector<64x512xf32>
      tpu.vector_store %arg6[%c0_11, %c0_12], %12 {strides = array<i32>} : memref<64x512xf32, #tpu.memory_space<vmem>>, vector<64x512xf32>,
    } else {
    }
    %c0 = arith.constant 0 : index
    %c0_1 = arith.constant 0 : index
    %3 = vector.load %arg6[%c0, %c0_1] : memref<64x512xf32, #tpu.memory_space<vmem>>, vector<64x512xf32>
    %c0_2 = arith.constant 0 : index
    %c0_3 = arith.constant 0 : index
    %4 = vector.load %arg3[%c0_2, %c0_3] : memref<64x256xbf16, #tpu.memory_space<vmem>>, vector<64x256xbf16>
    %c0_4 = arith.constant 0 : index
    %c0_5 = arith.constant 0 : index
    %5 = vector.load %arg4[%c0_4, %c0_5] : memref<256x512xbf16, #tpu.memory_space<vmem>>, vector<256x512xbf16>
    %cst = arith.constant dense<0.000000e+00> : vector<64x512xf32>
    %6 = tpu.matmul %4, %5, %cst {dimension_numbers = #tpu.dot_dimension_numbers<[1], [0], [0], [1], [0, 0, 1, 1], [], []>} : vector<64x256xbf16>, vector<256x512xbf16>, vector<64x512xf32> -> vector<64x512xf32>
    %7 = arith.addf %3, %6 : vector<64x512xf32>
    %c0_6 = arith.constant 0 : index
    %c0_7 = arith.constant 0 : index
    %8 = vector.load %arg6[%c0_6, %c0_7] : memref<64x512xf32, #tpu.memory_space<vmem>>, vector<64x512xf32>
    tpu.vector_store %arg6[%c0_6, %c0_7], %7 {strides = array<i32>} : memref<64x512xf32, #tpu.memory_space<vmem>>, vector<64x512xf32>,
    %c0_i32_8 = arith.constant 0 : i32
    %9 = arith.cmpi eq, %arg2, %c0_i32_8 : i32
    %10 = arith.extui %9 : i1 to i32
    %c0_i32_9 = arith.constant 0 : i32
    %11 = arith.cmpi ne, %10, %c0_i32_9 : i32
    scf.if %11 {
      %c0_10 = arith.constant 0 : index
      %c0_11 = arith.constant 0 : index
      %12 = vector.load %arg6[%c0_10, %c0_11] : memref<64x512xf32, #tpu.memory_space<vmem>>, vector<64x512xf32>
      %13 = arith.truncf %12 : vector<64x512xf32> to vector<64x512xbf16>
      %c0_12 = arith.constant 0 : index
      %c0_13 = arith.constant 0 : index
      %14 = vector.load %arg5[%c0_12, %c0_13] : memref<64x512xbf16, #tpu.memory_space<vmem>>, vector<64x512xbf16>
      tpu.vector_store %arg5[%c0_12, %c0_13], %13 {strides = array<i32>} : memref<64x512xbf16, #tpu.memory_space<vmem>>, vector<64x512xbf16>,
    } else {
    }
    return
  }
  func.func @transform_0(%arg0: i32, %arg1: i32, %arg2: i32) -> (i32, i32) {
    %c0_i32 = arith.constant 0 : i32
    return %arg0, %arg2 : i32, i32
  }
  func.func @transform_1(%arg0: i32, %arg1: i32, %arg2: i32) -> (i32, i32) {
    %c0_i32 = arith.constant 0 : i32
    return %arg2, %arg1 : i32, i32
  }
  func.func @transform_2(%arg0: i32, %arg1: i32, %arg2: i32) -> (i32, i32) {
    %c0_i32 = arith.constant 0 : i32
    return %arg0, %arg1 : i32, i32
  }
}

module attributes {stable_mosaic.version = 11 : i64} {
  func.func @_rope_split_kernel(%arg0: i32, %arg1: i32, %arg2: memref<1x32x256xbf16, #tpu.memory_space<vmem>>, %arg3: memref<1x32x128xbf16, #tpu.memory_space<vmem>>, %arg4: memref<1x32x128xbf16, #tpu.memory_space<vmem>>, %arg5: memref<32x64xf32, #tpu.memory_space<vmem>>, %arg6: memref<32x64xf32, #tpu.memory_space<vmem>>, %arg7: memref<1x4x32x64xbf16, #tpu.memory_space<vmem>>, %arg8: memref<1x2x32x64xbf16, #tpu.memory_space<vmem>>, %arg9: memref<1x2x32x64xbf16, #tpu.memory_space<vmem>>) attributes {dimension_semantics = [#tpu.dimension_semantics<parallel>, #tpu.dimension_semantics<parallel>], iteration_bounds = array<i64: 2, 1>, scalar_prefetch = 0 : i64, scratch_operands = 0 : i64, tpu.core_type = #tpu.core_type<tc>, window_params = [{transform_indices = @transform_0, window_bounds = array<i64: 1, 32, 256>}, {transform_indices = @transform_1, window_bounds = array<i64: 1, 32, 128>}, {transform_indices = @transform_2, window_bounds = array<i64: 1, 32, 128>}, {transform_indices = @transform_3, window_bounds = array<i64: 32, 64>}, {transform_indices = @transform_4, window_bounds = array<i64: 32, 64>}, {transform_indices = @transform_5, window_bounds = array<i64: 1, 4, 32, 64>}, {transform_indices = @transform_6, window_bounds = array<i64: 1, 2, 32, 64>}, {transform_indices = @transform_7, window_bounds = array<i64: 1, 2, 32, 64>}]} {
    %c0 = arith.constant 0 : index
    %c0_0 = arith.constant 0 : index
    %0 = vector.load %arg5[%c0, %c0_0] : memref<32x64xf32, #tpu.memory_space<vmem>>, vector<32x64xf32>
    %c0_1 = arith.constant 0 : index
    %c0_2 = arith.constant 0 : index
    %1 = vector.load %arg6[%c0_1, %c0_2] : memref<32x64xf32, #tpu.memory_space<vmem>>, vector<32x64xf32>
    %c0_3 = arith.constant 0 : index
    %c0_4 = arith.constant 0 : index
    %c0_5 = arith.constant 0 : index
    %2 = vector.load %arg2[%c0_3, %c0_4, %c0_5] : memref<1x32x256xbf16, #tpu.memory_space<vmem>>, vector<1x32x64xbf16>
    %3 = vector.shape_cast %2 : vector<1x32x64xbf16> to vector<32x64xbf16>
    %4 = arith.extf %3 : vector<32x64xbf16> to vector<32x64xf32>
    %5 = tpu.iota {dimensions = array<i32: 1>} : vector<32x64xi32>
    %c2_i32 = arith.constant 2 : i32
    %c0_i32 = arith.constant 0 : i32
    %6 = arith.cmpi eq, %c2_i32, %c0_i32 : i32
    %c1_i32 = arith.constant 1 : i32
    %7 = arith.select %6, %c1_i32, %c2_i32 : i32
    %8 = vector.broadcast %7 : i32 to vector<32x64xi32>
    %9 = arith.remsi %5, %8 : vector<32x64xi32>
    %c0_i32_6 = arith.constant 0 : i32
    %10 = vector.broadcast %c0_i32_6 : i32 to vector<32x64xi32>
    %11 = arith.cmpi ne, %9, %10 : vector<32x64xi32>
    %c0_i32_7 = arith.constant 0 : i32
    %12 = vector.broadcast %c0_i32_7 : i32 to vector<32x64xi32>
    %13 = arith.cmpi slt, %9, %12 : vector<32x64xi32>
    %c0_i32_8 = arith.constant 0 : i32
    %14 = arith.cmpi slt, %7, %c0_i32_8 : i32
    %15 = vector.broadcast %14 : i1 to vector<32x64xi1>
    %16 = vector.broadcast %15 : vector<32x64xi1> to vector<32x64xi1>
    %17 = arith.xori %13, %16 : vector<32x64xi1>
    %18 = arith.andi %17, %11 : vector<32x64xi1>
    %19 = vector.broadcast %7 : i32 to vector<32x64xi32>
    %20 = arith.addi %9, %19 : vector<32x64xi32>
    %21 = arith.select %18, %20, %9 : vector<32x64xi1>, vector<32x64xi32>
    %c0_i32_9 = arith.constant 0 : i32
    %22 = vector.broadcast %c0_i32_9 : i32 to vector<32x64xi32>
    %23 = arith.cmpi eq, %21, %22 : vector<32x64xi32>
    %c63_i32 = arith.constant 63 : i32
    %24 = tpu.dynamic_rotate %4 by %c63_i32 dim 1 : vector<32x64xf32>, i32 -> vector<32x64xf32>
    %c1_i32_10 = arith.constant 1 : i32
    %25 = tpu.dynamic_rotate %4 by %c1_i32_10 dim 1 : vector<32x64xf32>, i32 -> vector<32x64xf32>
    %26 = arith.select %23, %24, %25 : vector<32x64xi1>, vector<32x64xf32>
    %cst = arith.constant 0.000000e+00 : f32
    %27 = vector.broadcast %cst : f32 to vector<32x64xf32>
    %28 = arith.subf %27, %26 : vector<32x64xf32>
    %29 = arith.select %23, %28, %26 : vector<32x64xi1>, vector<32x64xf32>
    %30 = arith.mulf %4, %0 : vector<32x64xf32>
    %31 = arith.mulf %29, %1 : vector<32x64xf32>
    %32 = arith.addf %30, %31 : vector<32x64xf32>
    %cst_11 = arith.constant 1.250000e-01 : f32
    %33 = vector.broadcast %cst_11 : f32 to vector<32x64xf32>
    %34 = arith.mulf %32, %33 : vector<32x64xf32>
    %35 = arith.truncf %34 : vector<32x64xf32> to vector<32x64xbf16>
    %c0_12 = arith.constant 0 : index
    %c0_13 = arith.constant 0 : index
    %c0_14 = arith.constant 0 : index
    %c0_15 = arith.constant 0 : index
    %36 = vector.load %arg7[%c0_12, %c0_13, %c0_14, %c0_15] : memref<1x4x32x64xbf16, #tpu.memory_space<vmem>>, vector<1x1x32x64xbf16>
    %37 = vector.shape_cast %36 : vector<1x1x32x64xbf16> to vector<32x64xbf16>
    %38 = vector.shape_cast %35 : vector<32x64xbf16> to vector<1x1x32x64xbf16>
    tpu.vector_store %arg7[%c0_12, %c0_13, %c0_14, %c0_15], %38 {strides = array<i32>} : memref<1x4x32x64xbf16, #tpu.memory_space<vmem>>, vector<1x1x32x64xbf16>,
    %c0_16 = arith.constant 0 : index
    %c0_17 = arith.constant 0 : index
    %c64 = arith.constant 64 : index
    %39 = vector.load %arg2[%c0_16, %c0_17, %c64] : memref<1x32x256xbf16, #tpu.memory_space<vmem>>, vector<1x32x64xbf16>
    %40 = vector.shape_cast %39 : vector<1x32x64xbf16> to vector<32x64xbf16>
    %41 = arith.extf %40 : vector<32x64xbf16> to vector<32x64xf32>
    %42 = tpu.iota {dimensions = array<i32: 1>} : vector<32x64xi32>
    %c2_i32_18 = arith.constant 2 : i32
    %c0_i32_19 = arith.constant 0 : i32
    %43 = arith.cmpi eq, %c2_i32_18, %c0_i32_19 : i32
    %c1_i32_20 = arith.constant 1 : i32
    %44 = arith.select %43, %c1_i32_20, %c2_i32_18 : i32
    %45 = vector.broadcast %44 : i32 to vector<32x64xi32>
    %46 = arith.remsi %42, %45 : vector<32x64xi32>
    %c0_i32_21 = arith.constant 0 : i32
    %47 = vector.broadcast %c0_i32_21 : i32 to vector<32x64xi32>
    %48 = arith.cmpi ne, %46, %47 : vector<32x64xi32>
    %c0_i32_22 = arith.constant 0 : i32
    %49 = vector.broadcast %c0_i32_22 : i32 to vector<32x64xi32>
    %50 = arith.cmpi slt, %46, %49 : vector<32x64xi32>
    %c0_i32_23 = arith.constant 0 : i32
    %51 = arith.cmpi slt, %44, %c0_i32_23 : i32
    %52 = vector.broadcast %51 : i1 to vector<32x64xi1>
    %53 = vector.broadcast %52 : vector<32x64xi1> to vector<32x64xi1>
    %54 = arith.xori %50, %53 : vector<32x64xi1>
    %55 = arith.andi %54, %48 : vector<32x64xi1>
    %56 = vector.broadcast %44 : i32 to vector<32x64xi32>
    %57 = arith.addi %46, %56 : vector<32x64xi32>
    %58 = arith.select %55, %57, %46 : vector<32x64xi1>, vector<32x64xi32>
    %c0_i32_24 = arith.constant 0 : i32
    %59 = vector.broadcast %c0_i32_24 : i32 to vector<32x64xi32>
    %60 = arith.cmpi eq, %58, %59 : vector<32x64xi32>
    %c63_i32_25 = arith.constant 63 : i32
    %61 = tpu.dynamic_rotate %41 by %c63_i32_25 dim 1 : vector<32x64xf32>, i32 -> vector<32x64xf32>
    %c1_i32_26 = arith.constant 1 : i32
    %62 = tpu.dynamic_rotate %41 by %c1_i32_26 dim 1 : vector<32x64xf32>, i32 -> vector<32x64xf32>
    %63 = arith.select %60, %61, %62 : vector<32x64xi1>, vector<32x64xf32>
    %cst_27 = arith.constant 0.000000e+00 : f32
    %64 = vector.broadcast %cst_27 : f32 to vector<32x64xf32>
    %65 = arith.subf %64, %63 : vector<32x64xf32>
    %66 = arith.select %60, %65, %63 : vector<32x64xi1>, vector<32x64xf32>
    %67 = arith.mulf %41, %0 : vector<32x64xf32>
    %68 = arith.mulf %66, %1 : vector<32x64xf32>
    %69 = arith.addf %67, %68 : vector<32x64xf32>
    %cst_28 = arith.constant 1.250000e-01 : f32
    %70 = vector.broadcast %cst_28 : f32 to vector<32x64xf32>
    %71 = arith.mulf %69, %70 : vector<32x64xf32>
    %72 = arith.truncf %71 : vector<32x64xf32> to vector<32x64xbf16>
    %c0_29 = arith.constant 0 : index
    %c1 = arith.constant 1 : index
    %c0_30 = arith.constant 0 : index
    %c0_31 = arith.constant 0 : index
    %73 = vector.load %arg7[%c0_29, %c1, %c0_30, %c0_31] : memref<1x4x32x64xbf16, #tpu.memory_space<vmem>>, vector<1x1x32x64xbf16>
    %74 = vector.shape_cast %73 : vector<1x1x32x64xbf16> to vector<32x64xbf16>
    %75 = vector.shape_cast %72 : vector<32x64xbf16> to vector<1x1x32x64xbf16>
    tpu.vector_store %arg7[%c0_29, %c1, %c0_30, %c0_31], %75 {strides = array<i32>} : memref<1x4x32x64xbf16, #tpu.memory_space<vmem>>, vector<1x1x32x64xbf16>,
    %c0_32 = arith.constant 0 : index
    %c0_33 = arith.constant 0 : index
    %c128 = arith.constant 128 : index
    %76 = vector.load %arg2[%c0_32, %c0_33, %c128] : memref<1x32x256xbf16, #tpu.memory_space<vmem>>, vector<1x32x64xbf16>
    %77 = vector.shape_cast %76 : vector<1x32x64xbf16> to vector<32x64xbf16>
    %78 = arith.extf %77 : vector<32x64xbf16> to vector<32x64xf32>
    %79 = tpu.iota {dimensions = array<i32: 1>} : vector<32x64xi32>
    %c2_i32_34 = arith.constant 2 : i32
    %c0_i32_35 = arith.constant 0 : i32
    %80 = arith.cmpi eq, %c2_i32_34, %c0_i32_35 : i32
    %c1_i32_36 = arith.constant 1 : i32
    %81 = arith.select %80, %c1_i32_36, %c2_i32_34 : i32
    %82 = vector.broadcast %81 : i32 to vector<32x64xi32>
    %83 = arith.remsi %79, %82 : vector<32x64xi32>
    %c0_i32_37 = arith.constant 0 : i32
    %84 = vector.broadcast %c0_i32_37 : i32 to vector<32x64xi32>
    %85 = arith.cmpi ne, %83, %84 : vector<32x64xi32>
    %c0_i32_38 = arith.constant 0 : i32
    %86 = vector.broadcast %c0_i32_38 : i32 to vector<32x64xi32>
    %87 = arith.cmpi slt, %83, %86 : vector<32x64xi32>
    %c0_i32_39 = arith.constant 0 : i32
    %88 = arith.cmpi slt, %81, %c0_i32_39 : i32
    %89 = vector.broadcast %88 : i1 to vector<32x64xi1>
    %90 = vector.broadcast %89 : vector<32x64xi1> to vector<32x64xi1>
    %91 = arith.xori %87, %90 : vector<32x64xi1>
    %92 = arith.andi %91, %85 : vector<32x64xi1>
    %93 = vector.broadcast %81 : i32 to vector<32x64xi32>
    %94 = arith.addi %83, %93 : vector<32x64xi32>
    %95 = arith.select %92, %94, %83 : vector<32x64xi1>, vector<32x64xi32>
    %c0_i32_40 = arith.constant 0 : i32
    %96 = vector.broadcast %c0_i32_40 : i32 to vector<32x64xi32>
    %97 = arith.cmpi eq, %95, %96 : vector<32x64xi32>
    %c63_i32_41 = arith.constant 63 : i32
    %98 = tpu.dynamic_rotate %78 by %c63_i32_41 dim 1 : vector<32x64xf32>, i32 -> vector<32x64xf32>
    %c1_i32_42 = arith.constant 1 : i32
    %99 = tpu.dynamic_rotate %78 by %c1_i32_42 dim 1 : vector<32x64xf32>, i32 -> vector<32x64xf32>
    %100 = arith.select %97, %98, %99 : vector<32x64xi1>, vector<32x64xf32>
    %cst_43 = arith.constant 0.000000e+00 : f32
    %101 = vector.broadcast %cst_43 : f32 to vector<32x64xf32>
    %102 = arith.subf %101, %100 : vector<32x64xf32>
    %103 = arith.select %97, %102, %100 : vector<32x64xi1>, vector<32x64xf32>
    %104 = arith.mulf %78, %0 : vector<32x64xf32>
    %105 = arith.mulf %103, %1 : vector<32x64xf32>
    %106 = arith.addf %104, %105 : vector<32x64xf32>
    %cst_44 = arith.constant 1.250000e-01 : f32
    %107 = vector.broadcast %cst_44 : f32 to vector<32x64xf32>
    %108 = arith.mulf %106, %107 : vector<32x64xf32>
    %109 = arith.truncf %108 : vector<32x64xf32> to vector<32x64xbf16>
    %c0_45 = arith.constant 0 : index
    %c2 = arith.constant 2 : index
    %c0_46 = arith.constant 0 : index
    %c0_47 = arith.constant 0 : index
    %110 = vector.load %arg7[%c0_45, %c2, %c0_46, %c0_47] : memref<1x4x32x64xbf16, #tpu.memory_space<vmem>>, vector<1x1x32x64xbf16>
    %111 = vector.shape_cast %110 : vector<1x1x32x64xbf16> to vector<32x64xbf16>
    %112 = vector.shape_cast %109 : vector<32x64xbf16> to vector<1x1x32x64xbf16>
    tpu.vector_store %arg7[%c0_45, %c2, %c0_46, %c0_47], %112 {strides = array<i32>} : memref<1x4x32x64xbf16, #tpu.memory_space<vmem>>, vector<1x1x32x64xbf16>,
    %c0_48 = arith.constant 0 : index
    %c0_49 = arith.constant 0 : index
    %c192 = arith.constant 192 : index
    %113 = vector.load %arg2[%c0_48, %c0_49, %c192] : memref<1x32x256xbf16, #tpu.memory_space<vmem>>, vector<1x32x64xbf16>
    %114 = vector.shape_cast %113 : vector<1x32x64xbf16> to vector<32x64xbf16>
    %115 = arith.extf %114 : vector<32x64xbf16> to vector<32x64xf32>
    %116 = tpu.iota {dimensions = array<i32: 1>} : vector<32x64xi32>
    %c2_i32_50 = arith.constant 2 : i32
    %c0_i32_51 = arith.constant 0 : i32
    %117 = arith.cmpi eq, %c2_i32_50, %c0_i32_51 : i32
    %c1_i32_52 = arith.constant 1 : i32
    %118 = arith.select %117, %c1_i32_52, %c2_i32_50 : i32
    %119 = vector.broadcast %118 : i32 to vector<32x64xi32>
    %120 = arith.remsi %116, %119 : vector<32x64xi32>
    %c0_i32_53 = arith.constant 0 : i32
    %121 = vector.broadcast %c0_i32_53 : i32 to vector<32x64xi32>
    %122 = arith.cmpi ne, %120, %121 : vector<32x64xi32>
    %c0_i32_54 = arith.constant 0 : i32
    %123 = vector.broadcast %c0_i32_54 : i32 to vector<32x64xi32>
    %124 = arith.cmpi slt, %120, %123 : vector<32x64xi32>
    %c0_i32_55 = arith.constant 0 : i32
    %125 = arith.cmpi slt, %118, %c0_i32_55 : i32
    %126 = vector.broadcast %125 : i1 to vector<32x64xi1>
    %127 = vector.broadcast %126 : vector<32x64xi1> to vector<32x64xi1>
    %128 = arith.xori %124, %127 : vector<32x64xi1>
    %129 = arith.andi %128, %122 : vector<32x64xi1>
    %130 = vector.broadcast %118 : i32 to vector<32x64xi32>
    %131 = arith.addi %120, %130 : vector<32x64xi32>
    %132 = arith.select %129, %131, %120 : vector<32x64xi1>, vector<32x64xi32>
    %c0_i32_56 = arith.constant 0 : i32
    %133 = vector.broadcast %c0_i32_56 : i32 to vector<32x64xi32>
    %134 = arith.cmpi eq, %132, %133 : vector<32x64xi32>
    %c63_i32_57 = arith.constant 63 : i32
    %135 = tpu.dynamic_rotate %115 by %c63_i32_57 dim 1 : vector<32x64xf32>, i32 -> vector<32x64xf32>
    %c1_i32_58 = arith.constant 1 : i32
    %136 = tpu.dynamic_rotate %115 by %c1_i32_58 dim 1 : vector<32x64xf32>, i32 -> vector<32x64xf32>
    %137 = arith.select %134, %135, %136 : vector<32x64xi1>, vector<32x64xf32>
    %cst_59 = arith.constant 0.000000e+00 : f32
    %138 = vector.broadcast %cst_59 : f32 to vector<32x64xf32>
    %139 = arith.subf %138, %137 : vector<32x64xf32>
    %140 = arith.select %134, %139, %137 : vector<32x64xi1>, vector<32x64xf32>
    %141 = arith.mulf %115, %0 : vector<32x64xf32>
    %142 = arith.mulf %140, %1 : vector<32x64xf32>
    %143 = arith.addf %141, %142 : vector<32x64xf32>
    %cst_60 = arith.constant 1.250000e-01 : f32
    %144 = vector.broadcast %cst_60 : f32 to vector<32x64xf32>
    %145 = arith.mulf %143, %144 : vector<32x64xf32>
    %146 = arith.truncf %145 : vector<32x64xf32> to vector<32x64xbf16>
    %c0_61 = arith.constant 0 : index
    %c3 = arith.constant 3 : index
    %c0_62 = arith.constant 0 : index
    %c0_63 = arith.constant 0 : index
    %147 = vector.load %arg7[%c0_61, %c3, %c0_62, %c0_63] : memref<1x4x32x64xbf16, #tpu.memory_space<vmem>>, vector<1x1x32x64xbf16>
    %148 = vector.shape_cast %147 : vector<1x1x32x64xbf16> to vector<32x64xbf16>
    %149 = vector.shape_cast %146 : vector<32x64xbf16> to vector<1x1x32x64xbf16>
    tpu.vector_store %arg7[%c0_61, %c3, %c0_62, %c0_63], %149 {strides = array<i32>} : memref<1x4x32x64xbf16, #tpu.memory_space<vmem>>, vector<1x1x32x64xbf16>,
    %c0_64 = arith.constant 0 : index
    %c0_65 = arith.constant 0 : index
    %c0_66 = arith.constant 0 : index
    %150 = vector.load %arg3[%c0_64, %c0_65, %c0_66] : memref<1x32x128xbf16, #tpu.memory_space<vmem>>, vector<1x32x64xbf16>
    %151 = vector.shape_cast %150 : vector<1x32x64xbf16> to vector<32x64xbf16>
    %152 = arith.extf %151 : vector<32x64xbf16> to vector<32x64xf32>
    %153 = tpu.iota {dimensions = array<i32: 1>} : vector<32x64xi32>
    %c2_i32_67 = arith.constant 2 : i32
    %c0_i32_68 = arith.constant 0 : i32
    %154 = arith.cmpi eq, %c2_i32_67, %c0_i32_68 : i32
    %c1_i32_69 = arith.constant 1 : i32
    %155 = arith.select %154, %c1_i32_69, %c2_i32_67 : i32
    %156 = vector.broadcast %155 : i32 to vector<32x64xi32>
    %157 = arith.remsi %153, %156 : vector<32x64xi32>
    %c0_i32_70 = arith.constant 0 : i32
    %158 = vector.broadcast %c0_i32_70 : i32 to vector<32x64xi32>
    %159 = arith.cmpi ne, %157, %158 : vector<32x64xi32>
    %c0_i32_71 = arith.constant 0 : i32
    %160 = vector.broadcast %c0_i32_71 : i32 to vector<32x64xi32>
    %161 = arith.cmpi slt, %157, %160 : vector<32x64xi32>
    %c0_i32_72 = arith.constant 0 : i32
    %162 = arith.cmpi slt, %155, %c0_i32_72 : i32
    %163 = vector.broadcast %162 : i1 to vector<32x64xi1>
    %164 = vector.broadcast %163 : vector<32x64xi1> to vector<32x64xi1>
    %165 = arith.xori %161, %164 : vector<32x64xi1>
    %166 = arith.andi %165, %159 : vector<32x64xi1>
    %167 = vector.broadcast %155 : i32 to vector<32x64xi32>
    %168 = arith.addi %157, %167 : vector<32x64xi32>
    %169 = arith.select %166, %168, %157 : vector<32x64xi1>, vector<32x64xi32>
    %c0_i32_73 = arith.constant 0 : i32
    %170 = vector.broadcast %c0_i32_73 : i32 to vector<32x64xi32>
    %171 = arith.cmpi eq, %169, %170 : vector<32x64xi32>
    %c63_i32_74 = arith.constant 63 : i32
    %172 = tpu.dynamic_rotate %152 by %c63_i32_74 dim 1 : vector<32x64xf32>, i32 -> vector<32x64xf32>
    %c1_i32_75 = arith.constant 1 : i32
    %173 = tpu.dynamic_rotate %152 by %c1_i32_75 dim 1 : vector<32x64xf32>, i32 -> vector<32x64xf32>
    %174 = arith.select %171, %172, %173 : vector<32x64xi1>, vector<32x64xf32>
    %cst_76 = arith.constant 0.000000e+00 : f32
    %175 = vector.broadcast %cst_76 : f32 to vector<32x64xf32>
    %176 = arith.subf %175, %174 : vector<32x64xf32>
    %177 = arith.select %171, %176, %174 : vector<32x64xi1>, vector<32x64xf32>
    %178 = arith.mulf %152, %0 : vector<32x64xf32>
    %179 = arith.mulf %177, %1 : vector<32x64xf32>
    %180 = arith.addf %178, %179 : vector<32x64xf32>
    %181 = arith.truncf %180 : vector<32x64xf32> to vector<32x64xbf16>
    %c0_77 = arith.constant 0 : index
    %c0_78 = arith.constant 0 : index
    %c0_79 = arith.constant 0 : index
    %c0_80 = arith.constant 0 : index
    %182 = vector.load %arg8[%c0_77, %c0_78, %c0_79, %c0_80] : memref<1x2x32x64xbf16, #tpu.memory_space<vmem>>, vector<1x1x32x64xbf16>
    %183 = vector.shape_cast %182 : vector<1x1x32x64xbf16> to vector<32x64xbf16>
    %184 = vector.shape_cast %181 : vector<32x64xbf16> to vector<1x1x32x64xbf16>
    tpu.vector_store %arg8[%c0_77, %c0_78, %c0_79, %c0_80], %184 {strides = array<i32>} : memref<1x2x32x64xbf16, #tpu.memory_space<vmem>>, vector<1x1x32x64xbf16>,
    %c0_81 = arith.constant 0 : index
    %c0_82 = arith.constant 0 : index
    %c0_83 = arith.constant 0 : index
    %185 = vector.load %arg4[%c0_81, %c0_82, %c0_83] : memref<1x32x128xbf16, #tpu.memory_space<vmem>>, vector<1x32x64xbf16>
    %186 = vector.shape_cast %185 : vector<1x32x64xbf16> to vector<32x64xbf16>
    %c0_84 = arith.constant 0 : index
    %c0_85 = arith.constant 0 : index
    %c0_86 = arith.constant 0 : index
    %c0_87 = arith.constant 0 : index
    %187 = vector.load %arg9[%c0_84, %c0_85, %c0_86, %c0_87] : memref<1x2x32x64xbf16, #tpu.memory_space<vmem>>, vector<1x1x32x64xbf16>
    %188 = vector.shape_cast %187 : vector<1x1x32x64xbf16> to vector<32x64xbf16>
    %189 = vector.shape_cast %186 : vector<32x64xbf16> to vector<1x1x32x64xbf16>
    tpu.vector_store %arg9[%c0_84, %c0_85, %c0_86, %c0_87], %189 {strides = array<i32>} : memref<1x2x32x64xbf16, #tpu.memory_space<vmem>>, vector<1x1x32x64xbf16>,
    %c0_88 = arith.constant 0 : index
    %c0_89 = arith.constant 0 : index
    %c64_90 = arith.constant 64 : index
    %190 = vector.load %arg3[%c0_88, %c0_89, %c64_90] : memref<1x32x128xbf16, #tpu.memory_space<vmem>>, vector<1x32x64xbf16>
    %191 = vector.shape_cast %190 : vector<1x32x64xbf16> to vector<32x64xbf16>
    %192 = arith.extf %191 : vector<32x64xbf16> to vector<32x64xf32>
    %193 = tpu.iota {dimensions = array<i32: 1>} : vector<32x64xi32>
    %c2_i32_91 = arith.constant 2 : i32
    %c0_i32_92 = arith.constant 0 : i32
    %194 = arith.cmpi eq, %c2_i32_91, %c0_i32_92 : i32
    %c1_i32_93 = arith.constant 1 : i32
    %195 = arith.select %194, %c1_i32_93, %c2_i32_91 : i32
    %196 = vector.broadcast %195 : i32 to vector<32x64xi32>
    %197 = arith.remsi %193, %196 : vector<32x64xi32>
    %c0_i32_94 = arith.constant 0 : i32
    %198 = vector.broadcast %c0_i32_94 : i32 to vector<32x64xi32>
    %199 = arith.cmpi ne, %197, %198 : vector<32x64xi32>
    %c0_i32_95 = arith.constant 0 : i32
    %200 = vector.broadcast %c0_i32_95 : i32 to vector<32x64xi32>
    %201 = arith.cmpi slt, %197, %200 : vector<32x64xi32>
    %c0_i32_96 = arith.constant 0 : i32
    %202 = arith.cmpi slt, %195, %c0_i32_96 : i32
    %203 = vector.broadcast %202 : i1 to vector<32x64xi1>
    %204 = vector.broadcast %203 : vector<32x64xi1> to vector<32x64xi1>
    %205 = arith.xori %201, %204 : vector<32x64xi1>
    %206 = arith.andi %205, %199 : vector<32x64xi1>
    %207 = vector.broadcast %195 : i32 to vector<32x64xi32>
    %208 = arith.addi %197, %207 : vector<32x64xi32>
    %209 = arith.select %206, %208, %197 : vector<32x64xi1>, vector<32x64xi32>
    %c0_i32_97 = arith.constant 0 : i32
    %210 = vector.broadcast %c0_i32_97 : i32 to vector<32x64xi32>
    %211 = arith.cmpi eq, %209, %210 : vector<32x64xi32>
    %c63_i32_98 = arith.constant 63 : i32
    %212 = tpu.dynamic_rotate %192 by %c63_i32_98 dim 1 : vector<32x64xf32>, i32 -> vector<32x64xf32>
    %c1_i32_99 = arith.constant 1 : i32
    %213 = tpu.dynamic_rotate %192 by %c1_i32_99 dim 1 : vector<32x64xf32>, i32 -> vector<32x64xf32>
    %214 = arith.select %211, %212, %213 : vector<32x64xi1>, vector<32x64xf32>
    %cst_100 = arith.constant 0.000000e+00 : f32
    %215 = vector.broadcast %cst_100 : f32 to vector<32x64xf32>
    %216 = arith.subf %215, %214 : vector<32x64xf32>
    %217 = arith.select %211, %216, %214 : vector<32x64xi1>, vector<32x64xf32>
    %218 = arith.mulf %192, %0 : vector<32x64xf32>
    %219 = arith.mulf %217, %1 : vector<32x64xf32>
    %220 = arith.addf %218, %219 : vector<32x64xf32>
    %221 = arith.truncf %220 : vector<32x64xf32> to vector<32x64xbf16>
    %c0_101 = arith.constant 0 : index
    %c1_102 = arith.constant 1 : index
    %c0_103 = arith.constant 0 : index
    %c0_104 = arith.constant 0 : index
    %222 = vector.load %arg8[%c0_101, %c1_102, %c0_103, %c0_104] : memref<1x2x32x64xbf16, #tpu.memory_space<vmem>>, vector<1x1x32x64xbf16>
    %223 = vector.shape_cast %222 : vector<1x1x32x64xbf16> to vector<32x64xbf16>
    %224 = vector.shape_cast %221 : vector<32x64xbf16> to vector<1x1x32x64xbf16>
    tpu.vector_store %arg8[%c0_101, %c1_102, %c0_103, %c0_104], %224 {strides = array<i32>} : memref<1x2x32x64xbf16, #tpu.memory_space<vmem>>, vector<1x1x32x64xbf16>,
    %c0_105 = arith.constant 0 : index
    %c0_106 = arith.constant 0 : index
    %c64_107 = arith.constant 64 : index
    %225 = vector.load %arg4[%c0_105, %c0_106, %c64_107] : memref<1x32x128xbf16, #tpu.memory_space<vmem>>, vector<1x32x64xbf16>
    %226 = vector.shape_cast %225 : vector<1x32x64xbf16> to vector<32x64xbf16>
    %c0_108 = arith.constant 0 : index
    %c1_109 = arith.constant 1 : index
    %c0_110 = arith.constant 0 : index
    %c0_111 = arith.constant 0 : index
    %227 = vector.load %arg9[%c0_108, %c1_109, %c0_110, %c0_111] : memref<1x2x32x64xbf16, #tpu.memory_space<vmem>>, vector<1x1x32x64xbf16>
    %228 = vector.shape_cast %227 : vector<1x1x32x64xbf16> to vector<32x64xbf16>
    %229 = vector.shape_cast %226 : vector<32x64xbf16> to vector<1x1x32x64xbf16>
    tpu.vector_store %arg9[%c0_108, %c1_109, %c0_110, %c0_111], %229 {strides = array<i32>} : memref<1x2x32x64xbf16, #tpu.memory_space<vmem>>, vector<1x1x32x64xbf16>,
    return
  }
  func.func @transform_0(%arg0: i32, %arg1: i32) -> (i32, i32, i32) {
    %c0_i32 = arith.constant 0 : i32
    %c0_i32_0 = arith.constant 0 : i32
    return %arg0, %arg1, %c0_i32 : i32, i32, i32
  }
  func.func @transform_1(%arg0: i32, %arg1: i32) -> (i32, i32, i32) {
    %c2_i32 = arith.constant 2 : i32
    %c0_i32 = arith.constant 0 : i32
    return %arg0, %arg1, %c2_i32 : i32, i32, i32
  }
  func.func @transform_2(%arg0: i32, %arg1: i32) -> (i32, i32, i32) {
    %c3_i32 = arith.constant 3 : i32
    %c0_i32 = arith.constant 0 : i32
    return %arg0, %arg1, %c3_i32 : i32, i32, i32
  }
  func.func @transform_3(%arg0: i32, %arg1: i32) -> (i32, i32) {
    %c0_i32 = arith.constant 0 : i32
    %c0_i32_0 = arith.constant 0 : i32
    return %arg1, %c0_i32 : i32, i32
  }
  func.func @transform_4(%arg0: i32, %arg1: i32) -> (i32, i32) {
    %c0_i32 = arith.constant 0 : i32
    %c0_i32_0 = arith.constant 0 : i32
    return %arg1, %c0_i32 : i32, i32
  }
  func.func @transform_5(%arg0: i32, %arg1: i32) -> (i32, i32, i32, i32) {
    %c0_i32 = arith.constant 0 : i32
    %c0_i32_0 = arith.constant 0 : i32
    %c0_i32_1 = arith.constant 0 : i32
    return %arg0, %c0_i32, %arg1, %c0_i32_0 : i32, i32, i32, i32
  }
  func.func @transform_6(%arg0: i32, %arg1: i32) -> (i32, i32, i32, i32) {
    %c0_i32 = arith.constant 0 : i32
    %c0_i32_0 = arith.constant 0 : i32
    %c0_i32_1 = arith.constant 0 : i32
    return %arg0, %c0_i32, %arg1, %c0_i32_0 : i32, i32, i32, i32
  }
  func.func @transform_7(%arg0: i32, %arg1: i32) -> (i32, i32, i32, i32) {
    %c0_i32 = arith.constant 0 : i32
    %c0_i32_0 = arith.constant 0 : i32
    %c0_i32_1 = arith.constant 0 : i32
    return %arg0, %c0_i32, %arg1, %c0_i32_0 : i32, i32, i32, i32
  }
}

module attributes {stable_mosaic.version = 11 : i64} {
  func.func @_flash_attn_kernel(%arg0: i32, %arg1: i32, %arg2: i32, %arg3: i32, %arg4: memref<1x2x16x64xbf16, #tpu.memory_space<vmem>>, %arg5: memref<1x1x16x64xbf16, #tpu.memory_space<vmem>>, %arg6: memref<1x1x16x64xbf16, #tpu.memory_space<vmem>>, %arg7: memref<1x16x128xbf16, #tpu.memory_space<vmem>>, %arg8: memref<32x1xf32, #tpu.memory_space<vmem>>, %arg9: memref<32x1xf32, #tpu.memory_space<vmem>>, %arg10: memref<32x64xf32, #tpu.memory_space<vmem>>) attributes {dimension_semantics = [#tpu.dimension_semantics<parallel>, #tpu.dimension_semantics<parallel>, #tpu.dimension_semantics<parallel>, #tpu.dimension_semantics<arbitrary>], iteration_bounds = array<i64: 2, 2, 2, 2>, scalar_prefetch = 0 : i64, scratch_operands = 3 : i64, tpu.core_type = #tpu.core_type<tc>, window_params = [{transform_indices = @transform_0, window_bounds = array<i64: 1, 2, 16, 64>}, {transform_indices = @transform_1, window_bounds = array<i64: 1, 1, 16, 64>}, {transform_indices = @transform_2, window_bounds = array<i64: 1, 1, 16, 64>}, {transform_indices = @transform_3, window_bounds = array<i64: 1, 16, 128>}]} {
    %c0_i32 = arith.constant 0 : i32
    %0 = arith.cmpi eq, %arg3, %c0_i32 : i32
    %1 = arith.extui %0 : i1 to i32
    %c0_i32_0 = arith.constant 0 : i32
    %2 = arith.cmpi ne, %1, %c0_i32_0 : i32
    scf.if %2 {
      %cst = arith.constant -1.000000e+30 : f32
      %14 = vector.broadcast %cst : f32 to vector<32x1xf32>
      %c0 = arith.constant 0 : index
      %c0_7 = arith.constant 0 : index
      %15 = vector.load %arg8[%c0, %c0_7] : memref<32x1xf32, #tpu.memory_space<vmem>>, vector<32x1xf32>
      tpu.vector_store %arg8[%c0, %c0_7], %14 {strides = array<i32>} : memref<32x1xf32, #tpu.memory_space<vmem>>, vector<32x1xf32>,
      %cst_8 = arith.constant 0.000000e+00 : f32
      %16 = vector.broadcast %cst_8 : f32 to vector<32x1xf32>
      %c0_9 = arith.constant 0 : index
      %c0_10 = arith.constant 0 : index
      %17 = vector.load %arg9[%c0_9, %c0_10] : memref<32x1xf32, #tpu.memory_space<vmem>>, vector<32x1xf32>
      tpu.vector_store %arg9[%c0_9, %c0_10], %16 {strides = array<i32>} : memref<32x1xf32, #tpu.memory_space<vmem>>, vector<32x1xf32>,
      %cst_11 = arith.constant 0.000000e+00 : f32
      %18 = vector.broadcast %cst_11 : f32 to vector<32x64xf32>
      %c0_12 = arith.constant 0 : index
      %c0_13 = arith.constant 0 : index
      %19 = vector.load %arg10[%c0_12, %c0_13] : memref<32x64xf32, #tpu.memory_space<vmem>>, vector<32x64xf32>
      tpu.vector_store %arg10[%c0_12, %c0_13], %18 {strides = array<i32>} : memref<32x64xf32, #tpu.memory_space<vmem>>, vector<32x64xf32>,
    } else {
    }
    %c16_i32 = arith.constant 16 : i32
    %3 = arith.muli %arg3, %c16_i32 : i32
    %c1_i32 = arith.constant 1 : i32
    %4 = arith.addi %arg2, %c1_i32 : i32
    %c16_i32_1 = arith.constant 16 : i32
    %5 = arith.muli %4, %c16_i32_1 : i32
    %c0_i32_2 = arith.constant 0 : i32
    %6 = arith.addi %c0_i32_2, %5 : i32
    %c1_i32_3 = arith.constant 1 : i32
    %7 = arith.subi %6, %c1_i32_3 : i32
    %8 = arith.cmpi sle, %3, %7 : i32
    %9 = arith.extui %8 : i1 to i32
    %c0_i32_4 = arith.constant 0 : i32
    %10 = arith.cmpi ne, %9, %c0_i32_4 : i32
    scf.if %10 {
      %c0 = arith.constant 0 : index
      %c0_7 = arith.constant 0 : index
      %c0_8 = arith.constant 0 : index
      %c0_9 = arith.constant 0 : index
      %14 = vector.load %arg4[%c0, %c0_7, %c0_8, %c0_9] : memref<1x2x16x64xbf16, #tpu.memory_space<vmem>>, vector<1x2x16x64xbf16>
      %15 = vector.shape_cast %14 : vector<1x2x16x64xbf16> to vector<32x64xbf16>
      %c0_10 = arith.constant 0 : index
      %c0_11 = arith.constant 0 : index
      %c0_12 = arith.constant 0 : index
      %c0_13 = arith.constant 0 : index
      %16 = vector.load %arg5[%c0_10, %c0_11, %c0_12, %c0_13] : memref<1x1x16x64xbf16, #tpu.memory_space<vmem>>, vector<1x1x16x64xbf16>
      %17 = vector.shape_cast %16 : vector<1x1x16x64xbf16> to vector<16x64xbf16>
      %c0_14 = arith.constant 0 : index
      %c0_15 = arith.constant 0 : index
      %c0_16 = arith.constant 0 : index
      %c0_17 = arith.constant 0 : index
      %18 = vector.load %arg6[%c0_14, %c0_15, %c0_16, %c0_17] : memref<1x1x16x64xbf16, #tpu.memory_space<vmem>>, vector<1x1x16x64xbf16>
      %19 = vector.shape_cast %18 : vector<1x1x16x64xbf16> to vector<16x64xbf16>
      %cst = arith.constant dense<0.000000e+00> : vector<32x16xf32>
      %20 = tpu.matmul %15, %17, %cst {dimension_numbers = #tpu.dot_dimension_numbers<[1], [1], [0], [0], [0, 0, 1, 0], [], []>} : vector<32x64xbf16>, vector<16x64xbf16>, vector<32x16xf32> -> vector<32x16xf32>
      %21 = tpu.iota {dimensions = array<i32: 1>} : vector<2x16x16xi32>
      %22 = vector.shape_cast %21 : vector<2x16x16xi32> to vector<32x16xi32>
      %23 = tpu.iota {dimensions = array<i32: 1>} : vector<32x16xi32>
      %c16_i32_18 = arith.constant 16 : i32
      %24 = arith.muli %arg2, %c16_i32_18 : i32
      %c0_i32_19 = arith.constant 0 : i32
      %25 = arith.addi %c0_i32_19, %24 : i32
      %26 = vector.broadcast %25 : i32 to vector<32x16xi32>
      %27 = arith.addi %26, %22 : vector<32x16xi32>
      %c16_i32_20 = arith.constant 16 : i32
      %28 = arith.muli %arg3, %c16_i32_20 : i32
      %29 = vector.broadcast %28 : i32 to vector<32x16xi32>
      %30 = arith.addi %29, %23 : vector<32x16xi32>
      %31 = arith.cmpi sle, %30, %27 : vector<32x16xi32>
      %cst_21 = arith.constant -1.000000e+30 : f32
      %32 = vector.broadcast %cst_21 : f32 to vector<32x16xf32>
      %33 = arith.select %31, %20, %32 : vector<32x16xi1>, vector<32x16xf32>
      %c0_22 = arith.constant 0 : index
      %c0_23 = arith.constant 0 : index
      %34 = vector.load %arg8[%c0_22, %c0_23] : memref<32x1xf32, #tpu.memory_space<vmem>>, vector<32x1xf32>
      %cst_24 = arith.constant dense<0xFF800000> : vector<32xf32>
      %35 = vector.multi_reduction <maximumf>, %33, %cst_24 [1] : vector<32x16xf32> to vector<32xf32>
      %36 = vector.shape_cast %35 : vector<32xf32> to vector<32x1xf32>
      %37 = arith.maximumf %34, %36 : vector<32x1xf32>
      %38 = arith.subf %34, %37 : vector<32x1xf32>
      %39 = math.exp %38 : vector<32x1xf32>
      %40 = vector.broadcast %37 : vector<32x1xf32> to vector<32x16xf32>
      %41 = arith.subf %33, %40 : vector<32x16xf32>
      %42 = math.exp %41 : vector<32x16xf32>
      %c0_25 = arith.constant 0 : index
      %c0_26 = arith.constant 0 : index
      %43 = vector.load %arg9[%c0_25, %c0_26] : memref<32x1xf32, #tpu.memory_space<vmem>>, vector<32x1xf32>
      %44 = arith.mulf %39, %43 : vector<32x1xf32>
      %cst_27 = arith.constant dense<0.000000e+00> : vector<32xf32>
      %45 = vector.multi_reduction <add>, %42, %cst_27 [1] : vector<32x16xf32> to vector<32xf32>
      %46 = vector.shape_cast %45 : vector<32xf32> to vector<32x1xf32>
      %47 = arith.addf %44, %46 : vector<32x1xf32>
      %c0_28 = arith.constant 0 : index
      %c0_29 = arith.constant 0 : index
      %48 = vector.load %arg9[%c0_28, %c0_29] : memref<32x1xf32, #tpu.memory_space<vmem>>, vector<32x1xf32>
      tpu.vector_store %arg9[%c0_28, %c0_29], %47 {strides = array<i32>} : memref<32x1xf32, #tpu.memory_space<vmem>>, vector<32x1xf32>,
      %c0_30 = arith.constant 0 : index
      %c0_31 = arith.constant 0 : index
      %49 = vector.load %arg10[%c0_30, %c0_31] : memref<32x64xf32, #tpu.memory_space<vmem>>, vector<32x64xf32>
      %50 = vector.broadcast %39 : vector<32x1xf32> to vector<32x64xf32>
      %51 = arith.mulf %50, %49 : vector<32x64xf32>
      %52 = arith.truncf %42 : vector<32x16xf32> to vector<32x16xbf16>
      %cst_32 = arith.constant dense<0.000000e+00> : vector<32x64xf32>
      %53 = tpu.matmul %52, %19, %cst_32 {dimension_numbers = #tpu.dot_dimension_numbers<[1], [0], [0], [1], [0, 0, 1, 1], [], []>} : vector<32x16xbf16>, vector<16x64xbf16>, vector<32x64xf32> -> vector<32x64xf32>
      %54 = arith.addf %51, %53 : vector<32x64xf32>
      %c0_33 = arith.constant 0 : index
      %c0_34 = arith.constant 0 : index
      %55 = vector.load %arg10[%c0_33, %c0_34] : memref<32x64xf32, #tpu.memory_space<vmem>>, vector<32x64xf32>
      tpu.vector_store %arg10[%c0_33, %c0_34], %54 {strides = array<i32>} : memref<32x64xf32, #tpu.memory_space<vmem>>, vector<32x64xf32>,
      %c0_35 = arith.constant 0 : index
      %c0_36 = arith.constant 0 : index
      %56 = vector.load %arg8[%c0_35, %c0_36] : memref<32x1xf32, #tpu.memory_space<vmem>>, vector<32x1xf32>
      tpu.vector_store %arg8[%c0_35, %c0_36], %37 {strides = array<i32>} : memref<32x1xf32, #tpu.memory_space<vmem>>, vector<32x1xf32>,
    } else {
    }
    %c1_i32_5 = arith.constant 1 : i32
    %11 = arith.cmpi eq, %arg3, %c1_i32_5 : i32
    %12 = arith.extui %11 : i1 to i32
    %c0_i32_6 = arith.constant 0 : i32
    %13 = arith.cmpi ne, %12, %c0_i32_6 : i32
    scf.if %13 {
      %c0 = arith.constant 0 : index
      %c0_7 = arith.constant 0 : index
      %14 = vector.load %arg10[%c0, %c0_7] : memref<32x64xf32, #tpu.memory_space<vmem>>, vector<32x64xf32>
      %c0_8 = arith.constant 0 : index
      %c0_9 = arith.constant 0 : index
      %15 = vector.load %arg9[%c0_8, %c0_9] : memref<32x1xf32, #tpu.memory_space<vmem>>, vector<32x1xf32>
      %16 = tpu.reciprocal %15 {approx = true} : vector<32x1xf32> -> vector<32x1xf32>
      %17 = vector.broadcast %16 : vector<32x1xf32> to vector<32x64xf32>
      %18 = arith.mulf %14, %17 : vector<32x64xf32>
      %19 = vector.extract_strided_slice %18 {offsets = [0, 0], sizes = [16, 64], strides = [1, 1]} : vector<32x64xf32> to vector<16x64xf32>
      %20 = arith.truncf %19 : vector<16x64xf32> to vector<16x64xbf16>
      %c0_10 = arith.constant 0 : index
      %c0_11 = arith.constant 0 : index
      %c0_12 = arith.constant 0 : index
      %21 = vector.load %arg7[%c0_10, %c0_11, %c0_12] : memref<1x16x128xbf16, #tpu.memory_space<vmem>>, vector<1x16x64xbf16>
      %22 = vector.shape_cast %21 : vector<1x16x64xbf16> to vector<16x64xbf16>
      %23 = vector.shape_cast %20 : vector<16x64xbf16> to vector<1x16x64xbf16>
      tpu.vector_store %arg7[%c0_10, %c0_11, %c0_12], %23 {strides = array<i32>} : memref<1x16x128xbf16, #tpu.memory_space<vmem>>, vector<1x16x64xbf16>,
      %24 = vector.extract_strided_slice %18 {offsets = [16, 0], sizes = [16, 64], strides = [1, 1]} : vector<32x64xf32> to vector<16x64xf32>
      %25 = arith.truncf %24 : vector<16x64xf32> to vector<16x64xbf16>
      %c0_13 = arith.constant 0 : index
      %c0_14 = arith.constant 0 : index
      %c64 = arith.constant 64 : index
      %26 = vector.load %arg7[%c0_13, %c0_14, %c64] : memref<1x16x128xbf16, #tpu.memory_space<vmem>>, vector<1x16x64xbf16>
      %27 = vector.shape_cast %26 : vector<1x16x64xbf16> to vector<16x64xbf16>
      %28 = vector.shape_cast %25 : vector<16x64xbf16> to vector<1x16x64xbf16>
      tpu.vector_store %arg7[%c0_13, %c0_14, %c64], %28 {strides = array<i32>} : memref<1x16x128xbf16, #tpu.memory_space<vmem>>, vector<1x16x64xbf16>,
    } else {
    }
    return
  }
  func.func @transform_0(%arg0: i32, %arg1: i32, %arg2: i32, %arg3: i32) -> (i32, i32, i32, i32) {
    %c0_i32 = arith.constant 0 : i32
    %c0_i32_0 = arith.constant 0 : i32
    return %arg0, %arg1, %arg2, %c0_i32 : i32, i32, i32, i32
  }
  func.func @transform_1(%arg0: i32, %arg1: i32, %arg2: i32, %arg3: i32) -> (i32, i32, i32, i32) {
    %c0_i32 = arith.constant 0 : i32
    %c0_i32_0 = arith.constant 0 : i32
    return %arg0, %arg1, %arg3, %c0_i32 : i32, i32, i32, i32
  }
  func.func @transform_2(%arg0: i32, %arg1: i32, %arg2: i32, %arg3: i32) -> (i32, i32, i32, i32) {
    %c0_i32 = arith.constant 0 : i32
    %c0_i32_0 = arith.constant 0 : i32
    return %arg0, %arg1, %arg3, %c0_i32 : i32, i32, i32, i32
  }
  func.func @transform_3(%arg0: i32, %arg1: i32, %arg2: i32, %arg3: i32) -> (i32, i32, i32) {
    %c0_i32 = arith.constant 0 : i32
    return %arg0, %arg2, %arg1 : i32, i32, i32
  }
}

module attributes {stable_mosaic.version = 11 : i64} {
  func.func @_matmul_residual_kernel(%arg0: i32, %arg1: i32, %arg2: i32, %arg3: memref<64x256xbf16, #tpu.memory_space<vmem>>, %arg4: memref<256x256xbf16, #tpu.memory_space<vmem>>, %arg5: memref<64x256xf32, #tpu.memory_space<vmem>>, %arg6: memref<64x256xbf16, #tpu.memory_space<vmem>>, %arg7: memref<64x256xf32, #tpu.memory_space<vmem>>) attributes {dimension_semantics = [#tpu.dimension_semantics<parallel>, #tpu.dimension_semantics<parallel>, #tpu.dimension_semantics<arbitrary>], iteration_bounds = array<i64: 1, 1, 1>, scalar_prefetch = 0 : i64, scratch_operands = 1 : i64, tpu.core_type = #tpu.core_type<tc>, window_params = [{transform_indices = @transform_0, window_bounds = array<i64: 64, 256>}, {transform_indices = @transform_1, window_bounds = array<i64: 256, 256>}, {transform_indices = @transform_2, window_bounds = array<i64: 64, 256>}, {transform_indices = @transform_3, window_bounds = array<i64: 64, 256>}]} {
    %c0_i32 = arith.constant 0 : i32
    %0 = arith.cmpi eq, %arg2, %c0_i32 : i32
    %1 = arith.extui %0 : i1 to i32
    %c0_i32_0 = arith.constant 0 : i32
    %2 = arith.cmpi ne, %1, %c0_i32_0 : i32
    scf.if %2 {
      %cst_10 = arith.constant 0.000000e+00 : f32
      %12 = vector.broadcast %cst_10 : f32 to vector<64x256xf32>
      %c0_11 = arith.constant 0 : index
      %c0_12 = arith.constant 0 : index
      %13 = vector.load %arg7[%c0_11, %c0_12] : memref<64x256xf32, #tpu.memory_space<vmem>>, vector<64x256xf32>
      tpu.vector_store %arg7[%c0_11, %c0_12], %12 {strides = array<i32>} : memref<64x256xf32, #tpu.memory_space<vmem>>, vector<64x256xf32>,
    } else {
    }
    %c0 = arith.constant 0 : index
    %c0_1 = arith.constant 0 : index
    %3 = vector.load %arg7[%c0, %c0_1] : memref<64x256xf32, #tpu.memory_space<vmem>>, vector<64x256xf32>
    %c0_2 = arith.constant 0 : index
    %c0_3 = arith.constant 0 : index
    %4 = vector.load %arg3[%c0_2, %c0_3] : memref<64x256xbf16, #tpu.memory_space<vmem>>, vector<64x256xbf16>
    %c0_4 = arith.constant 0 : index
    %c0_5 = arith.constant 0 : index
    %5 = vector.load %arg4[%c0_4, %c0_5] : memref<256x256xbf16, #tpu.memory_space<vmem>>, vector<256x256xbf16>
    %cst = arith.constant dense<0.000000e+00> : vector<64x256xf32>
    %6 = tpu.matmul %4, %5, %cst {dimension_numbers = #tpu.dot_dimension_numbers<[1], [0], [0], [1], [0, 0, 1, 1], [], []>} : vector<64x256xbf16>, vector<256x256xbf16>, vector<64x256xf32> -> vector<64x256xf32>
    %7 = arith.addf %3, %6 : vector<64x256xf32>
    %c0_6 = arith.constant 0 : index
    %c0_7 = arith.constant 0 : index
    %8 = vector.load %arg7[%c0_6, %c0_7] : memref<64x256xf32, #tpu.memory_space<vmem>>, vector<64x256xf32>
    tpu.vector_store %arg7[%c0_6, %c0_7], %7 {strides = array<i32>} : memref<64x256xf32, #tpu.memory_space<vmem>>, vector<64x256xf32>,
    %c0_i32_8 = arith.constant 0 : i32
    %9 = arith.cmpi eq, %arg2, %c0_i32_8 : i32
    %10 = arith.extui %9 : i1 to i32
    %c0_i32_9 = arith.constant 0 : i32
    %11 = arith.cmpi ne, %10, %c0_i32_9 : i32
    scf.if %11 {
      %c0_10 = arith.constant 0 : index
      %c0_11 = arith.constant 0 : index
      %12 = vector.load %arg7[%c0_10, %c0_11] : memref<64x256xf32, #tpu.memory_space<vmem>>, vector<64x256xf32>
      %c0_12 = arith.constant 0 : index
      %c0_13 = arith.constant 0 : index
      %13 = vector.load %arg5[%c0_12, %c0_13] : memref<64x256xf32, #tpu.memory_space<vmem>>, vector<64x256xf32>
      %14 = arith.addf %12, %13 : vector<64x256xf32>
      %15 = arith.truncf %14 : vector<64x256xf32> to vector<64x256xbf16>
      %c0_14 = arith.constant 0 : index
      %c0_15 = arith.constant 0 : index
      %16 = vector.load %arg6[%c0_14, %c0_15] : memref<64x256xbf16, #tpu.memory_space<vmem>>, vector<64x256xbf16>
      tpu.vector_store %arg6[%c0_14, %c0_15], %15 {strides = array<i32>} : memref<64x256xbf16, #tpu.memory_space<vmem>>, vector<64x256xbf16>,
    } else {
    }
    return
  }
  func.func @transform_0(%arg0: i32, %arg1: i32, %arg2: i32) -> (i32, i32) {
    %c0_i32 = arith.constant 0 : i32
    return %arg0, %arg2 : i32, i32
  }
  func.func @transform_1(%arg0: i32, %arg1: i32, %arg2: i32) -> (i32, i32) {
    %c0_i32 = arith.constant 0 : i32
    return %arg2, %arg1 : i32, i32
  }
  func.func @transform_2(%arg0: i32, %arg1: i32, %arg2: i32) -> (i32, i32) {
    %c0_i32 = arith.constant 0 : i32
    return %arg0, %arg1 : i32, i32
  }
  func.func @transform_3(%arg0: i32, %arg1: i32, %arg2: i32) -> (i32, i32) {
    %c0_i32 = arith.constant 0 : i32
    return %arg0, %arg1 : i32, i32
  }
}

module attributes {stable_mosaic.version = 11 : i64} {
  func.func @_rmsnorm_kernel(%arg0: i32, %arg1: memref<64x256xbf16, #tpu.memory_space<vmem>>, %arg2: memref<1x256xf32, #tpu.memory_space<vmem>>, %arg3: memref<64x256xbf16, #tpu.memory_space<vmem>>) attributes {dimension_semantics = [#tpu.dimension_semantics<parallel>], iteration_bounds = array<i64: 1>, scalar_prefetch = 0 : i64, scratch_operands = 0 : i64, tpu.core_type = #tpu.core_type<tc>, window_params = [{transform_indices = @transform_0, window_bounds = array<i64: 64, 256>}, {pipeline_mode = #tpu.pipeline_mode<synchronous>, transform_indices = @transform_1, window_bounds = array<i64: 1, 256>}, {transform_indices = @transform_2, window_bounds = array<i64: 64, 256>}]} {
    %c0 = arith.constant 0 : index
    %c0_0 = arith.constant 0 : index
    %0 = vector.load %arg1[%c0, %c0_0] : memref<64x256xbf16, #tpu.memory_space<vmem>>, vector<64x256xbf16>
    %1 = arith.extf %0 : vector<64x256xbf16> to vector<64x256xf32>
    %2 = arith.mulf %1, %1 : vector<64x256xf32>
    %cst = arith.constant dense<0.000000e+00> : vector<64xf32>
    %3 = vector.multi_reduction <add>, %2, %cst [1] : vector<64x256xf32> to vector<64xf32>
    %4 = vector.shape_cast %3 : vector<64xf32> to vector<64x1xf32>
    %cst_1 = arith.constant 2.560000e+02 : f32
    %5 = vector.broadcast %cst_1 : f32 to vector<64x1xf32>
    %6 = arith.divf %4, %5 : vector<64x1xf32>
    %cst_2 = arith.constant 9.99999974E-6 : f32
    %7 = vector.broadcast %cst_2 : f32 to vector<64x1xf32>
    %8 = arith.addf %6, %7 : vector<64x1xf32>
    %9 = math.rsqrt %8 : vector<64x1xf32>
    %10 = vector.broadcast %9 : vector<64x1xf32> to vector<64x256xf32>
    %11 = arith.mulf %1, %10 : vector<64x256xf32>
    %c0_3 = arith.constant 0 : index
    %c0_4 = arith.constant 0 : index
    %12 = vector.load %arg2[%c0_3, %c0_4] : memref<1x256xf32, #tpu.memory_space<vmem>>, vector<1x256xf32>
    %13 = vector.broadcast %12 : vector<1x256xf32> to vector<64x256xf32>
    %14 = arith.mulf %11, %13 : vector<64x256xf32>
    %15 = arith.truncf %14 : vector<64x256xf32> to vector<64x256xbf16>
    %c0_5 = arith.constant 0 : index
    %c0_6 = arith.constant 0 : index
    %16 = vector.load %arg3[%c0_5, %c0_6] : memref<64x256xbf16, #tpu.memory_space<vmem>>, vector<64x256xbf16>
    tpu.vector_store %arg3[%c0_5, %c0_6], %15 {strides = array<i32>} : memref<64x256xbf16, #tpu.memory_space<vmem>>, vector<64x256xbf16>,
    return
  }
  func.func @transform_0(%arg0: i32) -> (i32, i32) {
    %c0_i32 = arith.constant 0 : i32
    %c0_i32_0 = arith.constant 0 : i32
    return %arg0, %c0_i32 : i32, i32
  }
  func.func @transform_1(%arg0: i32) -> (i32, i32) {
    %c0_i32 = arith.constant 0 : i32
    %c0_i32_0 = arith.constant 0 : i32
    %c0_i32_1 = arith.constant 0 : i32
    return %c0_i32, %c0_i32_0 : i32, i32
  }
  func.func @transform_2(%arg0: i32) -> (i32, i32) {
    %c0_i32 = arith.constant 0 : i32
    %c0_i32_0 = arith.constant 0 : i32
    return %arg0, %c0_i32 : i32, i32
  }
}

module attributes {stable_mosaic.version = 11 : i64} {
  func.func @_swiglu_kernel(%arg0: i32, %arg1: i32, %arg2: i32, %arg3: memref<64x256xbf16, #tpu.memory_space<vmem>>, %arg4: memref<256x384xbf16, #tpu.memory_space<vmem>>, %arg5: memref<256x384xbf16, #tpu.memory_space<vmem>>, %arg6: memref<64x384xbf16, #tpu.memory_space<vmem>>, %arg7: memref<64x384xf32, #tpu.memory_space<vmem>>, %arg8: memref<64x384xf32, #tpu.memory_space<vmem>>) attributes {dimension_semantics = [#tpu.dimension_semantics<parallel>, #tpu.dimension_semantics<parallel>, #tpu.dimension_semantics<arbitrary>], iteration_bounds = array<i64: 1, 2, 1>, scalar_prefetch = 0 : i64, scratch_operands = 2 : i64, tpu.core_type = #tpu.core_type<tc>, window_params = [{transform_indices = @transform_0, window_bounds = array<i64: 64, 256>}, {transform_indices = @transform_1, window_bounds = array<i64: 256, 384>}, {transform_indices = @transform_2, window_bounds = array<i64: 256, 384>}, {transform_indices = @transform_3, window_bounds = array<i64: 64, 384>}]} {
    %c0_i32 = arith.constant 0 : i32
    %0 = arith.cmpi eq, %arg2, %c0_i32 : i32
    %1 = arith.extui %0 : i1 to i32
    %c0_i32_0 = arith.constant 0 : i32
    %2 = arith.cmpi ne, %1, %c0_i32_0 : i32
    scf.if %2 {
      %cst_17 = arith.constant 0.000000e+00 : f32
      %17 = vector.broadcast %cst_17 : f32 to vector<64x384xf32>
      %c0_18 = arith.constant 0 : index
      %c0_19 = arith.constant 0 : index
      %18 = vector.load %arg7[%c0_18, %c0_19] : memref<64x384xf32, #tpu.memory_space<vmem>>, vector<64x384xf32>
      tpu.vector_store %arg7[%c0_18, %c0_19], %17 {strides = array<i32>} : memref<64x384xf32, #tpu.memory_space<vmem>>, vector<64x384xf32>,
      %cst_20 = arith.constant 0.000000e+00 : f32
      %19 = vector.broadcast %cst_20 : f32 to vector<64x384xf32>
      %c0_21 = arith.constant 0 : index
      %c0_22 = arith.constant 0 : index
      %20 = vector.load %arg8[%c0_21, %c0_22] : memref<64x384xf32, #tpu.memory_space<vmem>>, vector<64x384xf32>
      tpu.vector_store %arg8[%c0_21, %c0_22], %19 {strides = array<i32>} : memref<64x384xf32, #tpu.memory_space<vmem>>, vector<64x384xf32>,
    } else {
    }
    %c0 = arith.constant 0 : index
    %c0_1 = arith.constant 0 : index
    %3 = vector.load %arg3[%c0, %c0_1] : memref<64x256xbf16, #tpu.memory_space<vmem>>, vector<64x256xbf16>
    %c0_2 = arith.constant 0 : index
    %c0_3 = arith.constant 0 : index
    %4 = vector.load %arg7[%c0_2, %c0_3] : memref<64x384xf32, #tpu.memory_space<vmem>>, vector<64x384xf32>
    %c0_4 = arith.constant 0 : index
    %c0_5 = arith.constant 0 : index
    %5 = vector.load %arg4[%c0_4, %c0_5] : memref<256x384xbf16, #tpu.memory_space<vmem>>, vector<256x384xbf16>
    %cst = arith.constant dense<0.000000e+00> : vector<64x384xf32>
    %6 = tpu.matmul %3, %5, %cst {dimension_numbers = #tpu.dot_dimension_numbers<[1], [0], [0], [1], [0, 0, 1, 1], [], []>} : vector<64x256xbf16>, vector<256x384xbf16>, vector<64x384xf32> -> vector<64x384xf32>
    %7 = arith.addf %4, %6 : vector<64x384xf32>
    %c0_6 = arith.constant 0 : index
    %c0_7 = arith.constant 0 : index
    %8 = vector.load %arg7[%c0_6, %c0_7] : memref<64x384xf32, #tpu.memory_space<vmem>>, vector<64x384xf32>
    tpu.vector_store %arg7[%c0_6, %c0_7], %7 {strides = array<i32>} : memref<64x384xf32, #tpu.memory_space<vmem>>, vector<64x384xf32>,
    %c0_8 = arith.constant 0 : index
    %c0_9 = arith.constant 0 : index
    %9 = vector.load %arg8[%c0_8, %c0_9] : memref<64x384xf32, #tpu.memory_space<vmem>>, vector<64x384xf32>
    %c0_10 = arith.constant 0 : index
    %c0_11 = arith.constant 0 : index
    %10 = vector.load %arg5[%c0_10, %c0_11] : memref<256x384xbf16, #tpu.memory_space<vmem>>, vector<256x384xbf16>
    %cst_12 = arith.constant dense<0.000000e+00> : vector<64x384xf32>
    %11 = tpu.matmul %3, %10, %cst_12 {dimension_numbers = #tpu.dot_dimension_numbers<[1], [0], [0], [1], [0, 0, 1, 1], [], []>} : vector<64x256xbf16>, vector<256x384xbf16>, vector<64x384xf32> -> vector<64x384xf32>
    %12 = arith.addf %9, %11 : vector<64x384xf32>
    %c0_13 = arith.constant 0 : index
    %c0_14 = arith.constant 0 : index
    %13 = vector.load %arg8[%c0_13, %c0_14] : memref<64x384xf32, #tpu.memory_space<vmem>>, vector<64x384xf32>
    tpu.vector_store %arg8[%c0_13, %c0_14], %12 {strides = array<i32>} : memref<64x384xf32, #tpu.memory_space<vmem>>, vector<64x384xf32>,
    %c0_i32_15 = arith.constant 0 : i32
    %14 = arith.cmpi eq, %arg2, %c0_i32_15 : i32
    %15 = arith.extui %14 : i1 to i32
    %c0_i32_16 = arith.constant 0 : i32
    %16 = arith.cmpi ne, %15, %c0_i32_16 : i32
    scf.if %16 {
      %c0_17 = arith.constant 0 : index
      %c0_18 = arith.constant 0 : index
      %17 = vector.load %arg7[%c0_17, %c0_18] : memref<64x384xf32, #tpu.memory_space<vmem>>, vector<64x384xf32>
      %18 = arith.negf %17 : vector<64x384xf32>
      %19 = math.exp %18 : vector<64x384xf32>
      %cst_19 = arith.constant 1.000000e+00 : f32
      %20 = vector.broadcast %cst_19 : f32 to vector<64x384xf32>
      %21 = arith.addf %20, %19 : vector<64x384xf32>
      %22 = arith.divf %20, %21 : vector<64x384xf32>
      %23 = arith.mulf %17, %22 : vector<64x384xf32>
      %c0_20 = arith.constant 0 : index
      %c0_21 = arith.constant 0 : index
      %24 = vector.load %arg8[%c0_20, %c0_21] : memref<64x384xf32, #tpu.memory_space<vmem>>, vector<64x384xf32>
      %25 = arith.mulf %23, %24 : vector<64x384xf32>
      %26 = arith.truncf %25 : vector<64x384xf32> to vector<64x384xbf16>
      %c0_22 = arith.constant 0 : index
      %c0_23 = arith.constant 0 : index
      %27 = vector.load %arg6[%c0_22, %c0_23] : memref<64x384xbf16, #tpu.memory_space<vmem>>, vector<64x384xbf16>
      tpu.vector_store %arg6[%c0_22, %c0_23], %26 {strides = array<i32>} : memref<64x384xbf16, #tpu.memory_space<vmem>>, vector<64x384xbf16>,
    } else {
    }
    return
  }
  func.func @transform_0(%arg0: i32, %arg1: i32, %arg2: i32) -> (i32, i32) {
    %c0_i32 = arith.constant 0 : i32
    return %arg0, %arg2 : i32, i32
  }
  func.func @transform_1(%arg0: i32, %arg1: i32, %arg2: i32) -> (i32, i32) {
    %c0_i32 = arith.constant 0 : i32
    return %arg2, %arg1 : i32, i32
  }
  func.func @transform_2(%arg0: i32, %arg1: i32, %arg2: i32) -> (i32, i32) {
    %c0_i32 = arith.constant 0 : i32
    return %arg2, %arg1 : i32, i32
  }
  func.func @transform_3(%arg0: i32, %arg1: i32, %arg2: i32) -> (i32, i32) {
    %c0_i32 = arith.constant 0 : i32
    return %arg0, %arg1 : i32, i32
  }
}

module attributes {stable_mosaic.version = 11 : i64} {
  func.func @_matmul_residual_kernel(%arg0: i32, %arg1: i32, %arg2: i32, %arg3: memref<64x768xbf16, #tpu.memory_space<vmem>>, %arg4: memref<768x256xbf16, #tpu.memory_space<vmem>>, %arg5: memref<64x256xbf16, #tpu.memory_space<vmem>>, %arg6: memref<64x256xf32, #tpu.memory_space<vmem>>, %arg7: memref<64x256xf32, #tpu.memory_space<vmem>>) attributes {dimension_semantics = [#tpu.dimension_semantics<parallel>, #tpu.dimension_semantics<parallel>, #tpu.dimension_semantics<arbitrary>], iteration_bounds = array<i64: 1, 1, 1>, scalar_prefetch = 0 : i64, scratch_operands = 1 : i64, tpu.core_type = #tpu.core_type<tc>, window_params = [{transform_indices = @transform_0, window_bounds = array<i64: 64, 768>}, {transform_indices = @transform_1, window_bounds = array<i64: 768, 256>}, {transform_indices = @transform_2, window_bounds = array<i64: 64, 256>}, {transform_indices = @transform_3, window_bounds = array<i64: 64, 256>}]} {
    %c0_i32 = arith.constant 0 : i32
    %0 = arith.cmpi eq, %arg2, %c0_i32 : i32
    %1 = arith.extui %0 : i1 to i32
    %c0_i32_0 = arith.constant 0 : i32
    %2 = arith.cmpi ne, %1, %c0_i32_0 : i32
    scf.if %2 {
      %cst_10 = arith.constant 0.000000e+00 : f32
      %12 = vector.broadcast %cst_10 : f32 to vector<64x256xf32>
      %c0_11 = arith.constant 0 : index
      %c0_12 = arith.constant 0 : index
      %13 = vector.load %arg7[%c0_11, %c0_12] : memref<64x256xf32, #tpu.memory_space<vmem>>, vector<64x256xf32>
      tpu.vector_store %arg7[%c0_11, %c0_12], %12 {strides = array<i32>} : memref<64x256xf32, #tpu.memory_space<vmem>>, vector<64x256xf32>,
    } else {
    }
    %c0 = arith.constant 0 : index
    %c0_1 = arith.constant 0 : index
    %3 = vector.load %arg7[%c0, %c0_1] : memref<64x256xf32, #tpu.memory_space<vmem>>, vector<64x256xf32>
    %c0_2 = arith.constant 0 : index
    %c0_3 = arith.constant 0 : index
    %4 = vector.load %arg3[%c0_2, %c0_3] : memref<64x768xbf16, #tpu.memory_space<vmem>>, vector<64x768xbf16>
    %c0_4 = arith.constant 0 : index
    %c0_5 = arith.constant 0 : index
    %5 = vector.load %arg4[%c0_4, %c0_5] : memref<768x256xbf16, #tpu.memory_space<vmem>>, vector<768x256xbf16>
    %cst = arith.constant dense<0.000000e+00> : vector<64x256xf32>
    %6 = tpu.matmul %4, %5, %cst {dimension_numbers = #tpu.dot_dimension_numbers<[1], [0], [0], [1], [0, 0, 1, 1], [], []>} : vector<64x768xbf16>, vector<768x256xbf16>, vector<64x256xf32> -> vector<64x256xf32>
    %7 = arith.addf %3, %6 : vector<64x256xf32>
    %c0_6 = arith.constant 0 : index
    %c0_7 = arith.constant 0 : index
    %8 = vector.load %arg7[%c0_6, %c0_7] : memref<64x256xf32, #tpu.memory_space<vmem>>, vector<64x256xf32>
    tpu.vector_store %arg7[%c0_6, %c0_7], %7 {strides = array<i32>} : memref<64x256xf32, #tpu.memory_space<vmem>>, vector<64x256xf32>,
    %c0_i32_8 = arith.constant 0 : i32
    %9 = arith.cmpi eq, %arg2, %c0_i32_8 : i32
    %10 = arith.extui %9 : i1 to i32
    %c0_i32_9 = arith.constant 0 : i32
    %11 = arith.cmpi ne, %10, %c0_i32_9 : i32
    scf.if %11 {
      %c0_10 = arith.constant 0 : index
      %c0_11 = arith.constant 0 : index
      %12 = vector.load %arg7[%c0_10, %c0_11] : memref<64x256xf32, #tpu.memory_space<vmem>>, vector<64x256xf32>
      %c0_12 = arith.constant 0 : index
      %c0_13 = arith.constant 0 : index
      %13 = vector.load %arg5[%c0_12, %c0_13] : memref<64x256xbf16, #tpu.memory_space<vmem>>, vector<64x256xbf16>
      %14 = arith.extf %13 : vector<64x256xbf16> to vector<64x256xf32>
      %15 = arith.addf %12, %14 : vector<64x256xf32>
      %c0_14 = arith.constant 0 : index
      %c0_15 = arith.constant 0 : index
      %16 = vector.load %arg6[%c0_14, %c0_15] : memref<64x256xf32, #tpu.memory_space<vmem>>, vector<64x256xf32>
      tpu.vector_store %arg6[%c0_14, %c0_15], %15 {strides = array<i32>} : memref<64x256xf32, #tpu.memory_space<vmem>>, vector<64x256xf32>,
    } else {
    }
    return
  }
  func.func @transform_0(%arg0: i32, %arg1: i32, %arg2: i32) -> (i32, i32) {
    %c0_i32 = arith.constant 0 : i32
    return %arg0, %arg2 : i32, i32
  }
  func.func @transform_1(%arg0: i32, %arg1: i32, %arg2: i32) -> (i32, i32) {
    %c0_i32 = arith.constant 0 : i32
    return %arg2, %arg1 : i32, i32
  }
  func.func @transform_2(%arg0: i32, %arg1: i32, %arg2: i32) -> (i32, i32) {
    %c0_i32 = arith.constant 0 : i32
    return %arg0, %arg1 : i32, i32
  }
  func.func @transform_3(%arg0: i32, %arg1: i32, %arg2: i32) -> (i32, i32) {
    %c0_i32 = arith.constant 0 : i32
    return %arg0, %arg1 : i32, i32
  }
}

</mosaic_0001>

<llo_original>
// kernel: transformer_block_forward.8
$region0: #{transformer_block_forward.8}
  #allocation0 [shape = 'u32[]', space=smem, size = 0x4, offset = 0x4, fixed_abs, tag = 'smem constant byte address 0x4 - core index']
  #allocation1 [shape = 'u32[144,128]{1,0:T(1,128)}', space=vmem, size = 0x12000, scoped, tag = 'internal scratch']
  %s0 = inlined_call_operand.hbm [shape: f32[64,256], index: 0, kind: input, shape index: {}]
  %s1 = inlined_call_operand.hbm [shape: f32[1,256], index: 1, kind: input, shape index: {}]
  %s2 = inlined_call_operand.vmem [shape: bf16[64,256], index: 2, kind: output, shape index: {}]
  %s3 = sld [smem:[#allocation0]]
  $region26: #{transformer_block_forward.8} parent=0
    _
  %s5 = ssub.s32 1, %s3
  %s6 = scalar_select 0, %s5, %s3
  $region1: #{transformer_block_forward.8} parent=0
    #allocation2 [shape = 'u8[65536]{0}', space=vmem, size = 0x10000, scoped, tag = 'input window, operand 0, single buffered']
    #allocation3 [shape = 's32[1]{0}', space=sflag, size = 0x4, scoped, tag = 'scoped memory for transformer_block_forward.8']
    #allocation4 [shape = 'u8[1024]{0}', space=vmem, size = 0x400, scoped, tag = 'input window, operand 1, single buffered']
    #allocation5 [shape = 's32[1]{0}', space=sflag, size = 0x4, scoped, tag = 'scoped memory for transformer_block_forward.8']
    %7 = vsyncpa [#allocation3], 0
    %8 = vsyncpa [#allocation5], 0
    // Predicated region
    $region2: #{transformer_block_forward.8} parent=1 // pred_check
      _
    $region3: #{transformer_block_forward.8} parent=1 // pred_check_branch
      %10 = sbr.rel (0) target = $region5
    $region4: #{transformer_block_forward.8} parent=1 // pred_region
      %s12 = ssub.s32 2048, 2048
      %13 = vsyncadd [#allocation3], %s12
      %s14 = sshll.u32 [#allocation2], 4
      %s15 = int_to_ptr.vmem [resolvable:$true] %s14
      %20 = dma.hbm_to_vmem [thread:$0]  %s0, 2048, %s15, [#allocation3], 256, 256, 16
    $region5: #{transformer_block_forward.8} parent=1 // pred_fallthru
      _
    // Predicated region
    $region6: #{transformer_block_forward.8} parent=1 // pred_check
      _
    $region7: #{transformer_block_forward.8} parent=1 // pred_check_branch
      %22 = sbr.rel (0) target = $region9
    $region8: #{transformer_block_forward.8} parent=1 // pred_region
      %s24 = ssub.s32 32, 32
      %25 = vsyncadd [#allocation5], %s24
      %s27 = sshll.u32 [#allocation4], 4
      %s28 = int_to_ptr.vmem [resolvable:$true] %s27
      %30 = dma.hbm_to_vmem [thread:$0]  %s1, 32, %s28, [#allocation5]
    $region9: #{transformer_block_forward.8} parent=1 // pred_fallthru
      _
    // Predicated region
    $region10: #{transformer_block_forward.8} parent=1 // pred_check
      _
    $region11: #{transformer_block_forward.8} parent=1 // pred_check_branch
      %32 = sbr.rel (0) target = $region13
    $region12: #{transformer_block_forward.8} parent=1 // pred_region
      %33 = dma.done [#allocation3], 2048
    $region13: #{transformer_block_forward.8} parent=1 // pred_fallthru
      _
    // Predicated region
    $region14: #{transformer_block_forward.8} parent=1 // pred_check
      _
    $region15: #{transformer_block_forward.8} parent=1 // pred_check_branch
      %35 = sbr.rel (0) target = $region17
    $region16: #{transformer_block_forward.8} parent=1 // pred_region
      %36 = dma.done [#allocation5], 32
    $region17: #{transformer_block_forward.8} parent=1 // pred_fallthru
      _
    %v37 = vld [vmem:[#allocation2] sm:$0xff]
    %v38 = vld [vmem:[#allocation2 + $0x8] sm:$0xff]
    %v39 = vld [vmem:[#allocation2 + $0x10] sm:$0xff]
    %v40 = vld [vmem:[#allocation2 + $0x18] sm:$0xff]
    %v41 = vld [vmem:[#allocation2 + $0x20] sm:$0xff]
    %v42 = vld [vmem:[#allocation2 + $0x28] sm:$0xff]
    %v43 = vld [vmem:[#allocation2 + $0x30] sm:$0xff]
    %v44 = vld [vmem:[#allocation2 + $0x38] sm:$0xff]
    %v45 = vld [vmem:[#allocation2 + $0x40] sm:$0xff]
    %v46 = vld [vmem:[#allocation2 + $0x48] sm:$0xff]
    %v47 = vld [vmem:[#allocation2 + $0x50] sm:$0xff]
    %v48 = vld [vmem:[#allocation2 + $0x58] sm:$0xff]
    %v49 = vld [vmem:[#allocation2 + $0x60] sm:$0xff]
    %v50 = vld [vmem:[#allocation2 + $0x68] sm:$0xff]
    %v51 = vld [vmem:[#allocation2 + $0x70] sm:$0xff]
    %v52 = vld [vmem:[#allocation2 + $0x78] sm:$0xff]
    %v53 = vmul.f32 %v37, %v37
    %v54 = vmul.f32 %v38, %v38
    %v55 = vmul.f32 %v39, %v39
    %v56 = vmul.f32 %v40, %v40
    %v57 = vmul.f32 %v41, %v41
    %v58 = vmul.f32 %v42, %v42
    %v59 = vmul.f32 %v43, %v43
    %v60 = vmul.f32 %v44, %v44
    %v61 = vmul.f32 %v45, %v45
    %v62 = vmul.f32 %v46, %v46
    %v63 = vmul.f32 %v47, %v47
    %v64 = vmul.f32 %v48, %v48
    %v65 = vmul.f32 %v49, %v49
    %v66 = vmul.f32 %v50, %v50
    %v67 = vmul.f32 %v51, %v51
    %v68 = vmul.f32 %v52, %v52
    %v69 = vadd.f32 %v53, %v54
    %70 = vadd.xlane.f32.xlu0 %v69
    %v71 = vpop.xlane.xlu0 %70
    %v72 = vadd.f32 %v55, %v56
    %73 = vadd.xlane.f32.xlu0 %v72
    %v74 = vpop.xlane.xlu0 %73
    %v75 = vadd.f32 %v57, %v58
    %76 = vadd.xlane.f32.xlu0 %v75
    %v77 = vpop.xlane.xlu0 %76
    %v78 = vadd.f32 %v59, %v60
    %79 = vadd.xlane.f32.xlu0 %v78
    %v80 = vpop.xlane.xlu0 %79
    %v81 = vadd.f32 %v61, %v62
    %82 = vadd.xlane.f32.xlu0 %v81
    %v83 = vpop.xlane.xlu0 %82
    %v84 = vadd.f32 %v63, %v64
    %85 = vadd.xlane.f32.xlu0 %v84
    %v86 = vpop.xlane.xlu0 %85
    %v87 = vadd.f32 %v65, %v66
    %88 = vadd.xlane.f32.xlu0 %v87
    %v89 = vpop.xlane.xlu0 %88
    %v90 = vadd.f32 %v67, %v68
    %91 = vadd.xlane.f32.xlu0 %v90
    %v92 = vpop.xlane.xlu0 %91
    %v93 = vrcp.pop 256.0
    %v94 = vmul.f32 %v71, %v93
    %v95 = vmul.f32 %v74, %v93
    %v96 = vmul.f32 %v77, %v93
    %v97 = vmul.f32 %v80, %v93
    %v98 = vmul.f32 %v83, %v93
    %v99 = vmul.f32 %v86, %v93
    %v100 = vmul.f32 %v89, %v93
    %v101 = vmul.f32 %v92, %v93
    %v102 = vadd.f32 %v94, 1e-05
    %v103 = vadd.f32 %v95, 1e-05
    %v104 = vadd.f32 %v96, 1e-05
    %v105 = vadd.f32 %v97, 1e-05
    %v106 = vadd.f32 %v98, 1e-05
    %v107 = vadd.f32 %v99, 1e-05
    %v108 = vadd.f32 %v100, 1e-05
    %v109 = vadd.f32 %v101, 1e-05
    %v110 = vrsqrt.pop %v102
    %v111 = vrsqrt.pop %v103
    %v112 = vrsqrt.pop %v104
    %v113 = vrsqrt.pop %v105
    %v114 = vrsqrt.pop %v106
    %v115 = vrsqrt.pop %v107
    %v116 = vrsqrt.pop %v108
    %v117 = vrsqrt.pop %v109
    %v118 = vmul.f32 %v37, %v110
    %v119 = vmul.f32 %v38, %v110
    %v120 = vmul.f32 %v39, %v111
    %v121 = vmul.f32 %v40, %v111
    %v122 = vmul.f32 %v41, %v112
    %v123 = vmul.f32 %v42, %v112
    %v124 = vmul.f32 %v43, %v113
    %v125 = vmul.f32 %v44, %v113
    %v126 = vmul.f32 %v45, %v114
    %v127 = vmul.f32 %v46, %v114
    %v128 = vmul.f32 %v47, %v115
    %v129 = vmul.f32 %v48, %v115
    %v130 = vmul.f32 %v49, %v116
    %v131 = vmul.f32 %v50, %v116
    %v132 = vmul.f32 %v51, %v117
    %v133 = vmul.f32 %v52, %v117
    %v134 = vld [vmem:[#allocation4] sm:$0x3]
    %v136 = vlaneseq
    %v137 = vshrl.u32 %v136, 7
    %v138 = vsub.s32 0, %v137
    %v139 = vrot.slane %v134, %v138
    %v140 = vlaneseq
    %v141 = vshrl.u32 %v140, 7
    %v142 = vsub.s32 1, %v141
    %v143 = vrot.slane %v134, %v142
    %v146 = vmul.f32 %v118, %v139
    %v147 = vmul.f32 %v119, %v143
    %v148 = vmul.f32 %v120, %v139
    %v149 = vmul.f32 %v121, %v143
    %v150 = vmul.f32 %v122, %v139
    %v151 = vmul.f32 %v123, %v143
    %v152 = vmul.f32 %v124, %v139
    %v153 = vmul.f32 %v125, %v143
    %v154 = vmul.f32 %v126, %v139
    %v155 = vmul.f32 %v127, %v143
    %v156 = vmul.f32 %v128, %v139
    %v157 = vmul.f32 %v129, %v143
    %v158 = vmul.f32 %v130, %v139
    %v159 = vmul.f32 %v131, %v143
    %v160 = vmul.f32 %v132, %v139
    %v161 = vmul.f32 %v133, %v143
    %v162 = vpack.c.bf16 %v148, %v146
    %v163 = vpack.c.bf16 %v149, %v147
    %v164 = vpack.c.bf16 %v152, %v150
    %v165 = vpack.c.bf16 %v153, %v151
    %v166 = vpack.c.bf16 %v156, %v154
    %v167 = vpack.c.bf16 %v157, %v155
    %v168 = vpack.c.bf16 %v160, %v158
    %v169 = vpack.c.bf16 %v161, %v159
    %v178 = vunpack.c.l.b16 %v162
    %v179 = vunpack.c.l.b16 %v163
    %v180 = vunpack.c.h.b16 %v162
    %v181 = vunpack.c.h.b16 %v163
    %v182 = vunpack.c.l.b16 %v164
    %v183 = vunpack.c.l.b16 %v165
    %v184 = vunpack.c.h.b16 %v164
    %v185 = vunpack.c.h.b16 %v165
    %v186 = vunpack.c.l.b16 %v166
    %v187 = vunpack.c.l.b16 %v167
    %v188 = vunpack.c.h.b16 %v166
    %v189 = vunpack.c.h.b16 %v167
    %v190 = vunpack.c.l.b16 %v168
    %v191 = vunpack.c.l.b16 %v169
    %v192 = vunpack.c.h.b16 %v168
    %v193 = vunpack.c.h.b16 %v169
    %v194 = vpack.c.b16 %v179, %v178
    %v195 = vpack.c.b16 %v181, %v180
    %v196 = vpack.c.b16 %v183, %v182
    %v197 = vpack.c.b16 %v185, %v184
    %v198 = vpack.c.b16 %v187, %v186
    %v199 = vpack.c.b16 %v189, %v188
    %v200 = vpack.c.b16 %v191, %v190
    %v201 = vpack.c.b16 %v193, %v192
    %210 = vst [vmem:[%s2] sm:$0xff] %v194
    %211 = vst [vmem:[%s2 + $0x8] sm:$0xff] %v195
    %212 = vst [vmem:[%s2 + $0x10] sm:$0xff] %v196
    %213 = vst [vmem:[%s2 + $0x18] sm:$0xff] %v197
    %214 = vst [vmem:[%s2 + $0x20] sm:$0xff] %v198
    %215 = vst [vmem:[%s2 + $0x28] sm:$0xff] %v199
    %216 = vst [vmem:[%s2 + $0x30] sm:$0xff] %v200
    %217 = vst [vmem:[%s2 + $0x38] sm:$0xff] %v201
    // Predicated region
    $region18: #{transformer_block_forward.8} parent=1 // pred_check
      _
    $region19: #{transformer_block_forward.8} parent=1 // pred_check_branch
      %219 = sbr.rel (0) target = $region21
    $region20: #{transformer_block_forward.8} parent=1 // pred_region
      _
    $region21: #{transformer_block_forward.8} parent=1 // pred_fallthru
      _
    // Predicated region
    $region22: #{transformer_block_forward.8} parent=1 // pred_check
      _
    $region23: #{transformer_block_forward.8} parent=1 // pred_check_branch
      %221 = sbr.rel (0) target = $region25
    $region24: #{transformer_block_forward.8} parent=1 // pred_region
      _
    $region25: #{transformer_block_forward.8} parent=1 // pred_fallthru
      _
    %222 = vsyncpa [#allocation3], 1
    %223 = vsyncpa [#allocation5], 1

// kernel: transformer_block_forward.11
$region0: #{transformer_block_forward.11}
  #allocation0 [shape = 'u32[]', space=smem, size = 0x4, offset = 0x4, fixed_abs, tag = 'smem constant byte address 0x4 - core index']
  #allocation1 [shape = 'u32[144,128]{1,0:T(1,128)}', space=vmem, size = 0x12000, scoped, tag = 'internal scratch']
  #allocation2 [shape = 'f32[32,1]{1,0:T(8,128)}', space=vmem, size = 0x4000, scoped, tag = 'scratch operand']
  #allocation3 [shape = 'f32[32,1]{1,0:T(8,128)}', space=vmem, size = 0x4000, scoped, tag = 'scratch operand']
  #allocation4 [shape = 'f32[32,64]{1,0:T(8,128)}', space=vmem, size = 0x4000, scoped, tag = 'scratch operand']
  %s0 = inlined_call_operand.vmem [shape: bf16[2,4,32,64], index: 0, kind: input, shape index: {}]
  %s1 = inlined_call_operand.vmem [shape: bf16[4,2,64,64], index: 1, kind: input, shape index: {}]
  %s2 = inlined_call_operand.vmem [shape: bf16[4,2,64,64], index: 2, kind: input, shape index: {}]
  %s3 = inlined_call_operand.vmem [shape: bf16[2,32,256], index: 3, kind: output, shape index: {}]
  %s4 = sld [smem:[#allocation0]]
  $region135: #{transformer_block_forward.11} parent=0
    _
  %s6 = ssub.s32 1, %s4
  %s7 = scalar_select 0, %s6, %s4
  $region1: #{transformer_block_forward.11} parent=0
    #allocation5 [shape = 'u8[16384]{0}', space=vmem, size = 0x4000, scoped, tag = 'input window, operand 0']
    #allocation6 [shape = 'u8[8192]{0}', space=vmem, size = 0x2000, scoped, tag = 'output window, operand 0']
    loop: start=0, step=1, limit=18
    $region2: #{transformer_block_forward.11} parent=1 // loop_pre_header
      _
    $region3: #{transformer_block_forward.11} parent=1 // loop_header
      %s9 = sphi 0, %s13
      %p10 = scmp.ge.s32.totalorder %s9, 18
      %s16 = sphi 0, %s42
      %s17 = sphi 0, %s38
      %s18 = sphi 0, %s34
      %s19 = sphi 0, %s30
      %s20 = sphi 0, %s16
      %s21 = sphi 0, %s17
      %s22 = sphi 0, %s18
      %s23 = sphi 0, %s19
      %s24 = sphi 0, %s20
      %s25 = sphi 0, %s21
      %s26 = sphi 0, %s22
      %s27 = sphi 0, %s23
      %s49 = sphi 0, %s51
      %s52 = sphi 0, %s49
      %s53 = sphi 0, %s52
      %s69 = sphi 0, %s53
      %s79 = sphi 0, %s81
      %s82 = sphi 0, %s79
      %s83 = sphi 0, %s82
      %s99 = sphi 0, %s83
      %s109 = sphi 0, %s111
      %s112 = sphi 0, %s109
      %s113 = sphi 0, %s112
      %s129 = sphi 0, %s113
      %s139 = sphi 0, %s141
      %s142 = sphi 0, %s139
      %s143 = sphi 0, %s142
      %s159 = sphi 0, %s143
    $region4: #{transformer_block_forward.11} parent=1 // loop_header_branch
      %12 = sbr.rel (%p10) target = $region8
    $region5: #{transformer_block_forward.11} parent=1 // loop_body
      %s14 = ssub.s32 %s9, 1
      %s15 = ssub.s32 %s9, 2
      %s28 = sadd.s32 1, %s19
      %p29 = scmp.ge.s32.totalorder %s28, 2
      %s30 = scalar_select %p29, 0, %s28
      %s31 = sadd.s32 1, %s18
      %s32 = scalar_select %p29, %s31, %s18
      %p33 = scmp.ge.s32.totalorder %s32, 2
      %s34 = scalar_select %p33, 0, %s32
      %s35 = sadd.s32 1, %s17
      %s36 = scalar_select %p33, %s35, %s17
      %p37 = scmp.ge.s32.totalorder %s36, 2
      %s38 = scalar_select %p37, 0, %s36
      %s39 = sadd.s32 1, %s16
      %s40 = scalar_select %p37, %s39, %s16
      %p41 = scmp.ge.s32.totalorder %s40, 2
      %s42 = scalar_select %p41, 0, %s40
      %s43 = ssub.s32 %s16, %s42
      %s44 = ssub.s32 %s17, %s38
      %s45 = sor.u32 %s43, %s44
      %s46 = ssub.s32 %s18, %s34
      %s47 = sor.u32 %s45, %s46
      %p48 = scmp.eq.s32.totalorder %s47, 0
      %s50 = sadd.s32 %s49, 1
      %s51 = scalar_select %p48, %s49, %s50
      %p54 = pneg %p48
      %p55 = scmp.eq.s32.totalorder %s9, 15
      %p56 = por %p54, %p55
      %p57 = scmp.ne.s32.totalorder %s49, %s52
      %p58 = scmp.eq.s32.totalorder %s9, 0
      %p59 = por %p57, %p58
      %p60 = scmp.ne.s32.totalorder %s49, %s52
      %p61 = scmp.eq.s32.totalorder %s14, 15
      %p62 = por %p60, %p61
      %p63 = scmp.ne.s32.totalorder %s52, %s53
      %p64 = scmp.eq.s32.totalorder %s14, 0
      %p65 = por %p63, %p64
      %p66 = scmp.ne.s32.totalorder %s52, %s53
      %p67 = scmp.eq.s32.totalorder %s15, 15
      %p68 = por %p66, %p67
      %p70 = scmp.ne.s32.totalorder %s53, %s69
      %p71 = scmp.eq.s32.totalorder %s15, 0
      %p72 = por %p70, %p71
      %s73 = ssub.s32 %s16, %s42
      %s74 = ssub.s32 %s17, %s38
      %s75 = sor.u32 %s73, %s74
      %s76 = ssub.s32 %s19, %s30
      %s77 = sor.u32 %s75, %s76
      %p78 = scmp.eq.s32.totalorder %s77, 0
      %s80 = sadd.s32 %s79, 1
      %s81 = scalar_select %p78, %s79, %s80
      %p84 = pneg %p78
      %p85 = scmp.eq.s32.totalorder %s9, 15
      %p86 = por %p84, %p85
      %p87 = scmp.ne.s32.totalorder %s79, %s82
      %p88 = scmp.eq.s32.totalorder %s9, 0
      %p89 = por %p87, %p88
      %p90 = scmp.ne.s32.totalorder %s79, %s82
      %p91 = scmp.eq.s32.totalorder %s14, 15
      %p92 = por %p90, %p91
      %p93 = scmp.ne.s32.totalorder %s82, %s83
      %p94 = scmp.eq.s32.totalorder %s14, 0
      %p95 = por %p93, %p94
      %p96 = scmp.ne.s32.totalorder %s82, %s83
      %p97 = scmp.eq.s32.totalorder %s15, 15
      %p98 = por %p96, %p97
      %p100 = scmp.ne.s32.totalorder %s83, %s99
      %p101 = scmp.eq.s32.totalorder %s15, 0
      %p102 = por %p100, %p101
      %s103 = ssub.s32 %s16, %s42
      %s104 = ssub.s32 %s17, %s38
      %s105 = sor.u32 %s103, %s104
      %s106 = ssub.s32 %s19, %s30
      %s107 = sor.u32 %s105, %s106
      %p108 = scmp.eq.s32.totalorder %s107, 0
      %s110 = sadd.s32 %s109, 1
      %s111 = scalar_select %p108, %s109, %s110
      %p114 = pneg %p108
      %p115 = scmp.eq.s32.totalorder %s9, 15
      %p116 = por %p114, %p115
      %p117 = scmp.ne.s32.totalorder %s109, %s112
      %p118 = scmp.eq.s32.totalorder %s9, 0
      %p119 = por %p117, %p118
      %p120 = scmp.ne.s32.totalorder %s109, %s112
      %p121 = scmp.eq.s32.totalorder %s14, 15
      %p122 = por %p120, %p121
      %p123 = scmp.ne.s32.totalorder %s112, %s113
      %p124 = scmp.eq.s32.totalorder %s14, 0
      %p125 = por %p123, %p124
      %p126 = scmp.ne.s32.totalorder %s112, %s113
      %p127 = scmp.eq.s32.totalorder %s15, 15
      %p128 = por %p126, %p127
      %p130 = scmp.ne.s32.totalorder %s113, %s129
      %p131 = scmp.eq.s32.totalorder %s15, 0
      %p132 = por %p130, %p131
      %s133 = ssub.s32 %s16, %s42
      %s134 = ssub.s32 %s18, %s34
      %s135 = sor.u32 %s133, %s134
      %s136 = ssub.s32 %s17, %s38
      %s137 = sor.u32 %s135, %s136
      %p138 = scmp.eq.s32.totalorder %s137, 0
      %s140 = sadd.s32 %s139, 1
      %s141 = scalar_select %p138, %s139, %s140
      %p144 = pneg %p138
      %p145 = scmp.eq.s32.totalorder %s9, 15
      %p146 = por %p144, %p145
      %p147 = scmp.ne.s32.totalorder %s139, %s142
      %p148 = scmp.eq.s32.totalorder %s9, 0
      %p149 = por %p147, %p148
      %p150 = scmp.ne.s32.totalorder %s139, %s142
      %p151 = scmp.eq.s32.totalorder %s14, 15
      %p152 = por %p150, %p151
      %p153 = scmp.ne.s32.totalorder %s142, %s143
      %p154 = scmp.eq.s32.totalorder %s14, 0
      %p155 = por %p153, %p154
      %p156 = scmp.ne.s32.totalorder %s142, %s143
      %p157 = scmp.eq.s32.totalorder %s15, 15
      %p158 = por %p156, %p157
      %p160 = scmp.ne.s32.totalorder %s143, %s159
      %p161 = scmp.eq.s32.totalorder %s15, 0
      %p162 = por %p160, %p161
      %p163 = scmp.le.s32.totalorder 1, %s9
      %p164 = scmp.lt.s32.totalorder %s9, 17
      %p165 = pnand %p163, %p164
      %p166 = pneg %p165
      // Predicated region
      $region9: #{transformer_block_forward.11} parent=5 // pred_check
        _
      $region10: #{transformer_block_forward.11} parent=5 // pred_check_branch
        %168 = sbr.rel (%p165) target = $region12
      $region11: #{transformer_block_forward.11} parent=5 // pred_region
        %s169 = ssub.s32 %s9, 1
      $region12: #{transformer_block_forward.11} parent=5 // pred_fallthru
        _
      %p170 = scmp.lt.s32.totalorder %s9, 16
      // Predicated region
      $region13: #{transformer_block_forward.11} parent=5 // pred_check
        %p171 = pneg %p170
      $region14: #{transformer_block_forward.11} parent=5 // pred_check_branch
        %173 = sbr.rel (%p171) target = $region16
      $region15: #{transformer_block_forward.11} parent=5 // pred_region
        // Predicated region
        $region17: #{transformer_block_forward.11} parent=15 // pred_check
          %p174 = pneg %p59
        $region18: #{transformer_block_forward.11} parent=15 // pred_check_branch
          %176 = sbr.rel (%p174) target = $region20
        $region19: #{transformer_block_forward.11} parent=15 // pred_region
          %s177 = sand.u32 %s49, 1
          %s178 = sand.u32 %s49, 1
          %s179 = smul.addr %s178, 16
          %s180 = scalar_lea.vmem [#allocation5], %s179
          %s181 = smul.u32 2, %s17
          %s182 = smul.u32 2, %s18
          %s183 = smul.addr %s181, 4
          %s184 = sadd.s32 %s182, %s183
          %s185 = smul.addr %s16, 16
          %s186 = sadd.s32 %s184, %s185
          %s187 = smul.addr %s186, 4
          %s188 = scalar_lea.vmem %s0, %s187
          // Predicated region
          $region21: #{transformer_block_forward.11} parent=19 // pred_check
            _
          $region22: #{transformer_block_forward.11} parent=19 // pred_check_branch
            %190 = sbr.rel (0) target = $region24
          $region23: #{transformer_block_forward.11} parent=19 // pred_region
            // Predicated region
            $region25: #{transformer_block_forward.11} parent=23 // pred_check
              _
            $region26: #{transformer_block_forward.11} parent=23 // pred_check_branch
              %192 = sbr.rel target = $region28
            $region27: #{transformer_block_forward.11} parent=23 // pred_region
              // Predicated region
              $region40: #{transformer_block_forward.11} parent=27 // pred_check
                _
              $region41: #{transformer_block_forward.11} parent=27 // pred_check_branch
                %213 = sbr.rel (0) target = $region43
              $region42: #{transformer_block_forward.11} parent=27 // pred_region
                loop: start=0, step=1, limit=1
                $region44: #{transformer_block_forward.11} parent=42 // loop_pre_header
                  _
                $region45: #{transformer_block_forward.11} parent=42 // loop_header
                  %s215 = sphi 0, %s219
                  %p216 = scmp.ge.s32.totalorder %s215, 1
                  %s220 = sphi %s188, %s188
                  %s221 = sphi %s180, %s180
                $region46: #{transformer_block_forward.11} parent=42 // loop_header_branch
                  %218 = sbr.rel (%p216) target = $region50
                $region47: #{transformer_block_forward.11} parent=42 // loop_body
                  _
                $region48: #{transformer_block_forward.11} parent=42 // loop_footer
                  %s219 = sadd.s32 1, %s215
                $region49: #{transformer_block_forward.11} parent=42 // loop_footer_branch
                  %214 = sbr.rel target = $region45
                $region50: #{transformer_block_forward.11} parent=42 // loop_exit
                  _
                loop: start=0, step=1, limit=1
                $region51: #{transformer_block_forward.11} parent=42 // loop_pre_header
                  _
                $region52: #{transformer_block_forward.11} parent=42 // loop_header
                  %s224 = sphi 0, %s228
                  %p225 = scmp.ge.s32.totalorder %s224, 1
                  %s229 = sphi %s188, %s188
                  %s230 = sphi %s180, %s180
                $region53: #{transformer_block_forward.11} parent=42 // loop_header_branch
                  %227 = sbr.rel (%p225) target = $region57
                $region54: #{transformer_block_forward.11} parent=42 // loop_body
                  %v231 = vld [vmem:[%s229] sm:$0xf]
                  %232 = vst [vmem:[%s230] sm:$0xf] %v231
                  %v233 = vld [vmem:[%s229 + $0x4] sm:$0xf]
                  %234 = vst [vmem:[%s230 + $0x4] sm:$0xf] %v233
                  %v235 = vld [vmem:[%s229 + $0x10] sm:$0xf]
                  %236 = vst [vmem:[%s230 + $0x8] sm:$0xf] %v235
                  %v237 = vld [vmem:[%s229 + $0x14] sm:$0xf]
                  %238 = vst [vmem:[%s230 + $0xc] sm:$0xf] %v237
                $region55: #{transformer_block_forward.11} parent=42 // loop_footer
                  %s228 = sadd.s32 1, %s224
                $region56: #{transformer_block_forward.11} parent=42 // loop_footer_branch
                  %223 = sbr.rel target = $region52
                $region57: #{transformer_block_forward.11} parent=42 // loop_exit
                  _
              $region43: #{transformer_block_forward.11} parent=27 // pred_fallthru
                _
            $region28: #{transformer_block_forward.11} parent=23 // pred_fallthru
              _
            // Predicated region
            $region29: #{transformer_block_forward.11} parent=23 // pred_check
              _
            $region30: #{transformer_block_forward.11} parent=23 // pred_check_branch
              %194 = sbr.rel (0) target = $region32
            $region31: #{transformer_block_forward.11} parent=23 // pred_region
              loop: start=0, step=1, limit=1
              $region33: #{transformer_block_forward.11} parent=31 // loop_pre_header
                _
              $region34: #{transformer_block_forward.11} parent=31 // loop_header
                %s197 = sphi 0, %s201
                %p198 = scmp.ge.s32.totalorder %s197, 1
                %s202 = sphi %s188, %s188
                %s203 = sphi %s180, %s180
              $region35: #{transformer_block_forward.11} parent=31 // loop_header_branch
                %200 = sbr.rel (%p198) target = $region39
              $region36: #{transformer_block_forward.11} parent=31 // loop_body
                %v204 = vld [vmem:[%s202] sm:$0xf]
                %205 = vst [vmem:[%s203] sm:$0xf] %v204
                %v206 = vld [vmem:[%s202 + $0x4] sm:$0xf]
                %207 = vst [vmem:[%s203 + $0x4] sm:$0xf] %v206
                %v208 = vld [vmem:[%s202 + $0x10] sm:$0xf]
                %209 = vst [vmem:[%s203 + $0x8] sm:$0xf] %v208
                %v210 = vld [vmem:[%s202 + $0x14] sm:$0xf]
                %211 = vst [vmem:[%s203 + $0xc] sm:$0xf] %v210
              $region37: #{transformer_block_forward.11} parent=31 // loop_footer
                %s201 = sadd.s32 1, %s197
              $region38: #{transformer_block_forward.11} parent=31 // loop_footer_branch
                %196 = sbr.rel target = $region34
              $region39: #{transformer_block_forward.11} parent=31 // loop_exit
                _
            $region32: #{transformer_block_forward.11} parent=23 // pred_fallthru
              _
          $region24: #{transformer_block_forward.11} parent=19 // pred_fallthru
            _
          %239 = vnop
        $region20: #{transformer_block_forward.11} parent=15 // pred_fallthru
          _
        // Predicated region
        $region58: #{transformer_block_forward.11} parent=15 // pred_check
          %p240 = pneg %p89
        $region59: #{transformer_block_forward.11} parent=15 // pred_check_branch
          %242 = sbr.rel (%p240) target = $region61
        $region60: #{transformer_block_forward.11} parent=15 // pred_region
          %s243 = smul.u32 2, %s19
          %p244 = scmp.lt.s32.totalorder %s16, 3
          %s245 = scalar_select %p244, %s16, 3
          %p246 = scmp.lt.s32.totalorder %s17, 1
          %s247 = scalar_select %p246, %s17, 1
          %p248 = scmp.lt.s32.totalorder %s243, 7
          %s249 = scalar_select %p248, %s243, 7
          %s250 = smul.addr %s247, 8
          %s251 = sadd.s32 %s249, %s250
          %s252 = smul.addr %s245, 16
          %s253 = sadd.s32 %s251, %s252
          %s254 = smul.addr %s253, 4
          %s255 = scalar_lea.vmem %s1, %s254
          %s256 = smul.u32 2, %s19
        $region61: #{transformer_block_forward.11} parent=15 // pred_fallthru
          _
        // Predicated region
        $region62: #{transformer_block_forward.11} parent=15 // pred_check
          %p257 = pneg %p119
        $region63: #{transformer_block_forward.11} parent=15 // pred_check_branch
          %259 = sbr.rel (%p257) target = $region65
        $region64: #{transformer_block_forward.11} parent=15 // pred_region
          %s260 = smul.u32 2, %s19
          %p261 = scmp.lt.s32.totalorder %s16, 3
          %s262 = scalar_select %p261, %s16, 3
          %p263 = scmp.lt.s32.totalorder %s17, 1
          %s264 = scalar_select %p263, %s17, 1
          %p265 = scmp.lt.s32.totalorder %s260, 7
          %s266 = scalar_select %p265, %s260, 7
          %s267 = smul.addr %s264, 8
          %s268 = sadd.s32 %s266, %s267
          %s269 = smul.addr %s262, 16
          %s270 = sadd.s32 %s268, %s269
          %s271 = smul.addr %s270, 4
          %s272 = scalar_lea.vmem %s2, %s271
          %s273 = smul.u32 2, %s19
        $region65: #{transformer_block_forward.11} parent=15 // pred_fallthru
          _
      $region16: #{transformer_block_forward.11} parent=5 // pred_fallthru
        _
      %p274 = scmp.le.s32.totalorder 1, %s9
      %p275 = scmp.lt.s32.totalorder %s9, 17
      %p276 = pnand %p274, %p275
      %p277 = pneg %p276
      // Predicated region
      $region66: #{transformer_block_forward.11} parent=5 // pred_check
        _
      $region67: #{transformer_block_forward.11} parent=5 // pred_check_branch
        %279 = sbr.rel (%p276) target = $region69
      $region68: #{transformer_block_forward.11} parent=5 // pred_region
        %s280 = ssub.s32 %s9, 1
        %s281 = sand.u32 %s52, 1
        %s282 = sand.u32 %s52, 1
        %s283 = smul.addr %s282, 16
        %s284 = scalar_lea.vmem [#allocation5], %s283
        // Predicated region
        $region70: #{transformer_block_forward.11} parent=68 // pred_check
          %p285 = pneg %p65
        $region71: #{transformer_block_forward.11} parent=68 // pred_check_branch
          %287 = sbr.rel (%p285) target = $region73
        $region72: #{transformer_block_forward.11} parent=68 // pred_region
          _
        $region73: #{transformer_block_forward.11} parent=68 // pred_fallthru
          _
        %s288 = sand.u32 %s52, 1
        %s289 = sand.u32 %s52, 1
        %s290 = smul.addr %s289, 16
        %s291 = scalar_lea.vmem [#allocation5], %s290
        %p292 = pneg %p65
        %p293 = pneg %p62
        %s294 = smul.u32 2, %s23
        %p295 = scmp.lt.s32.totalorder %s20, 3
        %s296 = scalar_select %p295, %s20, 3
        %p297 = scmp.lt.s32.totalorder %s21, 1
        %s298 = scalar_select %p297, %s21, 1
        %p299 = scmp.lt.s32.totalorder %s294, 7
        %s300 = scalar_select %p299, %s294, 7
        %s301 = smul.addr %s298, 8
        %s302 = sadd.s32 %s300, %s301
        %s303 = smul.addr %s296, 16
        %s304 = sadd.s32 %s302, %s303
        %s305 = smul.addr %s304, 4
        %s306 = scalar_lea.vmem %s1, %s305
        %p307 = pneg %p95
        %p308 = pneg %p92
        %s309 = smul.u32 2, %s23
        %p310 = scmp.lt.s32.totalorder %s20, 3
        %s311 = scalar_select %p310, %s20, 3
        %p312 = scmp.lt.s32.totalorder %s21, 1
        %s313 = scalar_select %p312, %s21, 1
        %p314 = scmp.lt.s32.totalorder %s309, 7
        %s315 = scalar_select %p314, %s309, 7
        %s316 = smul.addr %s313, 8
        %s317 = sadd.s32 %s315, %s316
        %s318 = smul.addr %s311, 16
        %s319 = sadd.s32 %s317, %s318
        %s320 = smul.addr %s319, 4
        %s321 = scalar_lea.vmem %s2, %s320
        %p322 = pneg %p125
        %p323 = pneg %p122
        %p324 = pneg %p155
        %p325 = pneg %p152
        %s326 = sand.u32 %s142, 1
        %s327 = sand.u32 %s142, 1
        %s328 = smul.addr %s327, 8
        %s329 = scalar_lea.vmem [#allocation6], %s328
        %s330 = smul.u32 2, %s21
        %s331 = smul.u32 2, %s22
        %s332 = smul.u32 2, %s23
        %p333 = scmp.lt.s32.totalorder %s20, 3
        %s334 = scalar_select %p333, %s20, 3
        %p335 = scmp.lt.s32.totalorder %s21, 1
        %s336 = scalar_select %p335, %s21, 1
        %p337 = scmp.lt.s32.totalorder %s332, 7
        %s338 = scalar_select %p337, %s332, 7
        %s339 = smul.addr %s336, 8
        %s340 = sadd.s32 %s338, %s339
        %s341 = smul.addr %s334, 16
        %s342 = sadd.s32 %s340, %s341
        %s343 = smul.addr %s342, 4
        %s344 = scalar_lea.vmem %s1, %s343
        %s345 = smul.u32 2, %s23
        %s346 = smul.u32 2, %s23
        %p347 = scmp.lt.s32.totalorder %s20, 3
        %s348 = scalar_select %p347, %s20, 3
        %p349 = scmp.lt.s32.totalorder %s21, 1
        %s350 = scalar_select %p349, %s21, 1
        %p351 = scmp.lt.s32.totalorder %s346, 7
        %s352 = scalar_select %p351, %s346, 7
        %s353 = smul.addr %s350, 8
        %s354 = sadd.s32 %s352, %s353
        %s355 = smul.addr %s348, 16
        %s356 = sadd.s32 %s354, %s355
        %s357 = smul.addr %s356, 4
        %s358 = scalar_lea.vmem %s2, %s357
        %s359 = smul.u32 2, %s23
        %s360 = smul.u32 2, %s22
        %p362 = scmp.eq.s32.totalorder %s23, 0
        // Predicated region
        $region74: #{transformer_block_forward.11} parent=68 // pred_check
          %p363 = pneg %p362
        $region75: #{transformer_block_forward.11} parent=68 // pred_check_branch
          %365 = sbr.rel (%p363) target = $region77
        $region76: #{transformer_block_forward.11} parent=68 // pred_region
          %vm366 = vcmask 7168
          %367 = vst.msk [vmem:[#allocation2] sm:$0xff] %vm366, -1e+30
          %368 = vst.msk [vmem:[#allocation2 + $0x8] sm:$0xff] %vm366, -1e+30
          %369 = vst.msk [vmem:[#allocation2 + $0x10] sm:$0xff] %vm366, -1e+30
          %370 = vst.msk [vmem:[#allocation2 + $0x18] sm:$0xff] %vm366, -1e+30
          %371 = vst.msk [vmem:[#allocation3] sm:$0xff] %vm366, 0.0
          %372 = vst.msk [vmem:[#allocation3 + $0x8] sm:$0xff] %vm366, 0.0
          %373 = vst.msk [vmem:[#allocation3 + $0x10] sm:$0xff] %vm366, 0.0
          %374 = vst.msk [vmem:[#allocation3 + $0x18] sm:$0xff] %vm366, 0.0
          %vm375 = vcmask 523264
          %376 = vst.msk [vmem:[#allocation4] sm:$0xff] %vm375, 0.0
          %377 = vst.msk [vmem:[#allocation4 + $0x8] sm:$0xff] %vm375, 0.0
          %378 = vst.msk [vmem:[#allocation4 + $0x10] sm:$0xff] %vm375, 0.0
          %379 = vst.msk [vmem:[#allocation4 + $0x18] sm:$0xff] %vm375, 0.0
        $region77: #{transformer_block_forward.11} parent=68 // pred_fallthru
          _
        %s380 = smul.u32 %s23, 16
        %s381 = sadd.s32 %s22, 1
        %s382 = smul.u32 %s381, 16
        %s383 = ssub.s32 %s382, 1
        %p384 = scmp.le.s32.totalorder %s380, %s383
        // Predicated region
        $region78: #{transformer_block_forward.11} parent=68 // pred_check
          %p385 = pneg %p384
        $region79: #{transformer_block_forward.11} parent=68 // pred_check_branch
          %387 = sbr.rel (%p385) target = $region81
        $region80: #{transformer_block_forward.11} parent=68 // pred_region
          %v388 = vld [vmem:[%s284] sm:$0xf]
          %v389 = vld [vmem:[%s284 + $0x4] sm:$0xf]
          %v390 = vld [vmem:[%s284 + $0x8] sm:$0xf]
          %v391 = vld [vmem:[%s284 + $0xc] sm:$0xf]
          %v392 = vld [vmem:[%s344] sm:$0xf]
          %v393 = vld [vmem:[%s344 + $0x4] sm:$0xf]
          %v394 = vld [vmem:[%s358] sm:$0xf]
          %v395 = vld [vmem:[%s358 + $0x4] sm:$0xf]
          %v400 = vunpack.c.l.b16 %v388
          %v401 = vunpack.c.l.b16 %v389
          %v402 = vunpack.c.l.b16 %v390
          %v403 = vunpack.c.l.b16 %v391
          %v404 = vpack.c.b16 %v401, %v400
          %v405 = vpack.c.b16 %v403, %v402
          %v408 = vunpack.c.l.b16 %v392
          %v409 = vunpack.c.l.b16 %v393
          %v410 = vpack.c.b16 %v409, %v408
          %vm411 = vcmask 523264
          %v413 = vsel %vm411, %v404, 0
          %v416 = vsel %vm411, %v405, 0
          %v419 = vsel %vm411, %v410, 0
          %421 = vmatprep.subr.bf16.mxu0 0
          %422 = vmatpush1.bf16.xpose.msra.mxu0 %v419
          %423 = vmatprep.subr.bf16.mxu0 0
          %424 = vmatpush1.bf16.xpose.msra.mxu0 0
          %425 = vmatprep.subr.bf16.mxu0 0
          %426 = vmatpush1.bf16.xpose.msra.mxu0 0
          %427 = vmatprep.subr.bf16.mxu0 0
          %428 = vmatpush1.bf16.xpose.msra.mxu0 0
          %429 = vmatprep.subr.bf16.mxu0 0
          %430 = vmatpush1.bf16.xpose.msra.mxu0 0
          %431 = vmatprep.subr.bf16.mxu0 0
          %432 = vmatpush1.bf16.xpose.msra.mxu0 0
          %433 = vmatprep.subr.bf16.mxu0 0
          %434 = vmatpush1.bf16.xpose.msra.mxu0 0
          %435 = vmatprep.subr.bf16.mxu0 0
          %436 = vmatpush1.bf16.xpose.msra.mxu0 0
          %437 = vmatprep.subr.bf16.mxu0 0
          %438 = vmatpush1.bf16.xpose.msra.mxu0 0
          %439 = vmatprep.subr.bf16.mxu0 0
          %440 = vmatpush1.bf16.xpose.msra.mxu0 0
          %441 = vmatprep.subr.bf16.mxu0 0
          %442 = vmatpush1.bf16.xpose.msra.mxu0 0
          %443 = vmatprep.subr.bf16.mxu0 0
          %444 = vmatpush1.bf16.xpose.msra.mxu0 0
          %445 = vmatprep.subr.bf16.mxu0 0
          %446 = vmatpush1.bf16.xpose.msra.mxu0 0
          %447 = vmatprep.subr.bf16.mxu0 0
          %448 = vmatpush1.bf16.xpose.msra.mxu0 0
          %449 = vmatprep.subr.bf16.mxu0 0
          %450 = vmatpush1.bf16.xpose.msra.mxu0 0
          %451 = vmatprep.subr.bf16.mxu0 0
          %452 = vmatpush1.bf16.xpose.msra.mxu0 0
          %453 = vmatprep.mubr.bf16.mxu0 0
          %454 = vmatmul.mubr.bf16.gmra.mrb[0].mxu0 %v413
          %v455 = vpop.f32.mrb[0].mxu0
          %v456 = vadd.f32 0.0, %v455
          %v457 = vpop.f32.mrb[0].mxu0
          %v458 = vpop.f32.mrb[0].mxu0
          %v459 = vadd.f32 0.0, %v458
          %v460 = vpop.f32.mrb[0].mxu0
          %461 = vmatprep.mubr.bf16.mxu0 0
          %462 = vmatmul.mubr.bf16.gmra.mrb[0].mxu0 %v416
          %v463 = vpop.f32.mrb[0].mxu0
          %v464 = vadd.f32 0.0, %v463
          %v465 = vpop.f32.mrb[0].mxu0
          %v466 = vpop.f32.mrb[0].mxu0
          %v467 = vadd.f32 0.0, %v466
          %v468 = vpop.f32.mrb[0].mxu0
          %469 = vdwg.mxu0
          %v470 = vlaneseq
          %v471 = vshrl.u32 %v470, 7
          %v472 = vadd.s32 %v471, 8
          %v473 = vlaneseq
          %v474 = vand.u32 %v473, 127
          %s475 = smul.u32 %s22, 16
          %v476 = vstv %s475
          %v477 = vadd.s32 %v476, %v471
          %v478 = vadd.s32 %v476, %v472
          %v479 = vstv %s380
          %v480 = vadd.s32 %v479, %v474
          %vm481 = vcmp.le.s32.totalorder %v480, %v477
          %vm482 = vcmp.le.s32.totalorder %v480, %v478
          %v483 = vsel %vm481, %v456, -1e+30
          %v484 = vsel %vm482, %v459, -1e+30
          %v485 = vsel %vm481, %v464, -1e+30
          %v486 = vsel %vm482, %v467, -1e+30
          %v487 = vld [vmem:[#allocation2] sm:$0xff]
          %v488 = vld [vmem:[#allocation2 + $0x8] sm:$0xff]
          %v489 = vld [vmem:[#allocation2 + $0x10] sm:$0xff]
          %v490 = vld [vmem:[#allocation2 + $0x18] sm:$0xff]
          %vm491 = vcmask 130048
          %v492 = vsel %vm491, %v483, -inf
          %493 = vmax.xlane.f32.xlu0 %v492
          %v494 = vpop.xlane.xlu0 %493
          %v495 = vsel %vm491, %v484, -inf
          %496 = vmax.xlane.f32.xlu0 %v495
          %v497 = vpop.xlane.xlu0 %496
          %v498 = vsel %vm491, %v485, -inf
          %499 = vmax.xlane.f32.xlu0 %v498
          %v500 = vpop.xlane.xlu0 %499
          %v501 = vsel %vm491, %v486, -inf
          %502 = vmax.xlane.f32.xlu0 %v501
          %v503 = vpop.xlane.xlu0 %502
          %v504 = vmax.f32 %v487, %v494
          %v505 = vmax.f32 %v488, %v497
          %v506 = vmax.f32 %v489, %v500
          %v507 = vmax.f32 %v490, %v503
          %v508 = vsub.f32 %v487, %v504
          %v509 = vsub.f32 %v488, %v505
          %v510 = vsub.f32 %v489, %v506
          %v511 = vsub.f32 %v490, %v507
          %v512 = vmul.f32 %v508, 1.442695
          %v513 = vpow.pop %v512
          %v514 = vmul.f32 %v509, 1.442695
          %v515 = vpow.pop %v514
          %v516 = vmul.f32 %v510, 1.442695
          %v517 = vpow.pop %v516
          %v518 = vmul.f32 %v511, 1.442695
          %v519 = vpow.pop %v518
          %521 = vset.pattern.permute.xlu0 0
          %522 = vperm.xlu0 %521, %v504
          %v523 = vpop.permute.xlu0 %522
          %526 = vset.pattern.permute.xlu0 0
          %527 = vperm.xlu0 %526, %v505
          %v528 = vpop.permute.xlu0 %527
          %531 = vset.pattern.permute.xlu0 0
          %532 = vperm.xlu0 %531, %v506
          %v533 = vpop.permute.xlu0 %532
          %536 = vset.pattern.permute.xlu0 0
          %537 = vperm.xlu0 %536, %v507
          %v538 = vpop.permute.xlu0 %537
          %v540 = vsub.f32 %v483, %v523
          %v541 = vsub.f32 %v484, %v528
          %v542 = vsub.f32 %v485, %v533
          %v543 = vsub.f32 %v486, %v538
          %v544 = vmul.f32 %v540, 1.442695
          %v545 = vpow.pop %v544
          %v546 = vmul.f32 %v541, 1.442695
          %v547 = vpow.pop %v546
          %v548 = vmul.f32 %v542, 1.442695
          %v549 = vpow.pop %v548
          %v550 = vmul.f32 %v543, 1.442695
          %v551 = vpow.pop %v550
          %v552 = vld [vmem:[#allocation3] sm:$0xff]
          %v553 = vld [vmem:[#allocation3 + $0x8] sm:$0xff]
          %v554 = vld [vmem:[#allocation3 + $0x10] sm:$0xff]
          %v555 = vld [vmem:[#allocation3 + $0x18] sm:$0xff]
          %v556 = vmul.f32 %v513, %v552
          %v557 = vmul.f32 %v515, %v553
          %v558 = vmul.f32 %v517, %v554
          %v559 = vmul.f32 %v519, %v555
          %v560 = vsel %vm491, %v545, 0.0
          %561 = vadd.xlane.f32.xlu0 %v560
          %v562 = vpop.xlane.xlu0 %561
          %v563 = vsel %vm491, %v547, 0.0
          %564 = vadd.xlane.f32.xlu0 %v563
          %v565 = vpop.xlane.xlu0 %564
          %v566 = vsel %vm491, %v549, 0.0
          %567 = vadd.xlane.f32.xlu0 %v566
          %v568 = vpop.xlane.xlu0 %567
          %v569 = vsel %vm491, %v551, 0.0
          %570 = vadd.xlane.f32.xlu0 %v569
          %v571 = vpop.xlane.xlu0 %570
          %v572 = vadd.f32 %v556, %v562
          %v573 = vadd.f32 %v557, %v565
          %v574 = vadd.f32 %v558, %v568
          %v575 = vadd.f32 %v559, %v571
          %vm576 = vcmask 7168
          %577 = vst.msk [vmem:[#allocation3] sm:$0xff] %vm576, %v572
          %578 = vst.msk [vmem:[#allocation3 + $0x8] sm:$0xff] %vm576, %v573
          %579 = vst.msk [vmem:[#allocation3 + $0x10] sm:$0xff] %vm576, %v574
          %580 = vst.msk [vmem:[#allocation3 + $0x18] sm:$0xff] %vm576, %v575
          %v581 = vld [vmem:[#allocation4] sm:$0xff]
          %v582 = vld [vmem:[#allocation4 + $0x8] sm:$0xff]
          %v583 = vld [vmem:[#allocation4 + $0x10] sm:$0xff]
          %v584 = vld [vmem:[#allocation4 + $0x18] sm:$0xff]
          %586 = vset.pattern.permute.xlu0 0
          %587 = vperm.xlu0 %586, %v513
          %v588 = vpop.permute.xlu0 %587
          %591 = vset.pattern.permute.xlu0 0
          %592 = vperm.xlu0 %591, %v515
          %v593 = vpop.permute.xlu0 %592
          %596 = vset.pattern.permute.xlu0 0
          %597 = vperm.xlu0 %596, %v517
          %v598 = vpop.permute.xlu0 %597
          %601 = vset.pattern.permute.xlu0 0
          %602 = vperm.xlu0 %601, %v519
          %v603 = vpop.permute.xlu0 %602
          %v605 = vmul.f32 %v588, %v581
          %v606 = vmul.f32 %v593, %v582
          %v607 = vmul.f32 %v598, %v583
          %v608 = vmul.f32 %v603, %v584
          %v609 = vpack.c.bf16 %v547, %v545
          %v610 = vpack.c.bf16 %v551, %v549
          %v613 = vunpack.c.l.b16 %v394
          %v614 = vunpack.c.l.b16 %v395
          %v615 = vpack.c.b16 %v614, %v613
          %v618 = vsel %vm491, %v609, 0
          %v621 = vsel %vm491, %v610, 0
          %623 = vmatprep.subr.bf16.mxu0 0
          %624 = vmatpush1.bf16.msra.mxu0 %v615
          %625 = vmatprep.subr.bf16.mxu0 0
          %626 = vmatpush1.bf16.msra.mxu0 0
          %627 = vmatprep.subr.bf16.mxu0 0
          %628 = vmatpush1.bf16.msra.mxu0 0
          %629 = vmatprep.subr.bf16.mxu0 0
          %630 = vmatpush1.bf16.msra.mxu0 0
          %631 = vmatprep.subr.bf16.mxu0 0
          %632 = vmatpush1.bf16.msra.mxu0 0
          %633 = vmatprep.subr.bf16.mxu0 0
          %634 = vmatpush1.bf16.msra.mxu0 0
          %635 = vmatprep.subr.bf16.mxu0 0
          %636 = vmatpush1.bf16.msra.mxu0 0
          %637 = vmatprep.subr.bf16.mxu0 0
          %638 = vmatpush1.bf16.msra.mxu0 0
          %639 = vmatprep.subr.bf16.mxu0 0
          %640 = vmatpush1.bf16.msra.mxu0 0
          %641 = vmatprep.subr.bf16.mxu0 0
          %642 = vmatpush1.bf16.msra.mxu0 0
          %643 = vmatprep.subr.bf16.mxu0 0
          %644 = vmatpush1.bf16.msra.mxu0 0
          %645 = vmatprep.subr.bf16.mxu0 0
          %646 = vmatpush1.bf16.msra.mxu0 0
          %647 = vmatprep.subr.bf16.mxu0 0
          %648 = vmatpush1.bf16.msra.mxu0 0
          %649 = vmatprep.subr.bf16.mxu0 0
          %650 = vmatpush1.bf16.msra.mxu0 0
          %651 = vmatprep.subr.bf16.mxu0 0
          %652 = vmatpush1.bf16.msra.mxu0 0
          %653 = vmatprep.subr.bf16.mxu0 0
          %654 = vmatpush1.bf16.msra.mxu0 0
          %655 = vmatprep.mubr.bf16.mxu0 0
          %656 = vmatmul.mubr.bf16.gmra.mrb[0].mxu0 %v618
          %v657 = vpop.f32.mrb[0].mxu0
          %v658 = vadd.f32 0.0, %v657
          %v659 = vpop.f32.mrb[0].mxu0
          %v660 = vpop.f32.mrb[0].mxu0
          %v661 = vadd.f32 0.0, %v660
          %v662 = vpop.f32.mrb[0].mxu0
          %663 = vmatprep.mubr.bf16.mxu0 0
          %664 = vmatmul.mubr.bf16.gmra.mrb[0].mxu0 %v621
          %v665 = vpop.f32.mrb[0].mxu0
          %v666 = vadd.f32 0.0, %v665
          %v667 = vpop.f32.mrb[0].mxu0
          %v668 = vpop.f32.mrb[0].mxu0
          %v669 = vadd.f32 0.0, %v668
          %v670 = vpop.f32.mrb[0].mxu0
          %671 = vdwg.mxu0
          %v672 = vadd.f32 %v605, %v658
          %v673 = vadd.f32 %v606, %v661
          %v674 = vadd.f32 %v607, %v666
          %v675 = vadd.f32 %v608, %v669
          %676 = vst.msk [vmem:[#allocation4] sm:$0xff] %vm411, %v672
          %677 = vst.msk [vmem:[#allocation4 + $0x8] sm:$0xff] %vm411, %v673
          %678 = vst.msk [vmem:[#allocation4 + $0x10] sm:$0xff] %vm411, %v674
          %679 = vst.msk [vmem:[#allocation4 + $0x18] sm:$0xff] %vm411, %v675
          %680 = vst.msk [vmem:[#allocation2] sm:$0xff] %vm576, %v504
          %681 = vst.msk [vmem:[#allocation2 + $0x8] sm:$0xff] %vm576, %v505
          %682 = vst.msk [vmem:[#allocation2 + $0x10] sm:$0xff] %vm576, %v506
          %683 = vst.msk [vmem:[#allocation2 + $0x18] sm:$0xff] %vm576, %v507
        $region81: #{transformer_block_forward.11} parent=68 // pred_fallthru
          _
        %p684 = scmp.eq.s32.totalorder %s23, 1
        // Predicated region
        $region82: #{transformer_block_forward.11} parent=68 // pred_check
          %p685 = pneg %p684
        $region83: #{transformer_block_forward.11} parent=68 // pred_check_branch
          %687 = sbr.rel (%p685) target = $region85
        $region84: #{transformer_block_forward.11} parent=68 // pred_region
          %v688 = vld [vmem:[#allocation4] sm:$0xff]
          %v689 = vld [vmem:[#allocation4 + $0x8] sm:$0xff]
          %v690 = vld [vmem:[#allocation4 + $0x10] sm:$0xff]
          %v691 = vld [vmem:[#allocation4 + $0x18] sm:$0xff]
          %v692 = vld [vmem:[#allocation3] sm:$0xff]
          %v693 = vld [vmem:[#allocation3 + $0x8] sm:$0xff]
          %v694 = vld [vmem:[#allocation3 + $0x10] sm:$0xff]
          %v695 = vld [vmem:[#allocation3 + $0x18] sm:$0xff]
          %v696 = vrcp.pop %v692
          %v697 = vrcp.pop %v693
          %v698 = vrcp.pop %v694
          %v699 = vrcp.pop %v695
          %701 = vset.pattern.permute.xlu0 0
          %702 = vperm.xlu0 %701, %v696
          %v703 = vpop.permute.xlu0 %702
          %706 = vset.pattern.permute.xlu0 0
          %707 = vperm.xlu0 %706, %v697
          %v708 = vpop.permute.xlu0 %707
          %711 = vset.pattern.permute.xlu0 0
          %712 = vperm.xlu0 %711, %v698
          %v713 = vpop.permute.xlu0 %712
          %716 = vset.pattern.permute.xlu0 0
          %717 = vperm.xlu0 %716, %v699
          %v718 = vpop.permute.xlu0 %717
          %v720 = vmul.f32 %v688, %v703
          %v721 = vmul.f32 %v689, %v708
          %v722 = vmul.f32 %v690, %v713
          %v723 = vmul.f32 %v691, %v718
          %v724 = vpack.c.bf16 %v721, %v720
          %v726 = vunpack.c.l.b16 %v724
          %v727 = vunpack.c.h.b16 %v724
          %v728 = vpack.c.b16 %v726, %v726
          %v729 = vpack.c.b16 %v727, %v727
          %vm732 = vcmask 519168
          %733 = vst.msk [vmem:[%s329] sm:$0xf] %vm732, %v728
          %734 = vst.msk [vmem:[%s329 + $0x4] sm:$0xf] %vm732, %v729
          %v735 = vpack.c.bf16 %v723, %v722
          %v737 = vunpack.c.l.b16 %v735
          %v738 = vunpack.c.h.b16 %v735
          %v739 = vpack.c.b16 %v737, %v737
          %v740 = vpack.c.b16 %v738, %v738
          %741 = vrot.lane.b32.xlu0 %v739, 64
          %v742 = vpop.permute.xlu0 %741
          %743 = vrot.lane.b32.xlu0 %v740, 64
          %v744 = vpop.permute.xlu0 %743
          %vm747 = vcmask 1043968
          %748 = vst.msk [vmem:[%s329] sm:$0xf] %vm747, %v742
          %749 = vst.msk [vmem:[%s329 + $0x4] sm:$0xf] %vm747, %v744
        $region85: #{transformer_block_forward.11} parent=68 // pred_fallthru
          _
        %s750 = sand.u32 %s142, 1
        %s751 = sand.u32 %s142, 1
        %s752 = smul.addr %s751, 8
        %s753 = scalar_lea.vmem [#allocation6], %s752
        // Predicated region
        $region86: #{transformer_block_forward.11} parent=68 // pred_check
          %p754 = pneg %p152
        $region87: #{transformer_block_forward.11} parent=68 // pred_check_branch
          %756 = sbr.rel (%p754) target = $region89
        $region88: #{transformer_block_forward.11} parent=68 // pred_region
          %s757 = smul.u32 2, %s22
          %s758 = smul.addr %s757, 2
          %s759 = sadd.s32 %s21, %s758
          %s760 = smul.addr %s20, 8
          %s761 = sadd.s32 %s759, %s760
          %s762 = smul.addr %s761, 4
          %s763 = scalar_lea.vmem %s3, %s762
          // Predicated region
          $region90: #{transformer_block_forward.11} parent=88 // pred_check
            _
          $region91: #{transformer_block_forward.11} parent=88 // pred_check_branch
            %765 = sbr.rel (0) target = $region93
          $region92: #{transformer_block_forward.11} parent=88 // pred_region
            // Predicated region
            $region94: #{transformer_block_forward.11} parent=92 // pred_check
              _
            $region95: #{transformer_block_forward.11} parent=92 // pred_check_branch
              %767 = sbr.rel target = $region97
            $region96: #{transformer_block_forward.11} parent=92 // pred_region
              // Predicated region
              $region109: #{transformer_block_forward.11} parent=96 // pred_check
                _
              $region110: #{transformer_block_forward.11} parent=96 // pred_check_branch
                %784 = sbr.rel (0) target = $region112
              $region111: #{transformer_block_forward.11} parent=96 // pred_region
                loop: start=0, step=1, limit=1
                $region113: #{transformer_block_forward.11} parent=111 // loop_pre_header
                  _
                $region114: #{transformer_block_forward.11} parent=111 // loop_header
                  %s786 = sphi 0, %s790
                  %p787 = scmp.ge.s32.totalorder %s786, 1
                  %s791 = sphi %s753, %s753
                  %s792 = sphi %s763, %s763
                $region115: #{transformer_block_forward.11} parent=111 // loop_header_branch
                  %789 = sbr.rel (%p787) target = $region119
                $region116: #{transformer_block_forward.11} parent=111 // loop_body
                  _
                $region117: #{transformer_block_forward.11} parent=111 // loop_footer
                  %s790 = sadd.s32 1, %s786
                $region118: #{transformer_block_forward.11} parent=111 // loop_footer_branch
                  %785 = sbr.rel target = $region114
                $region119: #{transformer_block_forward.11} parent=111 // loop_exit
                  _
                loop: start=0, step=1, limit=1
                $region120: #{transformer_block_forward.11} parent=111 // loop_pre_header
                  _
                $region121: #{transformer_block_forward.11} parent=111 // loop_header
                  %s795 = sphi 0, %s799
                  %p796 = scmp.ge.s32.totalorder %s795, 1
                  %s800 = sphi %s753, %s753
                  %s801 = sphi %s763, %s763
                $region122: #{transformer_block_forward.11} parent=111 // loop_header_branch
                  %798 = sbr.rel (%p796) target = $region126
                $region123: #{transformer_block_forward.11} parent=111 // loop_body
                  %v802 = vld [vmem:[%s800] sm:$0xf]
                  %803 = vst [vmem:[%s801] sm:$0xf] %v802
                  %v804 = vld [vmem:[%s800 + $0x4] sm:$0xf]
                  %805 = vst [vmem:[%s801 + $0x8] sm:$0xf] %v804
                $region124: #{transformer_block_forward.11} parent=111 // loop_footer
                  %s799 = sadd.s32 1, %s795
                $region125: #{transformer_block_forward.11} parent=111 // loop_footer_branch
                  %794 = sbr.rel target = $region121
                $region126: #{transformer_block_forward.11} parent=111 // loop_exit
                  _
              $region112: #{transformer_block_forward.11} parent=96 // pred_fallthru
                _
            $region97: #{transformer_block_forward.11} parent=92 // pred_fallthru
              _
            // Predicated region
            $region98: #{transformer_block_forward.11} parent=92 // pred_check
              _
            $region99: #{transformer_block_forward.11} parent=92 // pred_check_branch
              %769 = sbr.rel (0) target = $region101
            $region100: #{transformer_block_forward.11} parent=92 // pred_region
              loop: start=0, step=1, limit=1
              $region102: #{transformer_block_forward.11} parent=100 // loop_pre_header
                _
              $region103: #{transformer_block_forward.11} parent=100 // loop_header
                %s772 = sphi 0, %s776
                %p773 = scmp.ge.s32.totalorder %s772, 1
                %s777 = sphi %s753, %s753
                %s778 = sphi %s763, %s763
              $region104: #{transformer_block_forward.11} parent=100 // loop_header_branch
                %775 = sbr.rel (%p773) target = $region108
              $region105: #{transformer_block_forward.11} parent=100 // loop_body
                %v779 = vld [vmem:[%s777] sm:$0xf]
                %780 = vst [vmem:[%s778] sm:$0xf] %v779
                %v781 = vld [vmem:[%s777 + $0x4] sm:$0xf]
                %782 = vst [vmem:[%s778 + $0x8] sm:$0xf] %v781
              $region106: #{transformer_block_forward.11} parent=100 // loop_footer
                %s776 = sadd.s32 1, %s772
              $region107: #{transformer_block_forward.11} parent=100 // loop_footer_branch
                %771 = sbr.rel target = $region103
              $region108: #{transformer_block_forward.11} parent=100 // loop_exit
                _
            $region101: #{transformer_block_forward.11} parent=92 // pred_fallthru
              _
          $region93: #{transformer_block_forward.11} parent=88 // pred_fallthru
            _
          %806 = vnop
        $region89: #{transformer_block_forward.11} parent=68 // pred_fallthru
          _
      $region69: #{transformer_block_forward.11} parent=5 // pred_fallthru
        _
      %p807 = scmp.le.s32.totalorder 2, %s9
      // Predicated region
      $region127: #{transformer_block_forward.11} parent=5 // pred_check
        %p808 = pneg %p807
      $region128: #{transformer_block_forward.11} parent=5 // pred_check_branch
        %810 = sbr.rel (%p808) target = $region130
      $region129: #{transformer_block_forward.11} parent=5 // pred_region
        %s811 = ssub.s32 %s9, 2
        // Predicated region
        $region131: #{transformer_block_forward.11} parent=129 // pred_check
          %p812 = pneg %p158
        $region132: #{transformer_block_forward.11} parent=129 // pred_check_branch
          %814 = sbr.rel (%p812) target = $region134
        $region133: #{transformer_block_forward.11} parent=129 // pred_region
          %s815 = sand.u32 %s143, 1
          %s816 = sand.u32 %s143, 1
          %s817 = smul.addr %s816, 8
          %s818 = scalar_lea.vmem [#allocation6], %s817
        $region134: #{transformer_block_forward.11} parent=129 // pred_fallthru
          _
      $region130: #{transformer_block_forward.11} parent=5 // pred_fallthru
        _
    $region6: #{transformer_block_forward.11} parent=1 // loop_footer
      %s13 = sadd.s32 1, %s9
    $region7: #{transformer_block_forward.11} parent=1 // loop_footer_branch
      %8 = sbr.rel target = $region3
    $region8: #{transformer_block_forward.11} parent=1 // loop_exit
      _

// kernel: transformer_block_forward.9
$region0: #{transformer_block_forward.9}
  #allocation0 [shape = 'u32[]', space=smem, size = 0x4, offset = 0x4, fixed_abs, tag = 'smem constant byte address 0x4 - core index']
  #allocation1 [shape = 'u32[144,128]{1,0:T(1,128)}', space=vmem, size = 0x12000, scoped, tag = 'internal scratch']
  #allocation2 [shape = 'f32[64,512]{1,0:T(8,128)}', space=vmem, size = 0x20000, scoped, tag = 'scratch operand']
  %s0 = inlined_call_operand.vmem [shape: bf16[64,256], index: 0, kind: input, shape index: {}]
  %s1 = inlined_call_operand.vmem [shape: bf16[256,512], index: 1, kind: input, shape index: {}]
  %s2 = inlined_call_operand.vmem [shape: bf16[64,512], index: 2, kind: output, shape index: {}]
  %s3 = sld [smem:[#allocation0]]
  $region26: #{transformer_block_forward.9} parent=0
    _
  %s5 = ssub.s32 1, %s3
  %s6 = scalar_select 0, %s5, %s3
  // Predicated region
  $region2: #{transformer_block_forward.9} parent=0 // pred_check
    _
  $region3: #{transformer_block_forward.9} parent=0 // pred_check_branch
    %8 = sbr.rel (0) target = $region5
  $region4: #{transformer_block_forward.9} parent=0 // pred_region
    _
  $region5: #{transformer_block_forward.9} parent=0 // pred_fallthru
    _
  // Predicated region
  $region6: #{transformer_block_forward.9} parent=0 // pred_check
    _
  $region7: #{transformer_block_forward.9} parent=0 // pred_check_branch
    %10 = sbr.rel (0) target = $region9
  $region8: #{transformer_block_forward.9} parent=0 // pred_region
    _
  $region9: #{transformer_block_forward.9} parent=0 // pred_fallthru
    _
  %p11 = scmp.eq.s32.totalorder 0, 0
  // Predicated region
  $region10: #{transformer_block_forward.9} parent=0 // pred_check
    %p12 = pneg %p11
  $region11: #{transformer_block_forward.9} parent=0 // pred_check_branch
    %14 = sbr.rel (%p12) target = $region13
  $region12: #{transformer_block_forward.9} parent=0 // pred_region
    %15 = vst [vmem:[#allocation2] sm:$0xff] 0.0
    %16 = vst [vmem:[#allocation2 + $0x8] sm:$0xff] 0.0
    %17 = vst [vmem:[#allocation2 + $0x10] sm:$0xff] 0.0
    %18 = vst [vmem:[#allocation2 + $0x18] sm:$0xff] 0.0
    %19 = vst [vmem:[#allocation2 + $0x20] sm:$0xff] 0.0
    %20 = vst [vmem:[#allocation2 + $0x28] sm:$0xff] 0.0
    %21 = vst [vmem:[#allocation2 + $0x30] sm:$0xff] 0.0
    %22 = vst [vmem:[#allocation2 + $0x38] sm:$0xff] 0.0
    %23 = vst [vmem:[#allocation2 + $0x40] sm:$0xff] 0.0
    %24 = vst [vmem:[#allocation2 + $0x48] sm:$0xff] 0.0
    %25 = vst [vmem:[#allocation2 + $0x50] sm:$0xff] 0.0
    %26 = vst [vmem:[#allocation2 + $0x58] sm:$0xff] 0.0
    %27 = vst [vmem:[#allocation2 + $0x60] sm:$0xff] 0.0
    %28 = vst [vmem:[#allocation2 + $0x68] sm:$0xff] 0.0
    %29 = vst [vmem:[#allocation2 + $0x70] sm:$0xff] 0.0
    %30 = vst [vmem:[#allocation2 + $0x78] sm:$0xff] 0.0
    %31 = vst [vmem:[#allocation2 + $0x80] sm:$0xff] 0.0
    %32 = vst [vmem:[#allocation2 + $0x88] sm:$0xff] 0.0
    %33 = vst [vmem:[#allocation2 + $0x90] sm:$0xff] 0.0
    %34 = vst [vmem:[#allocation2 + $0x98] sm:$0xff] 0.0
    %35 = vst [vmem:[#allocation2 + $0xa0] sm:$0xff] 0.0
    %36 = vst [vmem:[#allocation2 + $0xa8] sm:$0xff] 0.0
    %37 = vst [vmem:[#allocation2 + $0xb0] sm:$0xff] 0.0
    %38 = vst [vmem:[#allocation2 + $0xb8] sm:$0xff] 0.0
    %39 = vst [vmem:[#allocation2 + $0xc0] sm:$0xff] 0.0
    %40 = vst [vmem:[#allocation2 + $0xc8] sm:$0xff] 0.0
    %41 = vst [vmem:[#allocation2 + $0xd0] sm:$0xff] 0.0
    %42 = vst [vmem:[#allocation2 + $0xd8] sm:$0xff] 0.0
    %43 = vst [vmem:[#allocation2 + $0xe0] sm:$0xff] 0.0
    %44 = vst [vmem:[#allocation2 + $0xe8] sm:$0xff] 0.0
    %45 = vst [vmem:[#allocation2 + $0xf0] sm:$0xff] 0.0
    %46 = vst [vmem:[#allocation2 + $0xf8] sm:$0xff] 0.0
  $region13: #{transformer_block_forward.9} parent=0 // pred_fallthru
    _
  %v47 = vld [vmem:[#allocation2] sm:$0xff]
  %v48 = vld [vmem:[#allocation2 + $0x8] sm:$0xff]
  %v49 = vld [vmem:[#allocation2 + $0x10] sm:$0xff]
  %v50 = vld [vmem:[#allocation2 + $0x18] sm:$0xff]
  %v51 = vld [vmem:[#allocation2 + $0x20] sm:$0xff]
  %v52 = vld [vmem:[#allocation2 + $0x28] sm:$0xff]
  %v53 = vld [vmem:[#allocation2 + $0x30] sm:$0xff]
  %v54 = vld [vmem:[#allocation2 + $0x38] sm:$0xff]
  %v55 = vld [vmem:[#allocation2 + $0x40] sm:$0xff]
  %v56 = vld [vmem:[#allocation2 + $0x48] sm:$0xff]
  %v57 = vld [vmem:[#allocation2 + $0x50] sm:$0xff]
  %v58 = vld [vmem:[#allocation2 + $0x58] sm:$0xff]
  %v59 = vld [vmem:[#allocation2 + $0x60] sm:$0xff]
  %v60 = vld [vmem:[#allocation2 + $0x68] sm:$0xff]
  %v61 = vld [vmem:[#allocation2 + $0x70] sm:$0xff]
  %v62 = vld [vmem:[#allocation2 + $0x78] sm:$0xff]
  %v63 = vld [vmem:[#allocation2 + $0x80] sm:$0xff]
  %v64 = vld [vmem:[#allocation2 + $0x88] sm:$0xff]
  %v65 = vld [vmem:[#allocation2 + $0x90] sm:$0xff]
  %v66 = vld [vmem:[#allocation2 + $0x98] sm:$0xff]
  %v67 = vld [vmem:[#allocation2 + $0xa0] sm:$0xff]
  %v68 = vld [vmem:[#allocation2 + $0xa8] sm:$0xff]
  %v69 = vld [vmem:[#allocation2 + $0xb0] sm:$0xff]
  %v70 = vld [vmem:[#allocation2 + $0xb8] sm:$0xff]
  %v71 = vld [vmem:[#allocation2 + $0xc0] sm:$0xff]
  %v72 = vld [vmem:[#allocation2 + $0xc8] sm:$0xff]
  %v73 = vld [vmem:[#allocation2 + $0xd0] sm:$0xff]
  %v74 = vld [vmem:[#allocation2 + $0xd8] sm:$0xff]
  %v75 = vld [vmem:[#allocation2 + $0xe0] sm:$0xff]
  %v76 = vld [vmem:[#allocation2 + $0xe8] sm:$0xff]
  %v77 = vld [vmem:[#allocation2 + $0xf0] sm:$0xff]
  %v78 = vld [vmem:[#allocation2 + $0xf8] sm:$0xff]
  %v79 = vld [vmem:[%s0] sm:$0xff]
  %v80 = vld [vmem:[%s0 + $0x8] sm:$0xff]
  %v81 = vld [vmem:[%s0 + $0x10] sm:$0xff]
  %v82 = vld [vmem:[%s0 + $0x18] sm:$0xff]
  %v83 = vld [vmem:[%s0 + $0x20] sm:$0xff]
  %v84 = vld [vmem:[%s0 + $0x28] sm:$0xff]
  %v85 = vld [vmem:[%s0 + $0x30] sm:$0xff]
  %v86 = vld [vmem:[%s0 + $0x38] sm:$0xff]
  %v87 = vld [vmem:[%s1] sm:$0xff]
  %v88 = vld [vmem:[%s1 + $0x8] sm:$0xff]
  %v89 = vld [vmem:[%s1 + $0x10] sm:$0xff]
  %v90 = vld [vmem:[%s1 + $0x18] sm:$0xff]
  %v91 = vld [vmem:[%s1 + $0x20] sm:$0xff]
  %v92 = vld [vmem:[%s1 + $0x28] sm:$0xff]
  %v93 = vld [vmem:[%s1 + $0x30] sm:$0xff]
  %v94 = vld [vmem:[%s1 + $0x38] sm:$0xff]
  %v95 = vld [vmem:[%s1 + $0x40] sm:$0xff]
  %v96 = vld [vmem:[%s1 + $0x48] sm:$0xff]
  %v97 = vld [vmem:[%s1 + $0x50] sm:$0xff]
  %v98 = vld [vmem:[%s1 + $0x58] sm:$0xff]
  %v99 = vld [vmem:[%s1 + $0x60] sm:$0xff]
  %v100 = vld [vmem:[%s1 + $0x68] sm:$0xff]
  %v101 = vld [vmem:[%s1 + $0x70] sm:$0xff]
  %v102 = vld [vmem:[%s1 + $0x78] sm:$0xff]
  %v103 = vld [vmem:[%s1 + $0x80] sm:$0xff]
  %v104 = vld [vmem:[%s1 + $0x88] sm:$0xff]
  %v105 = vld [vmem:[%s1 + $0x90] sm:$0xff]
  %v106 = vld [vmem:[%s1 + $0x98] sm:$0xff]
  %v107 = vld [vmem:[%s1 + $0xa0] sm:$0xff]
  %v108 = vld [vmem:[%s1 + $0xa8] sm:$0xff]
  %v109 = vld [vmem:[%s1 + $0xb0] sm:$0xff]
  %v110 = vld [vmem:[%s1 + $0xb8] sm:$0xff]
  %v111 = vld [vmem:[%s1 + $0xc0] sm:$0xff]
  %v112 = vld [vmem:[%s1 + $0xc8] sm:$0xff]
  %v113 = vld [vmem:[%s1 + $0xd0] sm:$0xff]
  %v114 = vld [vmem:[%s1 + $0xd8] sm:$0xff]
  %v115 = vld [vmem:[%s1 + $0xe0] sm:$0xff]
  %v116 = vld [vmem:[%s1 + $0xe8] sm:$0xff]
  %v117 = vld [vmem:[%s1 + $0xf0] sm:$0xff]
  %v118 = vld [vmem:[%s1 + $0xf8] sm:$0xff]
  %v119 = vld [vmem:[%s1 + $0x100] sm:$0xff]
  %v120 = vld [vmem:[%s1 + $0x108] sm:$0xff]
  %v121 = vld [vmem:[%s1 + $0x110] sm:$0xff]
  %v122 = vld [vmem:[%s1 + $0x118] sm:$0xff]
  %v123 = vld [vmem:[%s1 + $0x120] sm:$0xff]
  %v124 = vld [vmem:[%s1 + $0x128] sm:$0xff]
  %v125 = vld [vmem:[%s1 + $0x130] sm:$0xff]
  %v126 = vld [vmem:[%s1 + $0x138] sm:$0xff]
  %v127 = vld [vmem:[%s1 + $0x140] sm:$0xff]
  %v128 = vld [vmem:[%s1 + $0x148] sm:$0xff]
  %v129 = vld [vmem:[%s1 + $0x150] sm:$0xff]
  %v130 = vld [vmem:[%s1 + $0x158] sm:$0xff]
  %v131 = vld [vmem:[%s1 + $0x160] sm:$0xff]
  %v132 = vld [vmem:[%s1 + $0x168] sm:$0xff]
  %v133 = vld [vmem:[%s1 + $0x170] sm:$0xff]
  %v134 = vld [vmem:[%s1 + $0x178] sm:$0xff]
  %v135 = vld [vmem:[%s1 + $0x180] sm:$0xff]
  %v136 = vld [vmem:[%s1 + $0x188] sm:$0xff]
  %v137 = vld [vmem:[%s1 + $0x190] sm:$0xff]
  %v138 = vld [vmem:[%s1 + $0x198] sm:$0xff]
  %v139 = vld [vmem:[%s1 + $0x1a0] sm:$0xff]
  %v140 = vld [vmem:[%s1 + $0x1a8] sm:$0xff]
  %v141 = vld [vmem:[%s1 + $0x1b0] sm:$0xff]
  %v142 = vld [vmem:[%s1 + $0x1b8] sm:$0xff]
  %v143 = vld [vmem:[%s1 + $0x1c0] sm:$0xff]
  %v144 = vld [vmem:[%s1 + $0x1c8] sm:$0xff]
  %v145 = vld [vmem:[%s1 + $0x1d0] sm:$0xff]
  %v146 = vld [vmem:[%s1 + $0x1d8] sm:$0xff]
  %v147 = vld [vmem:[%s1 + $0x1e0] sm:$0xff]
  %v148 = vld [vmem:[%s1 + $0x1e8] sm:$0xff]
  %v149 = vld [vmem:[%s1 + $0x1f0] sm:$0xff]
  %v150 = vld [vmem:[%s1 + $0x1f8] sm:$0xff]
  %v159 = vunpack.c.l.b16 %v79
  %v160 = vunpack.c.h.b16 %v79
  %v161 = vunpack.c.l.b16 %v80
  %v162 = vunpack.c.h.b16 %v80
  %v163 = vunpack.c.l.b16 %v81
  %v164 = vunpack.c.h.b16 %v81
  %v165 = vunpack.c.l.b16 %v82
  %v166 = vunpack.c.h.b16 %v82
  %v167 = vunpack.c.l.b16 %v83
  %v168 = vunpack.c.h.b16 %v83
  %v169 = vunpack.c.l.b16 %v84
  %v170 = vunpack.c.h.b16 %v84
  %v171 = vunpack.c.l.b16 %v85
  %v172 = vunpack.c.h.b16 %v85
  %v173 = vunpack.c.l.b16 %v86
  %v174 = vunpack.c.h.b16 %v86
  %v175 = vpack.c.b16 %v161, %v159
  %v176 = vpack.c.b16 %v162, %v160
  %v177 = vpack.c.b16 %v165, %v163
  %v178 = vpack.c.b16 %v166, %v164
  %v179 = vpack.c.b16 %v169, %v167
  %v180 = vpack.c.b16 %v170, %v168
  %v181 = vpack.c.b16 %v173, %v171
  %v182 = vpack.c.b16 %v174, %v172
  %v255 = vunpack.c.l.b16 %v87
  %v256 = vunpack.c.h.b16 %v87
  %v257 = vunpack.c.l.b16 %v88
  %v258 = vunpack.c.h.b16 %v88
  %v259 = vunpack.c.l.b16 %v89
  %v260 = vunpack.c.h.b16 %v89
  %v261 = vunpack.c.l.b16 %v90
  %v262 = vunpack.c.h.b16 %v90
  %v263 = vunpack.c.l.b16 %v91
  %v264 = vunpack.c.h.b16 %v91
  %v265 = vunpack.c.l.b16 %v92
  %v266 = vunpack.c.h.b16 %v92
  %v267 = vunpack.c.l.b16 %v93
  %v268 = vunpack.c.h.b16 %v93
  %v269 = vunpack.c.l.b16 %v94
  %v270 = vunpack.c.h.b16 %v94
  %v271 = vunpack.c.l.b16 %v95
  %v272 = vunpack.c.h.b16 %v95
  %v273 = vunpack.c.l.b16 %v96
  %v274 = vunpack.c.h.b16 %v96
  %v275 = vunpack.c.l.b16 %v97
  %v276 = vunpack.c.h.b16 %v97
  %v277 = vunpack.c.l.b16 %v98
  %v278 = vunpack.c.h.b16 %v98
  %v279 = vunpack.c.l.b16 %v99
  %v280 = vunpack.c.h.b16 %v99
  %v281 = vunpack.c.l.b16 %v100
  %v282 = vunpack.c.h.b16 %v100
  %v283 = vunpack.c.l.b16 %v101
  %v284 = vunpack.c.h.b16 %v101
  %v285 = vunpack.c.l.b16 %v102
  %v286 = vunpack.c.h.b16 %v102
  %v287 = vunpack.c.l.b16 %v103
  %v288 = vunpack.c.h.b16 %v103
  %v289 = vunpack.c.l.b16 %v104
  %v290 = vunpack.c.h.b16 %v104
  %v291 = vunpack.c.l.b16 %v105
  %v292 = vunpack.c.h.b16 %v105
  %v293 = vunpack.c.l.b16 %v106
  %v294 = vunpack.c.h.b16 %v106
  %v295 = vunpack.c.l.b16 %v107
  %v296 = vunpack.c.h.b16 %v107
  %v297 = vunpack.c.l.b16 %v108
  %v298 = vunpack.c.h.b16 %v108
  %v299 = vunpack.c.l.b16 %v109
  %v300 = vunpack.c.h.b16 %v109
  %v301 = vunpack.c.l.b16 %v110
  %v302 = vunpack.c.h.b16 %v110
  %v303 = vunpack.c.l.b16 %v111
  %v304 = vunpack.c.h.b16 %v111
  %v305 = vunpack.c.l.b16 %v112
  %v306 = vunpack.c.h.b16 %v112
  %v307 = vunpack.c.l.b16 %v113
  %v308 = vunpack.c.h.b16 %v113
  %v309 = vunpack.c.l.b16 %v114
  %v310 = vunpack.c.h.b16 %v114
  %v311 = vunpack.c.l.b16 %v115
  %v312 = vunpack.c.h.b16 %v115
  %v313 = vunpack.c.l.b16 %v116
  %v314 = vunpack.c.h.b16 %v116
  %v315 = vunpack.c.l.b16 %v117
  %v316 = vunpack.c.h.b16 %v117
  %v317 = vunpack.c.l.b16 %v118
  %v318 = vunpack.c.h.b16 %v118
  %v319 = vunpack.c.l.b16 %v119
  %v320 = vunpack.c.h.b16 %v119
  %v321 = vunpack.c.l.b16 %v120
  %v322 = vunpack.c.h.b16 %v120
  %v323 = vunpack.c.l.b16 %v121
  %v324 = vunpack.c.h.b16 %v121
  %v325 = vunpack.c.l.b16 %v122
  %v326 = vunpack.c.h.b16 %v122
  %v327 = vunpack.c.l.b16 %v123
  %v328 = vunpack.c.h.b16 %v123
  %v329 = vunpack.c.l.b16 %v124
  %v330 = vunpack.c.h.b16 %v124
  %v331 = vunpack.c.l.b16 %v125
  %v332 = vunpack.c.h.b16 %v125
  %v333 = vunpack.c.l.b16 %v126
  %v334 = vunpack.c.h.b16 %v126
  %v335 = vunpack.c.l.b16 %v127
  %v336 = vunpack.c.h.b16 %v127
  %v337 = vunpack.c.l.b16 %v128
  %v338 = vunpack.c.h.b16 %v128
  %v339 = vunpack.c.l.b16 %v129
  %v340 = vunpack.c.h.b16 %v129
  %v341 = vunpack.c.l.b16 %v130
  %v342 = vunpack.c.h.b16 %v130
  %v343 = vunpack.c.l.b16 %v131
  %v344 = vunpack.c.h.b16 %v131
  %v345 = vunpack.c.l.b16 %v132
  %v346 = vunpack.c.h.b16 %v132
  %v347 = vunpack.c.l.b16 %v133
  %v348 = vunpack.c.h.b16 %v133
  %v349 = vunpack.c.l.b16 %v134
  %v350 = vunpack.c.h.b16 %v134
  %v351 = vunpack.c.l.b16 %v135
  %v352 = vunpack.c.h.b16 %v135
  %v353 = vunpack.c.l.b16 %v136
  %v354 = vunpack.c.h.b16 %v136
  %v355 = vunpack.c.l.b16 %v137
  %v356 = vunpack.c.h.b16 %v137
  %v357 = vunpack.c.l.b16 %v138
  %v358 = vunpack.c.h.b16 %v138
  %v359 = vunpack.c.l.b16 %v139
  %v360 = vunpack.c.h.b16 %v139
  %v361 = vunpack.c.l.b16 %v140
  %v362 = vunpack.c.h.b16 %v140
  %v363 = vunpack.c.l.b16 %v141
  %v364 = vunpack.c.h.b16 %v141
  %v365 = vunpack.c.l.b16 %v142
  %v366 = vunpack.c.h.b16 %v142
  %v367 = vunpack.c.l.b16 %v143
  %v368 = vunpack.c.h.b16 %v143
  %v369 = vunpack.c.l.b16 %v144
  %v370 = vunpack.c.h.b16 %v144
  %v371 = vunpack.c.l.b16 %v145
  %v372 = vunpack.c.h.b16 %v145
  %v373 = vunpack.c.l.b16 %v146
  %v374 = vunpack.c.h.b16 %v146
  %v375 = vunpack.c.l.b16 %v147
  %v376 = vunpack.c.h.b16 %v147
  %v377 = vunpack.c.l.b16 %v148
  %v378 = vunpack.c.h.b16 %v148
  %v379 = vunpack.c.l.b16 %v149
  %v380 = vunpack.c.h.b16 %v149
  %v381 = vunpack.c.l.b16 %v150
  %v382 = vunpack.c.h.b16 %v150
  %v383 = vpack.c.b16 %v259, %v255
  %v384 = vpack.c.b16 %v260, %v256
  %v385 = vpack.c.b16 %v261, %v257
  %v386 = vpack.c.b16 %v262, %v258
  %v387 = vpack.c.b16 %v267, %v263
  %v388 = vpack.c.b16 %v268, %v264
  %v389 = vpack.c.b16 %v269, %v265
  %v390 = vpack.c.b16 %v270, %v266
  %v391 = vpack.c.b16 %v275, %v271
  %v392 = vpack.c.b16 %v276, %v272
  %v393 = vpack.c.b16 %v277, %v273
  %v394 = vpack.c.b16 %v278, %v274
  %v395 = vpack.c.b16 %v283, %v279
  %v396 = vpack.c.b16 %v284, %v280
  %v397 = vpack.c.b16 %v285, %v281
  %v398 = vpack.c.b16 %v286, %v282
  %v399 = vpack.c.b16 %v291, %v287
  %v400 = vpack.c.b16 %v292, %v288
  %v401 = vpack.c.b16 %v293, %v289
  %v402 = vpack.c.b16 %v294, %v290
  %v403 = vpack.c.b16 %v299, %v295
  %v404 = vpack.c.b16 %v300, %v296
  %v405 = vpack.c.b16 %v301, %v297
  %v406 = vpack.c.b16 %v302, %v298
  %v407 = vpack.c.b16 %v307, %v303
  %v408 = vpack.c.b16 %v308, %v304
  %v409 = vpack.c.b16 %v309, %v305
  %v410 = vpack.c.b16 %v310, %v306
  %v411 = vpack.c.b16 %v315, %v311
  %v412 = vpack.c.b16 %v316, %v312
  %v413 = vpack.c.b16 %v317, %v313
  %v414 = vpack.c.b16 %v318, %v314
  %v415 = vpack.c.b16 %v323, %v319
  %v416 = vpack.c.b16 %v324, %v320
  %v417 = vpack.c.b16 %v325, %v321
  %v418 = vpack.c.b16 %v326, %v322
  %v419 = vpack.c.b16 %v331, %v327
  %v420 = vpack.c.b16 %v332, %v328
  %v421 = vpack.c.b16 %v333, %v329
  %v422 = vpack.c.b16 %v334, %v330
  %v423 = vpack.c.b16 %v339, %v335
  %v424 = vpack.c.b16 %v340, %v336
  %v425 = vpack.c.b16 %v341, %v337
  %v426 = vpack.c.b16 %v342, %v338
  %v427 = vpack.c.b16 %v347, %v343
  %v428 = vpack.c.b16 %v348, %v344
  %v429 = vpack.c.b16 %v349, %v345
  %v430 = vpack.c.b16 %v350, %v346
  %v431 = vpack.c.b16 %v355, %v351
  %v432 = vpack.c.b16 %v356, %v352
  %v433 = vpack.c.b16 %v357, %v353
  %v434 = vpack.c.b16 %v358, %v354
  %v435 = vpack.c.b16 %v363, %v359
  %v436 = vpack.c.b16 %v364, %v360
  %v437 = vpack.c.b16 %v365, %v361
  %v438 = vpack.c.b16 %v366, %v362
  %v439 = vpack.c.b16 %v371, %v367
  %v440 = vpack.c.b16 %v372, %v368
  %v441 = vpack.c.b16 %v373, %v369
  %v442 = vpack.c.b16 %v374, %v370
  %v443 = vpack.c.b16 %v379, %v375
  %v444 = vpack.c.b16 %v380, %v376
  %v445 = vpack.c.b16 %v381, %v377
  %v446 = vpack.c.b16 %v382, %v378
  %511 = vmatprep.subr.bf16.mxu0 %v384
  %512 = vmatpush1.bf16.msra.mxu0 %v383
  %513 = vmatprep.subr.bf16.mxu0 %v388
  %514 = vmatpush1.bf16.msra.mxu0 %v387
  %515 = vmatprep.subr.bf16.mxu0 %v392
  %516 = vmatpush1.bf16.msra.mxu0 %v391
  %517 = vmatprep.subr.bf16.mxu0 %v396
  %518 = vmatpush1.bf16.msra.mxu0 %v395
  %519 = vmatprep.subr.bf16.mxu0 %v400
  %520 = vmatpush1.bf16.msra.mxu0 %v399
  %521 = vmatprep.subr.bf16.mxu0 %v404
  %522 = vmatpush1.bf16.msra.mxu0 %v403
  %523 = vmatprep.subr.bf16.mxu0 %v408
  %524 = vmatpush1.bf16.msra.mxu0 %v407
  %525 = vmatprep.subr.bf16.mxu0 %v412
  %526 = vmatpush1.bf16.msra.mxu0 %v411
  %527 = vmatprep.subr.bf16.mxu0 %v416
  %528 = vmatpush1.bf16.msra.mxu0 %v415
  %529 = vmatprep.subr.bf16.mxu0 %v420
  %530 = vmatpush1.bf16.msra.mxu0 %v419
  %531 = vmatprep.subr.bf16.mxu0 %v424
  %532 = vmatpush1.bf16.msra.mxu0 %v423
  %533 = vmatprep.subr.bf16.mxu0 %v428
  %534 = vmatpush1.bf16.msra.mxu0 %v427
  %535 = vmatprep.subr.bf16.mxu0 %v432
  %536 = vmatpush1.bf16.msra.mxu0 %v431
  %537 = vmatprep.subr.bf16.mxu0 %v436
  %538 = vmatpush1.bf16.msra.mxu0 %v435
  %539 = vmatprep.subr.bf16.mxu0 %v440
  %540 = vmatpush1.bf16.msra.mxu0 %v439
  %541 = vmatprep.subr.bf16.mxu0 %v444
  %542 = vmatpush1.bf16.msra.mxu0 %v443
  %543 = vmatprep.mubr.bf16.mxu0 %v176
  %544 = vmatmul.mubr.bf16.gmra.mrb[0].mxu0 %v175
  %v545 = vpop.f32.mrb[0].mxu0
  %v546 = vadd.f32 0.0, %v545
  %v547 = vpop.f32.mrb[0].mxu0
  %v548 = vadd.f32 0.0, %v547
  %v549 = vpop.f32.mrb[0].mxu0
  %v550 = vadd.f32 0.0, %v549
  %v551 = vpop.f32.mrb[0].mxu0
  %v552 = vadd.f32 0.0, %v551
  %553 = vmatprep.mubr.bf16.mxu0 %v178
  %554 = vmatmul.mubr.bf16.gmra.mrb[0].mxu0 %v177
  %v555 = vpop.f32.mrb[0].mxu0
  %v556 = vadd.f32 0.0, %v555
  %v557 = vpop.f32.mrb[0].mxu0
  %v558 = vadd.f32 0.0, %v557
  %v559 = vpop.f32.mrb[0].mxu0
  %v560 = vadd.f32 0.0, %v559
  %v561 = vpop.f32.mrb[0].mxu0
  %v562 = vadd.f32 0.0, %v561
  %563 = vmatprep.mubr.bf16.mxu0 %v180
  %564 = vmatmul.mubr.bf16.gmra.mrb[0].mxu0 %v179
  %v565 = vpop.f32.mrb[0].mxu0
  %v566 = vadd.f32 0.0, %v565
  %v567 = vpop.f32.mrb[0].mxu0
  %v568 = vadd.f32 0.0, %v567
  %v569 = vpop.f32.mrb[0].mxu0
  %v570 = vadd.f32 0.0, %v569
  %v571 = vpop.f32.mrb[0].mxu0
  %v572 = vadd.f32 0.0, %v571
  %573 = vmatprep.mubr.bf16.mxu0 %v182
  %574 = vmatmul.mubr.bf16.gmra.mrb[0].mxu0 %v181
  %v575 = vpop.f32.mrb[0].mxu0
  %v576 = vadd.f32 0.0, %v575
  %v577 = vpop.f32.mrb[0].mxu0
  %v578 = vadd.f32 0.0, %v577
  %v579 = vpop.f32.mrb[0].mxu0
  %v580 = vadd.f32 0.0, %v579
  %v581 = vpop.f32.mrb[0].mxu0
  %v582 = vadd.f32 0.0, %v581
  %583 = vdwg.mxu0
  %584 = vmatprep.subr.bf16.mxu0 %v386
  %585 = vmatpush1.bf16.msra.mxu0 %v385
  %586 = vmatprep.subr.bf16.mxu0 %v390
  %587 = vmatpush1.bf16.msra.mxu0 %v389
  %588 = vmatprep.subr.bf16.mxu0 %v394
  %589 = vmatpush1.bf16.msra.mxu0 %v393
  %590 = vmatprep.subr.bf16.mxu0 %v398
  %591 = vmatpush1.bf16.msra.mxu0 %v397
  %592 = vmatprep.subr.bf16.mxu0 %v402
  %593 = vmatpush1.bf16.msra.mxu0 %v401
  %594 = vmatprep.subr.bf16.mxu0 %v406
  %595 = vmatpush1.bf16.msra.mxu0 %v405
  %596 = vmatprep.subr.bf16.mxu0 %v410
  %597 = vmatpush1.bf16.msra.mxu0 %v409
  %598 = vmatprep.subr.bf16.mxu0 %v414
  %599 = vmatpush1.bf16.msra.mxu0 %v413
  %600 = vmatprep.subr.bf16.mxu0 %v418
  %601 = vmatpush1.bf16.msra.mxu0 %v417
  %602 = vmatprep.subr.bf16.mxu0 %v422
  %603 = vmatpush1.bf16.msra.mxu0 %v421
  %604 = vmatprep.subr.bf16.mxu0 %v426
  %605 = vmatpush1.bf16.msra.mxu0 %v425
  %606 = vmatprep.subr.bf16.mxu0 %v430
  %607 = vmatpush1.bf16.msra.mxu0 %v429
  %608 = vmatprep.subr.bf16.mxu0 %v434
  %609 = vmatpush1.bf16.msra.mxu0 %v433
  %610 = vmatprep.subr.bf16.mxu0 %v438
  %611 = vmatpush1.bf16.msra.mxu0 %v437
  %612 = vmatprep.subr.bf16.mxu0 %v442
  %613 = vmatpush1.bf16.msra.mxu0 %v441
  %614 = vmatprep.subr.bf16.mxu0 %v446
  %615 = vmatpush1.bf16.msra.mxu0 %v445
  %616 = vmatprep.mubr.bf16.mxu0 %v176
  %617 = vmatmul.mubr.bf16.gmra.mrb[0].mxu0 %v175
  %v618 = vpop.f32.mrb[0].mxu0
  %v619 = vadd.f32 0.0, %v618
  %v620 = vpop.f32.mrb[0].mxu0
  %v621 = vadd.f32 0.0, %v620
  %v622 = vpop.f32.mrb[0].mxu0
  %v623 = vadd.f32 0.0, %v622
  %v624 = vpop.f32.mrb[0].mxu0
  %v625 = vadd.f32 0.0, %v624
  %626 = vmatprep.mubr.bf16.mxu0 %v178
  %627 = vmatmul.mubr.bf16.gmra.mrb[0].mxu0 %v177
  %v628 = vpop.f32.mrb[0].mxu0
  %v629 = vadd.f32 0.0, %v628
  %v630 = vpop.f32.mrb[0].mxu0
  %v631 = vadd.f32 0.0, %v630
  %v632 = vpop.f32.mrb[0].mxu0
  %v633 = vadd.f32 0.0, %v632
  %v634 = vpop.f32.mrb[0].mxu0
  %v635 = vadd.f32 0.0, %v634
  %636 = vmatprep.mubr.bf16.mxu0 %v180
  %637 = vmatmul.mubr.bf16.gmra.mrb[0].mxu0 %v179
  %v638 = vpop.f32.mrb[0].mxu0
  %v639 = vadd.f32 0.0, %v638
  %v640 = vpop.f32.mrb[0].mxu0
  %v641 = vadd.f32 0.0, %v640
  %v642 = vpop.f32.mrb[0].mxu0
  %v643 = vadd.f32 0.0, %v642
  %v644 = vpop.f32.mrb[0].mxu0
  %v645 = vadd.f32 0.0, %v644
  %646 = vmatprep.mubr.bf16.mxu0 %v182
  %647 = vmatmul.mubr.bf16.gmra.mrb[0].mxu0 %v181
  %v648 = vpop.f32.mrb[0].mxu0
  %v649 = vadd.f32 0.0, %v648
  %v650 = vpop.f32.mrb[0].mxu0
  %v651 = vadd.f32 0.0, %v650
  %v652 = vpop.f32.mrb[0].mxu0
  %v653 = vadd.f32 0.0, %v652
  %v654 = vpop.f32.mrb[0].mxu0
  %v655 = vadd.f32 0.0, %v654
  %656 = vdwg.mxu0
  %v657 = vadd.f32 %v47, %v546
  %v658 = vadd.f32 %v48, %v548
  %v659 = vadd.f32 %v49, %v619
  %v660 = vadd.f32 %v50, %v621
  %v661 = vadd.f32 %v51, %v550
  %v662 = vadd.f32 %v52, %v552
  %v663 = vadd.f32 %v53, %v623
  %v664 = vadd.f32 %v54, %v625
  %v665 = vadd.f32 %v55, %v556
  %v666 = vadd.f32 %v56, %v558
  %v667 = vadd.f32 %v57, %v629
  %v668 = vadd.f32 %v58, %v631
  %v669 = vadd.f32 %v59, %v560
  %v670 = vadd.f32 %v60, %v562
  %v671 = vadd.f32 %v61, %v633
  %v672 = vadd.f32 %v62, %v635
  %v673 = vadd.f32 %v63, %v566
  %v674 = vadd.f32 %v64, %v568
  %v675 = vadd.f32 %v65, %v639
  %v676 = vadd.f32 %v66, %v641
  %v677 = vadd.f32 %v67, %v570
  %v678 = vadd.f32 %v68, %v572
  %v679 = vadd.f32 %v69, %v643
  %v680 = vadd.f32 %v70, %v645
  %v681 = vadd.f32 %v71, %v576
  %v682 = vadd.f32 %v72, %v578
  %v683 = vadd.f32 %v73, %v649
  %v684 = vadd.f32 %v74, %v651
  %v685 = vadd.f32 %v75, %v580
  %v686 = vadd.f32 %v76, %v582
  %v687 = vadd.f32 %v77, %v653
  %v688 = vadd.f32 %v78, %v655
  %689 = vst [vmem:[#allocation2] sm:$0xff] %v657
  %690 = vst [vmem:[#allocation2 + $0x8] sm:$0xff] %v658
  %691 = vst [vmem:[#allocation2 + $0x10] sm:$0xff] %v659
  %692 = vst [vmem:[#allocation2 + $0x18] sm:$0xff] %v660
  %693 = vst [vmem:[#allocation2 + $0x20] sm:$0xff] %v661
  %694 = vst [vmem:[#allocation2 + $0x28] sm:$0xff] %v662
  %695 = vst [vmem:[#allocation2 + $0x30] sm:$0xff] %v663
  %696 = vst [vmem:[#allocation2 + $0x38] sm:$0xff] %v664
  %697 = vst [vmem:[#allocation2 + $0x40] sm:$0xff] %v665
  %698 = vst [vmem:[#allocation2 + $0x48] sm:$0xff] %v666
  %699 = vst [vmem:[#allocation2 + $0x50] sm:$0xff] %v667
  %700 = vst [vmem:[#allocation2 + $0x58] sm:$0xff] %v668
  %701 = vst [vmem:[#allocation2 + $0x60] sm:$0xff] %v669
  %702 = vst [vmem:[#allocation2 + $0x68] sm:$0xff] %v670
  %703 = vst [vmem:[#allocation2 + $0x70] sm:$0xff] %v671
  %704 = vst [vmem:[#allocation2 + $0x78] sm:$0xff] %v672
  %705 = vst [vmem:[#allocation2 + $0x80] sm:$0xff] %v673
  %706 = vst [vmem:[#allocation2 + $0x88] sm:$0xff] %v674
  %707 = vst [vmem:[#allocation2 + $0x90] sm:$0xff] %v675
  %708 = vst [vmem:[#allocation2 + $0x98] sm:$0xff] %v676
  %709 = vst [vmem:[#allocation2 + $0xa0] sm:$0xff] %v677
  %710 = vst [vmem:[#allocation2 + $0xa8] sm:$0xff] %v678
  %711 = vst [vmem:[#allocation2 + $0xb0] sm:$0xff] %v679
  %712 = vst [vmem:[#allocation2 + $0xb8] sm:$0xff] %v680
  %713 = vst [vmem:[#allocation2 + $0xc0] sm:$0xff] %v681
  %714 = vst [vmem:[#allocation2 + $0xc8] sm:$0xff] %v682
  %715 = vst [vmem:[#allocation2 + $0xd0] sm:$0xff] %v683
  %716 = vst [vmem:[#allocation2 + $0xd8] sm:$0xff] %v684
  %717 = vst [vmem:[#allocation2 + $0xe0] sm:$0xff] %v685
  %718 = vst [vmem:[#allocation2 + $0xe8] sm:$0xff] %v686
  %719 = vst [vmem:[#allocation2 + $0xf0] sm:$0xff] %v687
  %720 = vst [vmem:[#allocation2 + $0xf8] sm:$0xff] %v688
  // Predicated region
  $region14: #{transformer_block_forward.9} parent=0 // pred_check
    %p721 = pneg %p11
  $region15: #{transformer_block_forward.9} parent=0 // pred_check_branch
    %723 = sbr.rel (%p721) target = $region17
  $region16: #{transformer_block_forward.9} parent=0 // pred_region
    %v724 = vld [vmem:[#allocation2] sm:$0xff]
    %v725 = vld [vmem:[#allocation2 + $0x8] sm:$0xff]
    %v726 = vld [vmem:[#allocation2 + $0x10] sm:$0xff]
    %v727 = vld [vmem:[#allocation2 + $0x18] sm:$0xff]
    %v728 = vld [vmem:[#allocation2 + $0x20] sm:$0xff]
    %v729 = vld [vmem:[#allocation2 + $0x28] sm:$0xff]
    %v730 = vld [vmem:[#allocation2 + $0x30] sm:$0xff]
    %v731 = vld [vmem:[#allocation2 + $0x38] sm:$0xff]
    %v732 = vld [vmem:[#allocation2 + $0x40] sm:$0xff]
    %v733 = vld [vmem:[#allocation2 + $0x48] sm:$0xff]
    %v734 = vld [vmem:[#allocation2 + $0x50] sm:$0xff]
    %v735 = vld [vmem:[#allocation2 + $0x58] sm:$0xff]
    %v736 = vld [vmem:[#allocation2 + $0x60] sm:$0xff]
    %v737 = vld [vmem:[#allocation2 + $0x68] sm:$0xff]
    %v738 = vld [vmem:[#allocation2 + $0x70] sm:$0xff]
    %v739 = vld [vmem:[#allocation2 + $0x78] sm:$0xff]
    %v740 = vld [vmem:[#allocation2 + $0x80] sm:$0xff]
    %v741 = vld [vmem:[#allocation2 + $0x88] sm:$0xff]
    %v742 = vld [vmem:[#allocation2 + $0x90] sm:$0xff]
    %v743 = vld [vmem:[#allocation2 + $0x98] sm:$0xff]
    %v744 = vld [vmem:[#allocation2 + $0xa0] sm:$0xff]
    %v745 = vld [vmem:[#allocation2 + $0xa8] sm:$0xff]
    %v746 = vld [vmem:[#allocation2 + $0xb0] sm:$0xff]
    %v747 = vld [vmem:[#allocation2 + $0xb8] sm:$0xff]
    %v748 = vld [vmem:[#allocation2 + $0xc0] sm:$0xff]
    %v749 = vld [vmem:[#allocation2 + $0xc8] sm:$0xff]
    %v750 = vld [vmem:[#allocation2 + $0xd0] sm:$0xff]
    %v751 = vld [vmem:[#allocation2 + $0xd8] sm:$0xff]
    %v752 = vld [vmem:[#allocation2 + $0xe0] sm:$0xff]
    %v753 = vld [vmem:[#allocation2 + $0xe8] sm:$0xff]
    %v754 = vld [vmem:[#allocation2 + $0xf0] sm:$0xff]
    %v755 = vld [vmem:[#allocation2 + $0xf8] sm:$0xff]
    %v756 = vpack.c.bf16 %v728, %v724
    %v757 = vpack.c.bf16 %v729, %v725
    %v758 = vpack.c.bf16 %v730, %v726
    %v759 = vpack.c.bf16 %v731, %v727
    %v760 = vpack.c.bf16 %v736, %v732
    %v761 = vpack.c.bf16 %v737, %v733
    %v762 = vpack.c.bf16 %v738, %v734
    %v763 = vpack.c.bf16 %v739, %v735
    %v764 = vpack.c.bf16 %v744, %v740
    %v765 = vpack.c.bf16 %v745, %v741
    %v766 = vpack.c.bf16 %v746, %v742
    %v767 = vpack.c.bf16 %v747, %v743
    %v768 = vpack.c.bf16 %v752, %v748
    %v769 = vpack.c.bf16 %v753, %v749
    %v770 = vpack.c.bf16 %v754, %v750
    %v771 = vpack.c.bf16 %v755, %v751
    %v788 = vunpack.c.l.b16 %v756
    %v789 = vunpack.c.l.b16 %v757
    %v790 = vunpack.c.l.b16 %v758
    %v791 = vunpack.c.l.b16 %v759
    %v792 = vunpack.c.h.b16 %v756
    %v793 = vunpack.c.h.b16 %v757
    %v794 = vunpack.c.h.b16 %v758
    %v795 = vunpack.c.h.b16 %v759
    %v796 = vunpack.c.l.b16 %v760
    %v797 = vunpack.c.l.b16 %v761
    %v798 = vunpack.c.l.b16 %v762
    %v799 = vunpack.c.l.b16 %v763
    %v800 = vunpack.c.h.b16 %v760
    %v801 = vunpack.c.h.b16 %v761
    %v802 = vunpack.c.h.b16 %v762
    %v803 = vunpack.c.h.b16 %v763
    %v804 = vunpack.c.l.b16 %v764
    %v805 = vunpack.c.l.b16 %v765
    %v806 = vunpack.c.l.b16 %v766
    %v807 = vunpack.c.l.b16 %v767
    %v808 = vunpack.c.h.b16 %v764
    %v809 = vunpack.c.h.b16 %v765
    %v810 = vunpack.c.h.b16 %v766
    %v811 = vunpack.c.h.b16 %v767
    %v812 = vunpack.c.l.b16 %v768
    %v813 = vunpack.c.l.b16 %v769
    %v814 = vunpack.c.l.b16 %v770
    %v815 = vunpack.c.l.b16 %v771
    %v816 = vunpack.c.h.b16 %v768
    %v817 = vunpack.c.h.b16 %v769
    %v818 = vunpack.c.h.b16 %v770
    %v819 = vunpack.c.h.b16 %v771
    %v820 = vpack.c.b16 %v789, %v788
    %v821 = vpack.c.b16 %v791, %v790
    %v822 = vpack.c.b16 %v793, %v792
    %v823 = vpack.c.b16 %v795, %v794
    %v824 = vpack.c.b16 %v797, %v796
    %v825 = vpack.c.b16 %v799, %v798
    %v826 = vpack.c.b16 %v801, %v800
    %v827 = vpack.c.b16 %v803, %v802
    %v828 = vpack.c.b16 %v805, %v804
    %v829 = vpack.c.b16 %v807, %v806
    %v830 = vpack.c.b16 %v809, %v808
    %v831 = vpack.c.b16 %v811, %v810
    %v832 = vpack.c.b16 %v813, %v812
    %v833 = vpack.c.b16 %v815, %v814
    %v834 = vpack.c.b16 %v817, %v816
    %v835 = vpack.c.b16 %v819, %v818
    %852 = vst [vmem:[%s2] sm:$0xff] %v820
    %853 = vst [vmem:[%s2 + $0x8] sm:$0xff] %v821
    %854 = vst [vmem:[%s2 + $0x10] sm:$0xff] %v822
    %855 = vst [vmem:[%s2 + $0x18] sm:$0xff] %v823
    %856 = vst [vmem:[%s2 + $0x20] sm:$0xff] %v824
    %857 = vst [vmem:[%s2 + $0x28] sm:$0xff] %v825
    %858 = vst [vmem:[%s2 + $0x30] sm:$0xff] %v826
    %859 = vst [vmem:[%s2 + $0x38] sm:$0xff] %v827
    %860 = vst [vmem:[%s2 + $0x40] sm:$0xff] %v828
    %861 = vst [vmem:[%s2 + $0x48] sm:$0xff] %v829
    %862 = vst [vmem:[%s2 + $0x50] sm:$0xff] %v830
    %863 = vst [vmem:[%s2 + $0x58] sm:$0xff] %v831
    %864 = vst [vmem:[%s2 + $0x60] sm:$0xff] %v832
    %865 = vst [vmem:[%s2 + $0x68] sm:$0xff] %v833
    %866 = vst [vmem:[%s2 + $0x70] sm:$0xff] %v834
    %867 = vst [vmem:[%s2 + $0x78] sm:$0xff] %v835
  $region17: #{transformer_block_forward.9} parent=0 // pred_fallthru
    _
  // Predicated region
  $region18: #{transformer_block_forward.9} parent=0 // pred_check
    _
  $region19: #{transformer_block_forward.9} parent=0 // pred_check_branch
    %869 = sbr.rel (0) target = $region21
  $region20: #{transformer_block_forward.9} parent=0 // pred_region
    _
  $region21: #{transformer_block_forward.9} parent=0 // pred_fallthru
    _
  // Predicated region
  $region22: #{transformer_block_forward.9} parent=0 // pred_check
    _
  $region23: #{transformer_block_forward.9} parent=0 // pred_check_branch
    %871 = sbr.rel (0) target = $region25
  $region24: #{transformer_block_forward.9} parent=0 // pred_region
    _
  $region25: #{transformer_block_forward.9} parent=0 // pred_fallthru
    _

// kernel: transformer_block_forward.10
$region0: #{transformer_block_forward.10}
  #allocation0 [shape = 'u32[]', space=smem, size = 0x4, offset = 0x4, fixed_abs, tag = 'smem constant byte address 0x4 - core index']
  #allocation1 [shape = 'u32[144,128]{1,0:T(1,128)}', space=vmem, size = 0x12000, scoped, tag = 'internal scratch']
  %s0 = inlined_call_operand.vmem [shape: bf16[2,32,512], index: 0, kind: input, shape index: {}, may-alias: {0,1,2}]
  %s1 = inlined_call_operand.vmem [shape: bf16[2,32,512], index: 1, kind: input, shape index: {}, may-alias: {0,1,2}]
  %s2 = inlined_call_operand.vmem [shape: bf16[2,32,512], index: 2, kind: input, shape index: {}, may-alias: {0,1,2}]
  %s3 = inlined_call_operand.vmem [shape: f32[32,64], index: 3, kind: input, shape index: {}]
  %s4 = inlined_call_operand.vmem [shape: f32[32,64], index: 4, kind: input, shape index: {}]
  %s5 = inlined_call_operand.vmem [shape: bf16[2,4,32,64], index: 5, kind: output, shape index: {0}]
  %s6 = inlined_call_operand.vmem [shape: bf16[2,2,32,64], index: 6, kind: output, shape index: {1}]
  %s7 = inlined_call_operand.vmem [shape: bf16[2,2,32,64], index: 7, kind: output, shape index: {2}]
  %8 = xla_tuple %s5, %s6, %s7
  %s9 = sld [smem:[#allocation0]]
  $region189: #{transformer_block_forward.10} parent=0
    _
  %s11 = ssub.s32 1, %s9
  %s12 = scalar_select 0, %s11, %s9
  $region1: #{transformer_block_forward.10} parent=0
    #allocation2 [shape = 'u8[32768]{0}', space=vmem, size = 0x8000, scoped, tag = 'input window, operand 0']
    #allocation3 [shape = 'u8[16384]{0}', space=vmem, size = 0x4000, scoped, tag = 'input window, operand 1']
    #allocation4 [shape = 'u8[16384]{0}', space=vmem, size = 0x4000, scoped, tag = 'input window, operand 2']
    loop: start=0, step=1, limit=4
    $region2: #{transformer_block_forward.10} parent=1 // loop_pre_header
      _
    $region3: #{transformer_block_forward.10} parent=1 // loop_header
      %s14 = sphi 0, %s18
      %p15 = scmp.ge.s32.totalorder %s14, 4
      %s21 = sphi 0, %s33
      %s22 = sphi 0, %s29
      %s23 = sphi 0, %s21
      %s24 = sphi 0, %s22
      %s25 = sphi 0, %s23
      %s26 = sphi 0, %s24
      %s38 = sphi 0, %s40
      %s41 = sphi 0, %s38
      %s42 = sphi 0, %s41
      %s58 = sphi 0, %s42
      %s66 = sphi 0, %s68
      %s69 = sphi 0, %s66
      %s70 = sphi 0, %s69
      %s86 = sphi 0, %s70
      %s94 = sphi 0, %s96
      %s97 = sphi 0, %s94
      %s98 = sphi 0, %s97
      %s114 = sphi 0, %s98
      %s120 = sphi 0, %s122
      %s123 = sphi 0, %s120
      %s124 = sphi 0, %s123
      %s140 = sphi 0, %s124
      %s146 = sphi 0, %s148
      %s149 = sphi 0, %s146
      %s150 = sphi 0, %s149
      %s166 = sphi 0, %s150
      %s174 = sphi 0, %s176
      %s177 = sphi 0, %s174
      %s178 = sphi 0, %s177
      %s194 = sphi 0, %s178
      %s202 = sphi 0, %s204
      %s205 = sphi 0, %s202
      %s206 = sphi 0, %s205
      %s222 = sphi 0, %s206
      %s230 = sphi 0, %s232
      %s233 = sphi 0, %s230
      %s234 = sphi 0, %s233
      %s250 = sphi 0, %s234
    $region4: #{transformer_block_forward.10} parent=1 // loop_header_branch
      %17 = sbr.rel (%p15) target = $region8
    $region5: #{transformer_block_forward.10} parent=1 // loop_body
      %s19 = ssub.s32 %s14, 1
      %s20 = ssub.s32 %s14, 2
      %s27 = sadd.s32 1, %s22
      %p28 = scmp.ge.s32.totalorder %s27, 1
      %s29 = scalar_select %p28, 0, %s27
      %s30 = sadd.s32 1, %s21
      %s31 = scalar_select %p28, %s30, %s21
      %p32 = scmp.ge.s32.totalorder %s31, 2
      %s33 = scalar_select %p32, 0, %s31
      %s34 = ssub.s32 %s21, %s33
      %s35 = ssub.s32 %s22, %s29
      %s36 = sor.u32 %s34, %s35
      %p37 = scmp.eq.s32.totalorder %s36, 0
      %s39 = sadd.s32 %s38, 1
      %s40 = scalar_select %p37, %s38, %s39
      %p43 = pneg %p37
      %p44 = scmp.eq.s32.totalorder %s14, 1
      %p45 = por %p43, %p44
      %p46 = scmp.ne.s32.totalorder %s38, %s41
      %p47 = scmp.eq.s32.totalorder %s14, 0
      %p48 = por %p46, %p47
      %p49 = scmp.ne.s32.totalorder %s38, %s41
      %p50 = scmp.eq.s32.totalorder %s19, 1
      %p51 = por %p49, %p50
      %p52 = scmp.ne.s32.totalorder %s41, %s42
      %p53 = scmp.eq.s32.totalorder %s19, 0
      %p54 = por %p52, %p53
      %p55 = scmp.ne.s32.totalorder %s41, %s42
      %p56 = scmp.eq.s32.totalorder %s20, 1
      %p57 = por %p55, %p56
      %p59 = scmp.ne.s32.totalorder %s42, %s58
      %p60 = scmp.eq.s32.totalorder %s20, 0
      %p61 = por %p59, %p60
      %s62 = ssub.s32 %s21, %s33
      %s63 = ssub.s32 %s22, %s29
      %s64 = sor.u32 %s62, %s63
      %p65 = scmp.eq.s32.totalorder %s64, 0
      %s67 = sadd.s32 %s66, 1
      %s68 = scalar_select %p65, %s66, %s67
      %p71 = pneg %p65
      %p72 = scmp.eq.s32.totalorder %s14, 1
      %p73 = por %p71, %p72
      %p74 = scmp.ne.s32.totalorder %s66, %s69
      %p75 = scmp.eq.s32.totalorder %s14, 0
      %p76 = por %p74, %p75
      %p77 = scmp.ne.s32.totalorder %s66, %s69
      %p78 = scmp.eq.s32.totalorder %s19, 1
      %p79 = por %p77, %p78
      %p80 = scmp.ne.s32.totalorder %s69, %s70
      %p81 = scmp.eq.s32.totalorder %s19, 0
      %p82 = por %p80, %p81
      %p83 = scmp.ne.s32.totalorder %s69, %s70
      %p84 = scmp.eq.s32.totalorder %s20, 1
      %p85 = por %p83, %p84
      %p87 = scmp.ne.s32.totalorder %s70, %s86
      %p88 = scmp.eq.s32.totalorder %s20, 0
      %p89 = por %p87, %p88
      %s90 = ssub.s32 %s21, %s33
      %s91 = ssub.s32 %s22, %s29
      %s92 = sor.u32 %s90, %s91
      %p93 = scmp.eq.s32.totalorder %s92, 0
      %s95 = sadd.s32 %s94, 1
      %s96 = scalar_select %p93, %s94, %s95
      %p99 = pneg %p93
      %p100 = scmp.eq.s32.totalorder %s14, 1
      %p101 = por %p99, %p100
      %p102 = scmp.ne.s32.totalorder %s94, %s97
      %p103 = scmp.eq.s32.totalorder %s14, 0
      %p104 = por %p102, %p103
      %p105 = scmp.ne.s32.totalorder %s94, %s97
      %p106 = scmp.eq.s32.totalorder %s19, 1
      %p107 = por %p105, %p106
      %p108 = scmp.ne.s32.totalorder %s97, %s98
      %p109 = scmp.eq.s32.totalorder %s19, 0
      %p110 = por %p108, %p109
      %p111 = scmp.ne.s32.totalorder %s97, %s98
      %p112 = scmp.eq.s32.totalorder %s20, 1
      %p113 = por %p111, %p112
      %p115 = scmp.ne.s32.totalorder %s98, %s114
      %p116 = scmp.eq.s32.totalorder %s20, 0
      %p117 = por %p115, %p116
      %s118 = ssub.s32 %s22, %s29
      %p119 = scmp.eq.s32.totalorder %s118, 0
      %s121 = sadd.s32 %s120, 1
      %s122 = scalar_select %p119, %s120, %s121
      %p125 = pneg %p119
      %p126 = scmp.eq.s32.totalorder %s14, 1
      %p127 = por %p125, %p126
      %p128 = scmp.ne.s32.totalorder %s120, %s123
      %p129 = scmp.eq.s32.totalorder %s14, 0
      %p130 = por %p128, %p129
      %p131 = scmp.ne.s32.totalorder %s120, %s123
      %p132 = scmp.eq.s32.totalorder %s19, 1
      %p133 = por %p131, %p132
      %p134 = scmp.ne.s32.totalorder %s123, %s124
      %p135 = scmp.eq.s32.totalorder %s19, 0
      %p136 = por %p134, %p135
      %p137 = scmp.ne.s32.totalorder %s123, %s124
      %p138 = scmp.eq.s32.totalorder %s20, 1
      %p139 = por %p137, %p138
      %p141 = scmp.ne.s32.totalorder %s124, %s140
      %p142 = scmp.eq.s32.totalorder %s20, 0
      %p143 = por %p141, %p142
      %s144 = ssub.s32 %s22, %s29
      %p145 = scmp.eq.s32.totalorder %s144, 0
      %s147 = sadd.s32 %s146, 1
      %s148 = scalar_select %p145, %s146, %s147
      %p151 = pneg %p145
      %p152 = scmp.eq.s32.totalorder %s14, 1
      %p153 = por %p151, %p152
      %p154 = scmp.ne.s32.totalorder %s146, %s149
      %p155 = scmp.eq.s32.totalorder %s14, 0
      %p156 = por %p154, %p155
      %p157 = scmp.ne.s32.totalorder %s146, %s149
      %p158 = scmp.eq.s32.totalorder %s19, 1
      %p159 = por %p157, %p158
      %p160 = scmp.ne.s32.totalorder %s149, %s150
      %p161 = scmp.eq.s32.totalorder %s19, 0
      %p162 = por %p160, %p161
      %p163 = scmp.ne.s32.totalorder %s149, %s150
      %p164 = scmp.eq.s32.totalorder %s20, 1
      %p165 = por %p163, %p164
      %p167 = scmp.ne.s32.totalorder %s150, %s166
      %p168 = scmp.eq.s32.totalorder %s20, 0
      %p169 = por %p167, %p168
      %s170 = ssub.s32 %s21, %s33
      %s171 = ssub.s32 %s22, %s29
      %s172 = sor.u32 %s170, %s171
      %p173 = scmp.eq.s32.totalorder %s172, 0
      %s175 = sadd.s32 %s174, 1
      %s176 = scalar_select %p173, %s174, %s175
      %p179 = pneg %p173
      %p180 = scmp.eq.s32.totalorder %s14, 1
      %p181 = por %p179, %p180
      %p182 = scmp.ne.s32.totalorder %s174, %s177
      %p183 = scmp.eq.s32.totalorder %s14, 0
      %p184 = por %p182, %p183
      %p185 = scmp.ne.s32.totalorder %s174, %s177
      %p186 = scmp.eq.s32.totalorder %s19, 1
      %p187 = por %p185, %p186
      %p188 = scmp.ne.s32.totalorder %s177, %s178
      %p189 = scmp.eq.s32.totalorder %s19, 0
      %p190 = por %p188, %p189
      %p191 = scmp.ne.s32.totalorder %s177, %s178
      %p192 = scmp.eq.s32.totalorder %s20, 1
      %p193 = por %p191, %p192
      %p195 = scmp.ne.s32.totalorder %s178, %s194
      %p196 = scmp.eq.s32.totalorder %s20, 0
      %p197 = por %p195, %p196
      %s198 = ssub.s32 %s21, %s33
      %s199 = ssub.s32 %s22, %s29
      %s200 = sor.u32 %s198, %s199
      %p201 = scmp.eq.s32.totalorder %s200, 0
      %s203 = sadd.s32 %s202, 1
      %s204 = scalar_select %p201, %s202, %s203
      %p207 = pneg %p201
      %p208 = scmp.eq.s32.totalorder %s14, 1
      %p209 = por %p207, %p208
      %p210 = scmp.ne.s32.totalorder %s202, %s205
      %p211 = scmp.eq.s32.totalorder %s14, 0
      %p212 = por %p210, %p211
      %p213 = scmp.ne.s32.totalorder %s202, %s205
      %p214 = scmp.eq.s32.totalorder %s19, 1
      %p215 = por %p213, %p214
      %p216 = scmp.ne.s32.totalorder %s205, %s206
      %p217 = scmp.eq.s32.totalorder %s19, 0
      %p218 = por %p216, %p217
      %p219 = scmp.ne.s32.totalorder %s205, %s206
      %p220 = scmp.eq.s32.totalorder %s20, 1
      %p221 = por %p219, %p220
      %p223 = scmp.ne.s32.totalorder %s206, %s222
      %p224 = scmp.eq.s32.totalorder %s20, 0
      %p225 = por %p223, %p224
      %s226 = ssub.s32 %s21, %s33
      %s227 = ssub.s32 %s22, %s29
      %s228 = sor.u32 %s226, %s227
      %p229 = scmp.eq.s32.totalorder %s228, 0
      %s231 = sadd.s32 %s230, 1
      %s232 = scalar_select %p229, %s230, %s231
      %p235 = pneg %p229
      %p236 = scmp.eq.s32.totalorder %s14, 1
      %p237 = por %p235, %p236
      %p238 = scmp.ne.s32.totalorder %s230, %s233
      %p239 = scmp.eq.s32.totalorder %s14, 0
      %p240 = por %p238, %p239
      %p241 = scmp.ne.s32.totalorder %s230, %s233
      %p242 = scmp.eq.s32.totalorder %s19, 1
      %p243 = por %p241, %p242
      %p244 = scmp.ne.s32.totalorder %s233, %s234
      %p245 = scmp.eq.s32.totalorder %s19, 0
      %p246 = por %p244, %p245
      %p247 = scmp.ne.s32.totalorder %s233, %s234
      %p248 = scmp.eq.s32.totalorder %s20, 1
      %p249 = por %p247, %p248
      %p251 = scmp.ne.s32.totalorder %s234, %s250
      %p252 = scmp.eq.s32.totalorder %s20, 0
      %p253 = por %p251, %p252
      %p254 = scmp.le.s32.totalorder 1, %s14
      %p255 = scmp.lt.s32.totalorder %s14, 3
      %p256 = pnand %p254, %p255
      %p257 = pneg %p256
      // Predicated region
      $region9: #{transformer_block_forward.10} parent=5 // pred_check
        _
      $region10: #{transformer_block_forward.10} parent=5 // pred_check_branch
        %259 = sbr.rel (%p256) target = $region12
      $region11: #{transformer_block_forward.10} parent=5 // pred_region
        %s260 = ssub.s32 %s14, 1
        // Predicated region
        $region13: #{transformer_block_forward.10} parent=11 // pred_check
          %p261 = pneg %p136
        $region14: #{transformer_block_forward.10} parent=11 // pred_check_branch
          %263 = sbr.rel (%p261) target = $region16
        $region15: #{transformer_block_forward.10} parent=11 // pred_region
          %s264 = smul.u32 4, %s24
          %p265 = scmp.lt.s32.totalorder %s264, 3
          %s266 = scalar_select %p265, %s264, 3
          %s267 = smul.addr %s266, 8
          %s268 = scalar_lea.vmem %s3, %s267
          %s269 = smul.u32 4, %s24
        $region16: #{transformer_block_forward.10} parent=11 // pred_fallthru
          _
        // Predicated region
        $region17: #{transformer_block_forward.10} parent=11 // pred_check
          %p270 = pneg %p162
        $region18: #{transformer_block_forward.10} parent=11 // pred_check_branch
          %272 = sbr.rel (%p270) target = $region20
        $region19: #{transformer_block_forward.10} parent=11 // pred_region
          %s273 = smul.u32 4, %s24
          %p274 = scmp.lt.s32.totalorder %s273, 3
          %s275 = scalar_select %p274, %s273, 3
          %s276 = smul.addr %s275, 8
          %s277 = scalar_lea.vmem %s4, %s276
          %s278 = smul.u32 4, %s24
        $region20: #{transformer_block_forward.10} parent=11 // pred_fallthru
          _
      $region12: #{transformer_block_forward.10} parent=5 // pred_fallthru
        _
      %p279 = scmp.lt.s32.totalorder %s14, 2
      // Predicated region
      $region21: #{transformer_block_forward.10} parent=5 // pred_check
        %p280 = pneg %p279
      $region22: #{transformer_block_forward.10} parent=5 // pred_check_branch
        %282 = sbr.rel (%p280) target = $region24
      $region23: #{transformer_block_forward.10} parent=5 // pred_region
        // Predicated region
        $region25: #{transformer_block_forward.10} parent=23 // pred_check
          %p283 = pneg %p48
        $region26: #{transformer_block_forward.10} parent=23 // pred_check_branch
          %285 = sbr.rel (%p283) target = $region28
        $region27: #{transformer_block_forward.10} parent=23 // pred_region
          %s286 = sand.u32 %s38, 1
          %s287 = sand.u32 %s38, 1
          %s288 = smul.addr %s287, 32
          %s289 = scalar_lea.vmem [#allocation2], %s288
          %s290 = smul.u32 4, %s22
          %s291 = smul.addr %s290, 4
          %s292 = smul.addr %s21, 16
          %s293 = sadd.s32 %s291, %s292
          %s294 = smul.addr %s293, 4
          %s295 = scalar_lea.vmem %s0, %s294
          // Predicated region
          $region29: #{transformer_block_forward.10} parent=27 // pred_check
            _
          $region30: #{transformer_block_forward.10} parent=27 // pred_check_branch
            %297 = sbr.rel (0) target = $region32
          $region31: #{transformer_block_forward.10} parent=27 // pred_region
            // Predicated region
            $region33: #{transformer_block_forward.10} parent=31 // pred_check
              _
            $region34: #{transformer_block_forward.10} parent=31 // pred_check_branch
              %299 = sbr.rel (0) target = $region36
            $region35: #{transformer_block_forward.10} parent=31 // pred_region
              // Predicated region
              $region48: #{transformer_block_forward.10} parent=35 // pred_check
                _
              $region49: #{transformer_block_forward.10} parent=35 // pred_check_branch
                %320 = sbr.rel (0) target = $region51
              $region50: #{transformer_block_forward.10} parent=35 // pred_region
                loop: start=0, step=1, limit=1
                $region52: #{transformer_block_forward.10} parent=50 // loop_pre_header
                  _
                $region53: #{transformer_block_forward.10} parent=50 // loop_header
                  %s322 = sphi 0, %s326
                  %p323 = scmp.ge.s32.totalorder %s322, 1
                  %s327 = sphi %s295, %s295
                  %s328 = sphi %s289, %s289
                $region54: #{transformer_block_forward.10} parent=50 // loop_header_branch
                  %325 = sbr.rel (%p323) target = $region58
                $region55: #{transformer_block_forward.10} parent=50 // loop_body
                  %v329 = vld [vmem:[%s327] sm:$0xff]
                  %330 = vst [vmem:[%s328] sm:$0xff] %v329
                  %v331 = vld [vmem:[%s327 + $0x10] sm:$0xff]
                  %332 = vst [vmem:[%s328 + $0x8] sm:$0xff] %v331
                  %v333 = vld [vmem:[%s327 + $0x20] sm:$0xff]
                  %334 = vst [vmem:[%s328 + $0x10] sm:$0xff] %v333
                  %v335 = vld [vmem:[%s327 + $0x30] sm:$0xff]
                  %336 = vst [vmem:[%s328 + $0x18] sm:$0xff] %v335
                $region56: #{transformer_block_forward.10} parent=50 // loop_footer
                  %s326 = sadd.s32 1, %s322
                $region57: #{transformer_block_forward.10} parent=50 // loop_footer_branch
                  %321 = sbr.rel target = $region53
                $region58: #{transformer_block_forward.10} parent=50 // loop_exit
                  _
              $region51: #{transformer_block_forward.10} parent=35 // pred_fallthru
                _
              // Predicated region
              $region59: #{transformer_block_forward.10} parent=35 // pred_check
                _
              $region60: #{transformer_block_forward.10} parent=35 // pred_check_branch
                %338 = sbr.rel target = $region62
              $region61: #{transformer_block_forward.10} parent=35 // pred_region
                _
              $region62: #{transformer_block_forward.10} parent=35 // pred_fallthru
                _
            $region36: #{transformer_block_forward.10} parent=31 // pred_fallthru
              _
            // Predicated region
            $region37: #{transformer_block_forward.10} parent=31 // pred_check
              _
            $region38: #{transformer_block_forward.10} parent=31 // pred_check_branch
              %301 = sbr.rel target = $region40
            $region39: #{transformer_block_forward.10} parent=31 // pred_region
              loop: start=0, step=1, limit=1
              $region41: #{transformer_block_forward.10} parent=39 // loop_pre_header
                _
              $region42: #{transformer_block_forward.10} parent=39 // loop_header
                %s304 = sphi 0, %s308
                %p305 = scmp.ge.s32.totalorder %s304, 1
                %s309 = sphi %s295, %s295
                %s310 = sphi %s289, %s289
              $region43: #{transformer_block_forward.10} parent=39 // loop_header_branch
                %307 = sbr.rel (%p305) target = $region47
              $region44: #{transformer_block_forward.10} parent=39 // loop_body
                %v311 = vld [vmem:[%s309] sm:$0xff]
                %312 = vst [vmem:[%s310] sm:$0xff] %v311
                %v313 = vld [vmem:[%s309 + $0x10] sm:$0xff]
                %314 = vst [vmem:[%s310 + $0x8] sm:$0xff] %v313
                %v315 = vld [vmem:[%s309 + $0x20] sm:$0xff]
                %316 = vst [vmem:[%s310 + $0x10] sm:$0xff] %v315
                %v317 = vld [vmem:[%s309 + $0x30] sm:$0xff]
                %318 = vst [vmem:[%s310 + $0x18] sm:$0xff] %v317
              $region45: #{transformer_block_forward.10} parent=39 // loop_footer
                %s308 = sadd.s32 1, %s304
              $region46: #{transformer_block_forward.10} parent=39 // loop_footer_branch
                %303 = sbr.rel target = $region42
              $region47: #{transformer_block_forward.10} parent=39 // loop_exit
                _
            $region40: #{transformer_block_forward.10} parent=31 // pred_fallthru
              _
          $region32: #{transformer_block_forward.10} parent=27 // pred_fallthru
            _
          %339 = vnop
        $region28: #{transformer_block_forward.10} parent=23 // pred_fallthru
          _
        // Predicated region
        $region63: #{transformer_block_forward.10} parent=23 // pred_check
          %p340 = pneg %p76
        $region64: #{transformer_block_forward.10} parent=23 // pred_check_branch
          %342 = sbr.rel (%p340) target = $region66
        $region65: #{transformer_block_forward.10} parent=23 // pred_region
          %s343 = sand.u32 %s66, 1
          %s344 = sand.u32 %s66, 1
          %s345 = smul.addr %s344, 16
          %s346 = scalar_lea.vmem [#allocation3], %s345
          %s347 = smul.u32 4, %s22
          %s348 = smul.addr %s347, 4
          %s349 = sadd.s32 2, %s348
          %s350 = smul.addr %s21, 16
          %s351 = sadd.s32 %s349, %s350
          %s352 = smul.addr %s351, 4
          %s353 = scalar_lea.vmem %s1, %s352
          // Predicated region
          $region67: #{transformer_block_forward.10} parent=65 // pred_check
            _
          $region68: #{transformer_block_forward.10} parent=65 // pred_check_branch
            %355 = sbr.rel (0) target = $region70
          $region69: #{transformer_block_forward.10} parent=65 // pred_region
            // Predicated region
            $region71: #{transformer_block_forward.10} parent=69 // pred_check
              _
            $region72: #{transformer_block_forward.10} parent=69 // pred_check_branch
              %357 = sbr.rel target = $region74
            $region73: #{transformer_block_forward.10} parent=69 // pred_region
              // Predicated region
              $region86: #{transformer_block_forward.10} parent=73 // pred_check
                _
              $region87: #{transformer_block_forward.10} parent=73 // pred_check_branch
                %378 = sbr.rel (0) target = $region89
              $region88: #{transformer_block_forward.10} parent=73 // pred_region
                loop: start=0, step=1, limit=1
                $region90: #{transformer_block_forward.10} parent=88 // loop_pre_header
                  _
                $region91: #{transformer_block_forward.10} parent=88 // loop_header
                  %s380 = sphi 0, %s384
                  %p381 = scmp.ge.s32.totalorder %s380, 1
                  %s385 = sphi %s353, %s353
                  %s386 = sphi %s346, %s346
                $region92: #{transformer_block_forward.10} parent=88 // loop_header_branch
                  %383 = sbr.rel (%p381) target = $region96
                $region93: #{transformer_block_forward.10} parent=88 // loop_body
                  _
                $region94: #{transformer_block_forward.10} parent=88 // loop_footer
                  %s384 = sadd.s32 1, %s380
                $region95: #{transformer_block_forward.10} parent=88 // loop_footer_branch
                  %379 = sbr.rel target = $region91
                $region96: #{transformer_block_forward.10} parent=88 // loop_exit
                  _
                loop: start=0, step=1, limit=1
                $region97: #{transformer_block_forward.10} parent=88 // loop_pre_header
                  _
                $region98: #{transformer_block_forward.10} parent=88 // loop_header
                  %s389 = sphi 0, %s393
                  %p390 = scmp.ge.s32.totalorder %s389, 1
                  %s394 = sphi %s353, %s353
                  %s395 = sphi %s346, %s346
                $region99: #{transformer_block_forward.10} parent=88 // loop_header_branch
                  %392 = sbr.rel (%p390) target = $region103
                $region100: #{transformer_block_forward.10} parent=88 // loop_body
                  %v396 = vld [vmem:[%s394] sm:$0xf]
                  %397 = vst [vmem:[%s395] sm:$0xf] %v396
                  %v398 = vld [vmem:[%s394 + $0x10] sm:$0xf]
                  %399 = vst [vmem:[%s395 + $0x4] sm:$0xf] %v398
                  %v400 = vld [vmem:[%s394 + $0x20] sm:$0xf]
                  %401 = vst [vmem:[%s395 + $0x8] sm:$0xf] %v400
                  %v402 = vld [vmem:[%s394 + $0x30] sm:$0xf]
                  %403 = vst [vmem:[%s395 + $0xc] sm:$0xf] %v402
                $region101: #{transformer_block_forward.10} parent=88 // loop_footer
                  %s393 = sadd.s32 1, %s389
                $region102: #{transformer_block_forward.10} parent=88 // loop_footer_branch
                  %388 = sbr.rel target = $region98
                $region103: #{transformer_block_forward.10} parent=88 // loop_exit
                  _
              $region89: #{transformer_block_forward.10} parent=73 // pred_fallthru
                _
            $region74: #{transformer_block_forward.10} parent=69 // pred_fallthru
              _
            // Predicated region
            $region75: #{transformer_block_forward.10} parent=69 // pred_check
              _
            $region76: #{transformer_block_forward.10} parent=69 // pred_check_branch
              %359 = sbr.rel (0) target = $region78
            $region77: #{transformer_block_forward.10} parent=69 // pred_region
              loop: start=0, step=1, limit=1
              $region79: #{transformer_block_forward.10} parent=77 // loop_pre_header
                _
              $region80: #{transformer_block_forward.10} parent=77 // loop_header
                %s362 = sphi 0, %s366
                %p363 = scmp.ge.s32.totalorder %s362, 1
                %s367 = sphi %s353, %s353
                %s368 = sphi %s346, %s346
              $region81: #{transformer_block_forward.10} parent=77 // loop_header_branch
                %365 = sbr.rel (%p363) target = $region85
              $region82: #{transformer_block_forward.10} parent=77 // loop_body
                %v369 = vld [vmem:[%s367] sm:$0xf]
                %370 = vst [vmem:[%s368] sm:$0xf] %v369
                %v371 = vld [vmem:[%s367 + $0x10] sm:$0xf]
                %372 = vst [vmem:[%s368 + $0x4] sm:$0xf] %v371
                %v373 = vld [vmem:[%s367 + $0x20] sm:$0xf]
                %374 = vst [vmem:[%s368 + $0x8] sm:$0xf] %v373
                %v375 = vld [vmem:[%s367 + $0x30] sm:$0xf]
                %376 = vst [vmem:[%s368 + $0xc] sm:$0xf] %v375
              $region83: #{transformer_block_forward.10} parent=77 // loop_footer
                %s366 = sadd.s32 1, %s362
              $region84: #{transformer_block_forward.10} parent=77 // loop_footer_branch
                %361 = sbr.rel target = $region80
              $region85: #{transformer_block_forward.10} parent=77 // loop_exit
                _
            $region78: #{transformer_block_forward.10} parent=69 // pred_fallthru
              _
          $region70: #{transformer_block_forward.10} parent=65 // pred_fallthru
            _
          %404 = vnop
        $region66: #{transformer_block_forward.10} parent=23 // pred_fallthru
          _
        // Predicated region
        $region104: #{transformer_block_forward.10} parent=23 // pred_check
          %p405 = pneg %p104
        $region105: #{transformer_block_forward.10} parent=23 // pred_check_branch
          %407 = sbr.rel (%p405) target = $region107
        $region106: #{transformer_block_forward.10} parent=23 // pred_region
          %s408 = sand.u32 %s94, 1
          %s409 = sand.u32 %s94, 1
          %s410 = smul.addr %s409, 16
          %s411 = scalar_lea.vmem [#allocation4], %s410
          %s412 = smul.u32 4, %s22
          %s413 = smul.addr %s412, 4
          %s414 = sadd.s32 3, %s413
          %s415 = smul.addr %s21, 16
          %s416 = sadd.s32 %s414, %s415
          %s417 = smul.addr %s416, 4
          %s418 = scalar_lea.vmem %s2, %s417
          // Predicated region
          $region108: #{transformer_block_forward.10} parent=106 // pred_check
            _
          $region109: #{transformer_block_forward.10} parent=106 // pred_check_branch
            %420 = sbr.rel (0) target = $region111
          $region110: #{transformer_block_forward.10} parent=106 // pred_region
            // Predicated region
            $region112: #{transformer_block_forward.10} parent=110 // pred_check
              _
            $region113: #{transformer_block_forward.10} parent=110 // pred_check_branch
              %422 = sbr.rel target = $region115
            $region114: #{transformer_block_forward.10} parent=110 // pred_region
              // Predicated region
              $region127: #{transformer_block_forward.10} parent=114 // pred_check
                _
              $region128: #{transformer_block_forward.10} parent=114 // pred_check_branch
                %443 = sbr.rel (0) target = $region130
              $region129: #{transformer_block_forward.10} parent=114 // pred_region
                loop: start=0, step=1, limit=1
                $region131: #{transformer_block_forward.10} parent=129 // loop_pre_header
                  _
                $region132: #{transformer_block_forward.10} parent=129 // loop_header
                  %s445 = sphi 0, %s449
                  %p446 = scmp.ge.s32.totalorder %s445, 1
                  %s450 = sphi %s418, %s418
                  %s451 = sphi %s411, %s411
                $region133: #{transformer_block_forward.10} parent=129 // loop_header_branch
                  %448 = sbr.rel (%p446) target = $region137
                $region134: #{transformer_block_forward.10} parent=129 // loop_body
                  _
                $region135: #{transformer_block_forward.10} parent=129 // loop_footer
                  %s449 = sadd.s32 1, %s445
                $region136: #{transformer_block_forward.10} parent=129 // loop_footer_branch
                  %444 = sbr.rel target = $region132
                $region137: #{transformer_block_forward.10} parent=129 // loop_exit
                  _
                loop: start=0, step=1, limit=1
                $region138: #{transformer_block_forward.10} parent=129 // loop_pre_header
                  _
                $region139: #{transformer_block_forward.10} parent=129 // loop_header
                  %s454 = sphi 0, %s458
                  %p455 = scmp.ge.s32.totalorder %s454, 1
                  %s459 = sphi %s418, %s418
                  %s460 = sphi %s411, %s411
                $region140: #{transformer_block_forward.10} parent=129 // loop_header_branch
                  %457 = sbr.rel (%p455) target = $region144
                $region141: #{transformer_block_forward.10} parent=129 // loop_body
                  %v461 = vld [vmem:[%s459] sm:$0xf]
                  %462 = vst [vmem:[%s460] sm:$0xf] %v461
                  %v463 = vld [vmem:[%s459 + $0x10] sm:$0xf]
                  %464 = vst [vmem:[%s460 + $0x4] sm:$0xf] %v463
                  %v465 = vld [vmem:[%s459 + $0x20] sm:$0xf]
                  %466 = vst [vmem:[%s460 + $0x8] sm:$0xf] %v465
                  %v467 = vld [vmem:[%s459 + $0x30] sm:$0xf]
                  %468 = vst [vmem:[%s460 + $0xc] sm:$0xf] %v467
                $region142: #{transformer_block_forward.10} parent=129 // loop_footer
                  %s458 = sadd.s32 1, %s454
                $region143: #{transformer_block_forward.10} parent=129 // loop_footer_branch
                  %453 = sbr.rel target = $region139
                $region144: #{transformer_block_forward.10} parent=129 // loop_exit
                  _
              $region130: #{transformer_block_forward.10} parent=114 // pred_fallthru
                _
            $region115: #{transformer_block_forward.10} parent=110 // pred_fallthru
              _
            // Predicated region
            $region116: #{transformer_block_forward.10} parent=110 // pred_check
              _
            $region117: #{transformer_block_forward.10} parent=110 // pred_check_branch
              %424 = sbr.rel (0) target = $region119
            $region118: #{transformer_block_forward.10} parent=110 // pred_region
              loop: start=0, step=1, limit=1
              $region120: #{transformer_block_forward.10} parent=118 // loop_pre_header
                _
              $region121: #{transformer_block_forward.10} parent=118 // loop_header
                %s427 = sphi 0, %s431
                %p428 = scmp.ge.s32.totalorder %s427, 1
                %s432 = sphi %s418, %s418
                %s433 = sphi %s411, %s411
              $region122: #{transformer_block_forward.10} parent=118 // loop_header_branch
                %430 = sbr.rel (%p428) target = $region126
              $region123: #{transformer_block_forward.10} parent=118 // loop_body
                %v434 = vld [vmem:[%s432] sm:$0xf]
                %435 = vst [vmem:[%s433] sm:$0xf] %v434
                %v436 = vld [vmem:[%s432 + $0x10] sm:$0xf]
                %437 = vst [vmem:[%s433 + $0x4] sm:$0xf] %v436
                %v438 = vld [vmem:[%s432 + $0x20] sm:$0xf]
                %439 = vst [vmem:[%s433 + $0x8] sm:$0xf] %v438
                %v440 = vld [vmem:[%s432 + $0x30] sm:$0xf]
                %441 = vst [vmem:[%s433 + $0xc] sm:$0xf] %v440
              $region124: #{transformer_block_forward.10} parent=118 // loop_footer
                %s431 = sadd.s32 1, %s427
              $region125: #{transformer_block_forward.10} parent=118 // loop_footer_branch
                %426 = sbr.rel target = $region121
              $region126: #{transformer_block_forward.10} parent=118 // loop_exit
                _
            $region119: #{transformer_block_forward.10} parent=110 // pred_fallthru
              _
          $region111: #{transformer_block_forward.10} parent=106 // pred_fallthru
            _
          %469 = vnop
        $region107: #{transformer_block_forward.10} parent=23 // pred_fallthru
          _
      $region24: #{transformer_block_forward.10} parent=5 // pred_fallthru
        _
      %p470 = scmp.le.s32.totalorder 1, %s14
      %p471 = scmp.lt.s32.totalorder %s14, 3
      %p472 = pnand %p470, %p471
      %p473 = pneg %p472
      // Predicated region
      $region145: #{transformer_block_forward.10} parent=5 // pred_check
        _
      $region146: #{transformer_block_forward.10} parent=5 // pred_check_branch
        %475 = sbr.rel (%p472) target = $region148
      $region147: #{transformer_block_forward.10} parent=5 // pred_region
        %s476 = ssub.s32 %s14, 1
        %s477 = sand.u32 %s41, 1
        %s478 = sand.u32 %s41, 1
        %s479 = smul.addr %s478, 32
        %s480 = scalar_lea.vmem [#allocation2], %s479
        // Predicated region
        $region149: #{transformer_block_forward.10} parent=147 // pred_check
          %p481 = pneg %p54
        $region150: #{transformer_block_forward.10} parent=147 // pred_check_branch
          %483 = sbr.rel (%p481) target = $region152
        $region151: #{transformer_block_forward.10} parent=147 // pred_region
          _
        $region152: #{transformer_block_forward.10} parent=147 // pred_fallthru
          _
        %s484 = sand.u32 %s69, 1
        %s485 = sand.u32 %s69, 1
        %s486 = smul.addr %s485, 16
        %s487 = scalar_lea.vmem [#allocation3], %s486
        // Predicated region
        $region153: #{transformer_block_forward.10} parent=147 // pred_check
          %p488 = pneg %p82
        $region154: #{transformer_block_forward.10} parent=147 // pred_check_branch
          %490 = sbr.rel (%p488) target = $region156
        $region155: #{transformer_block_forward.10} parent=147 // pred_region
          _
        $region156: #{transformer_block_forward.10} parent=147 // pred_fallthru
          _
        %s491 = sand.u32 %s97, 1
        %s492 = sand.u32 %s97, 1
        %s493 = smul.addr %s492, 16
        %s494 = scalar_lea.vmem [#allocation4], %s493
        // Predicated region
        $region157: #{transformer_block_forward.10} parent=147 // pred_check
          %p495 = pneg %p110
        $region158: #{transformer_block_forward.10} parent=147 // pred_check_branch
          %497 = sbr.rel (%p495) target = $region160
        $region159: #{transformer_block_forward.10} parent=147 // pred_region
          _
        $region160: #{transformer_block_forward.10} parent=147 // pred_fallthru
          _
        %s498 = sand.u32 %s41, 1
        %s499 = sand.u32 %s41, 1
        %s500 = smul.addr %s499, 32
        %s501 = scalar_lea.vmem [#allocation2], %s500
        %p502 = pneg %p54
        %p503 = pneg %p51
        %s504 = sand.u32 %s69, 1
        %s505 = sand.u32 %s69, 1
        %s506 = smul.addr %s505, 16
        %s507 = scalar_lea.vmem [#allocation3], %s506
        %p508 = pneg %p82
        %p509 = pneg %p79
        %s510 = sand.u32 %s97, 1
        %s511 = sand.u32 %s97, 1
        %s512 = smul.addr %s511, 16
        %s513 = scalar_lea.vmem [#allocation4], %s512
        %p514 = pneg %p110
        %p515 = pneg %p107
        %s516 = smul.u32 4, %s24
        %p517 = scmp.lt.s32.totalorder %s516, 3
        %s518 = scalar_select %p517, %s516, 3
        %s519 = smul.addr %s518, 8
        %s520 = scalar_lea.vmem %s3, %s519
        %p521 = pneg %p136
        %p522 = pneg %p133
        %s523 = smul.u32 4, %s24
        %p524 = scmp.lt.s32.totalorder %s523, 3
        %s525 = scalar_select %p524, %s523, 3
        %s526 = smul.addr %s525, 8
        %s527 = scalar_lea.vmem %s4, %s526
        %p528 = pneg %p162
        %p529 = pneg %p159
        %p530 = pneg %p190
        %p531 = pneg %p187
        %s532 = smul.u32 4, %s24
        %p533 = scmp.lt.s32.totalorder %s23, 1
        %s534 = scalar_select %p533, %s23, 1
        %p535 = scmp.lt.s32.totalorder %s532, 3
        %s536 = scalar_select %p535, %s532, 3
        %s537 = smul.addr %s534, 16
        %s538 = sadd.s32 %s536, %s537
        %s539 = smul.addr %s538, 4
        %s540 = scalar_lea.vmem %s5, %s539
        %p541 = pneg %p218
        %p542 = pneg %p215
        %s543 = smul.u32 4, %s24
        %p544 = scmp.lt.s32.totalorder %s23, 1
        %s545 = scalar_select %p544, %s23, 1
        %p546 = scmp.lt.s32.totalorder %s543, 3
        %s547 = scalar_select %p546, %s543, 3
        %s548 = smul.addr %s545, 8
        %s549 = sadd.s32 %s547, %s548
        %s550 = smul.addr %s549, 4
        %s551 = scalar_lea.vmem %s6, %s550
        %p552 = pneg %p246
        %p553 = pneg %p243
        %s554 = smul.u32 4, %s24
        %p555 = scmp.lt.s32.totalorder %s23, 1
        %s556 = scalar_select %p555, %s23, 1
        %p557 = scmp.lt.s32.totalorder %s554, 3
        %s558 = scalar_select %p557, %s554, 3
        %s559 = smul.addr %s556, 8
        %s560 = sadd.s32 %s558, %s559
        %s561 = smul.addr %s560, 4
        %s562 = scalar_lea.vmem %s7, %s561
        %s563 = smul.u32 4, %s24
        %s564 = smul.u32 4, %s24
        %s565 = smul.u32 4, %s24
        %s566 = smul.u32 4, %s24
        %p567 = scmp.lt.s32.totalorder %s566, 3
        %s568 = scalar_select %p567, %s566, 3
        %s569 = smul.addr %s568, 8
        %s570 = scalar_lea.vmem %s3, %s569
        %s571 = smul.u32 4, %s24
        %s572 = smul.u32 4, %s24
        %p573 = scmp.lt.s32.totalorder %s572, 3
        %s574 = scalar_select %p573, %s572, 3
        %s575 = smul.addr %s574, 8
        %s576 = scalar_lea.vmem %s4, %s575
        %s577 = smul.u32 4, %s24
        %s578 = smul.u32 4, %s24
        %p579 = scmp.lt.s32.totalorder %s23, 1
        %s580 = scalar_select %p579, %s23, 1
        %p581 = scmp.lt.s32.totalorder %s578, 3
        %s582 = scalar_select %p581, %s578, 3
        %s583 = smul.addr %s580, 16
        %s584 = sadd.s32 %s582, %s583
        %s585 = smul.addr %s584, 4
        %s586 = scalar_lea.vmem %s5, %s585
        %s587 = smul.u32 4, %s24
        %s588 = smul.u32 4, %s24
        %p589 = scmp.lt.s32.totalorder %s23, 1
        %s590 = scalar_select %p589, %s23, 1
        %p591 = scmp.lt.s32.totalorder %s588, 3
        %s592 = scalar_select %p591, %s588, 3
        %s593 = smul.addr %s590, 8
        %s594 = sadd.s32 %s592, %s593
        %s595 = smul.addr %s594, 4
        %s596 = scalar_lea.vmem %s6, %s595
        %s597 = smul.u32 4, %s24
        %s598 = smul.u32 4, %s24
        %p599 = scmp.lt.s32.totalorder %s23, 1
        %s600 = scalar_select %p599, %s23, 1
        %p601 = scmp.lt.s32.totalorder %s598, 3
        %s602 = scalar_select %p601, %s598, 3
        %s603 = smul.addr %s600, 8
        %s604 = sadd.s32 %s602, %s603
        %s605 = smul.addr %s604, 4
        %s606 = scalar_lea.vmem %s7, %s605
        %s607 = smul.u32 4, %s24
        %v608 = vld [vmem:[%s570] sm:$0xff]
        %v609 = vld [vmem:[%s570 + $0x8] sm:$0xff]
        %v610 = vld [vmem:[%s570 + $0x10] sm:$0xff]
        %v611 = vld [vmem:[%s570 + $0x18] sm:$0xff]
        %v612 = vld [vmem:[%s576] sm:$0xff]
        %v613 = vld [vmem:[%s576 + $0x8] sm:$0xff]
        %v614 = vld [vmem:[%s576 + $0x10] sm:$0xff]
        %v615 = vld [vmem:[%s576 + $0x18] sm:$0xff]
        %v616 = vld [vmem:[%s480] sm:$0xf]
        %v617 = vld [vmem:[%s480 + $0x8] sm:$0xf]
        %v618 = vld [vmem:[%s480 + $0x10] sm:$0xf]
        %v619 = vld [vmem:[%s480 + $0x18] sm:$0xf]
        %v620 = vunpack.c.l.bf16 %v616
        %v621 = vunpack.c.l.bf16 %v617
        %v622 = vunpack.c.l.bf16 %v618
        %v623 = vunpack.c.l.bf16 %v619
        %v624 = vlaneseq
        %v625 = vand.u32 %v624, 127
        %vm626 = vcmp.lt.s32.totalorder %v625, 0
        %v627 = vsub.s32 0, %v625
        %v628 = vsel %vm626, %v627, %v625
        %v629 = vshrl.u32 %v628, 1
        %v630 = vand.u32 %v628, 1
        %v631 = vsub.s32 0, %v630
        %v632 = vsel %vm626, %v631, %v630
        %vm633 = vcmp.ne.s32.totalorder %v632, 0
        %vm634 = vcmp.lt.s32.totalorder %v632, 0
        %vm635 = vmand %vm634, %vm633
        %v636 = vadd.s32 %v632, 2
        %v637 = vsel %vm635, %v636, %v632
        %vm638 = vcmp.eq.s32.totalorder %v637, 0
        %vm639 = vcmask 1048064
        %640 = vrot.lane.b32.xlu0 %v620, 64
        %v641 = vpop.permute.xlu0 %640
        %v642 = vsel %vm639, %v641, %v620
        %643 = vrot.lane.b32.xlu0 %v621, 64
        %v644 = vpop.permute.xlu0 %643
        %v645 = vsel %vm639, %v644, %v621
        %646 = vrot.lane.b32.xlu0 %v622, 64
        %v647 = vpop.permute.xlu0 %646
        %v648 = vsel %vm639, %v647, %v622
        %649 = vrot.lane.b32.xlu0 %v623, 64
        %v650 = vpop.permute.xlu0 %649
        %v651 = vsel %vm639, %v650, %v623
        %652 = vrot.lane.b32.xlu0 %v642, 64
        %v653 = vpop.permute.xlu0 %652
        %654 = vrot.lane.b32.xlu0 %v645, 64
        %v655 = vpop.permute.xlu0 %654
        %656 = vrot.lane.b32.xlu0 %v648, 64
        %v657 = vpop.permute.xlu0 %656
        %658 = vrot.lane.b32.xlu0 %v651, 64
        %v659 = vpop.permute.xlu0 %658
        %v660 = vsel %vm639, %v653, %v620
        %v661 = vsel %vm639, %v655, %v621
        %v662 = vsel %vm639, %v657, %v622
        %v663 = vsel %vm639, %v659, %v623
        %668 = vrot.lane.b32.xlu0 %v660, 127
        %v669 = vpop.permute.xlu0 %668
        %670 = vrot.lane.b32.xlu0 %v661, 127
        %v671 = vpop.permute.xlu0 %670
        %672 = vrot.lane.b32.xlu0 %v662, 127
        %v673 = vpop.permute.xlu0 %672
        %674 = vrot.lane.b32.xlu0 %v663, 127
        %v675 = vpop.permute.xlu0 %674
        %680 = vrot.lane.b32.xlu0 %v660, 65
        %v681 = vpop.permute.xlu0 %680
        %682 = vrot.lane.b32.xlu0 %v661, 65
        %v683 = vpop.permute.xlu0 %682
        %684 = vrot.lane.b32.xlu0 %v662, 65
        %v685 = vpop.permute.xlu0 %684
        %686 = vrot.lane.b32.xlu0 %v663, 65
        %v687 = vpop.permute.xlu0 %686
        %v692 = vsel %vm638, %v669, %v681
        %v693 = vsel %vm638, %v671, %v683
        %v694 = vsel %vm638, %v673, %v685
        %v695 = vsel %vm638, %v675, %v687
        %v696 = vsub.f32 0.0, %v692
        %v697 = vsub.f32 0.0, %v693
        %v698 = vsub.f32 0.0, %v694
        %v699 = vsub.f32 0.0, %v695
        %v700 = vsel %vm638, %v696, %v681
        %v701 = vsel %vm638, %v697, %v683
        %v702 = vsel %vm638, %v698, %v685
        %v703 = vsel %vm638, %v699, %v687
        %v704 = vmul.f32 %v620, %v608
        %v705 = vmul.f32 %v621, %v609
        %v706 = vmul.f32 %v622, %v610
        %v707 = vmul.f32 %v623, %v611
        %v708 = vmul.f32 %v700, %v612
        %v709 = vmul.f32 %v701, %v613
        %v710 = vmul.f32 %v702, %v614
        %v711 = vmul.f32 %v703, %v615
        %v712 = vadd.f32 %v704, %v708
        %v713 = vadd.f32 %v705, %v709
        %v714 = vadd.f32 %v706, %v710
        %v715 = vadd.f32 %v707, %v711
        %v716 = vmul.f32 %v712, 0.125
        %v717 = vmul.f32 %v713, 0.125
        %v718 = vmul.f32 %v714, 0.125
        %v719 = vmul.f32 %v715, 0.125
        %v720 = vpack.c.bf16 %v717, %v716
        %v721 = vpack.c.bf16 %v719, %v718
        %v724 = vunpack.c.l.b16 %v720
        %v725 = vunpack.c.h.b16 %v720
        %v726 = vunpack.c.l.b16 %v721
        %v727 = vunpack.c.h.b16 %v721
        %v728 = vpack.c.b16 %v724, %v724
        %v729 = vpack.c.b16 %v725, %v725
        %v730 = vpack.c.b16 %v726, %v726
        %v731 = vpack.c.b16 %v727, %v727
        %vm736 = vcmask 519168
        %737 = vst.msk [vmem:[%s586] sm:$0xf] %vm736, %v728
        %738 = vst.msk [vmem:[%s586 + $0x4] sm:$0xf] %vm736, %v729
        %739 = vst.msk [vmem:[%s586 + $0x8] sm:$0xf] %vm736, %v730
        %740 = vst.msk [vmem:[%s586 + $0xc] sm:$0xf] %vm736, %v731
        %v741 = vld [vmem:[%s480] sm:$0xf]
        %v742 = vld [vmem:[%s480 + $0x8] sm:$0xf]
        %v743 = vld [vmem:[%s480 + $0x10] sm:$0xf]
        %v744 = vld [vmem:[%s480 + $0x18] sm:$0xf]
        %v745 = vunpack.c.l.bf16 %v741
        %v746 = vunpack.c.l.bf16 %v742
        %v747 = vunpack.c.l.bf16 %v743
        %v748 = vunpack.c.l.bf16 %v744
        %753 = vrot.lane.b32.xlu0 %v745, 64
        %v754 = vpop.permute.xlu0 %753
        %755 = vrot.lane.b32.xlu0 %v746, 64
        %v756 = vpop.permute.xlu0 %755
        %757 = vrot.lane.b32.xlu0 %v747, 64
        %v758 = vpop.permute.xlu0 %757
        %759 = vrot.lane.b32.xlu0 %v748, 64
        %v760 = vpop.permute.xlu0 %759
        %765 = vrot.lane.b32.xlu0 %v754, 64
        %v766 = vpop.permute.xlu0 %765
        %v767 = vsel %vm639, %v766, %v754
        %768 = vrot.lane.b32.xlu0 %v756, 64
        %v769 = vpop.permute.xlu0 %768
        %v770 = vsel %vm639, %v769, %v756
        %771 = vrot.lane.b32.xlu0 %v758, 64
        %v772 = vpop.permute.xlu0 %771
        %v773 = vsel %vm639, %v772, %v758
        %774 = vrot.lane.b32.xlu0 %v760, 64
        %v775 = vpop.permute.xlu0 %774
        %v776 = vsel %vm639, %v775, %v760
        %777 = vrot.lane.b32.xlu0 %v767, 64
        %v778 = vpop.permute.xlu0 %777
        %779 = vrot.lane.b32.xlu0 %v770, 64
        %v780 = vpop.permute.xlu0 %779
        %781 = vrot.lane.b32.xlu0 %v773, 64
        %v782 = vpop.permute.xlu0 %781
        %783 = vrot.lane.b32.xlu0 %v776, 64
        %v784 = vpop.permute.xlu0 %783
        %v785 = vsel %vm639, %v778, %v754
        %v786 = vsel %vm639, %v780, %v756
        %v787 = vsel %vm639, %v782, %v758
        %v788 = vsel %vm639, %v784, %v760
        %793 = vrot.lane.b32.xlu0 %v785, 127
        %v794 = vpop.permute.xlu0 %793
        %795 = vrot.lane.b32.xlu0 %v786, 127
        %v796 = vpop.permute.xlu0 %795
        %797 = vrot.lane.b32.xlu0 %v787, 127
        %v798 = vpop.permute.xlu0 %797
        %799 = vrot.lane.b32.xlu0 %v788, 127
        %v800 = vpop.permute.xlu0 %799
        %805 = vrot.lane.b32.xlu0 %v785, 65
        %v806 = vpop.permute.xlu0 %805
        %807 = vrot.lane.b32.xlu0 %v786, 65
        %v808 = vpop.permute.xlu0 %807
        %809 = vrot.lane.b32.xlu0 %v787, 65
        %v810 = vpop.permute.xlu0 %809
        %811 = vrot.lane.b32.xlu0 %v788, 65
        %v812 = vpop.permute.xlu0 %811
        %v817 = vsel %vm638, %v794, %v806
        %v818 = vsel %vm638, %v796, %v808
        %v819 = vsel %vm638, %v798, %v810
        %v820 = vsel %vm638, %v800, %v812
        %v821 = vsub.f32 0.0, %v817
        %v822 = vsub.f32 0.0, %v818
        %v823 = vsub.f32 0.0, %v819
        %v824 = vsub.f32 0.0, %v820
        %v825 = vsel %vm638, %v821, %v806
        %v826 = vsel %vm638, %v822, %v808
        %v827 = vsel %vm638, %v823, %v810
        %v828 = vsel %vm638, %v824, %v812
        %833 = vrot.lane.b32.xlu0 %v608, 64
        %v834 = vpop.permute.xlu0 %833
        %835 = vrot.lane.b32.xlu0 %v609, 64
        %v836 = vpop.permute.xlu0 %835
        %837 = vrot.lane.b32.xlu0 %v610, 64
        %v838 = vpop.permute.xlu0 %837
        %839 = vrot.lane.b32.xlu0 %v611, 64
        %v840 = vpop.permute.xlu0 %839
        %v845 = vmul.f32 %v745, %v834
        %v846 = vmul.f32 %v746, %v836
        %v847 = vmul.f32 %v747, %v838
        %v848 = vmul.f32 %v748, %v840
        %v849 = vmul.f32 %v825, %v612
        %v850 = vmul.f32 %v826, %v613
        %v851 = vmul.f32 %v827, %v614
        %v852 = vmul.f32 %v828, %v615
        %857 = vrot.lane.b32.xlu0 %v849, 64
        %v858 = vpop.permute.xlu0 %857
        %859 = vrot.lane.b32.xlu0 %v850, 64
        %v860 = vpop.permute.xlu0 %859
        %861 = vrot.lane.b32.xlu0 %v851, 64
        %v862 = vpop.permute.xlu0 %861
        %863 = vrot.lane.b32.xlu0 %v852, 64
        %v864 = vpop.permute.xlu0 %863
        %v869 = vadd.f32 %v845, %v858
        %v870 = vadd.f32 %v846, %v860
        %v871 = vadd.f32 %v847, %v862
        %v872 = vadd.f32 %v848, %v864
        %v873 = vmul.f32 %v869, 0.125
        %v874 = vmul.f32 %v870, 0.125
        %v875 = vmul.f32 %v871, 0.125
        %v876 = vmul.f32 %v872, 0.125
        %v877 = vpack.c.bf16 %v874, %v873
        %v878 = vpack.c.bf16 %v876, %v875
        %v881 = vunpack.c.l.b16 %v877
        %v882 = vunpack.c.h.b16 %v877
        %v883 = vunpack.c.l.b16 %v878
        %v884 = vunpack.c.h.b16 %v878
        %v885 = vpack.c.b16 %v881, %v881
        %v886 = vpack.c.b16 %v882, %v882
        %v887 = vpack.c.b16 %v883, %v883
        %v888 = vpack.c.b16 %v884, %v884
        %889 = vrot.lane.b32.xlu0 %v885, 64
        %v890 = vpop.permute.xlu0 %889
        %891 = vrot.lane.b32.xlu0 %v886, 64
        %v892 = vpop.permute.xlu0 %891
        %893 = vrot.lane.b32.xlu0 %v887, 64
        %v894 = vpop.permute.xlu0 %893
        %895 = vrot.lane.b32.xlu0 %v888, 64
        %v896 = vpop.permute.xlu0 %895
        %s901 = scalar_lea.vmem %s586, 16
        %902 = vst.msk [vmem:[%s901] sm:$0xf] %vm736, %v890
        %903 = vst.msk [vmem:[%s901 + $0x4] sm:$0xf] %vm736, %v892
        %904 = vst.msk [vmem:[%s901 + $0x8] sm:$0xf] %vm736, %v894
        %905 = vst.msk [vmem:[%s901 + $0xc] sm:$0xf] %vm736, %v896
        %v906 = vld [vmem:[%s480 + $0x4] sm:$0xf]
        %v907 = vld [vmem:[%s480 + $0xc] sm:$0xf]
        %v908 = vld [vmem:[%s480 + $0x14] sm:$0xf]
        %v909 = vld [vmem:[%s480 + $0x1c] sm:$0xf]
        %v910 = vunpack.c.l.bf16 %v906
        %v911 = vunpack.c.l.bf16 %v907
        %v912 = vunpack.c.l.bf16 %v908
        %v913 = vunpack.c.l.bf16 %v909
        %914 = vrot.lane.b32.xlu0 %v910, 64
        %v915 = vpop.permute.xlu0 %914
        %v916 = vsel %vm639, %v915, %v910
        %917 = vrot.lane.b32.xlu0 %v911, 64
        %v918 = vpop.permute.xlu0 %917
        %v919 = vsel %vm639, %v918, %v911
        %920 = vrot.lane.b32.xlu0 %v912, 64
        %v921 = vpop.permute.xlu0 %920
        %v922 = vsel %vm639, %v921, %v912
        %923 = vrot.lane.b32.xlu0 %v913, 64
        %v924 = vpop.permute.xlu0 %923
        %v925 = vsel %vm639, %v924, %v913
        %926 = vrot.lane.b32.xlu0 %v916, 64
        %v927 = vpop.permute.xlu0 %926
        %928 = vrot.lane.b32.xlu0 %v919, 64
        %v929 = vpop.permute.xlu0 %928
        %930 = vrot.lane.b32.xlu0 %v922, 64
        %v931 = vpop.permute.xlu0 %930
        %932 = vrot.lane.b32.xlu0 %v925, 64
        %v933 = vpop.permute.xlu0 %932
        %v934 = vsel %vm639, %v927, %v910
        %v935 = vsel %vm639, %v929, %v911
        %v936 = vsel %vm639, %v931, %v912
        %v937 = vsel %vm639, %v933, %v913
        %942 = vrot.lane.b32.xlu0 %v934, 127
        %v943 = vpop.permute.xlu0 %942
        %944 = vrot.lane.b32.xlu0 %v935, 127
        %v945 = vpop.permute.xlu0 %944
        %946 = vrot.lane.b32.xlu0 %v936, 127
        %v947 = vpop.permute.xlu0 %946
        %948 = vrot.lane.b32.xlu0 %v937, 127
        %v949 = vpop.permute.xlu0 %948
        %954 = vrot.lane.b32.xlu0 %v934, 65
        %v955 = vpop.permute.xlu0 %954
        %956 = vrot.lane.b32.xlu0 %v935, 65
        %v957 = vpop.permute.xlu0 %956
        %958 = vrot.lane.b32.xlu0 %v936, 65
        %v959 = vpop.permute.xlu0 %958
        %960 = vrot.lane.b32.xlu0 %v937, 65
        %v961 = vpop.permute.xlu0 %960
        %v966 = vsel %vm638, %v943, %v955
        %v967 = vsel %vm638, %v945, %v957
        %v968 = vsel %vm638, %v947, %v959
        %v969 = vsel %vm638, %v949, %v961
        %v970 = vsub.f32 0.0, %v966
        %v971 = vsub.f32 0.0, %v967
        %v972 = vsub.f32 0.0, %v968
        %v973 = vsub.f32 0.0, %v969
        %v974 = vsel %vm638, %v970, %v955
        %v975 = vsel %vm638, %v971, %v957
        %v976 = vsel %vm638, %v972, %v959
        %v977 = vsel %vm638, %v973, %v961
        %v978 = vmul.f32 %v910, %v608
        %v979 = vmul.f32 %v911, %v609
        %v980 = vmul.f32 %v912, %v610
        %v981 = vmul.f32 %v913, %v611
        %v982 = vmul.f32 %v974, %v612
        %v983 = vmul.f32 %v975, %v613
        %v984 = vmul.f32 %v976, %v614
        %v985 = vmul.f32 %v977, %v615
        %v986 = vadd.f32 %v978, %v982
        %v987 = vadd.f32 %v979, %v983
        %v988 = vadd.f32 %v980, %v984
        %v989 = vadd.f32 %v981, %v985
        %v990 = vmul.f32 %v986, 0.125
        %v991 = vmul.f32 %v987, 0.125
        %v992 = vmul.f32 %v988, 0.125
        %v993 = vmul.f32 %v989, 0.125
        %v994 = vpack.c.bf16 %v991, %v990
        %v995 = vpack.c.bf16 %v993, %v992
        %v998 = vunpack.c.l.b16 %v994
        %v999 = vunpack.c.h.b16 %v994
        %v1000 = vunpack.c.l.b16 %v995
        %v1001 = vunpack.c.h.b16 %v995
        %v1002 = vpack.c.b16 %v998, %v998
        %v1003 = vpack.c.b16 %v999, %v999
        %v1004 = vpack.c.b16 %v1000, %v1000
        %v1005 = vpack.c.b16 %v1001, %v1001
        %s1010 = scalar_lea.vmem %s586, 32
        %1011 = vst.msk [vmem:[%s1010] sm:$0xf] %vm736, %v1002
        %1012 = vst.msk [vmem:[%s1010 + $0x4] sm:$0xf] %vm736, %v1003
        %1013 = vst.msk [vmem:[%s1010 + $0x8] sm:$0xf] %vm736, %v1004
        %1014 = vst.msk [vmem:[%s1010 + $0xc] sm:$0xf] %vm736, %v1005
        %v1015 = vld [vmem:[%s480 + $0x4] sm:$0xf]
        %v1016 = vld [vmem:[%s480 + $0xc] sm:$0xf]
        %v1017 = vld [vmem:[%s480 + $0x14] sm:$0xf]
        %v1018 = vld [vmem:[%s480 + $0x1c] sm:$0xf]
        %v1019 = vunpack.c.l.bf16 %v1015
        %v1020 = vunpack.c.l.bf16 %v1016
        %v1021 = vunpack.c.l.bf16 %v1017
        %v1022 = vunpack.c.l.bf16 %v1018
        %1027 = vrot.lane.b32.xlu0 %v1019, 64
        %v1028 = vpop.permute.xlu0 %1027
        %1029 = vrot.lane.b32.xlu0 %v1020, 64
        %v1030 = vpop.permute.xlu0 %1029
        %1031 = vrot.lane.b32.xlu0 %v1021, 64
        %v1032 = vpop.permute.xlu0 %1031
        %1033 = vrot.lane.b32.xlu0 %v1022, 64
        %v1034 = vpop.permute.xlu0 %1033
        %1039 = vrot.lane.b32.xlu0 %v1028, 64
        %v1040 = vpop.permute.xlu0 %1039
        %v1041 = vsel %vm639, %v1040, %v1028
        %1042 = vrot.lane.b32.xlu0 %v1030, 64
        %v1043 = vpop.permute.xlu0 %1042
        %v1044 = vsel %vm639, %v1043, %v1030
        %1045 = vrot.lane.b32.xlu0 %v1032, 64
        %v1046 = vpop.permute.xlu0 %1045
        %v1047 = vsel %vm639, %v1046, %v1032
        %1048 = vrot.lane.b32.xlu0 %v1034, 64
        %v1049 = vpop.permute.xlu0 %1048
        %v1050 = vsel %vm639, %v1049, %v1034
        %1051 = vrot.lane.b32.xlu0 %v1041, 64
        %v1052 = vpop.permute.xlu0 %1051
        %1053 = vrot.lane.b32.xlu0 %v1044, 64
        %v1054 = vpop.permute.xlu0 %1053
        %1055 = vrot.lane.b32.xlu0 %v1047, 64
        %v1056 = vpop.permute.xlu0 %1055
        %1057 = vrot.lane.b32.xlu0 %v1050, 64
        %v1058 = vpop.permute.xlu0 %1057
        %v1059 = vsel %vm639, %v1052, %v1028
        %v1060 = vsel %vm639, %v1054, %v1030
        %v1061 = vsel %vm639, %v1056, %v1032
        %v1062 = vsel %vm639, %v1058, %v1034
        %1067 = vrot.lane.b32.xlu0 %v1059, 127
        %v1068 = vpop.permute.xlu0 %1067
        %1069 = vrot.lane.b32.xlu0 %v1060, 127
        %v1070 = vpop.permute.xlu0 %1069
        %1071 = vrot.lane.b32.xlu0 %v1061, 127
        %v1072 = vpop.permute.xlu0 %1071
        %1073 = vrot.lane.b32.xlu0 %v1062, 127
        %v1074 = vpop.permute.xlu0 %1073
        %1079 = vrot.lane.b32.xlu0 %v1059, 65
        %v1080 = vpop.permute.xlu0 %1079
        %1081 = vrot.lane.b32.xlu0 %v1060, 65
        %v1082 = vpop.permute.xlu0 %1081
        %1083 = vrot.lane.b32.xlu0 %v1061, 65
        %v1084 = vpop.permute.xlu0 %1083
        %1085 = vrot.lane.b32.xlu0 %v1062, 65
        %v1086 = vpop.permute.xlu0 %1085
        %v1091 = vsel %vm638, %v1068, %v1080
        %v1092 = vsel %vm638, %v1070, %v1082
        %v1093 = vsel %vm638, %v1072, %v1084
        %v1094 = vsel %vm638, %v1074, %v1086
        %v1095 = vsub.f32 0.0, %v1091
        %v1096 = vsub.f32 0.0, %v1092
        %v1097 = vsub.f32 0.0, %v1093
        %v1098 = vsub.f32 0.0, %v1094
        %v1099 = vsel %vm638, %v1095, %v1080
        %v1100 = vsel %vm638, %v1096, %v1082
        %v1101 = vsel %vm638, %v1097, %v1084
        %v1102 = vsel %vm638, %v1098, %v1086
        %v1103 = vmul.f32 %v1019, %v834
        %v1104 = vmul.f32 %v1020, %v836
        %v1105 = vmul.f32 %v1021, %v838
        %v1106 = vmul.f32 %v1022, %v840
        %v1107 = vmul.f32 %v1099, %v612
        %v1108 = vmul.f32 %v1100, %v613
        %v1109 = vmul.f32 %v1101, %v614
        %v1110 = vmul.f32 %v1102, %v615
        %1115 = vrot.lane.b32.xlu0 %v1107, 64
        %v1116 = vpop.permute.xlu0 %1115
        %1117 = vrot.lane.b32.xlu0 %v1108, 64
        %v1118 = vpop.permute.xlu0 %1117
        %1119 = vrot.lane.b32.xlu0 %v1109, 64
        %v1120 = vpop.permute.xlu0 %1119
        %1121 = vrot.lane.b32.xlu0 %v1110, 64
        %v1122 = vpop.permute.xlu0 %1121
        %v1127 = vadd.f32 %v1103, %v1116
        %v1128 = vadd.f32 %v1104, %v1118
        %v1129 = vadd.f32 %v1105, %v1120
        %v1130 = vadd.f32 %v1106, %v1122
        %v1131 = vmul.f32 %v1127, 0.125
        %v1132 = vmul.f32 %v1128, 0.125
        %v1133 = vmul.f32 %v1129, 0.125
        %v1134 = vmul.f32 %v1130, 0.125
        %v1135 = vpack.c.bf16 %v1132, %v1131
        %v1136 = vpack.c.bf16 %v1134, %v1133
        %v1139 = vunpack.c.l.b16 %v1135
        %v1140 = vunpack.c.h.b16 %v1135
        %v1141 = vunpack.c.l.b16 %v1136
        %v1142 = vunpack.c.h.b16 %v1136
        %v1143 = vpack.c.b16 %v1139, %v1139
        %v1144 = vpack.c.b16 %v1140, %v1140
        %v1145 = vpack.c.b16 %v1141, %v1141
        %v1146 = vpack.c.b16 %v1142, %v1142
        %1147 = vrot.lane.b32.xlu0 %v1143, 64
        %v1148 = vpop.permute.xlu0 %1147
        %1149 = vrot.lane.b32.xlu0 %v1144, 64
        %v1150 = vpop.permute.xlu0 %1149
        %1151 = vrot.lane.b32.xlu0 %v1145, 64
        %v1152 = vpop.permute.xlu0 %1151
        %1153 = vrot.lane.b32.xlu0 %v1146, 64
        %v1154 = vpop.permute.xlu0 %1153
        %s1159 = scalar_lea.vmem %s586, 48
        %1160 = vst.msk [vmem:[%s1159] sm:$0xf] %vm736, %v1148
        %1161 = vst.msk [vmem:[%s1159 + $0x4] sm:$0xf] %vm736, %v1150
        %1162 = vst.msk [vmem:[%s1159 + $0x8] sm:$0xf] %vm736, %v1152
        %1163 = vst.msk [vmem:[%s1159 + $0xc] sm:$0xf] %vm736, %v1154
        %v1164 = vld [vmem:[%s487] sm:$0xf]
        %v1165 = vld [vmem:[%s487 + $0x4] sm:$0xf]
        %v1166 = vld [vmem:[%s487 + $0x8] sm:$0xf]
        %v1167 = vld [vmem:[%s487 + $0xc] sm:$0xf]
        %v1168 = vunpack.c.l.bf16 %v1164
        %v1169 = vunpack.c.l.bf16 %v1165
        %v1170 = vunpack.c.l.bf16 %v1166
        %v1171 = vunpack.c.l.bf16 %v1167
        %1172 = vrot.lane.b32.xlu0 %v1168, 64
        %v1173 = vpop.permute.xlu0 %1172
        %v1174 = vsel %vm639, %v1173, %v1168
        %1175 = vrot.lane.b32.xlu0 %v1169, 64
        %v1176 = vpop.permute.xlu0 %1175
        %v1177 = vsel %vm639, %v1176, %v1169
        %1178 = vrot.lane.b32.xlu0 %v1170, 64
        %v1179 = vpop.permute.xlu0 %1178
        %v1180 = vsel %vm639, %v1179, %v1170
        %1181 = vrot.lane.b32.xlu0 %v1171, 64
        %v1182 = vpop.permute.xlu0 %1181
        %v1183 = vsel %vm639, %v1182, %v1171
        %1184 = vrot.lane.b32.xlu0 %v1174, 64
        %v1185 = vpop.permute.xlu0 %1184
        %1186 = vrot.lane.b32.xlu0 %v1177, 64
        %v1187 = vpop.permute.xlu0 %1186
        %1188 = vrot.lane.b32.xlu0 %v1180, 64
        %v1189 = vpop.permute.xlu0 %1188
        %1190 = vrot.lane.b32.xlu0 %v1183, 64
        %v1191 = vpop.permute.xlu0 %1190
        %v1192 = vsel %vm639, %v1185, %v1168
        %v1193 = vsel %vm639, %v1187, %v1169
        %v1194 = vsel %vm639, %v1189, %v1170
        %v1195 = vsel %vm639, %v1191, %v1171
        %1200 = vrot.lane.b32.xlu0 %v1192, 127
        %v1201 = vpop.permute.xlu0 %1200
        %1202 = vrot.lane.b32.xlu0 %v1193, 127
        %v1203 = vpop.permute.xlu0 %1202
        %1204 = vrot.lane.b32.xlu0 %v1194, 127
        %v1205 = vpop.permute.xlu0 %1204
        %1206 = vrot.lane.b32.xlu0 %v1195, 127
        %v1207 = vpop.permute.xlu0 %1206
        %1212 = vrot.lane.b32.xlu0 %v1192, 65
        %v1213 = vpop.permute.xlu0 %1212
        %1214 = vrot.lane.b32.xlu0 %v1193, 65
        %v1215 = vpop.permute.xlu0 %1214
        %1216 = vrot.lane.b32.xlu0 %v1194, 65
        %v1217 = vpop.permute.xlu0 %1216
        %1218 = vrot.lane.b32.xlu0 %v1195, 65
        %v1219 = vpop.permute.xlu0 %1218
        %v1224 = vsel %vm638, %v1201, %v1213
        %v1225 = vsel %vm638, %v1203, %v1215
        %v1226 = vsel %vm638, %v1205, %v1217
        %v1227 = vsel %vm638, %v1207, %v1219
        %v1228 = vsub.f32 0.0, %v1224
        %v1229 = vsub.f32 0.0, %v1225
        %v1230 = vsub.f32 0.0, %v1226
        %v1231 = vsub.f32 0.0, %v1227
        %v1232 = vsel %vm638, %v1228, %v1213
        %v1233 = vsel %vm638, %v1229, %v1215
        %v1234 = vsel %vm638, %v1230, %v1217
        %v1235 = vsel %vm638, %v1231, %v1219
        %v1236 = vmul.f32 %v1168, %v608
        %v1237 = vmul.f32 %v1169, %v609
        %v1238 = vmul.f32 %v1170, %v610
        %v1239 = vmul.f32 %v1171, %v611
        %v1240 = vmul.f32 %v1232, %v612
        %v1241 = vmul.f32 %v1233, %v613
        %v1242 = vmul.f32 %v1234, %v614
        %v1243 = vmul.f32 %v1235, %v615
        %v1244 = vadd.f32 %v1236, %v1240
        %v1245 = vadd.f32 %v1237, %v1241
        %v1246 = vadd.f32 %v1238, %v1242
        %v1247 = vadd.f32 %v1239, %v1243
        %v1248 = vpack.c.bf16 %v1245, %v1244
        %v1249 = vpack.c.bf16 %v1247, %v1246
        %v1252 = vunpack.c.l.b16 %v1248
        %v1253 = vunpack.c.h.b16 %v1248
        %v1254 = vunpack.c.l.b16 %v1249
        %v1255 = vunpack.c.h.b16 %v1249
        %v1256 = vpack.c.b16 %v1252, %v1252
        %v1257 = vpack.c.b16 %v1253, %v1253
        %v1258 = vpack.c.b16 %v1254, %v1254
        %v1259 = vpack.c.b16 %v1255, %v1255
        %1264 = vst.msk [vmem:[%s596] sm:$0xf] %vm736, %v1256
        %1265 = vst.msk [vmem:[%s596 + $0x4] sm:$0xf] %vm736, %v1257
        %1266 = vst.msk [vmem:[%s596 + $0x8] sm:$0xf] %vm736, %v1258
        %1267 = vst.msk [vmem:[%s596 + $0xc] sm:$0xf] %vm736, %v1259
        %v1268 = vld [vmem:[%s494] sm:$0xf]
        %v1269 = vld [vmem:[%s494 + $0x4] sm:$0xf]
        %v1270 = vld [vmem:[%s494 + $0x8] sm:$0xf]
        %v1271 = vld [vmem:[%s494 + $0xc] sm:$0xf]
        %1272 = vst.msk [vmem:[%s606] sm:$0xf] %vm736, %v1268
        %1273 = vst.msk [vmem:[%s606 + $0x4] sm:$0xf] %vm736, %v1269
        %1274 = vst.msk [vmem:[%s606 + $0x8] sm:$0xf] %vm736, %v1270
        %1275 = vst.msk [vmem:[%s606 + $0xc] sm:$0xf] %vm736, %v1271
        %v1276 = vld [vmem:[%s487] sm:$0xf]
        %v1277 = vld [vmem:[%s487 + $0x4] sm:$0xf]
        %v1278 = vld [vmem:[%s487 + $0x8] sm:$0xf]
        %v1279 = vld [vmem:[%s487 + $0xc] sm:$0xf]
        %v1280 = vunpack.c.l.bf16 %v1276
        %v1281 = vunpack.c.l.bf16 %v1277
        %v1282 = vunpack.c.l.bf16 %v1278
        %v1283 = vunpack.c.l.bf16 %v1279
        %1288 = vrot.lane.b32.xlu0 %v1280, 64
        %v1289 = vpop.permute.xlu0 %1288
        %1290 = vrot.lane.b32.xlu0 %v1281, 64
        %v1291 = vpop.permute.xlu0 %1290
        %1292 = vrot.lane.b32.xlu0 %v1282, 64
        %v1293 = vpop.permute.xlu0 %1292
        %1294 = vrot.lane.b32.xlu0 %v1283, 64
        %v1295 = vpop.permute.xlu0 %1294
        %1300 = vrot.lane.b32.xlu0 %v1289, 64
        %v1301 = vpop.permute.xlu0 %1300
        %v1302 = vsel %vm639, %v1301, %v1289
        %1303 = vrot.lane.b32.xlu0 %v1291, 64
        %v1304 = vpop.permute.xlu0 %1303
        %v1305 = vsel %vm639, %v1304, %v1291
        %1306 = vrot.lane.b32.xlu0 %v1293, 64
        %v1307 = vpop.permute.xlu0 %1306
        %v1308 = vsel %vm639, %v1307, %v1293
        %1309 = vrot.lane.b32.xlu0 %v1295, 64
        %v1310 = vpop.permute.xlu0 %1309
        %v1311 = vsel %vm639, %v1310, %v1295
        %1312 = vrot.lane.b32.xlu0 %v1302, 64
        %v1313 = vpop.permute.xlu0 %1312
        %1314 = vrot.lane.b32.xlu0 %v1305, 64
        %v1315 = vpop.permute.xlu0 %1314
        %1316 = vrot.lane.b32.xlu0 %v1308, 64
        %v1317 = vpop.permute.xlu0 %1316
        %1318 = vrot.lane.b32.xlu0 %v1311, 64
        %v1319 = vpop.permute.xlu0 %1318
        %v1320 = vsel %vm639, %v1313, %v1289
        %v1321 = vsel %vm639, %v1315, %v1291
        %v1322 = vsel %vm639, %v1317, %v1293
        %v1323 = vsel %vm639, %v1319, %v1295
        %1328 = vrot.lane.b32.xlu0 %v1320, 127
        %v1329 = vpop.permute.xlu0 %1328
        %1330 = vrot.lane.b32.xlu0 %v1321, 127
        %v1331 = vpop.permute.xlu0 %1330
        %1332 = vrot.lane.b32.xlu0 %v1322, 127
        %v1333 = vpop.permute.xlu0 %1332
        %1334 = vrot.lane.b32.xlu0 %v1323, 127
        %v1335 = vpop.permute.xlu0 %1334
        %1340 = vrot.lane.b32.xlu0 %v1320, 65
        %v1341 = vpop.permute.xlu0 %1340
        %1342 = vrot.lane.b32.xlu0 %v1321, 65
        %v1343 = vpop.permute.xlu0 %1342
        %1344 = vrot.lane.b32.xlu0 %v1322, 65
        %v1345 = vpop.permute.xlu0 %1344
        %1346 = vrot.lane.b32.xlu0 %v1323, 65
        %v1347 = vpop.permute.xlu0 %1346
        %v1352 = vsel %vm638, %v1329, %v1341
        %v1353 = vsel %vm638, %v1331, %v1343
        %v1354 = vsel %vm638, %v1333, %v1345
        %v1355 = vsel %vm638, %v1335, %v1347
        %v1356 = vsub.f32 0.0, %v1352
        %v1357 = vsub.f32 0.0, %v1353
        %v1358 = vsub.f32 0.0, %v1354
        %v1359 = vsub.f32 0.0, %v1355
        %v1360 = vsel %vm638, %v1356, %v1341
        %v1361 = vsel %vm638, %v1357, %v1343
        %v1362 = vsel %vm638, %v1358, %v1345
        %v1363 = vsel %vm638, %v1359, %v1347
        %v1364 = vmul.f32 %v1280, %v834
        %v1365 = vmul.f32 %v1281, %v836
        %v1366 = vmul.f32 %v1282, %v838
        %v1367 = vmul.f32 %v1283, %v840
        %v1368 = vmul.f32 %v1360, %v612
        %v1369 = vmul.f32 %v1361, %v613
        %v1370 = vmul.f32 %v1362, %v614
        %v1371 = vmul.f32 %v1363, %v615
        %1376 = vrot.lane.b32.xlu0 %v1368, 64
        %v1377 = vpop.permute.xlu0 %1376
        %1378 = vrot.lane.b32.xlu0 %v1369, 64
        %v1379 = vpop.permute.xlu0 %1378
        %1380 = vrot.lane.b32.xlu0 %v1370, 64
        %v1381 = vpop.permute.xlu0 %1380
        %1382 = vrot.lane.b32.xlu0 %v1371, 64
        %v1383 = vpop.permute.xlu0 %1382
        %v1388 = vadd.f32 %v1364, %v1377
        %v1389 = vadd.f32 %v1365, %v1379
        %v1390 = vadd.f32 %v1366, %v1381
        %v1391 = vadd.f32 %v1367, %v1383
        %v1392 = vpack.c.bf16 %v1389, %v1388
        %v1393 = vpack.c.bf16 %v1391, %v1390
        %v1396 = vunpack.c.l.b16 %v1392
        %v1397 = vunpack.c.h.b16 %v1392
        %v1398 = vunpack.c.l.b16 %v1393
        %v1399 = vunpack.c.h.b16 %v1393
        %v1400 = vpack.c.b16 %v1396, %v1396
        %v1401 = vpack.c.b16 %v1397, %v1397
        %v1402 = vpack.c.b16 %v1398, %v1398
        %v1403 = vpack.c.b16 %v1399, %v1399
        %1404 = vrot.lane.b32.xlu0 %v1400, 64
        %v1405 = vpop.permute.xlu0 %1404
        %1406 = vrot.lane.b32.xlu0 %v1401, 64
        %v1407 = vpop.permute.xlu0 %1406
        %1408 = vrot.lane.b32.xlu0 %v1402, 64
        %v1409 = vpop.permute.xlu0 %1408
        %1410 = vrot.lane.b32.xlu0 %v1403, 64
        %v1411 = vpop.permute.xlu0 %1410
        %s1416 = scalar_lea.vmem %s596, 16
        %1417 = vst.msk [vmem:[%s1416] sm:$0xf] %vm736, %v1405
        %1418 = vst.msk [vmem:[%s1416 + $0x4] sm:$0xf] %vm736, %v1407
        %1419 = vst.msk [vmem:[%s1416 + $0x8] sm:$0xf] %vm736, %v1409
        %1420 = vst.msk [vmem:[%s1416 + $0xc] sm:$0xf] %vm736, %v1411
        %v1421 = vld [vmem:[%s494] sm:$0xf]
        %v1422 = vld [vmem:[%s494 + $0x4] sm:$0xf]
        %v1423 = vld [vmem:[%s494 + $0x8] sm:$0xf]
        %v1424 = vld [vmem:[%s494 + $0xc] sm:$0xf]
        %1429 = vrot.lane.b32.xlu0 %v1421, 64
        %v1430 = vpop.permute.xlu0 %1429
        %1431 = vrot.lane.b32.xlu0 %v1422, 64
        %v1432 = vpop.permute.xlu0 %1431
        %1433 = vrot.lane.b32.xlu0 %v1423, 64
        %v1434 = vpop.permute.xlu0 %1433
        %1435 = vrot.lane.b32.xlu0 %v1424, 64
        %v1436 = vpop.permute.xlu0 %1435
        %s1441 = scalar_lea.vmem %s606, 16
        %1442 = vst.msk [vmem:[%s1441] sm:$0xf] %vm736, %v1430
        %1443 = vst.msk [vmem:[%s1441 + $0x4] sm:$0xf] %vm736, %v1432
        %1444 = vst.msk [vmem:[%s1441 + $0x8] sm:$0xf] %vm736, %v1434
        %1445 = vst.msk [vmem:[%s1441 + $0xc] sm:$0xf] %vm736, %v1436
        %s1446 = smul.u32 4, %s24
        %p1447 = scmp.lt.s32.totalorder %s23, 1
        %s1448 = scalar_select %p1447, %s23, 1
        %p1449 = scmp.lt.s32.totalorder %s1446, 3
        %s1450 = scalar_select %p1449, %s1446, 3
        %s1451 = smul.addr %s1448, 16
        %s1452 = sadd.s32 %s1450, %s1451
        %s1453 = smul.addr %s1452, 4
        %s1454 = scalar_lea.vmem %s5, %s1453
        %s1455 = smul.u32 4, %s24
        %p1456 = scmp.lt.s32.totalorder %s23, 1
        %s1457 = scalar_select %p1456, %s23, 1
        %p1458 = scmp.lt.s32.totalorder %s1455, 3
        %s1459 = scalar_select %p1458, %s1455, 3
        %s1460 = smul.addr %s1457, 8
        %s1461 = sadd.s32 %s1459, %s1460
        %s1462 = smul.addr %s1461, 4
        %s1463 = scalar_lea.vmem %s6, %s1462
        %s1464 = smul.u32 4, %s24
        %p1465 = scmp.lt.s32.totalorder %s23, 1
        %s1466 = scalar_select %p1465, %s23, 1
        %p1467 = scmp.lt.s32.totalorder %s1464, 3
        %s1468 = scalar_select %p1467, %s1464, 3
        %s1469 = smul.addr %s1466, 8
        %s1470 = sadd.s32 %s1468, %s1469
        %s1471 = smul.addr %s1470, 4
        %s1472 = scalar_lea.vmem %s7, %s1471
        // Predicated region
        $region161: #{transformer_block_forward.10} parent=147 // pred_check
          %p1473 = pneg %p187
        $region162: #{transformer_block_forward.10} parent=147 // pred_check_branch
          %1475 = sbr.rel (%p1473) target = $region164
        $region163: #{transformer_block_forward.10} parent=147 // pred_region
          %s1476 = smul.u32 4, %s24
        $region164: #{transformer_block_forward.10} parent=147 // pred_fallthru
          _
        // Predicated region
        $region165: #{transformer_block_forward.10} parent=147 // pred_check
          %p1477 = pneg %p215
        $region166: #{transformer_block_forward.10} parent=147 // pred_check_branch
          %1479 = sbr.rel (%p1477) target = $region168
        $region167: #{transformer_block_forward.10} parent=147 // pred_region
          %s1480 = smul.u32 4, %s24
        $region168: #{transformer_block_forward.10} parent=147 // pred_fallthru
          _
        // Predicated region
        $region169: #{transformer_block_forward.10} parent=147 // pred_check
          %p1481 = pneg %p243
        $region170: #{transformer_block_forward.10} parent=147 // pred_check_branch
          %1483 = sbr.rel (%p1481) target = $region172
        $region171: #{transformer_block_forward.10} parent=147 // pred_region
          %s1484 = smul.u32 4, %s24
        $region172: #{transformer_block_forward.10} parent=147 // pred_fallthru
          _
      $region148: #{transformer_block_forward.10} parent=5 // pred_fallthru
        _
      %p1485 = scmp.le.s32.totalorder 2, %s14
      // Predicated region
      $region173: #{transformer_block_forward.10} parent=5 // pred_check
        %p1486 = pneg %p1485
      $region174: #{transformer_block_forward.10} parent=5 // pred_check_branch
        %1488 = sbr.rel (%p1486) target = $region176
      $region175: #{transformer_block_forward.10} parent=5 // pred_region
        %s1489 = ssub.s32 %s14, 2
        // Predicated region
        $region177: #{transformer_block_forward.10} parent=175 // pred_check
          %p1490 = pneg %p193
        $region178: #{transformer_block_forward.10} parent=175 // pred_check_branch
          %1492 = sbr.rel (%p1490) target = $region180
        $region179: #{transformer_block_forward.10} parent=175 // pred_region
          %s1493 = smul.u32 4, %s26
          %p1494 = scmp.lt.s32.totalorder %s25, 1
          %s1495 = scalar_select %p1494, %s25, 1
          %p1496 = scmp.lt.s32.totalorder %s1493, 3
          %s1497 = scalar_select %p1496, %s1493, 3
          %s1498 = smul.addr %s1495, 16
          %s1499 = sadd.s32 %s1497, %s1498
          %s1500 = smul.addr %s1499, 4
          %s1501 = scalar_lea.vmem %s5, %s1500
        $region180: #{transformer_block_forward.10} parent=175 // pred_fallthru
          _
        // Predicated region
        $region181: #{transformer_block_forward.10} parent=175 // pred_check
          %p1502 = pneg %p221
        $region182: #{transformer_block_forward.10} parent=175 // pred_check_branch
          %1504 = sbr.rel (%p1502) target = $region184
        $region183: #{transformer_block_forward.10} parent=175 // pred_region
          %s1505 = smul.u32 4, %s26
          %p1506 = scmp.lt.s32.totalorder %s25, 1
          %s1507 = scalar_select %p1506, %s25, 1
          %p1508 = scmp.lt.s32.totalorder %s1505, 3
          %s1509 = scalar_select %p1508, %s1505, 3
          %s1510 = smul.addr %s1507, 8
          %s1511 = sadd.s32 %s1509, %s1510
          %s1512 = smul.addr %s1511, 4
          %s1513 = scalar_lea.vmem %s6, %s1512
        $region184: #{transformer_block_forward.10} parent=175 // pred_fallthru
          _
        // Predicated region
        $region185: #{transformer_block_forward.10} parent=175 // pred_check
          %p1514 = pneg %p249
        $region186: #{transformer_block_forward.10} parent=175 // pred_check_branch
          %1516 = sbr.rel (%p1514) target = $region188
        $region187: #{transformer_block_forward.10} parent=175 // pred_region
          %s1517 = smul.u32 4, %s26
          %p1518 = scmp.lt.s32.totalorder %s25, 1
          %s1519 = scalar_select %p1518, %s25, 1
          %p1520 = scmp.lt.s32.totalorder %s1517, 3
          %s1521 = scalar_select %p1520, %s1517, 3
          %s1522 = smul.addr %s1519, 8
          %s1523 = sadd.s32 %s1521, %s1522
          %s1524 = smul.addr %s1523, 4
          %s1525 = scalar_lea.vmem %s7, %s1524
        $region188: #{transformer_block_forward.10} parent=175 // pred_fallthru
          _
      $region176: #{transformer_block_forward.10} parent=5 // pred_fallthru
        _
    $region6: #{transformer_block_forward.10} parent=1 // loop_footer
      %s18 = sadd.s32 1, %s14
    $region7: #{transformer_block_forward.10} parent=1 // loop_footer_branch
      %13 = sbr.rel target = $region3
    $region8: #{transformer_block_forward.10} parent=1 // loop_exit
      _

// kernel: transformer_block_forward.12
$region0: #{transformer_block_forward.12}
  #allocation0 [shape = 'u32[]', space=smem, size = 0x4, offset = 0x4, fixed_abs, tag = 'smem constant byte address 0x4 - core index']
  #allocation1 [shape = 'u32[144,128]{1,0:T(1,128)}', space=vmem, size = 0x12000, scoped, tag = 'internal scratch']
  #allocation2 [shape = 'f32[64,256]{1,0:T(8,128)}', space=vmem, size = 0x10000, scoped, tag = 'scratch operand']
  %s0 = inlined_call_operand.vmem [shape: bf16[64,256], index: 0, kind: input, shape index: {}]
  %s1 = inlined_call_operand.vmem [shape: bf16[256,256], index: 1, kind: input, shape index: {}]
  %s2 = inlined_call_operand.vmem [shape: f32[64,256], index: 2, kind: input, shape index: {}]
  %s3 = inlined_call_operand.vmem [shape: bf16[64,256], index: 3, kind: output, shape index: {}]
  %s4 = sld [smem:[#allocation0]]
  $region30: #{transformer_block_forward.12} parent=0
    _
  %s6 = ssub.s32 1, %s4
  %s7 = scalar_select 0, %s6, %s4
  // Predicated region
  $region2: #{transformer_block_forward.12} parent=0 // pred_check
    _
  $region3: #{transformer_block_forward.12} parent=0 // pred_check_branch
    %9 = sbr.rel (0) target = $region5
  $region4: #{transformer_block_forward.12} parent=0 // pred_region
    _
  $region5: #{transformer_block_forward.12} parent=0 // pred_fallthru
    _
  // Predicated region
  $region6: #{transformer_block_forward.12} parent=0 // pred_check
    _
  $region7: #{transformer_block_forward.12} parent=0 // pred_check_branch
    %11 = sbr.rel (0) target = $region9
  $region8: #{transformer_block_forward.12} parent=0 // pred_region
    _
  $region9: #{transformer_block_forward.12} parent=0 // pred_fallthru
    _
  // Predicated region
  $region10: #{transformer_block_forward.12} parent=0 // pred_check
    _
  $region11: #{transformer_block_forward.12} parent=0 // pred_check_branch
    %13 = sbr.rel (0) target = $region13
  $region12: #{transformer_block_forward.12} parent=0 // pred_region
    _
  $region13: #{transformer_block_forward.12} parent=0 // pred_fallthru
    _
  %p14 = scmp.eq.s32.totalorder 0, 0
  // Predicated region
  $region14: #{transformer_block_forward.12} parent=0 // pred_check
    %p15 = pneg %p14
  $region15: #{transformer_block_forward.12} parent=0 // pred_check_branch
    %17 = sbr.rel (%p15) target = $region17
  $region16: #{transformer_block_forward.12} parent=0 // pred_region
    %18 = vst [vmem:[#allocation2] sm:$0xff] 0.0
    %19 = vst [vmem:[#allocation2 + $0x8] sm:$0xff] 0.0
    %20 = vst [vmem:[#allocation2 + $0x10] sm:$0xff] 0.0
    %21 = vst [vmem:[#allocation2 + $0x18] sm:$0xff] 0.0
    %22 = vst [vmem:[#allocation2 + $0x20] sm:$0xff] 0.0
    %23 = vst [vmem:[#allocation2 + $0x28] sm:$0xff] 0.0
    %24 = vst [vmem:[#allocation2 + $0x30] sm:$0xff] 0.0
    %25 = vst [vmem:[#allocation2 + $0x38] sm:$0xff] 0.0
    %26 = vst [vmem:[#allocation2 + $0x40] sm:$0xff] 0.0
    %27 = vst [vmem:[#allocation2 + $0x48] sm:$0xff] 0.0
    %28 = vst [vmem:[#allocation2 + $0x50] sm:$0xff] 0.0
    %29 = vst [vmem:[#allocation2 + $0x58] sm:$0xff] 0.0
    %30 = vst [vmem:[#allocation2 + $0x60] sm:$0xff] 0.0
    %31 = vst [vmem:[#allocation2 + $0x68] sm:$0xff] 0.0
    %32 = vst [vmem:[#allocation2 + $0x70] sm:$0xff] 0.0
    %33 = vst [vmem:[#allocation2 + $0x78] sm:$0xff] 0.0
  $region17: #{transformer_block_forward.12} parent=0 // pred_fallthru
    _
  %v34 = vld [vmem:[#allocation2] sm:$0xff]
  %v35 = vld [vmem:[#allocation2 + $0x8] sm:$0xff]
  %v36 = vld [vmem:[#allocation2 + $0x10] sm:$0xff]
  %v37 = vld [vmem:[#allocation2 + $0x18] sm:$0xff]
  %v38 = vld [vmem:[#allocation2 + $0x20] sm:$0xff]
  %v39 = vld [vmem:[#allocation2 + $0x28] sm:$0xff]
  %v40 = vld [vmem:[#allocation2 + $0x30] sm:$0xff]
  %v41 = vld [vmem:[#allocation2 + $0x38] sm:$0xff]
  %v42 = vld [vmem:[#allocation2 + $0x40] sm:$0xff]
  %v43 = vld [vmem:[#allocation2 + $0x48] sm:$0xff]
  %v44 = vld [vmem:[#allocation2 + $0x50] sm:$0xff]
  %v45 = vld [vmem:[#allocation2 + $0x58] sm:$0xff]
  %v46 = vld [vmem:[#allocation2 + $0x60] sm:$0xff]
  %v47 = vld [vmem:[#allocation2 + $0x68] sm:$0xff]
  %v48 = vld [vmem:[#allocation2 + $0x70] sm:$0xff]
  %v49 = vld [vmem:[#allocation2 + $0x78] sm:$0xff]
  %v50 = vld [vmem:[%s0] sm:$0xff]
  %v51 = vld [vmem:[%s0 + $0x8] sm:$0xff]
  %v52 = vld [vmem:[%s0 + $0x10] sm:$0xff]
  %v53 = vld [vmem:[%s0 + $0x18] sm:$0xff]
  %v54 = vld [vmem:[%s0 + $0x20] sm:$0xff]
  %v55 = vld [vmem:[%s0 + $0x28] sm:$0xff]
  %v56 = vld [vmem:[%s0 + $0x30] sm:$0xff]
  %v57 = vld [vmem:[%s0 + $0x38] sm:$0xff]
  %v58 = vld [vmem:[%s1] sm:$0xff]
  %v59 = vld [vmem:[%s1 + $0x8] sm:$0xff]
  %v60 = vld [vmem:[%s1 + $0x10] sm:$0xff]
  %v61 = vld [vmem:[%s1 + $0x18] sm:$0xff]
  %v62 = vld [vmem:[%s1 + $0x20] sm:$0xff]
  %v63 = vld [vmem:[%s1 + $0x28] sm:$0xff]
  %v64 = vld [vmem:[%s1 + $0x30] sm:$0xff]
  %v65 = vld [vmem:[%s1 + $0x38] sm:$0xff]
  %v66 = vld [vmem:[%s1 + $0x40] sm:$0xff]
  %v67 = vld [vmem:[%s1 + $0x48] sm:$0xff]
  %v68 = vld [vmem:[%s1 + $0x50] sm:$0xff]
  %v69 = vld [vmem:[%s1 + $0x58] sm:$0xff]
  %v70 = vld [vmem:[%s1 + $0x60] sm:$0xff]
  %v71 = vld [vmem:[%s1 + $0x68] sm:$0xff]
  %v72 = vld [vmem:[%s1 + $0x70] sm:$0xff]
  %v73 = vld [vmem:[%s1 + $0x78] sm:$0xff]
  %v74 = vld [vmem:[%s1 + $0x80] sm:$0xff]
  %v75 = vld [vmem:[%s1 + $0x88] sm:$0xff]
  %v76 = vld [vmem:[%s1 + $0x90] sm:$0xff]
  %v77 = vld [vmem:[%s1 + $0x98] sm:$0xff]
  %v78 = vld [vmem:[%s1 + $0xa0] sm:$0xff]
  %v79 = vld [vmem:[%s1 + $0xa8] sm:$0xff]
  %v80 = vld [vmem:[%s1 + $0xb0] sm:$0xff]
  %v81 = vld [vmem:[%s1 + $0xb8] sm:$0xff]
  %v82 = vld [vmem:[%s1 + $0xc0] sm:$0xff]
  %v83 = vld [vmem:[%s1 + $0xc8] sm:$0xff]
  %v84 = vld [vmem:[%s1 + $0xd0] sm:$0xff]
  %v85 = vld [vmem:[%s1 + $0xd8] sm:$0xff]
  %v86 = vld [vmem:[%s1 + $0xe0] sm:$0xff]
  %v87 = vld [vmem:[%s1 + $0xe8] sm:$0xff]
  %v88 = vld [vmem:[%s1 + $0xf0] sm:$0xff]
  %v89 = vld [vmem:[%s1 + $0xf8] sm:$0xff]
  %v98 = vunpack.c.l.b16 %v50
  %v99 = vunpack.c.h.b16 %v50
  %v100 = vunpack.c.l.b16 %v51
  %v101 = vunpack.c.h.b16 %v51
  %v102 = vunpack.c.l.b16 %v52
  %v103 = vunpack.c.h.b16 %v52
  %v104 = vunpack.c.l.b16 %v53
  %v105 = vunpack.c.h.b16 %v53
  %v106 = vunpack.c.l.b16 %v54
  %v107 = vunpack.c.h.b16 %v54
  %v108 = vunpack.c.l.b16 %v55
  %v109 = vunpack.c.h.b16 %v55
  %v110 = vunpack.c.l.b16 %v56
  %v111 = vunpack.c.h.b16 %v56
  %v112 = vunpack.c.l.b16 %v57
  %v113 = vunpack.c.h.b16 %v57
  %v114 = vpack.c.b16 %v100, %v98
  %v115 = vpack.c.b16 %v101, %v99
  %v116 = vpack.c.b16 %v104, %v102
  %v117 = vpack.c.b16 %v105, %v103
  %v118 = vpack.c.b16 %v108, %v106
  %v119 = vpack.c.b16 %v109, %v107
  %v120 = vpack.c.b16 %v112, %v110
  %v121 = vpack.c.b16 %v113, %v111
  %v162 = vunpack.c.l.b16 %v58
  %v163 = vunpack.c.h.b16 %v58
  %v164 = vunpack.c.l.b16 %v59
  %v165 = vunpack.c.h.b16 %v59
  %v166 = vunpack.c.l.b16 %v60
  %v167 = vunpack.c.h.b16 %v60
  %v168 = vunpack.c.l.b16 %v61
  %v169 = vunpack.c.h.b16 %v61
  %v170 = vunpack.c.l.b16 %v62
  %v171 = vunpack.c.h.b16 %v62
  %v172 = vunpack.c.l.b16 %v63
  %v173 = vunpack.c.h.b16 %v63
  %v174 = vunpack.c.l.b16 %v64
  %v175 = vunpack.c.h.b16 %v64
  %v176 = vunpack.c.l.b16 %v65
  %v177 = vunpack.c.h.b16 %v65
  %v178 = vunpack.c.l.b16 %v66
  %v179 = vunpack.c.h.b16 %v66
  %v180 = vunpack.c.l.b16 %v67
  %v181 = vunpack.c.h.b16 %v67
  %v182 = vunpack.c.l.b16 %v68
  %v183 = vunpack.c.h.b16 %v68
  %v184 = vunpack.c.l.b16 %v69
  %v185 = vunpack.c.h.b16 %v69
  %v186 = vunpack.c.l.b16 %v70
  %v187 = vunpack.c.h.b16 %v70
  %v188 = vunpack.c.l.b16 %v71
  %v189 = vunpack.c.h.b16 %v71
  %v190 = vunpack.c.l.b16 %v72
  %v191 = vunpack.c.h.b16 %v72
  %v192 = vunpack.c.l.b16 %v73
  %v193 = vunpack.c.h.b16 %v73
  %v194 = vunpack.c.l.b16 %v74
  %v195 = vunpack.c.h.b16 %v74
  %v196 = vunpack.c.l.b16 %v75
  %v197 = vunpack.c.h.b16 %v75
  %v198 = vunpack.c.l.b16 %v76
  %v199 = vunpack.c.h.b16 %v76
  %v200 = vunpack.c.l.b16 %v77
  %v201 = vunpack.c.h.b16 %v77
  %v202 = vunpack.c.l.b16 %v78
  %v203 = vunpack.c.h.b16 %v78
  %v204 = vunpack.c.l.b16 %v79
  %v205 = vunpack.c.h.b16 %v79
  %v206 = vunpack.c.l.b16 %v80
  %v207 = vunpack.c.h.b16 %v80
  %v208 = vunpack.c.l.b16 %v81
  %v209 = vunpack.c.h.b16 %v81
  %v210 = vunpack.c.l.b16 %v82
  %v211 = vunpack.c.h.b16 %v82
  %v212 = vunpack.c.l.b16 %v83
  %v213 = vunpack.c.h.b16 %v83
  %v214 = vunpack.c.l.b16 %v84
  %v215 = vunpack.c.h.b16 %v84
  %v216 = vunpack.c.l.b16 %v85
  %v217 = vunpack.c.h.b16 %v85
  %v218 = vunpack.c.l.b16 %v86
  %v219 = vunpack.c.h.b16 %v86
  %v220 = vunpack.c.l.b16 %v87
  %v221 = vunpack.c.h.b16 %v87
  %v222 = vunpack.c.l.b16 %v88
  %v223 = vunpack.c.h.b16 %v88
  %v224 = vunpack.c.l.b16 %v89
  %v225 = vunpack.c.h.b16 %v89
  %v226 = vpack.c.b16 %v164, %v162
  %v227 = vpack.c.b16 %v165, %v163
  %v228 = vpack.c.b16 %v168, %v166
  %v229 = vpack.c.b16 %v169, %v167
  %v230 = vpack.c.b16 %v172, %v170
  %v231 = vpack.c.b16 %v173, %v171
  %v232 = vpack.c.b16 %v176, %v174
  %v233 = vpack.c.b16 %v177, %v175
  %v234 = vpack.c.b16 %v180, %v178
  %v235 = vpack.c.b16 %v181, %v179
  %v236 = vpack.c.b16 %v184, %v182
  %v237 = vpack.c.b16 %v185, %v183
  %v238 = vpack.c.b16 %v188, %v186
  %v239 = vpack.c.b16 %v189, %v187
  %v240 = vpack.c.b16 %v192, %v190
  %v241 = vpack.c.b16 %v193, %v191
  %v242 = vpack.c.b16 %v196, %v194
  %v243 = vpack.c.b16 %v197, %v195
  %v244 = vpack.c.b16 %v200, %v198
  %v245 = vpack.c.b16 %v201, %v199
  %v246 = vpack.c.b16 %v204, %v202
  %v247 = vpack.c.b16 %v205, %v203
  %v248 = vpack.c.b16 %v208, %v206
  %v249 = vpack.c.b16 %v209, %v207
  %v250 = vpack.c.b16 %v212, %v210
  %v251 = vpack.c.b16 %v213, %v211
  %v252 = vpack.c.b16 %v216, %v214
  %v253 = vpack.c.b16 %v217, %v215
  %v254 = vpack.c.b16 %v220, %v218
  %v255 = vpack.c.b16 %v221, %v219
  %v256 = vpack.c.b16 %v224, %v222
  %v257 = vpack.c.b16 %v225, %v223
  %290 = vmatprep.subr.bf16.mxu0 %v227
  %291 = vmatpush1.bf16.msra.mxu0 %v226
  %292 = vmatprep.subr.bf16.mxu0 %v229
  %293 = vmatpush1.bf16.msra.mxu0 %v228
  %294 = vmatprep.subr.bf16.mxu0 %v231
  %295 = vmatpush1.bf16.msra.mxu0 %v230
  %296 = vmatprep.subr.bf16.mxu0 %v233
  %297 = vmatpush1.bf16.msra.mxu0 %v232
  %298 = vmatprep.subr.bf16.mxu0 %v235
  %299 = vmatpush1.bf16.msra.mxu0 %v234
  %300 = vmatprep.subr.bf16.mxu0 %v237
  %301 = vmatpush1.bf16.msra.mxu0 %v236
  %302 = vmatprep.subr.bf16.mxu0 %v239
  %303 = vmatpush1.bf16.msra.mxu0 %v238
  %304 = vmatprep.subr.bf16.mxu0 %v241
  %305 = vmatpush1.bf16.msra.mxu0 %v240
  %306 = vmatprep.subr.bf16.mxu0 %v243
  %307 = vmatpush1.bf16.msra.mxu0 %v242
  %308 = vmatprep.subr.bf16.mxu0 %v245
  %309 = vmatpush1.bf16.msra.mxu0 %v244
  %310 = vmatprep.subr.bf16.mxu0 %v247
  %311 = vmatpush1.bf16.msra.mxu0 %v246
  %312 = vmatprep.subr.bf16.mxu0 %v249
  %313 = vmatpush1.bf16.msra.mxu0 %v248
  %314 = vmatprep.subr.bf16.mxu0 %v251
  %315 = vmatpush1.bf16.msra.mxu0 %v250
  %316 = vmatprep.subr.bf16.mxu0 %v253
  %317 = vmatpush1.bf16.msra.mxu0 %v252
  %318 = vmatprep.subr.bf16.mxu0 %v255
  %319 = vmatpush1.bf16.msra.mxu0 %v254
  %320 = vmatprep.subr.bf16.mxu0 %v257
  %321 = vmatpush1.bf16.msra.mxu0 %v256
  %322 = vmatprep.mubr.bf16.mxu0 %v115
  %323 = vmatmul.mubr.bf16.gmra.mrb[0].mxu0 %v114
  %v324 = vpop.f32.mrb[0].mxu0
  %v325 = vadd.f32 0.0, %v324
  %v326 = vpop.f32.mrb[0].mxu0
  %v327 = vadd.f32 0.0, %v326
  %v328 = vpop.f32.mrb[0].mxu0
  %v329 = vadd.f32 0.0, %v328
  %v330 = vpop.f32.mrb[0].mxu0
  %v331 = vadd.f32 0.0, %v330
  %332 = vmatprep.mubr.bf16.mxu0 %v117
  %333 = vmatmul.mubr.bf16.gmra.mrb[0].mxu0 %v116
  %v334 = vpop.f32.mrb[0].mxu0
  %v335 = vadd.f32 0.0, %v334
  %v336 = vpop.f32.mrb[0].mxu0
  %v337 = vadd.f32 0.0, %v336
  %v338 = vpop.f32.mrb[0].mxu0
  %v339 = vadd.f32 0.0, %v338
  %v340 = vpop.f32.mrb[0].mxu0
  %v341 = vadd.f32 0.0, %v340
  %342 = vmatprep.mubr.bf16.mxu0 %v119
  %343 = vmatmul.mubr.bf16.gmra.mrb[0].mxu0 %v118
  %v344 = vpop.f32.mrb[0].mxu0
  %v345 = vadd.f32 0.0, %v344
  %v346 = vpop.f32.mrb[0].mxu0
  %v347 = vadd.f32 0.0, %v346
  %v348 = vpop.f32.mrb[0].mxu0
  %v349 = vadd.f32 0.0, %v348
  %v350 = vpop.f32.mrb[0].mxu0
  %v351 = vadd.f32 0.0, %v350
  %352 = vmatprep.mubr.bf16.mxu0 %v121
  %353 = vmatmul.mubr.bf16.gmra.mrb[0].mxu0 %v120
  %v354 = vpop.f32.mrb[0].mxu0
  %v355 = vadd.f32 0.0, %v354
  %v356 = vpop.f32.mrb[0].mxu0
  %v357 = vadd.f32 0.0, %v356
  %v358 = vpop.f32.mrb[0].mxu0
  %v359 = vadd.f32 0.0, %v358
  %v360 = vpop.f32.mrb[0].mxu0
  %v361 = vadd.f32 0.0, %v360
  %362 = vdwg.mxu0
  %v363 = vadd.f32 %v34, %v325
  %v364 = vadd.f32 %v35, %v327
  %v365 = vadd.f32 %v36, %v329
  %v366 = vadd.f32 %v37, %v331
  %v367 = vadd.f32 %v38, %v335
  %v368 = vadd.f32 %v39, %v337
  %v369 = vadd.f32 %v40, %v339
  %v370 = vadd.f32 %v41, %v341
  %v371 = vadd.f32 %v42, %v345
  %v372 = vadd.f32 %v43, %v347
  %v373 = vadd.f32 %v44, %v349
  %v374 = vadd.f32 %v45, %v351
  %v375 = vadd.f32 %v46, %v355
  %v376 = vadd.f32 %v47, %v357
  %v377 = vadd.f32 %v48, %v359
  %v378 = vadd.f32 %v49, %v361
  %379 = vst [vmem:[#allocation2] sm:$0xff] %v363
  %380 = vst [vmem:[#allocation2 + $0x8] sm:$0xff] %v364
  %381 = vst [vmem:[#allocation2 + $0x10] sm:$0xff] %v365
  %382 = vst [vmem:[#allocation2 + $0x18] sm:$0xff] %v366
  %383 = vst [vmem:[#allocation2 + $0x20] sm:$0xff] %v367
  %384 = vst [vmem:[#allocation2 + $0x28] sm:$0xff] %v368
  %385 = vst [vmem:[#allocation2 + $0x30] sm:$0xff] %v369
  %386 = vst [vmem:[#allocation2 + $0x38] sm:$0xff] %v370
  %387 = vst [vmem:[#allocation2 + $0x40] sm:$0xff] %v371
  %388 = vst [vmem:[#allocation2 + $0x48] sm:$0xff] %v372
  %389 = vst [vmem:[#allocation2 + $0x50] sm:$0xff] %v373
  %390 = vst [vmem:[#allocation2 + $0x58] sm:$0xff] %v374
  %391 = vst [vmem:[#allocation2 + $0x60] sm:$0xff] %v375
  %392 = vst [vmem:[#allocation2 + $0x68] sm:$0xff] %v376
  %393 = vst [vmem:[#allocation2 + $0x70] sm:$0xff] %v377
  %394 = vst [vmem:[#allocation2 + $0x78] sm:$0xff] %v378
  // Predicated region
  $region18: #{transformer_block_forward.12} parent=0 // pred_check
    %p395 = pneg %p14
  $region19: #{transformer_block_forward.12} parent=0 // pred_check_branch
    %397 = sbr.rel (%p395) target = $region21
  $region20: #{transformer_block_forward.12} parent=0 // pred_region
    %v398 = vld [vmem:[#allocation2] sm:$0xff]
    %v399 = vld [vmem:[#allocation2 + $0x8] sm:$0xff]
    %v400 = vld [vmem:[#allocation2 + $0x10] sm:$0xff]
    %v401 = vld [vmem:[#allocation2 + $0x18] sm:$0xff]
    %v402 = vld [vmem:[#allocation2 + $0x20] sm:$0xff]
    %v403 = vld [vmem:[#allocation2 + $0x28] sm:$0xff]
    %v404 = vld [vmem:[#allocation2 + $0x30] sm:$0xff]
    %v405 = vld [vmem:[#allocation2 + $0x38] sm:$0xff]
    %v406 = vld [vmem:[#allocation2 + $0x40] sm:$0xff]
    %v407 = vld [vmem:[#allocation2 + $0x48] sm:$0xff]
    %v408 = vld [vmem:[#allocation2 + $0x50] sm:$0xff]
    %v409 = vld [vmem:[#allocation2 + $0x58] sm:$0xff]
    %v410 = vld [vmem:[#allocation2 + $0x60] sm:$0xff]
    %v411 = vld [vmem:[#allocation2 + $0x68] sm:$0xff]
    %v412 = vld [vmem:[#allocation2 + $0x70] sm:$0xff]
    %v413 = vld [vmem:[#allocation2 + $0x78] sm:$0xff]
    %v414 = vld [vmem:[%s2] sm:$0xff]
    %v415 = vld [vmem:[%s2 + $0x8] sm:$0xff]
    %v416 = vld [vmem:[%s2 + $0x10] sm:$0xff]
    %v417 = vld [vmem:[%s2 + $0x18] sm:$0xff]
    %v418 = vld [vmem:[%s2 + $0x20] sm:$0xff]
    %v419 = vld [vmem:[%s2 + $0x28] sm:$0xff]
    %v420 = vld [vmem:[%s2 + $0x30] sm:$0xff]
    %v421 = vld [vmem:[%s2 + $0x38] sm:$0xff]
    %v422 = vld [vmem:[%s2 + $0x40] sm:$0xff]
    %v423 = vld [vmem:[%s2 + $0x48] sm:$0xff]
    %v424 = vld [vmem:[%s2 + $0x50] sm:$0xff]
    %v425 = vld [vmem:[%s2 + $0x58] sm:$0xff]
    %v426 = vld [vmem:[%s2 + $0x60] sm:$0xff]
    %v427 = vld [vmem:[%s2 + $0x68] sm:$0xff]
    %v428 = vld [vmem:[%s2 + $0x70] sm:$0xff]
    %v429 = vld [vmem:[%s2 + $0x78] sm:$0xff]
    %v430 = vadd.f32 %v398, %v414
    %v431 = vadd.f32 %v399, %v415
    %v432 = vadd.f32 %v400, %v416
    %v433 = vadd.f32 %v401, %v417
    %v434 = vadd.f32 %v402, %v418
    %v435 = vadd.f32 %v403, %v419
    %v436 = vadd.f32 %v404, %v420
    %v437 = vadd.f32 %v405, %v421
    %v438 = vadd.f32 %v406, %v422
    %v439 = vadd.f32 %v407, %v423
    %v440 = vadd.f32 %v408, %v424
    %v441 = vadd.f32 %v409, %v425
    %v442 = vadd.f32 %v410, %v426
    %v443 = vadd.f32 %v411, %v427
    %v444 = vadd.f32 %v412, %v428
    %v445 = vadd.f32 %v413, %v429
    %v446 = vpack.c.bf16 %v432, %v430
    %v447 = vpack.c.bf16 %v433, %v431
    %v448 = vpack.c.bf16 %v436, %v434
    %v449 = vpack.c.bf16 %v437, %v435
    %v450 = vpack.c.bf16 %v440, %v438
    %v451 = vpack.c.bf16 %v441, %v439
    %v452 = vpack.c.bf16 %v444, %v442
    %v453 = vpack.c.bf16 %v445, %v443
    %v462 = vunpack.c.l.b16 %v446
    %v463 = vunpack.c.l.b16 %v447
    %v464 = vunpack.c.h.b16 %v446
    %v465 = vunpack.c.h.b16 %v447
    %v466 = vunpack.c.l.b16 %v448
    %v467 = vunpack.c.l.b16 %v449
    %v468 = vunpack.c.h.b16 %v448
    %v469 = vunpack.c.h.b16 %v449
    %v470 = vunpack.c.l.b16 %v450
    %v471 = vunpack.c.l.b16 %v451
    %v472 = vunpack.c.h.b16 %v450
    %v473 = vunpack.c.h.b16 %v451
    %v474 = vunpack.c.l.b16 %v452
    %v475 = vunpack.c.l.b16 %v453
    %v476 = vunpack.c.h.b16 %v452
    %v477 = vunpack.c.h.b16 %v453
    %v478 = vpack.c.b16 %v463, %v462
    %v479 = vpack.c.b16 %v465, %v464
    %v480 = vpack.c.b16 %v467, %v466
    %v481 = vpack.c.b16 %v469, %v468
    %v482 = vpack.c.b16 %v471, %v470
    %v483 = vpack.c.b16 %v473, %v472
    %v484 = vpack.c.b16 %v475, %v474
    %v485 = vpack.c.b16 %v477, %v476
    %494 = vst [vmem:[%s3] sm:$0xff] %v478
    %495 = vst [vmem:[%s3 + $0x8] sm:$0xff] %v479
    %496 = vst [vmem:[%s3 + $0x10] sm:$0xff] %v480
    %497 = vst [vmem:[%s3 + $0x18] sm:$0xff] %v481
    %498 = vst [vmem:[%s3 + $0x20] sm:$0xff] %v482
    %499 = vst [vmem:[%s3 + $0x28] sm:$0xff] %v483
    %500 = vst [vmem:[%s3 + $0x30] sm:$0xff] %v484
    %501 = vst [vmem:[%s3 + $0x38] sm:$0xff] %v485
  $region21: #{transformer_block_forward.12} parent=0 // pred_fallthru
    _
  // Predicated region
  $region22: #{transformer_block_forward.12} parent=0 // pred_check
    _
  $region23: #{transformer_block_forward.12} parent=0 // pred_check_branch
    %503 = sbr.rel (0) target = $region25
  $region24: #{transformer_block_forward.12} parent=0 // pred_region
    _
  $region25: #{transformer_block_forward.12} parent=0 // pred_fallthru
    _
  // Predicated region
  $region26: #{transformer_block_forward.12} parent=0 // pred_check
    _
  $region27: #{transformer_block_forward.12} parent=0 // pred_check_branch
    %505 = sbr.rel (0) target = $region29
  $region28: #{transformer_block_forward.12} parent=0 // pred_region
    _
  $region29: #{transformer_block_forward.12} parent=0 // pred_fallthru
    _

// kernel: transformer_block_forward.13
$region0: #{transformer_block_forward.13}
  #allocation0 [shape = 'u32[]', space=smem, size = 0x4, offset = 0x4, fixed_abs, tag = 'smem constant byte address 0x4 - core index']
  #allocation1 [shape = 'u32[144,128]{1,0:T(1,128)}', space=vmem, size = 0x12000, scoped, tag = 'internal scratch']
  %s0 = inlined_call_operand.vmem [shape: bf16[64,256], index: 0, kind: input, shape index: {}]
  %s1 = inlined_call_operand.vmem [shape: f32[1,256], index: 1, kind: input, shape index: {}]
  %s2 = inlined_call_operand.vmem [shape: bf16[64,256], index: 2, kind: output, shape index: {}]
  %s3 = sld [smem:[#allocation0]]
  $region18: #{transformer_block_forward.13} parent=0
    _
  %s5 = ssub.s32 1, %s3
  %s6 = scalar_select 0, %s5, %s3
  // Predicated region
  $region2: #{transformer_block_forward.13} parent=0 // pred_check
    _
  $region3: #{transformer_block_forward.13} parent=0 // pred_check_branch
    %8 = sbr.rel (0) target = $region5
  $region4: #{transformer_block_forward.13} parent=0 // pred_region
    _
  $region5: #{transformer_block_forward.13} parent=0 // pred_fallthru
    _
  // Predicated region
  $region6: #{transformer_block_forward.13} parent=0 // pred_check
    _
  $region7: #{transformer_block_forward.13} parent=0 // pred_check_branch
    %10 = sbr.rel (0) target = $region9
  $region8: #{transformer_block_forward.13} parent=0 // pred_region
    _
  $region9: #{transformer_block_forward.13} parent=0 // pred_fallthru
    _
  %v11 = vld [vmem:[%s0] sm:$0xff]
  %v12 = vld [vmem:[%s0 + $0x8] sm:$0xff]
  %v13 = vld [vmem:[%s0 + $0x10] sm:$0xff]
  %v14 = vld [vmem:[%s0 + $0x18] sm:$0xff]
  %v15 = vld [vmem:[%s0 + $0x20] sm:$0xff]
  %v16 = vld [vmem:[%s0 + $0x28] sm:$0xff]
  %v17 = vld [vmem:[%s0 + $0x30] sm:$0xff]
  %v18 = vld [vmem:[%s0 + $0x38] sm:$0xff]
  %v19 = vunpack.c.l.bf16 %v11
  %v20 = vunpack.c.h.bf16 %v11
  %v21 = vunpack.c.l.bf16 %v12
  %v22 = vunpack.c.h.bf16 %v12
  %v23 = vunpack.c.l.bf16 %v13
  %v24 = vunpack.c.h.bf16 %v13
  %v25 = vunpack.c.l.bf16 %v14
  %v26 = vunpack.c.h.bf16 %v14
  %v27 = vunpack.c.l.bf16 %v15
  %v28 = vunpack.c.h.bf16 %v15
  %v29 = vunpack.c.l.bf16 %v16
  %v30 = vunpack.c.h.bf16 %v16
  %v31 = vunpack.c.l.bf16 %v17
  %v32 = vunpack.c.h.bf16 %v17
  %v33 = vunpack.c.l.bf16 %v18
  %v34 = vunpack.c.h.bf16 %v18
  %v35 = vmul.f32 %v19, %v19
  %v36 = vmul.f32 %v20, %v20
  %v37 = vmul.f32 %v21, %v21
  %v38 = vmul.f32 %v22, %v22
  %v39 = vmul.f32 %v23, %v23
  %v40 = vmul.f32 %v24, %v24
  %v41 = vmul.f32 %v25, %v25
  %v42 = vmul.f32 %v26, %v26
  %v43 = vmul.f32 %v27, %v27
  %v44 = vmul.f32 %v28, %v28
  %v45 = vmul.f32 %v29, %v29
  %v46 = vmul.f32 %v30, %v30
  %v47 = vmul.f32 %v31, %v31
  %v48 = vmul.f32 %v32, %v32
  %v49 = vmul.f32 %v33, %v33
  %v50 = vmul.f32 %v34, %v34
  %v51 = vadd.f32 %v35, %v36
  %52 = vadd.xlane.f32.xlu0 %v51
  %v53 = vpop.xlane.xlu0 %52
  %v54 = vadd.f32 %v37, %v38
  %55 = vadd.xlane.f32.xlu0 %v54
  %v56 = vpop.xlane.xlu0 %55
  %v57 = vadd.f32 %v39, %v40
  %58 = vadd.xlane.f32.xlu0 %v57
  %v59 = vpop.xlane.xlu0 %58
  %v60 = vadd.f32 %v41, %v42
  %61 = vadd.xlane.f32.xlu0 %v60
  %v62 = vpop.xlane.xlu0 %61
  %v63 = vadd.f32 %v43, %v44
  %64 = vadd.xlane.f32.xlu0 %v63
  %v65 = vpop.xlane.xlu0 %64
  %v66 = vadd.f32 %v45, %v46
  %67 = vadd.xlane.f32.xlu0 %v66
  %v68 = vpop.xlane.xlu0 %67
  %v69 = vadd.f32 %v47, %v48
  %70 = vadd.xlane.f32.xlu0 %v69
  %v71 = vpop.xlane.xlu0 %70
  %v72 = vadd.f32 %v49, %v50
  %73 = vadd.xlane.f32.xlu0 %v72
  %v74 = vpop.xlane.xlu0 %73
  %v75 = vrcp.pop 256.0
  %v76 = vmul.f32 %v53, %v75
  %v77 = vmul.f32 %v56, %v75
  %v78 = vmul.f32 %v59, %v75
  %v79 = vmul.f32 %v62, %v75
  %v80 = vmul.f32 %v65, %v75
  %v81 = vmul.f32 %v68, %v75
  %v82 = vmul.f32 %v71, %v75
  %v83 = vmul.f32 %v74, %v75
  %v84 = vadd.f32 %v76, 1e-05
  %v85 = vadd.f32 %v77, 1e-05
  %v86 = vadd.f32 %v78, 1e-05
  %v87 = vadd.f32 %v79, 1e-05
  %v88 = vadd.f32 %v80, 1e-05
  %v89 = vadd.f32 %v81, 1e-05
  %v90 = vadd.f32 %v82, 1e-05
  %v91 = vadd.f32 %v83, 1e-05
  %v92 = vrsqrt.pop %v84
  %v93 = vrsqrt.pop %v85
  %v94 = vrsqrt.pop %v86
  %v95 = vrsqrt.pop %v87
  %v96 = vrsqrt.pop %v88
  %v97 = vrsqrt.pop %v89
  %v98 = vrsqrt.pop %v90
  %v99 = vrsqrt.pop %v91
  %v100 = vmul.f32 %v19, %v92
  %v101 = vmul.f32 %v20, %v92
  %v102 = vmul.f32 %v21, %v93
  %v103 = vmul.f32 %v22, %v93
  %v104 = vmul.f32 %v23, %v94
  %v105 = vmul.f32 %v24, %v94
  %v106 = vmul.f32 %v25, %v95
  %v107 = vmul.f32 %v26, %v95
  %v108 = vmul.f32 %v27, %v96
  %v109 = vmul.f32 %v28, %v96
  %v110 = vmul.f32 %v29, %v97
  %v111 = vmul.f32 %v30, %v97
  %v112 = vmul.f32 %v31, %v98
  %v113 = vmul.f32 %v32, %v98
  %v114 = vmul.f32 %v33, %v99
  %v115 = vmul.f32 %v34, %v99
  %v116 = vld [vmem:[%s1] sm:$0x3]
  %v118 = vlaneseq
  %v119 = vshrl.u32 %v118, 7
  %v120 = vsub.s32 0, %v119
  %v121 = vrot.slane %v116, %v120
  %v122 = vlaneseq
  %v123 = vshrl.u32 %v122, 7
  %v124 = vsub.s32 1, %v123
  %v125 = vrot.slane %v116, %v124
  %v128 = vmul.f32 %v100, %v121
  %v129 = vmul.f32 %v101, %v125
  %v130 = vmul.f32 %v102, %v121
  %v131 = vmul.f32 %v103, %v125
  %v132 = vmul.f32 %v104, %v121
  %v133 = vmul.f32 %v105, %v125
  %v134 = vmul.f32 %v106, %v121
  %v135 = vmul.f32 %v107, %v125
  %v136 = vmul.f32 %v108, %v121
  %v137 = vmul.f32 %v109, %v125
  %v138 = vmul.f32 %v110, %v121
  %v139 = vmul.f32 %v111, %v125
  %v140 = vmul.f32 %v112, %v121
  %v141 = vmul.f32 %v113, %v125
  %v142 = vmul.f32 %v114, %v121
  %v143 = vmul.f32 %v115, %v125
  %v144 = vpack.c.bf16 %v130, %v128
  %v145 = vpack.c.bf16 %v131, %v129
  %v146 = vpack.c.bf16 %v134, %v132
  %v147 = vpack.c.bf16 %v135, %v133
  %v148 = vpack.c.bf16 %v138, %v136
  %v149 = vpack.c.bf16 %v139, %v137
  %v150 = vpack.c.bf16 %v142, %v140
  %v151 = vpack.c.bf16 %v143, %v141
  %v160 = vunpack.c.l.b16 %v144
  %v161 = vunpack.c.l.b16 %v145
  %v162 = vunpack.c.h.b16 %v144
  %v163 = vunpack.c.h.b16 %v145
  %v164 = vunpack.c.l.b16 %v146
  %v165 = vunpack.c.l.b16 %v147
  %v166 = vunpack.c.h.b16 %v146
  %v167 = vunpack.c.h.b16 %v147
  %v168 = vunpack.c.l.b16 %v148
  %v169 = vunpack.c.l.b16 %v149
  %v170 = vunpack.c.h.b16 %v148
  %v171 = vunpack.c.h.b16 %v149
  %v172 = vunpack.c.l.b16 %v150
  %v173 = vunpack.c.l.b16 %v151
  %v174 = vunpack.c.h.b16 %v150
  %v175 = vunpack.c.h.b16 %v151
  %v176 = vpack.c.b16 %v161, %v160
  %v177 = vpack.c.b16 %v163, %v162
  %v178 = vpack.c.b16 %v165, %v164
  %v179 = vpack.c.b16 %v167, %v166
  %v180 = vpack.c.b16 %v169, %v168
  %v181 = vpack.c.b16 %v171, %v170
  %v182 = vpack.c.b16 %v173, %v172
  %v183 = vpack.c.b16 %v175, %v174
  %192 = vst [vmem:[%s2] sm:$0xff] %v176
  %193 = vst [vmem:[%s2 + $0x8] sm:$0xff] %v177
  %194 = vst [vmem:[%s2 + $0x10] sm:$0xff] %v178
  %195 = vst [vmem:[%s2 + $0x18] sm:$0xff] %v179
  %196 = vst [vmem:[%s2 + $0x20] sm:$0xff] %v180
  %197 = vst [vmem:[%s2 + $0x28] sm:$0xff] %v181
  %198 = vst [vmem:[%s2 + $0x30] sm:$0xff] %v182
  %199 = vst [vmem:[%s2 + $0x38] sm:$0xff] %v183
  // Predicated region
  $region10: #{transformer_block_forward.13} parent=0 // pred_check
    _
  $region11: #{transformer_block_forward.13} parent=0 // pred_check_branch
    %201 = sbr.rel (0) target = $region13
  $region12: #{transformer_block_forward.13} parent=0 // pred_region
    _
  $region13: #{transformer_block_forward.13} parent=0 // pred_fallthru
    _
  // Predicated region
  $region14: #{transformer_block_forward.13} parent=0 // pred_check
    _
  $region15: #{transformer_block_forward.13} parent=0 // pred_check_branch
    %203 = sbr.rel (0) target = $region17
  $region16: #{transformer_block_forward.13} parent=0 // pred_region
    _
  $region17: #{transformer_block_forward.13} parent=0 // pred_fallthru
    _

// kernel: transformer_block_forward.15
$region0: #{transformer_block_forward.15}
  #allocation0 [shape = 'u32[]', space=smem, size = 0x4, offset = 0x4, fixed_abs, tag = 'smem constant byte address 0x4 - core index']
  #allocation1 [shape = 'u32[144,128]{1,0:T(1,128)}', space=vmem, size = 0x12000, scoped, tag = 'internal scratch']
  #allocation2 [shape = 'f32[64,256]{1,0:T(8,128)}', space=vmem, size = 0x10000, scoped, tag = 'scratch operand']
  %s0 = inlined_call_operand.vmem [shape: bf16[64,768], index: 0, kind: input, shape index: {}]
  %s1 = inlined_call_operand.vmem [shape: bf16[768,256], index: 1, kind: input, shape index: {}]
  %s2 = inlined_call_operand.vmem [shape: bf16[64,256], index: 2, kind: input, shape index: {}]
  %s3 = inlined_call_operand.hbm [shape: f32[64,256], index: 3, kind: output, shape index: {}]
  %s4 = sld [smem:[#allocation0]]
  $region30: #{transformer_block_forward.15} parent=0
    _
  %s6 = ssub.s32 1, %s4
  %s7 = scalar_select 0, %s6, %s4
  $region1: #{transformer_block_forward.15} parent=0
    #allocation3 [shape = 'u8[65536]{0}', space=vmem, size = 0x10000, scoped, tag = 'output window, operand 0, single buffered']
    #allocation4 [shape = 's32[1]{0}', space=sflag, size = 0x4, scoped, tag = 'scoped memory for transformer_block_forward.15']
    %8 = vsyncpa [#allocation4], 0
    // Predicated region
    $region2: #{transformer_block_forward.15} parent=1 // pred_check
      _
    $region3: #{transformer_block_forward.15} parent=1 // pred_check_branch
      %10 = sbr.rel (0) target = $region5
    $region4: #{transformer_block_forward.15} parent=1 // pred_region
      _
    $region5: #{transformer_block_forward.15} parent=1 // pred_fallthru
      _
    // Predicated region
    $region6: #{transformer_block_forward.15} parent=1 // pred_check
      _
    $region7: #{transformer_block_forward.15} parent=1 // pred_check_branch
      %12 = sbr.rel (0) target = $region9
    $region8: #{transformer_block_forward.15} parent=1 // pred_region
      _
    $region9: #{transformer_block_forward.15} parent=1 // pred_fallthru
      _
    // Predicated region
    $region10: #{transformer_block_forward.15} parent=1 // pred_check
      _
    $region11: #{transformer_block_forward.15} parent=1 // pred_check_branch
      %14 = sbr.rel (0) target = $region13
    $region12: #{transformer_block_forward.15} parent=1 // pred_region
      _
    $region13: #{transformer_block_forward.15} parent=1 // pred_fallthru
      _
    %p15 = scmp.eq.s32.totalorder 0, 0
    // Predicated region
    $region14: #{transformer_block_forward.15} parent=1 // pred_check
      %p16 = pneg %p15
    $region15: #{transformer_block_forward.15} parent=1 // pred_check_branch
      %18 = sbr.rel (%p16) target = $region17
    $region16: #{transformer_block_forward.15} parent=1 // pred_region
      %19 = vst [vmem:[#allocation2] sm:$0xff] 0.0
      %20 = vst [vmem:[#allocation2 + $0x8] sm:$0xff] 0.0
      %21 = vst [vmem:[#allocation2 + $0x10] sm:$0xff] 0.0
      %22 = vst [vmem:[#allocation2 + $0x18] sm:$0xff] 0.0
      %23 = vst [vmem:[#allocation2 + $0x20] sm:$0xff] 0.0
      %24 = vst [vmem:[#allocation2 + $0x28] sm:$0xff] 0.0
      %25 = vst [vmem:[#allocation2 + $0x30] sm:$0xff] 0.0
      %26 = vst [vmem:[#allocation2 + $0x38] sm:$0xff] 0.0
      %27 = vst [vmem:[#allocation2 + $0x40] sm:$0xff] 0.0
      %28 = vst [vmem:[#allocation2 + $0x48] sm:$0xff] 0.0
      %29 = vst [vmem:[#allocation2 + $0x50] sm:$0xff] 0.0
      %30 = vst [vmem:[#allocation2 + $0x58] sm:$0xff] 0.0
      %31 = vst [vmem:[#allocation2 + $0x60] sm:$0xff] 0.0
      %32 = vst [vmem:[#allocation2 + $0x68] sm:$0xff] 0.0
      %33 = vst [vmem:[#allocation2 + $0x70] sm:$0xff] 0.0
      %34 = vst [vmem:[#allocation2 + $0x78] sm:$0xff] 0.0
    $region17: #{transformer_block_forward.15} parent=1 // pred_fallthru
      _
    %v35 = vld [vmem:[#allocation2] sm:$0xff]
    %v36 = vld [vmem:[#allocation2 + $0x8] sm:$0xff]
    %v37 = vld [vmem:[#allocation2 + $0x10] sm:$0xff]
    %v38 = vld [vmem:[#allocation2 + $0x18] sm:$0xff]
    %v39 = vld [vmem:[#allocation2 + $0x20] sm:$0xff]
    %v40 = vld [vmem:[#allocation2 + $0x28] sm:$0xff]
    %v41 = vld [vmem:[#allocation2 + $0x30] sm:$0xff]
    %v42 = vld [vmem:[#allocation2 + $0x38] sm:$0xff]
    %v43 = vld [vmem:[#allocation2 + $0x40] sm:$0xff]
    %v44 = vld [vmem:[#allocation2 + $0x48] sm:$0xff]
    %v45 = vld [vmem:[#allocation2 + $0x50] sm:$0xff]
    %v46 = vld [vmem:[#allocation2 + $0x58] sm:$0xff]
    %v47 = vld [vmem:[#allocation2 + $0x60] sm:$0xff]
    %v48 = vld [vmem:[#allocation2 + $0x68] sm:$0xff]
    %v49 = vld [vmem:[#allocation2 + $0x70] sm:$0xff]
    %v50 = vld [vmem:[#allocation2 + $0x78] sm:$0xff]
    %v51 = vld [vmem:[%s0] sm:$0xff]
    %v52 = vld [vmem:[%s0 + $0x8] sm:$0xff]
    %v53 = vld [vmem:[%s0 + $0x10] sm:$0xff]
    %v54 = vld [vmem:[%s0 + $0x18] sm:$0xff]
    %v55 = vld [vmem:[%s0 + $0x20] sm:$0xff]
    %v56 = vld [vmem:[%s0 + $0x28] sm:$0xff]
    %v57 = vld [vmem:[%s0 + $0x30] sm:$0xff]
    %v58 = vld [vmem:[%s0 + $0x38] sm:$0xff]
    %v59 = vld [vmem:[%s0 + $0x40] sm:$0xff]
    %v60 = vld [vmem:[%s0 + $0x48] sm:$0xff]
    %v61 = vld [vmem:[%s0 + $0x50] sm:$0xff]
    %v62 = vld [vmem:[%s0 + $0x58] sm:$0xff]
    %v63 = vld [vmem:[%s0 + $0x60] sm:$0xff]
    %v64 = vld [vmem:[%s0 + $0x68] sm:$0xff]
    %v65 = vld [vmem:[%s0 + $0x70] sm:$0xff]
    %v66 = vld [vmem:[%s0 + $0x78] sm:$0xff]
    %v67 = vld [vmem:[%s0 + $0x80] sm:$0xff]
    %v68 = vld [vmem:[%s0 + $0x88] sm:$0xff]
    %v69 = vld [vmem:[%s0 + $0x90] sm:$0xff]
    %v70 = vld [vmem:[%s0 + $0x98] sm:$0xff]
    %v71 = vld [vmem:[%s0 + $0xa0] sm:$0xff]
    %v72 = vld [vmem:[%s0 + $0xa8] sm:$0xff]
    %v73 = vld [vmem:[%s0 + $0xb0] sm:$0xff]
    %v74 = vld [vmem:[%s0 + $0xb8] sm:$0xff]
    %v75 = vld [vmem:[%s1] sm:$0xff]
    %v76 = vld [vmem:[%s1 + $0x8] sm:$0xff]
    %v77 = vld [vmem:[%s1 + $0x10] sm:$0xff]
    %v78 = vld [vmem:[%s1 + $0x18] sm:$0xff]
    %v79 = vld [vmem:[%s1 + $0x20] sm:$0xff]
    %v80 = vld [vmem:[%s1 + $0x28] sm:$0xff]
    %v81 = vld [vmem:[%s1 + $0x30] sm:$0xff]
    %v82 = vld [vmem:[%s1 + $0x38] sm:$0xff]
    %v83 = vld [vmem:[%s1 + $0x40] sm:$0xff]
    %v84 = vld [vmem:[%s1 + $0x48] sm:$0xff]
    %v85 = vld [vmem:[%s1 + $0x50] sm:$0xff]
    %v86 = vld [vmem:[%s1 + $0x58] sm:$0xff]
    %v87 = vld [vmem:[%s1 + $0x60] sm:$0xff]
    %v88 = vld [vmem:[%s1 + $0x68] sm:$0xff]
    %v89 = vld [vmem:[%s1 + $0x70] sm:$0xff]
    %v90 = vld [vmem:[%s1 + $0x78] sm:$0xff]
    %v91 = vld [vmem:[%s1 + $0x80] sm:$0xff]
    %v92 = vld [vmem:[%s1 + $0x88] sm:$0xff]
    %v93 = vld [vmem:[%s1 + $0x90] sm:$0xff]
    %v94 = vld [vmem:[%s1 + $0x98] sm:$0xff]
    %v95 = vld [vmem:[%s1 + $0xa0] sm:$0xff]
    %v96 = vld [vmem:[%s1 + $0xa8] sm:$0xff]
    %v97 = vld [vmem:[%s1 + $0xb0] sm:$0xff]
    %v98 = vld [vmem:[%s1 + $0xb8] sm:$0xff]
    %v99 = vld [vmem:[%s1 + $0xc0] sm:$0xff]
    %v100 = vld [vmem:[%s1 + $0xc8] sm:$0xff]
    %v101 = vld [vmem:[%s1 + $0xd0] sm:$0xff]
    %v102 = vld [vmem:[%s1 + $0xd8] sm:$0xff]
    %v103 = vld [vmem:[%s1 + $0xe0] sm:$0xff]
    %v104 = vld [vmem:[%s1 + $0xe8] sm:$0xff]
    %v105 = vld [vmem:[%s1 + $0xf0] sm:$0xff]
    %v106 = vld [vmem:[%s1 + $0xf8] sm:$0xff]
    %v107 = vld [vmem:[%s1 + $0x100] sm:$0xff]
    %v108 = vld [vmem:[%s1 + $0x108] sm:$0xff]
    %v109 = vld [vmem:[%s1 + $0x110] sm:$0xff]
    %v110 = vld [vmem:[%s1 + $0x118] sm:$0xff]
    %v111 = vld [vmem:[%s1 + $0x120] sm:$0xff]
    %v112 = vld [vmem:[%s1 + $0x128] sm:$0xff]
    %v113 = vld [vmem:[%s1 + $0x130] sm:$0xff]
    %v114 = vld [vmem:[%s1 + $0x138] sm:$0xff]
    %v115 = vld [vmem:[%s1 + $0x140] sm:$0xff]
    %v116 = vld [vmem:[%s1 + $0x148] sm:$0xff]
    %v117 = vld [vmem:[%s1 + $0x150] sm:$0xff]
    %v118 = vld [vmem:[%s1 + $0x158] sm:$0xff]
    %v119 = vld [vmem:[%s1 + $0x160] sm:$0xff]
    %v120 = vld [vmem:[%s1 + $0x168] sm:$0xff]
    %v121 = vld [vmem:[%s1 + $0x170] sm:$0xff]
    %v122 = vld [vmem:[%s1 + $0x178] sm:$0xff]
    %v123 = vld [vmem:[%s1 + $0x180] sm:$0xff]
    %v124 = vld [vmem:[%s1 + $0x188] sm:$0xff]
    %v125 = vld [vmem:[%s1 + $0x190] sm:$0xff]
    %v126 = vld [vmem:[%s1 + $0x198] sm:$0xff]
    %v127 = vld [vmem:[%s1 + $0x1a0] sm:$0xff]
    %v128 = vld [vmem:[%s1 + $0x1a8] sm:$0xff]
    %v129 = vld [vmem:[%s1 + $0x1b0] sm:$0xff]
    %v130 = vld [vmem:[%s1 + $0x1b8] sm:$0xff]
    %v131 = vld [vmem:[%s1 + $0x1c0] sm:$0xff]
    %v132 = vld [vmem:[%s1 + $0x1c8] sm:$0xff]
    %v133 = vld [vmem:[%s1 + $0x1d0] sm:$0xff]
    %v134 = vld [vmem:[%s1 + $0x1d8] sm:$0xff]
    %v135 = vld [vmem:[%s1 + $0x1e0] sm:$0xff]
    %v136 = vld [vmem:[%s1 + $0x1e8] sm:$0xff]
    %v137 = vld [vmem:[%s1 + $0x1f0] sm:$0xff]
    %v138 = vld [vmem:[%s1 + $0x1f8] sm:$0xff]
    %v139 = vld [vmem:[%s1 + $0x200] sm:$0xff]
    %v140 = vld [vmem:[%s1 + $0x208] sm:$0xff]
    %v141 = vld [vmem:[%s1 + $0x210] sm:$0xff]
    %v142 = vld [vmem:[%s1 + $0x218] sm:$0xff]
    %v143 = vld [vmem:[%s1 + $0x220] sm:$0xff]
    %v144 = vld [vmem:[%s1 + $0x228] sm:$0xff]
    %v145 = vld [vmem:[%s1 + $0x230] sm:$0xff]
    %v146 = vld [vmem:[%s1 + $0x238] sm:$0xff]
    %v147 = vld [vmem:[%s1 + $0x240] sm:$0xff]
    %v148 = vld [vmem:[%s1 + $0x248] sm:$0xff]
    %v149 = vld [vmem:[%s1 + $0x250] sm:$0xff]
    %v150 = vld [vmem:[%s1 + $0x258] sm:$0xff]
    %v151 = vld [vmem:[%s1 + $0x260] sm:$0xff]
    %v152 = vld [vmem:[%s1 + $0x268] sm:$0xff]
    %v153 = vld [vmem:[%s1 + $0x270] sm:$0xff]
    %v154 = vld [vmem:[%s1 + $0x278] sm:$0xff]
    %v155 = vld [vmem:[%s1 + $0x280] sm:$0xff]
    %v156 = vld [vmem:[%s1 + $0x288] sm:$0xff]
    %v157 = vld [vmem:[%s1 + $0x290] sm:$0xff]
    %v158 = vld [vmem:[%s1 + $0x298] sm:$0xff]
    %v159 = vld [vmem:[%s1 + $0x2a0] sm:$0xff]
    %v160 = vld [vmem:[%s1 + $0x2a8] sm:$0xff]
    %v161 = vld [vmem:[%s1 + $0x2b0] sm:$0xff]
    %v162 = vld [vmem:[%s1 + $0x2b8] sm:$0xff]
    %v163 = vld [vmem:[%s1 + $0x2c0] sm:$0xff]
    %v164 = vld [vmem:[%s1 + $0x2c8] sm:$0xff]
    %v165 = vld [vmem:[%s1 + $0x2d0] sm:$0xff]
    %v166 = vld [vmem:[%s1 + $0x2d8] sm:$0xff]
    %v167 = vld [vmem:[%s1 + $0x2e0] sm:$0xff]
    %v168 = vld [vmem:[%s1 + $0x2e8] sm:$0xff]
    %v169 = vld [vmem:[%s1 + $0x2f0] sm:$0xff]
    %v170 = vld [vmem:[%s1 + $0x2f8] sm:$0xff]
    %v195 = vunpack.c.l.b16 %v51
    %v196 = vunpack.c.h.b16 %v51
    %v197 = vunpack.c.l.b16 %v52
    %v198 = vunpack.c.h.b16 %v52
    %v199 = vunpack.c.l.b16 %v53
    %v200 = vunpack.c.h.b16 %v53
    %v201 = vunpack.c.l.b16 %v54
    %v202 = vunpack.c.h.b16 %v54
    %v203 = vunpack.c.l.b16 %v55
    %v204 = vunpack.c.h.b16 %v55
    %v205 = vunpack.c.l.b16 %v56
    %v206 = vunpack.c.h.b16 %v56
    %v207 = vunpack.c.l.b16 %v57
    %v208 = vunpack.c.h.b16 %v57
    %v209 = vunpack.c.l.b16 %v58
    %v210 = vunpack.c.h.b16 %v58
    %v211 = vunpack.c.l.b16 %v59
    %v212 = vunpack.c.h.b16 %v59
    %v213 = vunpack.c.l.b16 %v60
    %v214 = vunpack.c.h.b16 %v60
    %v215 = vunpack.c.l.b16 %v61
    %v216 = vunpack.c.h.b16 %v61
    %v217 = vunpack.c.l.b16 %v62
    %v218 = vunpack.c.h.b16 %v62
    %v219 = vunpack.c.l.b16 %v63
    %v220 = vunpack.c.h.b16 %v63
    %v221 = vunpack.c.l.b16 %v64
    %v222 = vunpack.c.h.b16 %v64
    %v223 = vunpack.c.l.b16 %v65
    %v224 = vunpack.c.h.b16 %v65
    %v225 = vunpack.c.l.b16 %v66
    %v226 = vunpack.c.h.b16 %v66
    %v227 = vunpack.c.l.b16 %v67
    %v228 = vunpack.c.h.b16 %v67
    %v229 = vunpack.c.l.b16 %v68
    %v230 = vunpack.c.h.b16 %v68
    %v231 = vunpack.c.l.b16 %v69
    %v232 = vunpack.c.h.b16 %v69
    %v233 = vunpack.c.l.b16 %v70
    %v234 = vunpack.c.h.b16 %v70
    %v235 = vunpack.c.l.b16 %v71
    %v236 = vunpack.c.h.b16 %v71
    %v237 = vunpack.c.l.b16 %v72
    %v238 = vunpack.c.h.b16 %v72
    %v239 = vunpack.c.l.b16 %v73
    %v240 = vunpack.c.h.b16 %v73
    %v241 = vunpack.c.l.b16 %v74
    %v242 = vunpack.c.h.b16 %v74
    %v243 = vpack.c.b16 %v201, %v195
    %v244 = vpack.c.b16 %v202, %v196
    %v245 = vpack.c.b16 %v203, %v197
    %v246 = vpack.c.b16 %v204, %v198
    %v247 = vpack.c.b16 %v205, %v199
    %v248 = vpack.c.b16 %v206, %v200
    %v249 = vpack.c.b16 %v213, %v207
    %v250 = vpack.c.b16 %v214, %v208
    %v251 = vpack.c.b16 %v215, %v209
    %v252 = vpack.c.b16 %v216, %v210
    %v253 = vpack.c.b16 %v217, %v211
    %v254 = vpack.c.b16 %v218, %v212
    %v255 = vpack.c.b16 %v225, %v219
    %v256 = vpack.c.b16 %v226, %v220
    %v257 = vpack.c.b16 %v227, %v221
    %v258 = vpack.c.b16 %v228, %v222
    %v259 = vpack.c.b16 %v229, %v223
    %v260 = vpack.c.b16 %v230, %v224
    %v261 = vpack.c.b16 %v237, %v231
    %v262 = vpack.c.b16 %v238, %v232
    %v263 = vpack.c.b16 %v239, %v233
    %v264 = vpack.c.b16 %v240, %v234
    %v265 = vpack.c.b16 %v241, %v235
    %v266 = vpack.c.b16 %v242, %v236
    %v387 = vunpack.c.l.b16 %v75
    %v388 = vunpack.c.h.b16 %v75
    %v389 = vunpack.c.l.b16 %v76
    %v390 = vunpack.c.h.b16 %v76
    %v391 = vunpack.c.l.b16 %v77
    %v392 = vunpack.c.h.b16 %v77
    %v393 = vunpack.c.l.b16 %v78
    %v394 = vunpack.c.h.b16 %v78
    %v395 = vunpack.c.l.b16 %v79
    %v396 = vunpack.c.h.b16 %v79
    %v397 = vunpack.c.l.b16 %v80
    %v398 = vunpack.c.h.b16 %v80
    %v399 = vunpack.c.l.b16 %v81
    %v400 = vunpack.c.h.b16 %v81
    %v401 = vunpack.c.l.b16 %v82
    %v402 = vunpack.c.h.b16 %v82
    %v403 = vunpack.c.l.b16 %v83
    %v404 = vunpack.c.h.b16 %v83
    %v405 = vunpack.c.l.b16 %v84
    %v406 = vunpack.c.h.b16 %v84
    %v407 = vunpack.c.l.b16 %v85
    %v408 = vunpack.c.h.b16 %v85
    %v409 = vunpack.c.l.b16 %v86
    %v410 = vunpack.c.h.b16 %v86
    %v411 = vunpack.c.l.b16 %v87
    %v412 = vunpack.c.h.b16 %v87
    %v413 = vunpack.c.l.b16 %v88
    %v414 = vunpack.c.h.b16 %v88
    %v415 = vunpack.c.l.b16 %v89
    %v416 = vunpack.c.h.b16 %v89
    %v417 = vunpack.c.l.b16 %v90
    %v418 = vunpack.c.h.b16 %v90
    %v419 = vunpack.c.l.b16 %v91
    %v420 = vunpack.c.h.b16 %v91
    %v421 = vunpack.c.l.b16 %v92
    %v422 = vunpack.c.h.b16 %v92
    %v423 = vunpack.c.l.b16 %v93
    %v424 = vunpack.c.h.b16 %v93
    %v425 = vunpack.c.l.b16 %v94
    %v426 = vunpack.c.h.b16 %v94
    %v427 = vunpack.c.l.b16 %v95
    %v428 = vunpack.c.h.b16 %v95
    %v429 = vunpack.c.l.b16 %v96
    %v430 = vunpack.c.h.b16 %v96
    %v431 = vunpack.c.l.b16 %v97
    %v432 = vunpack.c.h.b16 %v97
    %v433 = vunpack.c.l.b16 %v98
    %v434 = vunpack.c.h.b16 %v98
    %v435 = vunpack.c.l.b16 %v99
    %v436 = vunpack.c.h.b16 %v99
    %v437 = vunpack.c.l.b16 %v100
    %v438 = vunpack.c.h.b16 %v100
    %v439 = vunpack.c.l.b16 %v101
    %v440 = vunpack.c.h.b16 %v101
    %v441 = vunpack.c.l.b16 %v102
    %v442 = vunpack.c.h.b16 %v102
    %v443 = vunpack.c.l.b16 %v103
    %v444 = vunpack.c.h.b16 %v103
    %v445 = vunpack.c.l.b16 %v104
    %v446 = vunpack.c.h.b16 %v104
    %v447 = vunpack.c.l.b16 %v105
    %v448 = vunpack.c.h.b16 %v105
    %v449 = vunpack.c.l.b16 %v106
    %v450 = vunpack.c.h.b16 %v106
    %v451 = vunpack.c.l.b16 %v107
    %v452 = vunpack.c.h.b16 %v107
    %v453 = vunpack.c.l.b16 %v108
    %v454 = vunpack.c.h.b16 %v108
    %v455 = vunpack.c.l.b16 %v109
    %v456 = vunpack.c.h.b16 %v109
    %v457 = vunpack.c.l.b16 %v110
    %v458 = vunpack.c.h.b16 %v110
    %v459 = vunpack.c.l.b16 %v111
    %v460 = vunpack.c.h.b16 %v111
    %v461 = vunpack.c.l.b16 %v112
    %v462 = vunpack.c.h.b16 %v112
    %v463 = vunpack.c.l.b16 %v113
    %v464 = vunpack.c.h.b16 %v113
    %v465 = vunpack.c.l.b16 %v114
    %v466 = vunpack.c.h.b16 %v114
    %v467 = vunpack.c.l.b16 %v115
    %v468 = vunpack.c.h.b16 %v115
    %v469 = vunpack.c.l.b16 %v116
    %v470 = vunpack.c.h.b16 %v116
    %v471 = vunpack.c.l.b16 %v117
    %v472 = vunpack.c.h.b16 %v117
    %v473 = vunpack.c.l.b16 %v118
    %v474 = vunpack.c.h.b16 %v118
    %v475 = vunpack.c.l.b16 %v119
    %v476 = vunpack.c.h.b16 %v119
    %v477 = vunpack.c.l.b16 %v120
    %v478 = vunpack.c.h.b16 %v120
    %v479 = vunpack.c.l.b16 %v121
    %v480 = vunpack.c.h.b16 %v121
    %v481 = vunpack.c.l.b16 %v122
    %v482 = vunpack.c.h.b16 %v122
    %v483 = vunpack.c.l.b16 %v123
    %v484 = vunpack.c.h.b16 %v123
    %v485 = vunpack.c.l.b16 %v124
    %v486 = vunpack.c.h.b16 %v124
    %v487 = vunpack.c.l.b16 %v125
    %v488 = vunpack.c.h.b16 %v125
    %v489 = vunpack.c.l.b16 %v126
    %v490 = vunpack.c.h.b16 %v126
    %v491 = vunpack.c.l.b16 %v127
    %v492 = vunpack.c.h.b16 %v127
    %v493 = vunpack.c.l.b16 %v128
    %v494 = vunpack.c.h.b16 %v128
    %v495 = vunpack.c.l.b16 %v129
    %v496 = vunpack.c.h.b16 %v129
    %v497 = vunpack.c.l.b16 %v130
    %v498 = vunpack.c.h.b16 %v130
    %v499 = vunpack.c.l.b16 %v131
    %v500 = vunpack.c.h.b16 %v131
    %v501 = vunpack.c.l.b16 %v132
    %v502 = vunpack.c.h.b16 %v132
    %v503 = vunpack.c.l.b16 %v133
    %v504 = vunpack.c.h.b16 %v133
    %v505 = vunpack.c.l.b16 %v134
    %v506 = vunpack.c.h.b16 %v134
    %v507 = vunpack.c.l.b16 %v135
    %v508 = vunpack.c.h.b16 %v135
    %v509 = vunpack.c.l.b16 %v136
    %v510 = vunpack.c.h.b16 %v136
    %v511 = vunpack.c.l.b16 %v137
    %v512 = vunpack.c.h.b16 %v137
    %v513 = vunpack.c.l.b16 %v138
    %v514 = vunpack.c.h.b16 %v138
    %v515 = vunpack.c.l.b16 %v139
    %v516 = vunpack.c.h.b16 %v139
    %v517 = vunpack.c.l.b16 %v140
    %v518 = vunpack.c.h.b16 %v140
    %v519 = vunpack.c.l.b16 %v141
    %v520 = vunpack.c.h.b16 %v141
    %v521 = vunpack.c.l.b16 %v142
    %v522 = vunpack.c.h.b16 %v142
    %v523 = vunpack.c.l.b16 %v143
    %v524 = vunpack.c.h.b16 %v143
    %v525 = vunpack.c.l.b16 %v144
    %v526 = vunpack.c.h.b16 %v144
    %v527 = vunpack.c.l.b16 %v145
    %v528 = vunpack.c.h.b16 %v145
    %v529 = vunpack.c.l.b16 %v146
    %v530 = vunpack.c.h.b16 %v146
    %v531 = vunpack.c.l.b16 %v147
    %v532 = vunpack.c.h.b16 %v147
    %v533 = vunpack.c.l.b16 %v148
    %v534 = vunpack.c.h.b16 %v148
    %v535 = vunpack.c.l.b16 %v149
    %v536 = vunpack.c.h.b16 %v149
    %v537 = vunpack.c.l.b16 %v150
    %v538 = vunpack.c.h.b16 %v150
    %v539 = vunpack.c.l.b16 %v151
    %v540 = vunpack.c.h.b16 %v151
    %v541 = vunpack.c.l.b16 %v152
    %v542 = vunpack.c.h.b16 %v152
    %v543 = vunpack.c.l.b16 %v153
    %v544 = vunpack.c.h.b16 %v153
    %v545 = vunpack.c.l.b16 %v154
    %v546 = vunpack.c.h.b16 %v154
    %v547 = vunpack.c.l.b16 %v155
    %v548 = vunpack.c.h.b16 %v155
    %v549 = vunpack.c.l.b16 %v156
    %v550 = vunpack.c.h.b16 %v156
    %v551 = vunpack.c.l.b16 %v157
    %v552 = vunpack.c.h.b16 %v157
    %v553 = vunpack.c.l.b16 %v158
    %v554 = vunpack.c.h.b16 %v158
    %v555 = vunpack.c.l.b16 %v159
    %v556 = vunpack.c.h.b16 %v159
    %v557 = vunpack.c.l.b16 %v160
    %v558 = vunpack.c.h.b16 %v160
    %v559 = vunpack.c.l.b16 %v161
    %v560 = vunpack.c.h.b16 %v161
    %v561 = vunpack.c.l.b16 %v162
    %v562 = vunpack.c.h.b16 %v162
    %v563 = vunpack.c.l.b16 %v163
    %v564 = vunpack.c.h.b16 %v163
    %v565 = vunpack.c.l.b16 %v164
    %v566 = vunpack.c.h.b16 %v164
    %v567 = vunpack.c.l.b16 %v165
    %v568 = vunpack.c.h.b16 %v165
    %v569 = vunpack.c.l.b16 %v166
    %v570 = vunpack.c.h.b16 %v166
    %v571 = vunpack.c.l.b16 %v167
    %v572 = vunpack.c.h.b16 %v167
    %v573 = vunpack.c.l.b16 %v168
    %v574 = vunpack.c.h.b16 %v168
    %v575 = vunpack.c.l.b16 %v169
    %v576 = vunpack.c.h.b16 %v169
    %v577 = vunpack.c.l.b16 %v170
    %v578 = vunpack.c.h.b16 %v170
    %v579 = vpack.c.b16 %v389, %v387
    %v580 = vpack.c.b16 %v390, %v388
    %v581 = vpack.c.b16 %v393, %v391
    %v582 = vpack.c.b16 %v394, %v392
    %v583 = vpack.c.b16 %v397, %v395
    %v584 = vpack.c.b16 %v398, %v396
    %v585 = vpack.c.b16 %v401, %v399
    %v586 = vpack.c.b16 %v402, %v400
    %v587 = vpack.c.b16 %v405, %v403
    %v588 = vpack.c.b16 %v406, %v404
    %v589 = vpack.c.b16 %v409, %v407
    %v590 = vpack.c.b16 %v410, %v408
    %v591 = vpack.c.b16 %v413, %v411
    %v592 = vpack.c.b16 %v414, %v412
    %v593 = vpack.c.b16 %v417, %v415
    %v594 = vpack.c.b16 %v418, %v416
    %v595 = vpack.c.b16 %v421, %v419
    %v596 = vpack.c.b16 %v422, %v420
    %v597 = vpack.c.b16 %v425, %v423
    %v598 = vpack.c.b16 %v426, %v424
    %v599 = vpack.c.b16 %v429, %v427
    %v600 = vpack.c.b16 %v430, %v428
    %v601 = vpack.c.b16 %v433, %v431
    %v602 = vpack.c.b16 %v434, %v432
    %v603 = vpack.c.b16 %v437, %v435
    %v604 = vpack.c.b16 %v438, %v436
    %v605 = vpack.c.b16 %v441, %v439
    %v606 = vpack.c.b16 %v442, %v440
    %v607 = vpack.c.b16 %v445, %v443
    %v608 = vpack.c.b16 %v446, %v444
    %v609 = vpack.c.b16 %v449, %v447
    %v610 = vpack.c.b16 %v450, %v448
    %v611 = vpack.c.b16 %v453, %v451
    %v612 = vpack.c.b16 %v454, %v452
    %v613 = vpack.c.b16 %v457, %v455
    %v614 = vpack.c.b16 %v458, %v456
    %v615 = vpack.c.b16 %v461, %v459
    %v616 = vpack.c.b16 %v462, %v460
    %v617 = vpack.c.b16 %v465, %v463
    %v618 = vpack.c.b16 %v466, %v464
    %v619 = vpack.c.b16 %v469, %v467
    %v620 = vpack.c.b16 %v470, %v468
    %v621 = vpack.c.b16 %v473, %v471
    %v622 = vpack.c.b16 %v474, %v472
    %v623 = vpack.c.b16 %v477, %v475
    %v624 = vpack.c.b16 %v478, %v476
    %v625 = vpack.c.b16 %v481, %v479
    %v626 = vpack.c.b16 %v482, %v480
    %v627 = vpack.c.b16 %v485, %v483
    %v628 = vpack.c.b16 %v486, %v484
    %v629 = vpack.c.b16 %v489, %v487
    %v630 = vpack.c.b16 %v490, %v488
    %v631 = vpack.c.b16 %v493, %v491
    %v632 = vpack.c.b16 %v494, %v492
    %v633 = vpack.c.b16 %v497, %v495
    %v634 = vpack.c.b16 %v498, %v496
    %v635 = vpack.c.b16 %v501, %v499
    %v636 = vpack.c.b16 %v502, %v500
    %v637 = vpack.c.b16 %v505, %v503
    %v638 = vpack.c.b16 %v506, %v504
    %v639 = vpack.c.b16 %v509, %v507
    %v640 = vpack.c.b16 %v510, %v508
    %v641 = vpack.c.b16 %v513, %v511
    %v642 = vpack.c.b16 %v514, %v512
    %v643 = vpack.c.b16 %v517, %v515
    %v644 = vpack.c.b16 %v518, %v516
    %v645 = vpack.c.b16 %v521, %v519
    %v646 = vpack.c.b16 %v522, %v520
    %v647 = vpack.c.b16 %v525, %v523
    %v648 = vpack.c.b16 %v526, %v524
    %v649 = vpack.c.b16 %v529, %v527
    %v650 = vpack.c.b16 %v530, %v528
    %v651 = vpack.c.b16 %v533, %v531
    %v652 = vpack.c.b16 %v534, %v532
    %v653 = vpack.c.b16 %v537, %v535
    %v654 = vpack.c.b16 %v538, %v536
    %v655 = vpack.c.b16 %v541, %v539
    %v656 = vpack.c.b16 %v542, %v540
    %v657 = vpack.c.b16 %v545, %v543
    %v658 = vpack.c.b16 %v546, %v544
    %v659 = vpack.c.b16 %v549, %v547
    %v660 = vpack.c.b16 %v550, %v548
    %v661 = vpack.c.b16 %v553, %v551
    %v662 = vpack.c.b16 %v554, %v552
    %v663 = vpack.c.b16 %v557, %v555
    %v664 = vpack.c.b16 %v558, %v556
    %v665 = vpack.c.b16 %v561, %v559
    %v666 = vpack.c.b16 %v562, %v560
    %v667 = vpack.c.b16 %v565, %v563
    %v668 = vpack.c.b16 %v566, %v564
    %v669 = vpack.c.b16 %v569, %v567
    %v670 = vpack.c.b16 %v570, %v568
    %v671 = vpack.c.b16 %v573, %v571
    %v672 = vpack.c.b16 %v574, %v572
    %v673 = vpack.c.b16 %v577, %v575
    %v674 = vpack.c.b16 %v578, %v576
    %771 = vmatprep.subr.bf16.mxu0 %v580
    %772 = vmatpush1.bf16.msra.mxu0 %v579
    %773 = vmatprep.subr.bf16.mxu0 %v582
    %774 = vmatpush1.bf16.msra.mxu0 %v581
    %775 = vmatprep.subr.bf16.mxu0 %v584
    %776 = vmatpush1.bf16.msra.mxu0 %v583
    %777 = vmatprep.subr.bf16.mxu0 %v586
    %778 = vmatpush1.bf16.msra.mxu0 %v585
    %779 = vmatprep.subr.bf16.mxu0 %v588
    %780 = vmatpush1.bf16.msra.mxu0 %v587
    %781 = vmatprep.subr.bf16.mxu0 %v590
    %782 = vmatpush1.bf16.msra.mxu0 %v589
    %783 = vmatprep.subr.bf16.mxu0 %v592
    %784 = vmatpush1.bf16.msra.mxu0 %v591
    %785 = vmatprep.subr.bf16.mxu0 %v594
    %786 = vmatpush1.bf16.msra.mxu0 %v593
    %787 = vmatprep.subr.bf16.mxu0 %v596
    %788 = vmatpush1.bf16.msra.mxu0 %v595
    %789 = vmatprep.subr.bf16.mxu0 %v598
    %790 = vmatpush1.bf16.msra.mxu0 %v597
    %791 = vmatprep.subr.bf16.mxu0 %v600
    %792 = vmatpush1.bf16.msra.mxu0 %v599
    %793 = vmatprep.subr.bf16.mxu0 %v602
    %794 = vmatpush1.bf16.msra.mxu0 %v601
    %795 = vmatprep.subr.bf16.mxu0 %v604
    %796 = vmatpush1.bf16.msra.mxu0 %v603
    %797 = vmatprep.subr.bf16.mxu0 %v606
    %798 = vmatpush1.bf16.msra.mxu0 %v605
    %799 = vmatprep.subr.bf16.mxu0 %v608
    %800 = vmatpush1.bf16.msra.mxu0 %v607
    %801 = vmatprep.subr.bf16.mxu0 %v610
    %802 = vmatpush1.bf16.msra.mxu0 %v609
    %803 = vmatprep.mubr.bf16.mxu0 %v244
    %804 = vmatmul.mubr.bf16.gmra.mrb[0].mxu0 %v243
    %v805 = vpop.f32.mrb[0].mxu0
    %v806 = vadd.f32 0.0, %v805
    %v807 = vpop.f32.mrb[0].mxu0
    %v808 = vadd.f32 0.0, %v807
    %v809 = vpop.f32.mrb[0].mxu0
    %v810 = vadd.f32 0.0, %v809
    %v811 = vpop.f32.mrb[0].mxu0
    %v812 = vadd.f32 0.0, %v811
    %813 = vmatprep.mubr.bf16.mxu0 %v250
    %814 = vmatmul.mubr.bf16.gmra.mrb[0].mxu0 %v249
    %v815 = vpop.f32.mrb[0].mxu0
    %v816 = vadd.f32 0.0, %v815
    %v817 = vpop.f32.mrb[0].mxu0
    %v818 = vadd.f32 0.0, %v817
    %v819 = vpop.f32.mrb[0].mxu0
    %v820 = vadd.f32 0.0, %v819
    %v821 = vpop.f32.mrb[0].mxu0
    %v822 = vadd.f32 0.0, %v821
    %823 = vmatprep.mubr.bf16.mxu0 %v256
    %824 = vmatmul.mubr.bf16.gmra.mrb[0].mxu0 %v255
    %v825 = vpop.f32.mrb[0].mxu0
    %v826 = vadd.f32 0.0, %v825
    %v827 = vpop.f32.mrb[0].mxu0
    %v828 = vadd.f32 0.0, %v827
    %v829 = vpop.f32.mrb[0].mxu0
    %v830 = vadd.f32 0.0, %v829
    %v831 = vpop.f32.mrb[0].mxu0
    %v832 = vadd.f32 0.0, %v831
    %833 = vmatprep.mubr.bf16.mxu0 %v262
    %834 = vmatmul.mubr.bf16.gmra.mrb[0].mxu0 %v261
    %v835 = vpop.f32.mrb[0].mxu0
    %v836 = vadd.f32 0.0, %v835
    %v837 = vpop.f32.mrb[0].mxu0
    %v838 = vadd.f32 0.0, %v837
    %v839 = vpop.f32.mrb[0].mxu0
    %v840 = vadd.f32 0.0, %v839
    %v841 = vpop.f32.mrb[0].mxu0
    %v842 = vadd.f32 0.0, %v841
    %843 = vdwg.mxu0
    %844 = vmatprep.subr.bf16.mxu0 %v612
    %845 = vmatpush1.bf16.msra.mxu0 %v611
    %846 = vmatprep.subr.bf16.mxu0 %v614
    %847 = vmatpush1.bf16.msra.mxu0 %v613
    %848 = vmatprep.subr.bf16.mxu0 %v616
    %849 = vmatpush1.bf16.msra.mxu0 %v615
    %850 = vmatprep.subr.bf16.mxu0 %v618
    %851 = vmatpush1.bf16.msra.mxu0 %v617
    %852 = vmatprep.subr.bf16.mxu0 %v620
    %853 = vmatpush1.bf16.msra.mxu0 %v619
    %854 = vmatprep.subr.bf16.mxu0 %v622
    %855 = vmatpush1.bf16.msra.mxu0 %v621
    %856 = vmatprep.subr.bf16.mxu0 %v624
    %857 = vmatpush1.bf16.msra.mxu0 %v623
    %858 = vmatprep.subr.bf16.mxu0 %v626
    %859 = vmatpush1.bf16.msra.mxu0 %v625
    %860 = vmatprep.subr.bf16.mxu0 %v628
    %861 = vmatpush1.bf16.msra.mxu0 %v627
    %862 = vmatprep.subr.bf16.mxu0 %v630
    %863 = vmatpush1.bf16.msra.mxu0 %v629
    %864 = vmatprep.subr.bf16.mxu0 %v632
    %865 = vmatpush1.bf16.msra.mxu0 %v631
    %866 = vmatprep.subr.bf16.mxu0 %v634
    %867 = vmatpush1.bf16.msra.mxu0 %v633
    %868 = vmatprep.subr.bf16.mxu0 %v636
    %869 = vmatpush1.bf16.msra.mxu0 %v635
    %870 = vmatprep.subr.bf16.mxu0 %v638
    %871 = vmatpush1.bf16.msra.mxu0 %v637
    %872 = vmatprep.subr.bf16.mxu0 %v640
    %873 = vmatpush1.bf16.msra.mxu0 %v639
    %874 = vmatprep.subr.bf16.mxu0 %v642
    %875 = vmatpush1.bf16.msra.mxu0 %v641
    %876 = vmatprep.mubr.bf16.mxu0 %v246
    %877 = vmatmul.mubr.bf16.gmra.mrb[0].mxu0 %v245
    %v878 = vpop.f32.mrb[0].mxu0
    %v879 = vadd.f32 %v806, %v878
    %v880 = vpop.f32.mrb[0].mxu0
    %v881 = vadd.f32 %v808, %v880
    %v882 = vpop.f32.mrb[0].mxu0
    %v883 = vadd.f32 %v810, %v882
    %v884 = vpop.f32.mrb[0].mxu0
    %v885 = vadd.f32 %v812, %v884
    %886 = vmatprep.mubr.bf16.mxu0 %v252
    %887 = vmatmul.mubr.bf16.gmra.mrb[0].mxu0 %v251
    %v888 = vpop.f32.mrb[0].mxu0
    %v889 = vadd.f32 %v816, %v888
    %v890 = vpop.f32.mrb[0].mxu0
    %v891 = vadd.f32 %v818, %v890
    %v892 = vpop.f32.mrb[0].mxu0
    %v893 = vadd.f32 %v820, %v892
    %v894 = vpop.f32.mrb[0].mxu0
    %v895 = vadd.f32 %v822, %v894
    %896 = vmatprep.mubr.bf16.mxu0 %v258
    %897 = vmatmul.mubr.bf16.gmra.mrb[0].mxu0 %v257
    %v898 = vpop.f32.mrb[0].mxu0
    %v899 = vadd.f32 %v826, %v898
    %v900 = vpop.f32.mrb[0].mxu0
    %v901 = vadd.f32 %v828, %v900
    %v902 = vpop.f32.mrb[0].mxu0
    %v903 = vadd.f32 %v830, %v902
    %v904 = vpop.f32.mrb[0].mxu0
    %v905 = vadd.f32 %v832, %v904
    %906 = vmatprep.mubr.bf16.mxu0 %v264
    %907 = vmatmul.mubr.bf16.gmra.mrb[0].mxu0 %v263
    %v908 = vpop.f32.mrb[0].mxu0
    %v909 = vadd.f32 %v836, %v908
    %v910 = vpop.f32.mrb[0].mxu0
    %v911 = vadd.f32 %v838, %v910
    %v912 = vpop.f32.mrb[0].mxu0
    %v913 = vadd.f32 %v840, %v912
    %v914 = vpop.f32.mrb[0].mxu0
    %v915 = vadd.f32 %v842, %v914
    %916 = vdwg.mxu0
    %917 = vmatprep.subr.bf16.mxu0 %v644
    %918 = vmatpush1.bf16.msra.mxu0 %v643
    %919 = vmatprep.subr.bf16.mxu0 %v646
    %920 = vmatpush1.bf16.msra.mxu0 %v645
    %921 = vmatprep.subr.bf16.mxu0 %v648
    %922 = vmatpush1.bf16.msra.mxu0 %v647
    %923 = vmatprep.subr.bf16.mxu0 %v650
    %924 = vmatpush1.bf16.msra.mxu0 %v649
    %925 = vmatprep.subr.bf16.mxu0 %v652
    %926 = vmatpush1.bf16.msra.mxu0 %v651
    %927 = vmatprep.subr.bf16.mxu0 %v654
    %928 = vmatpush1.bf16.msra.mxu0 %v653
    %929 = vmatprep.subr.bf16.mxu0 %v656
    %930 = vmatpush1.bf16.msra.mxu0 %v655
    %931 = vmatprep.subr.bf16.mxu0 %v658
    %932 = vmatpush1.bf16.msra.mxu0 %v657
    %933 = vmatprep.subr.bf16.mxu0 %v660
    %934 = vmatpush1.bf16.msra.mxu0 %v659
    %935 = vmatprep.subr.bf16.mxu0 %v662
    %936 = vmatpush1.bf16.msra.mxu0 %v661
    %937 = vmatprep.subr.bf16.mxu0 %v664
    %938 = vmatpush1.bf16.msra.mxu0 %v663
    %939 = vmatprep.subr.bf16.mxu0 %v666
    %940 = vmatpush1.bf16.msra.mxu0 %v665
    %941 = vmatprep.subr.bf16.mxu0 %v668
    %942 = vmatpush1.bf16.msra.mxu0 %v667
    %943 = vmatprep.subr.bf16.mxu0 %v670
    %944 = vmatpush1.bf16.msra.mxu0 %v669
    %945 = vmatprep.subr.bf16.mxu0 %v672
    %946 = vmatpush1.bf16.msra.mxu0 %v671
    %947 = vmatprep.subr.bf16.mxu0 %v674
    %948 = vmatpush1.bf16.msra.mxu0 %v673
    %949 = vmatprep.mubr.bf16.mxu0 %v248
    %950 = vmatmul.mubr.bf16.gmra.mrb[0].mxu0 %v247
    %v951 = vpop.f32.mrb[0].mxu0
    %v952 = vadd.f32 %v879, %v951
    %v953 = vpop.f32.mrb[0].mxu0
    %v954 = vadd.f32 %v881, %v953
    %v955 = vpop.f32.mrb[0].mxu0
    %v956 = vadd.f32 %v883, %v955
    %v957 = vpop.f32.mrb[0].mxu0
    %v958 = vadd.f32 %v885, %v957
    %959 = vmatprep.mubr.bf16.mxu0 %v254
    %960 = vmatmul.mubr.bf16.gmra.mrb[0].mxu0 %v253
    %v961 = vpop.f32.mrb[0].mxu0
    %v962 = vadd.f32 %v889, %v961
    %v963 = vpop.f32.mrb[0].mxu0
    %v964 = vadd.f32 %v891, %v963
    %v965 = vpop.f32.mrb[0].mxu0
    %v966 = vadd.f32 %v893, %v965
    %v967 = vpop.f32.mrb[0].mxu0
    %v968 = vadd.f32 %v895, %v967
    %969 = vmatprep.mubr.bf16.mxu0 %v260
    %970 = vmatmul.mubr.bf16.gmra.mrb[0].mxu0 %v259
    %v971 = vpop.f32.mrb[0].mxu0
    %v972 = vadd.f32 %v899, %v971
    %v973 = vpop.f32.mrb[0].mxu0
    %v974 = vadd.f32 %v901, %v973
    %v975 = vpop.f32.mrb[0].mxu0
    %v976 = vadd.f32 %v903, %v975
    %v977 = vpop.f32.mrb[0].mxu0
    %v978 = vadd.f32 %v905, %v977
    %979 = vmatprep.mubr.bf16.mxu0 %v266
    %980 = vmatmul.mubr.bf16.gmra.mrb[0].mxu0 %v265
    %v981 = vpop.f32.mrb[0].mxu0
    %v982 = vadd.f32 %v909, %v981
    %v983 = vpop.f32.mrb[0].mxu0
    %v984 = vadd.f32 %v911, %v983
    %v985 = vpop.f32.mrb[0].mxu0
    %v986 = vadd.f32 %v913, %v985
    %v987 = vpop.f32.mrb[0].mxu0
    %v988 = vadd.f32 %v915, %v987
    %989 = vdwg.mxu0
    %v990 = vadd.f32 %v35, %v952
    %v991 = vadd.f32 %v36, %v954
    %v992 = vadd.f32 %v37, %v956
    %v993 = vadd.f32 %v38, %v958
    %v994 = vadd.f32 %v39, %v962
    %v995 = vadd.f32 %v40, %v964
    %v996 = vadd.f32 %v41, %v966
    %v997 = vadd.f32 %v42, %v968
    %v998 = vadd.f32 %v43, %v972
    %v999 = vadd.f32 %v44, %v974
    %v1000 = vadd.f32 %v45, %v976
    %v1001 = vadd.f32 %v46, %v978
    %v1002 = vadd.f32 %v47, %v982
    %v1003 = vadd.f32 %v48, %v984
    %v1004 = vadd.f32 %v49, %v986
    %v1005 = vadd.f32 %v50, %v988
    %1006 = vst [vmem:[#allocation2] sm:$0xff] %v990
    %1007 = vst [vmem:[#allocation2 + $0x8] sm:$0xff] %v991
    %1008 = vst [vmem:[#allocation2 + $0x10] sm:$0xff] %v992
    %1009 = vst [vmem:[#allocation2 + $0x18] sm:$0xff] %v993
    %1010 = vst [vmem:[#allocation2 + $0x20] sm:$0xff] %v994
    %1011 = vst [vmem:[#allocation2 + $0x28] sm:$0xff] %v995
    %1012 = vst [vmem:[#allocation2 + $0x30] sm:$0xff] %v996
    %1013 = vst [vmem:[#allocation2 + $0x38] sm:$0xff] %v997
    %1014 = vst [vmem:[#allocation2 + $0x40] sm:$0xff] %v998
    %1015 = vst [vmem:[#allocation2 + $0x48] sm:$0xff] %v999
    %1016 = vst [vmem:[#allocation2 + $0x50] sm:$0xff] %v1000
    %1017 = vst [vmem:[#allocation2 + $0x58] sm:$0xff] %v1001
    %1018 = vst [vmem:[#allocation2 + $0x60] sm:$0xff] %v1002
    %1019 = vst [vmem:[#allocation2 + $0x68] sm:$0xff] %v1003
    %1020 = vst [vmem:[#allocation2 + $0x70] sm:$0xff] %v1004
    %1021 = vst [vmem:[#allocation2 + $0x78] sm:$0xff] %v1005
    // Predicated region
    $region18: #{transformer_block_forward.15} parent=1 // pred_check
      %p1022 = pneg %p15
    $region19: #{transformer_block_forward.15} parent=1 // pred_check_branch
      %1024 = sbr.rel (%p1022) target = $region21
    $region20: #{transformer_block_forward.15} parent=1 // pred_region
      %v1025 = vld [vmem:[#allocation2] sm:$0xff]
      %v1026 = vld [vmem:[#allocation2 + $0x8] sm:$0xff]
      %v1027 = vld [vmem:[#allocation2 + $0x10] sm:$0xff]
      %v1028 = vld [vmem:[#allocation2 + $0x18] sm:$0xff]
      %v1029 = vld [vmem:[#allocation2 + $0x20] sm:$0xff]
      %v1030 = vld [vmem:[#allocation2 + $0x28] sm:$0xff]
      %v1031 = vld [vmem:[#allocation2 + $0x30] sm:$0xff]
      %v1032 = vld [vmem:[#allocation2 + $0x38] sm:$0xff]
      %v1033 = vld [vmem:[#allocation2 + $0x40] sm:$0xff]
      %v1034 = vld [vmem:[#allocation2 + $0x48] sm:$0xff]
      %v1035 = vld [vmem:[#allocation2 + $0x50] sm:$0xff]
      %v1036 = vld [vmem:[#allocation2 + $0x58] sm:$0xff]
      %v1037 = vld [vmem:[#allocation2 + $0x60] sm:$0xff]
      %v1038 = vld [vmem:[#allocation2 + $0x68] sm:$0xff]
      %v1039 = vld [vmem:[#allocation2 + $0x70] sm:$0xff]
      %v1040 = vld [vmem:[#allocation2 + $0x78] sm:$0xff]
      %v1041 = vld [vmem:[%s2] sm:$0xff]
      %v1042 = vld [vmem:[%s2 + $0x8] sm:$0xff]
      %v1043 = vld [vmem:[%s2 + $0x10] sm:$0xff]
      %v1044 = vld [vmem:[%s2 + $0x18] sm:$0xff]
      %v1045 = vld [vmem:[%s2 + $0x20] sm:$0xff]
      %v1046 = vld [vmem:[%s2 + $0x28] sm:$0xff]
      %v1047 = vld [vmem:[%s2 + $0x30] sm:$0xff]
      %v1048 = vld [vmem:[%s2 + $0x38] sm:$0xff]
      %v1049 = vunpack.c.l.bf16 %v1041
      %v1050 = vunpack.c.h.bf16 %v1041
      %v1051 = vunpack.c.l.bf16 %v1042
      %v1052 = vunpack.c.h.bf16 %v1042
      %v1053 = vunpack.c.l.bf16 %v1043
      %v1054 = vunpack.c.h.bf16 %v1043
      %v1055 = vunpack.c.l.bf16 %v1044
      %v1056 = vunpack.c.h.bf16 %v1044
      %v1057 = vunpack.c.l.bf16 %v1045
      %v1058 = vunpack.c.h.bf16 %v1045
      %v1059 = vunpack.c.l.bf16 %v1046
      %v1060 = vunpack.c.h.bf16 %v1046
      %v1061 = vunpack.c.l.bf16 %v1047
      %v1062 = vunpack.c.h.bf16 %v1047
      %v1063 = vunpack.c.l.bf16 %v1048
      %v1064 = vunpack.c.h.bf16 %v1048
      %v1065 = vadd.f32 %v1025, %v1049
      %v1066 = vadd.f32 %v1026, %v1050
      %v1067 = vadd.f32 %v1027, %v1051
      %v1068 = vadd.f32 %v1028, %v1052
      %v1069 = vadd.f32 %v1029, %v1053
      %v1070 = vadd.f32 %v1030, %v1054
      %v1071 = vadd.f32 %v1031, %v1055
      %v1072 = vadd.f32 %v1032, %v1056
      %v1073 = vadd.f32 %v1033, %v1057
      %v1074 = vadd.f32 %v1034, %v1058
      %v1075 = vadd.f32 %v1035, %v1059
      %v1076 = vadd.f32 %v1036, %v1060
      %v1077 = vadd.f32 %v1037, %v1061
      %v1078 = vadd.f32 %v1038, %v1062
      %v1079 = vadd.f32 %v1039, %v1063
      %v1080 = vadd.f32 %v1040, %v1064
      %1081 = vst [vmem:[#allocation3] sm:$0xff] %v1065
      %1082 = vst [vmem:[#allocation3 + $0x8] sm:$0xff] %v1066
      %1083 = vst [vmem:[#allocation3 + $0x10] sm:$0xff] %v1067
      %1084 = vst [vmem:[#allocation3 + $0x18] sm:$0xff] %v1068
      %1085 = vst [vmem:[#allocation3 + $0x20] sm:$0xff] %v1069
      %1086 = vst [vmem:[#allocation3 + $0x28] sm:$0xff] %v1070
      %1087 = vst [vmem:[#allocation3 + $0x30] sm:$0xff] %v1071
      %1088 = vst [vmem:[#allocation3 + $0x38] sm:$0xff] %v1072
      %1089 = vst [vmem:[#allocation3 + $0x40] sm:$0xff] %v1073
      %1090 = vst [vmem:[#allocation3 + $0x48] sm:$0xff] %v1074
      %1091 = vst [vmem:[#allocation3 + $0x50] sm:$0xff] %v1075
      %1092 = vst [vmem:[#allocation3 + $0x58] sm:$0xff] %v1076
      %1093 = vst [vmem:[#allocation3 + $0x60] sm:$0xff] %v1077
      %1094 = vst [vmem:[#allocation3 + $0x68] sm:$0xff] %v1078
      %1095 = vst [vmem:[#allocation3 + $0x70] sm:$0xff] %v1079
      %1096 = vst [vmem:[#allocation3 + $0x78] sm:$0xff] %v1080
    $region21: #{transformer_block_forward.15} parent=1 // pred_fallthru
      _
    // Predicated region
    $region22: #{transformer_block_forward.15} parent=1 // pred_check
      _
    $region23: #{transformer_block_forward.15} parent=1 // pred_check_branch
      %1098 = sbr.rel (0) target = $region25
    $region24: #{transformer_block_forward.15} parent=1 // pred_region
      %s1100 = ssub.s32 2048, 2048
      %1101 = vsyncadd [#allocation4], %s1100
      %s1102 = sshll.u32 [#allocation3], 4
      %s1103 = int_to_ptr.vmem [resolvable:$true] %s1102
      %1108 = dma.vmem_to_hbm [thread:$0]  %s1103, 2048, %s3, [#allocation4], 256, 256, 16
    $region25: #{transformer_block_forward.15} parent=1 // pred_fallthru
      _
    // Predicated region
    $region26: #{transformer_block_forward.15} parent=1 // pred_check
      _
    $region27: #{transformer_block_forward.15} parent=1 // pred_check_branch
      %1110 = sbr.rel (0) target = $region29
    $region28: #{transformer_block_forward.15} parent=1 // pred_region
      %1111 = dma.done [#allocation4], 2048
    $region29: #{transformer_block_forward.15} parent=1 // pred_fallthru
      _
    %1112 = vsyncpa [#allocation4], 1

// kernel: transformer_block_forward.14
$region0: #{transformer_block_forward.14}
  #allocation0 [shape = 'u32[]', space=smem, size = 0x4, offset = 0x4, fixed_abs, tag = 'smem constant byte address 0x4 - core index']
  #allocation1 [shape = 'u32[144,128]{1,0:T(1,128)}', space=vmem, size = 0x12000, scoped, tag = 'internal scratch']
  #allocation2 [shape = 'f32[64,384]{1,0:T(8,128)}', space=vmem, size = 0x18000, scoped, tag = 'scratch operand']
  #allocation3 [shape = 'f32[64,384]{1,0:T(8,128)}', space=vmem, size = 0x18000, scoped, tag = 'scratch operand']
  %s0 = inlined_call_operand.vmem [shape: bf16[64,256], index: 0, kind: input, shape index: {}]
  %s1 = inlined_call_operand.vmem [shape: bf16[256,768], index: 1, kind: input, shape index: {}]
  %s2 = inlined_call_operand.vmem [shape: bf16[256,768], index: 2, kind: input, shape index: {}]
  %s3 = inlined_call_operand.vmem [shape: bf16[64,768], index: 3, kind: output, shape index: {}]
  %s4 = sld [smem:[#allocation0]]
  $region127: #{transformer_block_forward.14} parent=0
    _
  %s6 = ssub.s32 1, %s4
  %s7 = scalar_select 0, %s6, %s4
  $region1: #{transformer_block_forward.14} parent=0
    #allocation4 [shape = 'u8[393216]{0}', space=vmem, size = 0x60000, scoped, tag = 'input window, operand 1']
    #allocation5 [shape = 'u8[393216]{0}', space=vmem, size = 0x60000, scoped, tag = 'input window, operand 2']
    #allocation6 [shape = 'u8[98304]{0}', space=vmem, size = 0x18000, scoped, tag = 'output window, operand 0']
    loop: start=0, step=1, limit=4
    $region2: #{transformer_block_forward.14} parent=1 // loop_pre_header
      _
    $region3: #{transformer_block_forward.14} parent=1 // loop_header
      %s9 = sphi 0, %s13
      %p10 = scmp.ge.s32.totalorder %s9, 4
      %s16 = sphi 0, %s35
      %s17 = sphi 0, %s31
      %s18 = sphi 0, %s27
      %s19 = sphi 0, %s16
      %s20 = sphi 0, %s17
      %s21 = sphi 0, %s18
      %s22 = sphi 0, %s19
      %s23 = sphi 0, %s20
      %s24 = sphi 0, %s21
      %s40 = sphi 0, %s42
      %s43 = sphi 0, %s40
      %s44 = sphi 0, %s43
      %s60 = sphi 0, %s44
      %s68 = sphi 0, %s70
      %s71 = sphi 0, %s68
      %s72 = sphi 0, %s71
      %s88 = sphi 0, %s72
      %s96 = sphi 0, %s98
      %s99 = sphi 0, %s96
      %s100 = sphi 0, %s99
      %s116 = sphi 0, %s100
      %s124 = sphi 0, %s126
      %s127 = sphi 0, %s124
      %s128 = sphi 0, %s127
      %s144 = sphi 0, %s128
    $region4: #{transformer_block_forward.14} parent=1 // loop_header_branch
      %12 = sbr.rel (%p10) target = $region8
    $region5: #{transformer_block_forward.14} parent=1 // loop_body
      %s14 = ssub.s32 %s9, 1
      %s15 = ssub.s32 %s9, 2
      %s25 = sadd.s32 1, %s18
      %p26 = scmp.ge.s32.totalorder %s25, 1
      %s27 = scalar_select %p26, 0, %s25
      %s28 = sadd.s32 1, %s17
      %s29 = scalar_select %p26, %s28, %s17
      %p30 = scmp.ge.s32.totalorder %s29, 2
      %s31 = scalar_select %p30, 0, %s29
      %s32 = sadd.s32 1, %s16
      %s33 = scalar_select %p30, %s32, %s16
      %p34 = scmp.ge.s32.totalorder %s33, 1
      %s35 = scalar_select %p34, 0, %s33
      %s36 = ssub.s32 %s16, %s35
      %s37 = ssub.s32 %s18, %s27
      %s38 = sor.u32 %s36, %s37
      %p39 = scmp.eq.s32.totalorder %s38, 0
      %s41 = sadd.s32 %s40, 1
      %s42 = scalar_select %p39, %s40, %s41
      %p45 = pneg %p39
      %p46 = scmp.eq.s32.totalorder %s9, 1
      %p47 = por %p45, %p46
      %p48 = scmp.ne.s32.totalorder %s40, %s43
      %p49 = scmp.eq.s32.totalorder %s9, 0
      %p50 = por %p48, %p49
      %p51 = scmp.ne.s32.totalorder %s40, %s43
      %p52 = scmp.eq.s32.totalorder %s14, 1
      %p53 = por %p51, %p52
      %p54 = scmp.ne.s32.totalorder %s43, %s44
      %p55 = scmp.eq.s32.totalorder %s14, 0
      %p56 = por %p54, %p55
      %p57 = scmp.ne.s32.totalorder %s43, %s44
      %p58 = scmp.eq.s32.totalorder %s15, 1
      %p59 = por %p57, %p58
      %p61 = scmp.ne.s32.totalorder %s44, %s60
      %p62 = scmp.eq.s32.totalorder %s15, 0
      %p63 = por %p61, %p62
      %s64 = ssub.s32 %s18, %s27
      %s65 = ssub.s32 %s17, %s31
      %s66 = sor.u32 %s64, %s65
      %p67 = scmp.eq.s32.totalorder %s66, 0
      %s69 = sadd.s32 %s68, 1
      %s70 = scalar_select %p67, %s68, %s69
      %p73 = pneg %p67
      %p74 = scmp.eq.s32.totalorder %s9, 1
      %p75 = por %p73, %p74
      %p76 = scmp.ne.s32.totalorder %s68, %s71
      %p77 = scmp.eq.s32.totalorder %s9, 0
      %p78 = por %p76, %p77
      %p79 = scmp.ne.s32.totalorder %s68, %s71
      %p80 = scmp.eq.s32.totalorder %s14, 1
      %p81 = por %p79, %p80
      %p82 = scmp.ne.s32.totalorder %s71, %s72
      %p83 = scmp.eq.s32.totalorder %s14, 0
      %p84 = por %p82, %p83
      %p85 = scmp.ne.s32.totalorder %s71, %s72
      %p86 = scmp.eq.s32.totalorder %s15, 1
      %p87 = por %p85, %p86
      %p89 = scmp.ne.s32.totalorder %s72, %s88
      %p90 = scmp.eq.s32.totalorder %s15, 0
      %p91 = por %p89, %p90
      %s92 = ssub.s32 %s18, %s27
      %s93 = ssub.s32 %s17, %s31
      %s94 = sor.u32 %s92, %s93
      %p95 = scmp.eq.s32.totalorder %s94, 0
      %s97 = sadd.s32 %s96, 1
      %s98 = scalar_select %p95, %s96, %s97
      %p101 = pneg %p95
      %p102 = scmp.eq.s32.totalorder %s9, 1
      %p103 = por %p101, %p102
      %p104 = scmp.ne.s32.totalorder %s96, %s99
      %p105 = scmp.eq.s32.totalorder %s9, 0
      %p106 = por %p104, %p105
      %p107 = scmp.ne.s32.totalorder %s96, %s99
      %p108 = scmp.eq.s32.totalorder %s14, 1
      %p109 = por %p107, %p108
      %p110 = scmp.ne.s32.totalorder %s99, %s100
      %p111 = scmp.eq.s32.totalorder %s14, 0
      %p112 = por %p110, %p111
      %p113 = scmp.ne.s32.totalorder %s99, %s100
      %p114 = scmp.eq.s32.totalorder %s15, 1
      %p115 = por %p113, %p114
      %p117 = scmp.ne.s32.totalorder %s100, %s116
      %p118 = scmp.eq.s32.totalorder %s15, 0
      %p119 = por %p117, %p118
      %s120 = ssub.s32 %s16, %s35
      %s121 = ssub.s32 %s17, %s31
      %s122 = sor.u32 %s120, %s121
      %p123 = scmp.eq.s32.totalorder %s122, 0
      %s125 = sadd.s32 %s124, 1
      %s126 = scalar_select %p123, %s124, %s125
      %p129 = pneg %p123
      %p130 = scmp.eq.s32.totalorder %s9, 1
      %p131 = por %p129, %p130
      %p132 = scmp.ne.s32.totalorder %s124, %s127
      %p133 = scmp.eq.s32.totalorder %s9, 0
      %p134 = por %p132, %p133
      %p135 = scmp.ne.s32.totalorder %s124, %s127
      %p136 = scmp.eq.s32.totalorder %s14, 1
      %p137 = por %p135, %p136
      %p138 = scmp.ne.s32.totalorder %s127, %s128
      %p139 = scmp.eq.s32.totalorder %s14, 0
      %p140 = por %p138, %p139
      %p141 = scmp.ne.s32.totalorder %s127, %s128
      %p142 = scmp.eq.s32.totalorder %s15, 1
      %p143 = por %p141, %p142
      %p145 = scmp.ne.s32.totalorder %s128, %s144
      %p146 = scmp.eq.s32.totalorder %s15, 0
      %p147 = por %p145, %p146
      %p148 = scmp.le.s32.totalorder 1, %s9
      %p149 = scmp.lt.s32.totalorder %s9, 3
      %p150 = pnand %p148, %p149
      %p151 = pneg %p150
      // Predicated region
      $region9: #{transformer_block_forward.14} parent=5 // pred_check
        _
      $region10: #{transformer_block_forward.14} parent=5 // pred_check_branch
        %153 = sbr.rel (%p150) target = $region12
      $region11: #{transformer_block_forward.14} parent=5 // pred_region
        %s154 = ssub.s32 %s9, 1
        // Predicated region
        $region13: #{transformer_block_forward.14} parent=11 // pred_check
          %p155 = pneg %p56
        $region14: #{transformer_block_forward.14} parent=11 // pred_check_branch
          %157 = sbr.rel (%p155) target = $region16
        $region15: #{transformer_block_forward.14} parent=11 // pred_region
          %s158 = smul.u32 8, %s19
          %s159 = smul.u32 2, %s21
          %p160 = scmp.lt.s32.totalorder %s158, 7
          %s161 = scalar_select %p160, %s158, 7
          %p162 = scmp.lt.s32.totalorder %s159, 1
          %s163 = scalar_select %p162, %s159, 1
          %s164 = smul.addr %s161, 2
          %s165 = sadd.s32 %s163, %s164
          %s166 = smul.addr %s165, 4
          %s167 = scalar_lea.vmem %s0, %s166
          %s168 = smul.u32 8, %s19
          %s169 = smul.u32 2, %s21
        $region16: #{transformer_block_forward.14} parent=11 // pred_fallthru
          _
      $region12: #{transformer_block_forward.14} parent=5 // pred_fallthru
        _
      %p170 = scmp.lt.s32.totalorder %s9, 2
      // Predicated region
      $region17: #{transformer_block_forward.14} parent=5 // pred_check
        %p171 = pneg %p170
      $region18: #{transformer_block_forward.14} parent=5 // pred_check_branch
        %173 = sbr.rel (%p171) target = $region20
      $region19: #{transformer_block_forward.14} parent=5 // pred_region
        // Predicated region
        $region21: #{transformer_block_forward.14} parent=19 // pred_check
          %p174 = pneg %p78
        $region22: #{transformer_block_forward.14} parent=19 // pred_check_branch
          %176 = sbr.rel (%p174) target = $region24
        $region23: #{transformer_block_forward.14} parent=19 // pred_region
          %s177 = sand.u32 %s68, 1
          %s178 = sand.u32 %s68, 1
          %s179 = smul.addr %s178, 384
          %s180 = scalar_lea.vmem [#allocation4], %s179
          %s181 = smul.u32 32, %s18
          %s182 = smul.u32 3, %s17
          %s183 = smul.addr %s181, 6
          %s184 = sadd.s32 %s182, %s183
          %s185 = smul.addr %s184, 4
          %s186 = scalar_lea.vmem %s1, %s185
          // Predicated region
          $region25: #{transformer_block_forward.14} parent=23 // pred_check
            _
          $region26: #{transformer_block_forward.14} parent=23 // pred_check_branch
            %188 = sbr.rel (0) target = $region28
          $region27: #{transformer_block_forward.14} parent=23 // pred_region
            // Predicated region
            $region29: #{transformer_block_forward.14} parent=27 // pred_check
              _
            $region30: #{transformer_block_forward.14} parent=27 // pred_check_branch
              %190 = sbr.rel (0) target = $region32
            $region31: #{transformer_block_forward.14} parent=27 // pred_region
              %s191 = scalar_lea.vmem %s186, 8
              %s192 = scalar_lea.vmem %s180, 8 [#allocation4]
              loop: start=0, step=1, limit=1
              $region33: #{transformer_block_forward.14} parent=31 // loop_pre_header
                _
              $region34: #{transformer_block_forward.14} parent=31 // loop_header
                %s194 = sphi 0, %s198
                %p195 = scmp.ge.s32.totalorder %s194, 1
                %s199 = sphi %s186, %s186
                %s200 = sphi %s180, %s180
              $region35: #{transformer_block_forward.14} parent=31 // loop_header_branch
                %197 = sbr.rel (%p195) target = $region39
              $region36: #{transformer_block_forward.14} parent=31 // loop_body
                %v201 = vld [vmem:[%s199] sm:$0xff]
                %202 = vst [vmem:[%s200] sm:$0xff] %v201
                %v203 = vld [vmem:[%s199 + $0x18] sm:$0xff]
                %204 = vst [vmem:[%s200 + $0xc] sm:$0xff] %v203
                %v205 = vld [vmem:[%s199 + $0x30] sm:$0xff]
                %206 = vst [vmem:[%s200 + $0x18] sm:$0xff] %v205
                %v207 = vld [vmem:[%s199 + $0x48] sm:$0xff]
                %208 = vst [vmem:[%s200 + $0x24] sm:$0xff] %v207
                %v209 = vld [vmem:[%s199 + $0x60] sm:$0xff]
                %210 = vst [vmem:[%s200 + $0x30] sm:$0xff] %v209
                %v211 = vld [vmem:[%s199 + $0x78] sm:$0xff]
                %212 = vst [vmem:[%s200 + $0x3c] sm:$0xff] %v211
                %v213 = vld [vmem:[%s199 + $0x90] sm:$0xff]
                %214 = vst [vmem:[%s200 + $0x48] sm:$0xff] %v213
                %v215 = vld [vmem:[%s199 + $0xa8] sm:$0xff]
                %216 = vst [vmem:[%s200 + $0x54] sm:$0xff] %v215
                %v217 = vld [vmem:[%s199 + $0xc0] sm:$0xff]
                %218 = vst [vmem:[%s200 + $0x60] sm:$0xff] %v217
                %v219 = vld [vmem:[%s199 + $0xd8] sm:$0xff]
                %220 = vst [vmem:[%s200 + $0x6c] sm:$0xff] %v219
                %v221 = vld [vmem:[%s199 + $0xf0] sm:$0xff]
                %222 = vst [vmem:[%s200 + $0x78] sm:$0xff] %v221
                %v223 = vld [vmem:[%s199 + $0x108] sm:$0xff]
                %224 = vst [vmem:[%s200 + $0x84] sm:$0xff] %v223
                %v225 = vld [vmem:[%s199 + $0x120] sm:$0xff]
                %226 = vst [vmem:[%s200 + $0x90] sm:$0xff] %v225
                %v227 = vld [vmem:[%s199 + $0x138] sm:$0xff]
                %228 = vst [vmem:[%s200 + $0x9c] sm:$0xff] %v227
                %v229 = vld [vmem:[%s199 + $0x150] sm:$0xff]
                %230 = vst [vmem:[%s200 + $0xa8] sm:$0xff] %v229
                %v231 = vld [vmem:[%s199 + $0x168] sm:$0xff]
                %232 = vst [vmem:[%s200 + $0xb4] sm:$0xff] %v231
                %v233 = vld [vmem:[%s199 + $0x180] sm:$0xff]
                %234 = vst [vmem:[%s200 + $0xc0] sm:$0xff] %v233
                %v235 = vld [vmem:[%s199 + $0x198] sm:$0xff]
                %236 = vst [vmem:[%s200 + $0xcc] sm:$0xff] %v235
                %v237 = vld [vmem:[%s199 + $0x1b0] sm:$0xff]
                %238 = vst [vmem:[%s200 + $0xd8] sm:$0xff] %v237
                %v239 = vld [vmem:[%s199 + $0x1c8] sm:$0xff]
                %240 = vst [vmem:[%s200 + $0xe4] sm:$0xff] %v239
                %v241 = vld [vmem:[%s199 + $0x1e0] sm:$0xff]
                %242 = vst [vmem:[%s200 + $0xf0] sm:$0xff] %v241
                %v243 = vld [vmem:[%s199 + $0x1f8] sm:$0xff]
                %244 = vst [vmem:[%s200 + $0xfc] sm:$0xff] %v243
                %v245 = vld [vmem:[%s199 + $0x210] sm:$0xff]
                %246 = vst [vmem:[%s200 + $0x108] sm:$0xff] %v245
                %v247 = vld [vmem:[%s199 + $0x228] sm:$0xff]
                %248 = vst [vmem:[%s200 + $0x114] sm:$0xff] %v247
                %v249 = vld [vmem:[%s199 + $0x240] sm:$0xff]
                %250 = vst [vmem:[%s200 + $0x120] sm:$0xff] %v249
                %v251 = vld [vmem:[%s199 + $0x258] sm:$0xff]
                %252 = vst [vmem:[%s200 + $0x12c] sm:$0xff] %v251
                %v253 = vld [vmem:[%s199 + $0x270] sm:$0xff]
                %254 = vst [vmem:[%s200 + $0x138] sm:$0xff] %v253
                %v255 = vld [vmem:[%s199 + $0x288] sm:$0xff]
                %256 = vst [vmem:[%s200 + $0x144] sm:$0xff] %v255
                %v257 = vld [vmem:[%s199 + $0x2a0] sm:$0xff]
                %258 = vst [vmem:[%s200 + $0x150] sm:$0xff] %v257
                %v259 = vld [vmem:[%s199 + $0x2b8] sm:$0xff]
                %260 = vst [vmem:[%s200 + $0x15c] sm:$0xff] %v259
                %v261 = vld [vmem:[%s199 + $0x2d0] sm:$0xff]
                %262 = vst [vmem:[%s200 + $0x168] sm:$0xff] %v261
                %v263 = vld [vmem:[%s199 + $0x2e8] sm:$0xff]
                %264 = vst [vmem:[%s200 + $0x174] sm:$0xff] %v263
              $region37: #{transformer_block_forward.14} parent=31 // loop_footer
                %s198 = sadd.s32 1, %s194
              $region38: #{transformer_block_forward.14} parent=31 // loop_footer_branch
                %193 = sbr.rel target = $region34
              $region39: #{transformer_block_forward.14} parent=31 // loop_exit
                _
              loop: start=0, step=1, limit=1
              $region40: #{transformer_block_forward.14} parent=31 // loop_pre_header
                _
              $region41: #{transformer_block_forward.14} parent=31 // loop_header
                %s267 = sphi 0, %s271
                %p268 = scmp.ge.s32.totalorder %s267, 1
                %s272 = sphi %s191, %s191
                %s273 = sphi %s192, %s192
              $region42: #{transformer_block_forward.14} parent=31 // loop_header_branch
                %270 = sbr.rel (%p268) target = $region46
              $region43: #{transformer_block_forward.14} parent=31 // loop_body
                %v274 = vld [vmem:[%s272] sm:$0xf]
                %275 = vst [vmem:[%s273] sm:$0xf] %v274
                %v276 = vld [vmem:[%s272 + $0x18] sm:$0xf]
                %277 = vst [vmem:[%s273 + $0xc] sm:$0xf] %v276
                %v278 = vld [vmem:[%s272 + $0x30] sm:$0xf]
                %279 = vst [vmem:[%s273 + $0x18] sm:$0xf] %v278
                %v280 = vld [vmem:[%s272 + $0x48] sm:$0xf]
                %281 = vst [vmem:[%s273 + $0x24] sm:$0xf] %v280
                %v282 = vld [vmem:[%s272 + $0x60] sm:$0xf]
                %283 = vst [vmem:[%s273 + $0x30] sm:$0xf] %v282
                %v284 = vld [vmem:[%s272 + $0x78] sm:$0xf]
                %285 = vst [vmem:[%s273 + $0x3c] sm:$0xf] %v284
                %v286 = vld [vmem:[%s272 + $0x90] sm:$0xf]
                %287 = vst [vmem:[%s273 + $0x48] sm:$0xf] %v286
                %v288 = vld [vmem:[%s272 + $0xa8] sm:$0xf]
                %289 = vst [vmem:[%s273 + $0x54] sm:$0xf] %v288
                %v290 = vld [vmem:[%s272 + $0xc0] sm:$0xf]
                %291 = vst [vmem:[%s273 + $0x60] sm:$0xf] %v290
                %v292 = vld [vmem:[%s272 + $0xd8] sm:$0xf]
                %293 = vst [vmem:[%s273 + $0x6c] sm:$0xf] %v292
                %v294 = vld [vmem:[%s272 + $0xf0] sm:$0xf]
                %295 = vst [vmem:[%s273 + $0x78] sm:$0xf] %v294
                %v296 = vld [vmem:[%s272 + $0x108] sm:$0xf]
                %297 = vst [vmem:[%s273 + $0x84] sm:$0xf] %v296
                %v298 = vld [vmem:[%s272 + $0x120] sm:$0xf]
                %299 = vst [vmem:[%s273 + $0x90] sm:$0xf] %v298
                %v300 = vld [vmem:[%s272 + $0x138] sm:$0xf]
                %301 = vst [vmem:[%s273 + $0x9c] sm:$0xf] %v300
                %v302 = vld [vmem:[%s272 + $0x150] sm:$0xf]
                %303 = vst [vmem:[%s273 + $0xa8] sm:$0xf] %v302
                %v304 = vld [vmem:[%s272 + $0x168] sm:$0xf]
                %305 = vst [vmem:[%s273 + $0xb4] sm:$0xf] %v304
                %v306 = vld [vmem:[%s272 + $0x180] sm:$0xf]
                %307 = vst [vmem:[%s273 + $0xc0] sm:$0xf] %v306
                %v308 = vld [vmem:[%s272 + $0x198] sm:$0xf]
                %309 = vst [vmem:[%s273 + $0xcc] sm:$0xf] %v308
                %v310 = vld [vmem:[%s272 + $0x1b0] sm:$0xf]
                %311 = vst [vmem:[%s273 + $0xd8] sm:$0xf] %v310
                %v312 = vld [vmem:[%s272 + $0x1c8] sm:$0xf]
                %313 = vst [vmem:[%s273 + $0xe4] sm:$0xf] %v312
                %v314 = vld [vmem:[%s272 + $0x1e0] sm:$0xf]
                %315 = vst [vmem:[%s273 + $0xf0] sm:$0xf] %v314
                %v316 = vld [vmem:[%s272 + $0x1f8] sm:$0xf]
                %317 = vst [vmem:[%s273 + $0xfc] sm:$0xf] %v316
                %v318 = vld [vmem:[%s272 + $0x210] sm:$0xf]
                %319 = vst [vmem:[%s273 + $0x108] sm:$0xf] %v318
                %v320 = vld [vmem:[%s272 + $0x228] sm:$0xf]
                %321 = vst [vmem:[%s273 + $0x114] sm:$0xf] %v320
                %v322 = vld [vmem:[%s272 + $0x240] sm:$0xf]
                %323 = vst [vmem:[%s273 + $0x120] sm:$0xf] %v322
                %v324 = vld [vmem:[%s272 + $0x258] sm:$0xf]
                %325 = vst [vmem:[%s273 + $0x12c] sm:$0xf] %v324
                %v326 = vld [vmem:[%s272 + $0x270] sm:$0xf]
                %327 = vst [vmem:[%s273 + $0x138] sm:$0xf] %v326
                %v328 = vld [vmem:[%s272 + $0x288] sm:$0xf]
                %329 = vst [vmem:[%s273 + $0x144] sm:$0xf] %v328
                %v330 = vld [vmem:[%s272 + $0x2a0] sm:$0xf]
                %331 = vst [vmem:[%s273 + $0x150] sm:$0xf] %v330
                %v332 = vld [vmem:[%s272 + $0x2b8] sm:$0xf]
                %333 = vst [vmem:[%s273 + $0x15c] sm:$0xf] %v332
                %v334 = vld [vmem:[%s272 + $0x2d0] sm:$0xf]
                %335 = vst [vmem:[%s273 + $0x168] sm:$0xf] %v334
                %v336 = vld [vmem:[%s272 + $0x2e8] sm:$0xf]
                %337 = vst [vmem:[%s273 + $0x174] sm:$0xf] %v336
              $region44: #{transformer_block_forward.14} parent=31 // loop_footer
                %s271 = sadd.s32 1, %s267
              $region45: #{transformer_block_forward.14} parent=31 // loop_footer_branch
                %266 = sbr.rel target = $region41
              $region46: #{transformer_block_forward.14} parent=31 // loop_exit
                _
            $region32: #{transformer_block_forward.14} parent=27 // pred_fallthru
              _
          $region28: #{transformer_block_forward.14} parent=23 // pred_fallthru
            _
          %338 = vnop
        $region24: #{transformer_block_forward.14} parent=19 // pred_fallthru
          _
        // Predicated region
        $region47: #{transformer_block_forward.14} parent=19 // pred_check
          %p339 = pneg %p106
        $region48: #{transformer_block_forward.14} parent=19 // pred_check_branch
          %341 = sbr.rel (%p339) target = $region50
        $region49: #{transformer_block_forward.14} parent=19 // pred_region
          %s342 = sand.u32 %s96, 1
          %s343 = sand.u32 %s96, 1
          %s344 = smul.addr %s343, 384
          %s345 = scalar_lea.vmem [#allocation5], %s344
          %s346 = smul.u32 32, %s18
          %s347 = smul.u32 3, %s17
          %s348 = smul.addr %s346, 6
          %s349 = sadd.s32 %s347, %s348
          %s350 = smul.addr %s349, 4
          %s351 = scalar_lea.vmem %s2, %s350
          // Predicated region
          $region51: #{transformer_block_forward.14} parent=49 // pred_check
            _
          $region52: #{transformer_block_forward.14} parent=49 // pred_check_branch
            %353 = sbr.rel (0) target = $region54
          $region53: #{transformer_block_forward.14} parent=49 // pred_region
            // Predicated region
            $region55: #{transformer_block_forward.14} parent=53 // pred_check
              _
            $region56: #{transformer_block_forward.14} parent=53 // pred_check_branch
              %355 = sbr.rel (0) target = $region58
            $region57: #{transformer_block_forward.14} parent=53 // pred_region
              %s356 = scalar_lea.vmem %s351, 8
              %s357 = scalar_lea.vmem %s345, 8 [#allocation5]
              loop: start=0, step=1, limit=1
              $region59: #{transformer_block_forward.14} parent=57 // loop_pre_header
                _
              $region60: #{transformer_block_forward.14} parent=57 // loop_header
                %s359 = sphi 0, %s363
                %p360 = scmp.ge.s32.totalorder %s359, 1
                %s364 = sphi %s351, %s351
                %s365 = sphi %s345, %s345
              $region61: #{transformer_block_forward.14} parent=57 // loop_header_branch
                %362 = sbr.rel (%p360) target = $region65
              $region62: #{transformer_block_forward.14} parent=57 // loop_body
                %v366 = vld [vmem:[%s364] sm:$0xff]
                %367 = vst [vmem:[%s365] sm:$0xff] %v366
                %v368 = vld [vmem:[%s364 + $0x18] sm:$0xff]
                %369 = vst [vmem:[%s365 + $0xc] sm:$0xff] %v368
                %v370 = vld [vmem:[%s364 + $0x30] sm:$0xff]
                %371 = vst [vmem:[%s365 + $0x18] sm:$0xff] %v370
                %v372 = vld [vmem:[%s364 + $0x48] sm:$0xff]
                %373 = vst [vmem:[%s365 + $0x24] sm:$0xff] %v372
                %v374 = vld [vmem:[%s364 + $0x60] sm:$0xff]
                %375 = vst [vmem:[%s365 + $0x30] sm:$0xff] %v374
                %v376 = vld [vmem:[%s364 + $0x78] sm:$0xff]
                %377 = vst [vmem:[%s365 + $0x3c] sm:$0xff] %v376
                %v378 = vld [vmem:[%s364 + $0x90] sm:$0xff]
                %379 = vst [vmem:[%s365 + $0x48] sm:$0xff] %v378
                %v380 = vld [vmem:[%s364 + $0xa8] sm:$0xff]
                %381 = vst [vmem:[%s365 + $0x54] sm:$0xff] %v380
                %v382 = vld [vmem:[%s364 + $0xc0] sm:$0xff]
                %383 = vst [vmem:[%s365 + $0x60] sm:$0xff] %v382
                %v384 = vld [vmem:[%s364 + $0xd8] sm:$0xff]
                %385 = vst [vmem:[%s365 + $0x6c] sm:$0xff] %v384
                %v386 = vld [vmem:[%s364 + $0xf0] sm:$0xff]
                %387 = vst [vmem:[%s365 + $0x78] sm:$0xff] %v386
                %v388 = vld [vmem:[%s364 + $0x108] sm:$0xff]
                %389 = vst [vmem:[%s365 + $0x84] sm:$0xff] %v388
                %v390 = vld [vmem:[%s364 + $0x120] sm:$0xff]
                %391 = vst [vmem:[%s365 + $0x90] sm:$0xff] %v390
                %v392 = vld [vmem:[%s364 + $0x138] sm:$0xff]
                %393 = vst [vmem:[%s365 + $0x9c] sm:$0xff] %v392
                %v394 = vld [vmem:[%s364 + $0x150] sm:$0xff]
                %395 = vst [vmem:[%s365 + $0xa8] sm:$0xff] %v394
                %v396 = vld [vmem:[%s364 + $0x168] sm:$0xff]
                %397 = vst [vmem:[%s365 + $0xb4] sm:$0xff] %v396
                %v398 = vld [vmem:[%s364 + $0x180] sm:$0xff]
                %399 = vst [vmem:[%s365 + $0xc0] sm:$0xff] %v398
                %v400 = vld [vmem:[%s364 + $0x198] sm:$0xff]
                %401 = vst [vmem:[%s365 + $0xcc] sm:$0xff] %v400
                %v402 = vld [vmem:[%s364 + $0x1b0] sm:$0xff]
                %403 = vst [vmem:[%s365 + $0xd8] sm:$0xff] %v402
                %v404 = vld [vmem:[%s364 + $0x1c8] sm:$0xff]
                %405 = vst [vmem:[%s365 + $0xe4] sm:$0xff] %v404
                %v406 = vld [vmem:[%s364 + $0x1e0] sm:$0xff]
                %407 = vst [vmem:[%s365 + $0xf0] sm:$0xff] %v406
                %v408 = vld [vmem:[%s364 + $0x1f8] sm:$0xff]
                %409 = vst [vmem:[%s365 + $0xfc] sm:$0xff] %v408
                %v410 = vld [vmem:[%s364 + $0x210] sm:$0xff]
                %411 = vst [vmem:[%s365 + $0x108] sm:$0xff] %v410
                %v412 = vld [vmem:[%s364 + $0x228] sm:$0xff]
                %413 = vst [vmem:[%s365 + $0x114] sm:$0xff] %v412
                %v414 = vld [vmem:[%s364 + $0x240] sm:$0xff]
                %415 = vst [vmem:[%s365 + $0x120] sm:$0xff] %v414
                %v416 = vld [vmem:[%s364 + $0x258] sm:$0xff]
                %417 = vst [vmem:[%s365 + $0x12c] sm:$0xff] %v416
                %v418 = vld [vmem:[%s364 + $0x270] sm:$0xff]
                %419 = vst [vmem:[%s365 + $0x138] sm:$0xff] %v418
                %v420 = vld [vmem:[%s364 + $0x288] sm:$0xff]
                %421 = vst [vmem:[%s365 + $0x144] sm:$0xff] %v420
                %v422 = vld [vmem:[%s364 + $0x2a0] sm:$0xff]
                %423 = vst [vmem:[%s365 + $0x150] sm:$0xff] %v422
                %v424 = vld [vmem:[%s364 + $0x2b8] sm:$0xff]
                %425 = vst [vmem:[%s365 + $0x15c] sm:$0xff] %v424
                %v426 = vld [vmem:[%s364 + $0x2d0] sm:$0xff]
                %427 = vst [vmem:[%s365 + $0x168] sm:$0xff] %v426
                %v428 = vld [vmem:[%s364 + $0x2e8] sm:$0xff]
                %429 = vst [vmem:[%s365 + $0x174] sm:$0xff] %v428
              $region63: #{transformer_block_forward.14} parent=57 // loop_footer
                %s363 = sadd.s32 1, %s359
              $region64: #{transformer_block_forward.14} parent=57 // loop_footer_branch
                %358 = sbr.rel target = $region60
              $region65: #{transformer_block_forward.14} parent=57 // loop_exit
                _
              loop: start=0, step=1, limit=1
              $region66: #{transformer_block_forward.14} parent=57 // loop_pre_header
                _
              $region67: #{transformer_block_forward.14} parent=57 // loop_header
                %s432 = sphi 0, %s436
                %p433 = scmp.ge.s32.totalorder %s432, 1
                %s437 = sphi %s356, %s356
                %s438 = sphi %s357, %s357
              $region68: #{transformer_block_forward.14} parent=57 // loop_header_branch
                %435 = sbr.rel (%p433) target = $region72
              $region69: #{transformer_block_forward.14} parent=57 // loop_body
                %v439 = vld [vmem:[%s437] sm:$0xf]
                %440 = vst [vmem:[%s438] sm:$0xf] %v439
                %v441 = vld [vmem:[%s437 + $0x18] sm:$0xf]
                %442 = vst [vmem:[%s438 + $0xc] sm:$0xf] %v441
                %v443 = vld [vmem:[%s437 + $0x30] sm:$0xf]
                %444 = vst [vmem:[%s438 + $0x18] sm:$0xf] %v443
                %v445 = vld [vmem:[%s437 + $0x48] sm:$0xf]
                %446 = vst [vmem:[%s438 + $0x24] sm:$0xf] %v445
                %v447 = vld [vmem:[%s437 + $0x60] sm:$0xf]
                %448 = vst [vmem:[%s438 + $0x30] sm:$0xf] %v447
                %v449 = vld [vmem:[%s437 + $0x78] sm:$0xf]
                %450 = vst [vmem:[%s438 + $0x3c] sm:$0xf] %v449
                %v451 = vld [vmem:[%s437 + $0x90] sm:$0xf]
                %452 = vst [vmem:[%s438 + $0x48] sm:$0xf] %v451
                %v453 = vld [vmem:[%s437 + $0xa8] sm:$0xf]
                %454 = vst [vmem:[%s438 + $0x54] sm:$0xf] %v453
                %v455 = vld [vmem:[%s437 + $0xc0] sm:$0xf]
                %456 = vst [vmem:[%s438 + $0x60] sm:$0xf] %v455
                %v457 = vld [vmem:[%s437 + $0xd8] sm:$0xf]
                %458 = vst [vmem:[%s438 + $0x6c] sm:$0xf] %v457
                %v459 = vld [vmem:[%s437 + $0xf0] sm:$0xf]
                %460 = vst [vmem:[%s438 + $0x78] sm:$0xf] %v459
                %v461 = vld [vmem:[%s437 + $0x108] sm:$0xf]
                %462 = vst [vmem:[%s438 + $0x84] sm:$0xf] %v461
                %v463 = vld [vmem:[%s437 + $0x120] sm:$0xf]
                %464 = vst [vmem:[%s438 + $0x90] sm:$0xf] %v463
                %v465 = vld [vmem:[%s437 + $0x138] sm:$0xf]
                %466 = vst [vmem:[%s438 + $0x9c] sm:$0xf] %v465
                %v467 = vld [vmem:[%s437 + $0x150] sm:$0xf]
                %468 = vst [vmem:[%s438 + $0xa8] sm:$0xf] %v467
                %v469 = vld [vmem:[%s437 + $0x168] sm:$0xf]
                %470 = vst [vmem:[%s438 + $0xb4] sm:$0xf] %v469
                %v471 = vld [vmem:[%s437 + $0x180] sm:$0xf]
                %472 = vst [vmem:[%s438 + $0xc0] sm:$0xf] %v471
                %v473 = vld [vmem:[%s437 + $0x198] sm:$0xf]
                %474 = vst [vmem:[%s438 + $0xcc] sm:$0xf] %v473
                %v475 = vld [vmem:[%s437 + $0x1b0] sm:$0xf]
                %476 = vst [vmem:[%s438 + $0xd8] sm:$0xf] %v475
                %v477 = vld [vmem:[%s437 + $0x1c8] sm:$0xf]
                %478 = vst [vmem:[%s438 + $0xe4] sm:$0xf] %v477
                %v479 = vld [vmem:[%s437 + $0x1e0] sm:$0xf]
                %480 = vst [vmem:[%s438 + $0xf0] sm:$0xf] %v479
                %v481 = vld [vmem:[%s437 + $0x1f8] sm:$0xf]
                %482 = vst [vmem:[%s438 + $0xfc] sm:$0xf] %v481
                %v483 = vld [vmem:[%s437 + $0x210] sm:$0xf]
                %484 = vst [vmem:[%s438 + $0x108] sm:$0xf] %v483
                %v485 = vld [vmem:[%s437 + $0x228] sm:$0xf]
                %486 = vst [vmem:[%s438 + $0x114] sm:$0xf] %v485
                %v487 = vld [vmem:[%s437 + $0x240] sm:$0xf]
                %488 = vst [vmem:[%s438 + $0x120] sm:$0xf] %v487
                %v489 = vld [vmem:[%s437 + $0x258] sm:$0xf]
                %490 = vst [vmem:[%s438 + $0x12c] sm:$0xf] %v489
                %v491 = vld [vmem:[%s437 + $0x270] sm:$0xf]
                %492 = vst [vmem:[%s438 + $0x138] sm:$0xf] %v491
                %v493 = vld [vmem:[%s437 + $0x288] sm:$0xf]
                %494 = vst [vmem:[%s438 + $0x144] sm:$0xf] %v493
                %v495 = vld [vmem:[%s437 + $0x2a0] sm:$0xf]
                %496 = vst [vmem:[%s438 + $0x150] sm:$0xf] %v495
                %v497 = vld [vmem:[%s437 + $0x2b8] sm:$0xf]
                %498 = vst [vmem:[%s438 + $0x15c] sm:$0xf] %v497
                %v499 = vld [vmem:[%s437 + $0x2d0] sm:$0xf]
                %500 = vst [vmem:[%s438 + $0x168] sm:$0xf] %v499
                %v501 = vld [vmem:[%s437 + $0x2e8] sm:$0xf]
                %502 = vst [vmem:[%s438 + $0x174] sm:$0xf] %v501
              $region70: #{transformer_block_forward.14} parent=57 // loop_footer
                %s436 = sadd.s32 1, %s432
              $region71: #{transformer_block_forward.14} parent=57 // loop_footer_branch
                %431 = sbr.rel target = $region67
              $region72: #{transformer_block_forward.14} parent=57 // loop_exit
                _
            $region58: #{transformer_block_forward.14} parent=53 // pred_fallthru
              _
          $region54: #{transformer_block_forward.14} parent=49 // pred_fallthru
            _
          %503 = vnop
        $region50: #{transformer_block_forward.14} parent=19 // pred_fallthru
          _
      $region20: #{transformer_block_forward.14} parent=5 // pred_fallthru
        _
      %p504 = scmp.le.s32.totalorder 1, %s9
      %p505 = scmp.lt.s32.totalorder %s9, 3
      %p506 = pnand %p504, %p505
      %p507 = pneg %p506
      // Predicated region
      $region73: #{transformer_block_forward.14} parent=5 // pred_check
        _
      $region74: #{transformer_block_forward.14} parent=5 // pred_check_branch
        %509 = sbr.rel (%p506) target = $region76
      $region75: #{transformer_block_forward.14} parent=5 // pred_region
        %s510 = ssub.s32 %s9, 1
        %s511 = sand.u32 %s71, 1
        %s512 = sand.u32 %s71, 1
        %s513 = smul.addr %s512, 384
        %s514 = scalar_lea.vmem [#allocation4], %s513
        // Predicated region
        $region77: #{transformer_block_forward.14} parent=75 // pred_check
          %p515 = pneg %p84
        $region78: #{transformer_block_forward.14} parent=75 // pred_check_branch
          %517 = sbr.rel (%p515) target = $region80
        $region79: #{transformer_block_forward.14} parent=75 // pred_region
          _
        $region80: #{transformer_block_forward.14} parent=75 // pred_fallthru
          _
        %s518 = sand.u32 %s99, 1
        %s519 = sand.u32 %s99, 1
        %s520 = smul.addr %s519, 384
        %s521 = scalar_lea.vmem [#allocation5], %s520
        // Predicated region
        $region81: #{transformer_block_forward.14} parent=75 // pred_check
          %p522 = pneg %p112
        $region82: #{transformer_block_forward.14} parent=75 // pred_check_branch
          %524 = sbr.rel (%p522) target = $region84
        $region83: #{transformer_block_forward.14} parent=75 // pred_region
          _
        $region84: #{transformer_block_forward.14} parent=75 // pred_fallthru
          _
        %s525 = smul.u32 8, %s19
        %s526 = smul.u32 2, %s21
        %p527 = scmp.lt.s32.totalorder %s525, 7
        %s528 = scalar_select %p527, %s525, 7
        %p529 = scmp.lt.s32.totalorder %s526, 1
        %s530 = scalar_select %p529, %s526, 1
        %s531 = smul.addr %s528, 2
        %s532 = sadd.s32 %s530, %s531
        %s533 = smul.addr %s532, 4
        %s534 = scalar_lea.vmem %s0, %s533
        %p535 = pneg %p56
        %p536 = pneg %p53
        %s537 = sand.u32 %s71, 1
        %s538 = sand.u32 %s71, 1
        %s539 = smul.addr %s538, 384
        %s540 = scalar_lea.vmem [#allocation4], %s539
        %p541 = pneg %p84
        %p542 = pneg %p81
        %s543 = sand.u32 %s99, 1
        %s544 = sand.u32 %s99, 1
        %s545 = smul.addr %s544, 384
        %s546 = scalar_lea.vmem [#allocation5], %s545
        %p547 = pneg %p112
        %p548 = pneg %p109
        %p549 = pneg %p140
        %p550 = pneg %p137
        %s551 = sand.u32 %s127, 1
        %s552 = sand.u32 %s127, 1
        %s553 = smul.addr %s552, 96
        %s554 = scalar_lea.vmem [#allocation6], %s553
        %s555 = smul.u32 8, %s19
        %s556 = smul.u32 2, %s21
        %p557 = scmp.lt.s32.totalorder %s555, 7
        %s558 = scalar_select %p557, %s555, 7
        %p559 = scmp.lt.s32.totalorder %s556, 1
        %s560 = scalar_select %p559, %s556, 1
        %s561 = smul.addr %s558, 2
        %s562 = sadd.s32 %s560, %s561
        %s563 = smul.addr %s562, 4
        %s564 = scalar_lea.vmem %s0, %s563
        %s565 = smul.u32 8, %s19
        %s566 = smul.u32 2, %s21
        %s567 = smul.u32 32, %s21
        %s568 = smul.u32 3, %s20
        %s569 = smul.u32 32, %s21
        %s570 = smul.u32 3, %s20
        %s571 = smul.u32 8, %s19
        %s572 = smul.u32 3, %s20
        %p574 = scmp.eq.s32.totalorder %s21, 0
        // Predicated region
        $region85: #{transformer_block_forward.14} parent=75 // pred_check
          %p575 = pneg %p574
        $region86: #{transformer_block_forward.14} parent=75 // pred_check_branch
          %577 = sbr.rel (%p575) target = $region88
        $region87: #{transformer_block_forward.14} parent=75 // pred_region
          %578 = vst [vmem:[#allocation2] sm:$0xff] 0.0
          %579 = vst [vmem:[#allocation2 + $0x8] sm:$0xff] 0.0
          %580 = vst [vmem:[#allocation2 + $0x10] sm:$0xff] 0.0
          %581 = vst [vmem:[#allocation2 + $0x18] sm:$0xff] 0.0
          %582 = vst [vmem:[#allocation2 + $0x20] sm:$0xff] 0.0
          %583 = vst [vmem:[#allocation2 + $0x28] sm:$0xff] 0.0
          %584 = vst [vmem:[#allocation2 + $0x30] sm:$0xff] 0.0
          %585 = vst [vmem:[#allocation2 + $0x38] sm:$0xff] 0.0
          %586 = vst [vmem:[#allocation2 + $0x40] sm:$0xff] 0.0
          %587 = vst [vmem:[#allocation2 + $0x48] sm:$0xff] 0.0
          %588 = vst [vmem:[#allocation2 + $0x50] sm:$0xff] 0.0
          %589 = vst [vmem:[#allocation2 + $0x58] sm:$0xff] 0.0
          %590 = vst [vmem:[#allocation2 + $0x60] sm:$0xff] 0.0
          %591 = vst [vmem:[#allocation2 + $0x68] sm:$0xff] 0.0
          %592 = vst [vmem:[#allocation2 + $0x70] sm:$0xff] 0.0
          %593 = vst [vmem:[#allocation2 + $0x78] sm:$0xff] 0.0
          %594 = vst [vmem:[#allocation2 + $0x80] sm:$0xff] 0.0
          %595 = vst [vmem:[#allocation2 + $0x88] sm:$0xff] 0.0
          %596 = vst [vmem:[#allocation2 + $0x90] sm:$0xff] 0.0
          %597 = vst [vmem:[#allocation2 + $0x98] sm:$0xff] 0.0
          %598 = vst [vmem:[#allocation2 + $0xa0] sm:$0xff] 0.0
          %599 = vst [vmem:[#allocation2 + $0xa8] sm:$0xff] 0.0
          %600 = vst [vmem:[#allocation2 + $0xb0] sm:$0xff] 0.0
          %601 = vst [vmem:[#allocation2 + $0xb8] sm:$0xff] 0.0
          %602 = vst [vmem:[#allocation3] sm:$0xff] 0.0
          %603 = vst [vmem:[#allocation3 + $0x8] sm:$0xff] 0.0
          %604 = vst [vmem:[#allocation3 + $0x10] sm:$0xff] 0.0
          %605 = vst [vmem:[#allocation3 + $0x18] sm:$0xff] 0.0
          %606 = vst [vmem:[#allocation3 + $0x20] sm:$0xff] 0.0
          %607 = vst [vmem:[#allocation3 + $0x28] sm:$0xff] 0.0
          %608 = vst [vmem:[#allocation3 + $0x30] sm:$0xff] 0.0
          %609 = vst [vmem:[#allocation3 + $0x38] sm:$0xff] 0.0
          %610 = vst [vmem:[#allocation3 + $0x40] sm:$0xff] 0.0
          %611 = vst [vmem:[#allocation3 + $0x48] sm:$0xff] 0.0
          %612 = vst [vmem:[#allocation3 + $0x50] sm:$0xff] 0.0
          %613 = vst [vmem:[#allocation3 + $0x58] sm:$0xff] 0.0
          %614 = vst [vmem:[#allocation3 + $0x60] sm:$0xff] 0.0
          %615 = vst [vmem:[#allocation3 + $0x68] sm:$0xff] 0.0
          %616 = vst [vmem:[#allocation3 + $0x70] sm:$0xff] 0.0
          %617 = vst [vmem:[#allocation3 + $0x78] sm:$0xff] 0.0
          %618 = vst [vmem:[#allocation3 + $0x80] sm:$0xff] 0.0
          %619 = vst [vmem:[#allocation3 + $0x88] sm:$0xff] 0.0
          %620 = vst [vmem:[#allocation3 + $0x90] sm:$0xff] 0.0
          %621 = vst [vmem:[#allocation3 + $0x98] sm:$0xff] 0.0
          %622 = vst [vmem:[#allocation3 + $0xa0] sm:$0xff] 0.0
          %623 = vst [vmem:[#allocation3 + $0xa8] sm:$0xff] 0.0
          %624 = vst [vmem:[#allocation3 + $0xb0] sm:$0xff] 0.0
          %625 = vst [vmem:[#allocation3 + $0xb8] sm:$0xff] 0.0
        $region88: #{transformer_block_forward.14} parent=75 // pred_fallthru
          _
        %v626 = vld [vmem:[%s564] sm:$0xff]
        %v627 = vld [vmem:[%s564 + $0x8] sm:$0xff]
        %v628 = vld [vmem:[%s564 + $0x10] sm:$0xff]
        %v629 = vld [vmem:[%s564 + $0x18] sm:$0xff]
        %v630 = vld [vmem:[%s564 + $0x20] sm:$0xff]
        %v631 = vld [vmem:[%s564 + $0x28] sm:$0xff]
        %v632 = vld [vmem:[%s564 + $0x30] sm:$0xff]
        %v633 = vld [vmem:[%s564 + $0x38] sm:$0xff]
        %v634 = vld [vmem:[#allocation2] sm:$0xff]
        %v635 = vld [vmem:[#allocation2 + $0x8] sm:$0xff]
        %v636 = vld [vmem:[#allocation2 + $0x10] sm:$0xff]
        %v637 = vld [vmem:[#allocation2 + $0x18] sm:$0xff]
        %v638 = vld [vmem:[#allocation2 + $0x20] sm:$0xff]
        %v639 = vld [vmem:[#allocation2 + $0x28] sm:$0xff]
        %v640 = vld [vmem:[#allocation2 + $0x30] sm:$0xff]
        %v641 = vld [vmem:[#allocation2 + $0x38] sm:$0xff]
        %v642 = vld [vmem:[#allocation2 + $0x40] sm:$0xff]
        %v643 = vld [vmem:[#allocation2 + $0x48] sm:$0xff]
        %v644 = vld [vmem:[#allocation2 + $0x50] sm:$0xff]
        %v645 = vld [vmem:[#allocation2 + $0x58] sm:$0xff]
        %v646 = vld [vmem:[#allocation2 + $0x60] sm:$0xff]
        %v647 = vld [vmem:[#allocation2 + $0x68] sm:$0xff]
        %v648 = vld [vmem:[#allocation2 + $0x70] sm:$0xff]
        %v649 = vld [vmem:[#allocation2 + $0x78] sm:$0xff]
        %v650 = vld [vmem:[#allocation2 + $0x80] sm:$0xff]
        %v651 = vld [vmem:[#allocation2 + $0x88] sm:$0xff]
        %v652 = vld [vmem:[#allocation2 + $0x90] sm:$0xff]
        %v653 = vld [vmem:[#allocation2 + $0x98] sm:$0xff]
        %v654 = vld [vmem:[#allocation2 + $0xa0] sm:$0xff]
        %v655 = vld [vmem:[#allocation2 + $0xa8] sm:$0xff]
        %v656 = vld [vmem:[#allocation2 + $0xb0] sm:$0xff]
        %v657 = vld [vmem:[#allocation2 + $0xb8] sm:$0xff]
        %v658 = vld [vmem:[%s514] sm:$0xff]
        %v659 = vld [vmem:[%s514 + $0x8] sm:$0xf]
        %v660 = vld [vmem:[%s514 + $0xc] sm:$0xff]
        %v661 = vld [vmem:[%s514 + $0x14] sm:$0xf]
        %v662 = vld [vmem:[%s514 + $0x18] sm:$0xff]
        %v663 = vld [vmem:[%s514 + $0x20] sm:$0xf]
        %v664 = vld [vmem:[%s514 + $0x24] sm:$0xff]
        %v665 = vld [vmem:[%s514 + $0x2c] sm:$0xf]
        %v666 = vld [vmem:[%s514 + $0x30] sm:$0xff]
        %v667 = vld [vmem:[%s514 + $0x38] sm:$0xf]
        %v668 = vld [vmem:[%s514 + $0x3c] sm:$0xff]
        %v669 = vld [vmem:[%s514 + $0x44] sm:$0xf]
        %v670 = vld [vmem:[%s514 + $0x48] sm:$0xff]
        %v671 = vld [vmem:[%s514 + $0x50] sm:$0xf]
        %v672 = vld [vmem:[%s514 + $0x54] sm:$0xff]
        %v673 = vld [vmem:[%s514 + $0x5c] sm:$0xf]
        %v674 = vld [vmem:[%s514 + $0x60] sm:$0xff]
        %v675 = vld [vmem:[%s514 + $0x68] sm:$0xf]
        %v676 = vld [vmem:[%s514 + $0x6c] sm:$0xff]
        %v677 = vld [vmem:[%s514 + $0x74] sm:$0xf]
        %v678 = vld [vmem:[%s514 + $0x78] sm:$0xff]
        %v679 = vld [vmem:[%s514 + $0x80] sm:$0xf]
        %v680 = vld [vmem:[%s514 + $0x84] sm:$0xff]
        %v681 = vld [vmem:[%s514 + $0x8c] sm:$0xf]
        %v682 = vld [vmem:[%s514 + $0x90] sm:$0xff]
        %v683 = vld [vmem:[%s514 + $0x98] sm:$0xf]
        %v684 = vld [vmem:[%s514 + $0x9c] sm:$0xff]
        %v685 = vld [vmem:[%s514 + $0xa4] sm:$0xf]
        %v686 = vld [vmem:[%s514 + $0xa8] sm:$0xff]
        %v687 = vld [vmem:[%s514 + $0xb0] sm:$0xf]
        %v688 = vld [vmem:[%s514 + $0xb4] sm:$0xff]
        %v689 = vld [vmem:[%s514 + $0xbc] sm:$0xf]
        %v690 = vld [vmem:[%s514 + $0xc0] sm:$0xff]
        %v691 = vld [vmem:[%s514 + $0xc8] sm:$0xf]
        %v692 = vld [vmem:[%s514 + $0xcc] sm:$0xff]
        %v693 = vld [vmem:[%s514 + $0xd4] sm:$0xf]
        %v694 = vld [vmem:[%s514 + $0xd8] sm:$0xff]
        %v695 = vld [vmem:[%s514 + $0xe0] sm:$0xf]
        %v696 = vld [vmem:[%s514 + $0xe4] sm:$0xff]
        %v697 = vld [vmem:[%s514 + $0xec] sm:$0xf]
        %v698 = vld [vmem:[%s514 + $0xf0] sm:$0xff]
        %v699 = vld [vmem:[%s514 + $0xf8] sm:$0xf]
        %v700 = vld [vmem:[%s514 + $0xfc] sm:$0xff]
        %v701 = vld [vmem:[%s514 + $0x104] sm:$0xf]
        %v702 = vld [vmem:[%s514 + $0x108] sm:$0xff]
        %v703 = vld [vmem:[%s514 + $0x110] sm:$0xf]
        %v704 = vld [vmem:[%s514 + $0x114] sm:$0xff]
        %v705 = vld [vmem:[%s514 + $0x11c] sm:$0xf]
        %v706 = vld [vmem:[%s514 + $0x120] sm:$0xff]
        %v707 = vld [vmem:[%s514 + $0x128] sm:$0xf]
        %v708 = vld [vmem:[%s514 + $0x12c] sm:$0xff]
        %v709 = vld [vmem:[%s514 + $0x134] sm:$0xf]
        %v710 = vld [vmem:[%s514 + $0x138] sm:$0xff]
        %v711 = vld [vmem:[%s514 + $0x140] sm:$0xf]
        %v712 = vld [vmem:[%s514 + $0x144] sm:$0xff]
        %v713 = vld [vmem:[%s514 + $0x14c] sm:$0xf]
        %v714 = vld [vmem:[%s514 + $0x150] sm:$0xff]
        %v715 = vld [vmem:[%s514 + $0x158] sm:$0xf]
        %v716 = vld [vmem:[%s514 + $0x15c] sm:$0xff]
        %v717 = vld [vmem:[%s514 + $0x164] sm:$0xf]
        %v718 = vld [vmem:[%s514 + $0x168] sm:$0xff]
        %v719 = vld [vmem:[%s514 + $0x170] sm:$0xf]
        %v720 = vld [vmem:[%s514 + $0x174] sm:$0xff]
        %v721 = vld [vmem:[%s514 + $0x17c] sm:$0xf]
        %v730 = vunpack.c.l.b16 %v626
        %v731 = vunpack.c.h.b16 %v626
        %v732 = vunpack.c.l.b16 %v627
        %v733 = vunpack.c.h.b16 %v627
        %v734 = vunpack.c.l.b16 %v628
        %v735 = vunpack.c.h.b16 %v628
        %v736 = vunpack.c.l.b16 %v629
        %v737 = vunpack.c.h.b16 %v629
        %v738 = vunpack.c.l.b16 %v630
        %v739 = vunpack.c.h.b16 %v630
        %v740 = vunpack.c.l.b16 %v631
        %v741 = vunpack.c.h.b16 %v631
        %v742 = vunpack.c.l.b16 %v632
        %v743 = vunpack.c.h.b16 %v632
        %v744 = vunpack.c.l.b16 %v633
        %v745 = vunpack.c.h.b16 %v633
        %v746 = vpack.c.b16 %v732, %v730
        %v747 = vpack.c.b16 %v733, %v731
        %v748 = vpack.c.b16 %v736, %v734
        %v749 = vpack.c.b16 %v737, %v735
        %v750 = vpack.c.b16 %v740, %v738
        %v751 = vpack.c.b16 %v741, %v739
        %v752 = vpack.c.b16 %v744, %v742
        %v753 = vpack.c.b16 %v745, %v743
        %v826 = vunpack.c.l.b16 %v658
        %v827 = vunpack.c.h.b16 %v658
        %v828 = vunpack.c.l.b16 %v659
        %v829 = vunpack.c.l.b16 %v660
        %v830 = vunpack.c.h.b16 %v660
        %v831 = vunpack.c.l.b16 %v661
        %v832 = vunpack.c.l.b16 %v662
        %v833 = vunpack.c.h.b16 %v662
        %v834 = vunpack.c.l.b16 %v663
        %v835 = vunpack.c.l.b16 %v664
        %v836 = vunpack.c.h.b16 %v664
        %v837 = vunpack.c.l.b16 %v665
        %v838 = vunpack.c.l.b16 %v666
        %v839 = vunpack.c.h.b16 %v666
        %v840 = vunpack.c.l.b16 %v667
        %v841 = vunpack.c.l.b16 %v668
        %v842 = vunpack.c.h.b16 %v668
        %v843 = vunpack.c.l.b16 %v669
        %v844 = vunpack.c.l.b16 %v670
        %v845 = vunpack.c.h.b16 %v670
        %v846 = vunpack.c.l.b16 %v671
        %v847 = vunpack.c.l.b16 %v672
        %v848 = vunpack.c.h.b16 %v672
        %v849 = vunpack.c.l.b16 %v673
        %v850 = vunpack.c.l.b16 %v674
        %v851 = vunpack.c.h.b16 %v674
        %v852 = vunpack.c.l.b16 %v675
        %v853 = vunpack.c.l.b16 %v676
        %v854 = vunpack.c.h.b16 %v676
        %v855 = vunpack.c.l.b16 %v677
        %v856 = vunpack.c.l.b16 %v678
        %v857 = vunpack.c.h.b16 %v678
        %v858 = vunpack.c.l.b16 %v679
        %v859 = vunpack.c.l.b16 %v680
        %v860 = vunpack.c.h.b16 %v680
        %v861 = vunpack.c.l.b16 %v681
        %v862 = vunpack.c.l.b16 %v682
        %v863 = vunpack.c.h.b16 %v682
        %v864 = vunpack.c.l.b16 %v683
        %v865 = vunpack.c.l.b16 %v684
        %v866 = vunpack.c.h.b16 %v684
        %v867 = vunpack.c.l.b16 %v685
        %v868 = vunpack.c.l.b16 %v686
        %v869 = vunpack.c.h.b16 %v686
        %v870 = vunpack.c.l.b16 %v687
        %v871 = vunpack.c.l.b16 %v688
        %v872 = vunpack.c.h.b16 %v688
        %v873 = vunpack.c.l.b16 %v689
        %v874 = vunpack.c.l.b16 %v690
        %v875 = vunpack.c.h.b16 %v690
        %v876 = vunpack.c.l.b16 %v691
        %v877 = vunpack.c.l.b16 %v692
        %v878 = vunpack.c.h.b16 %v692
        %v879 = vunpack.c.l.b16 %v693
        %v880 = vunpack.c.l.b16 %v694
        %v881 = vunpack.c.h.b16 %v694
        %v882 = vunpack.c.l.b16 %v695
        %v883 = vunpack.c.l.b16 %v696
        %v884 = vunpack.c.h.b16 %v696
        %v885 = vunpack.c.l.b16 %v697
        %v886 = vunpack.c.l.b16 %v698
        %v887 = vunpack.c.h.b16 %v698
        %v888 = vunpack.c.l.b16 %v699
        %v889 = vunpack.c.l.b16 %v700
        %v890 = vunpack.c.h.b16 %v700
        %v891 = vunpack.c.l.b16 %v701
        %v892 = vunpack.c.l.b16 %v702
        %v893 = vunpack.c.h.b16 %v702
        %v894 = vunpack.c.l.b16 %v703
        %v895 = vunpack.c.l.b16 %v704
        %v896 = vunpack.c.h.b16 %v704
        %v897 = vunpack.c.l.b16 %v705
        %v898 = vunpack.c.l.b16 %v706
        %v899 = vunpack.c.h.b16 %v706
        %v900 = vunpack.c.l.b16 %v707
        %v901 = vunpack.c.l.b16 %v708
        %v902 = vunpack.c.h.b16 %v708
        %v903 = vunpack.c.l.b16 %v709
        %v904 = vunpack.c.l.b16 %v710
        %v905 = vunpack.c.h.b16 %v710
        %v906 = vunpack.c.l.b16 %v711
        %v907 = vunpack.c.l.b16 %v712
        %v908 = vunpack.c.h.b16 %v712
        %v909 = vunpack.c.l.b16 %v713
        %v910 = vunpack.c.l.b16 %v714
        %v911 = vunpack.c.h.b16 %v714
        %v912 = vunpack.c.l.b16 %v715
        %v913 = vunpack.c.l.b16 %v716
        %v914 = vunpack.c.h.b16 %v716
        %v915 = vunpack.c.l.b16 %v717
        %v916 = vunpack.c.l.b16 %v718
        %v917 = vunpack.c.h.b16 %v718
        %v918 = vunpack.c.l.b16 %v719
        %v919 = vunpack.c.l.b16 %v720
        %v920 = vunpack.c.h.b16 %v720
        %v921 = vunpack.c.l.b16 %v721
        %v922 = vpack.c.b16 %v829, %v826
        %v923 = vpack.c.b16 %v830, %v827
        %v924 = vpack.c.b16 %v831, %v828
        %v925 = vpack.c.b16 %v835, %v832
        %v926 = vpack.c.b16 %v836, %v833
        %v927 = vpack.c.b16 %v837, %v834
        %v928 = vpack.c.b16 %v841, %v838
        %v929 = vpack.c.b16 %v842, %v839
        %v930 = vpack.c.b16 %v843, %v840
        %v931 = vpack.c.b16 %v847, %v844
        %v932 = vpack.c.b16 %v848, %v845
        %v933 = vpack.c.b16 %v849, %v846
        %v934 = vpack.c.b16 %v853, %v850
        %v935 = vpack.c.b16 %v854, %v851
        %v936 = vpack.c.b16 %v855, %v852
        %v937 = vpack.c.b16 %v859, %v856
        %v938 = vpack.c.b16 %v860, %v857
        %v939 = vpack.c.b16 %v861, %v858
        %v940 = vpack.c.b16 %v865, %v862
        %v941 = vpack.c.b16 %v866, %v863
        %v942 = vpack.c.b16 %v867, %v864
        %v943 = vpack.c.b16 %v871, %v868
        %v944 = vpack.c.b16 %v872, %v869
        %v945 = vpack.c.b16 %v873, %v870
        %v946 = vpack.c.b16 %v877, %v874
        %v947 = vpack.c.b16 %v878, %v875
        %v948 = vpack.c.b16 %v879, %v876
        %v949 = vpack.c.b16 %v883, %v880
        %v950 = vpack.c.b16 %v884, %v881
        %v951 = vpack.c.b16 %v885, %v882
        %v952 = vpack.c.b16 %v889, %v886
        %v953 = vpack.c.b16 %v890, %v887
        %v954 = vpack.c.b16 %v891, %v888
        %v955 = vpack.c.b16 %v895, %v892
        %v956 = vpack.c.b16 %v896, %v893
        %v957 = vpack.c.b16 %v897, %v894
        %v958 = vpack.c.b16 %v901, %v898
        %v959 = vpack.c.b16 %v902, %v899
        %v960 = vpack.c.b16 %v903, %v900
        %v961 = vpack.c.b16 %v907, %v904
        %v962 = vpack.c.b16 %v908, %v905
        %v963 = vpack.c.b16 %v909, %v906
        %v964 = vpack.c.b16 %v913, %v910
        %v965 = vpack.c.b16 %v914, %v911
        %v966 = vpack.c.b16 %v915, %v912
        %v967 = vpack.c.b16 %v919, %v916
        %v968 = vpack.c.b16 %v920, %v917
        %v969 = vpack.c.b16 %v921, %v918
        %1018 = vmatprep.subr.bf16.mxu0 %v923
        %1019 = vmatpush1.bf16.msra.mxu0 %v922
        %1020 = vmatprep.subr.bf16.mxu0 %v926
        %1021 = vmatpush1.bf16.msra.mxu0 %v925
        %1022 = vmatprep.subr.bf16.mxu0 %v929
        %1023 = vmatpush1.bf16.msra.mxu0 %v928
        %1024 = vmatprep.subr.bf16.mxu0 %v932
        %1025 = vmatpush1.bf16.msra.mxu0 %v931
        %1026 = vmatprep.subr.bf16.mxu0 %v935
        %1027 = vmatpush1.bf16.msra.mxu0 %v934
        %1028 = vmatprep.subr.bf16.mxu0 %v938
        %1029 = vmatpush1.bf16.msra.mxu0 %v937
        %1030 = vmatprep.subr.bf16.mxu0 %v941
        %1031 = vmatpush1.bf16.msra.mxu0 %v940
        %1032 = vmatprep.subr.bf16.mxu0 %v944
        %1033 = vmatpush1.bf16.msra.mxu0 %v943
        %1034 = vmatprep.subr.bf16.mxu0 %v947
        %1035 = vmatpush1.bf16.msra.mxu0 %v946
        %1036 = vmatprep.subr.bf16.mxu0 %v950
        %1037 = vmatpush1.bf16.msra.mxu0 %v949
        %1038 = vmatprep.subr.bf16.mxu0 %v953
        %1039 = vmatpush1.bf16.msra.mxu0 %v952
        %1040 = vmatprep.subr.bf16.mxu0 %v956
        %1041 = vmatpush1.bf16.msra.mxu0 %v955
        %1042 = vmatprep.subr.bf16.mxu0 %v959
        %1043 = vmatpush1.bf16.msra.mxu0 %v958
        %1044 = vmatprep.subr.bf16.mxu0 %v962
        %1045 = vmatpush1.bf16.msra.mxu0 %v961
        %1046 = vmatprep.subr.bf16.mxu0 %v965
        %1047 = vmatpush1.bf16.msra.mxu0 %v964
        %1048 = vmatprep.subr.bf16.mxu0 %v968
        %1049 = vmatpush1.bf16.msra.mxu0 %v967
        %1050 = vmatprep.mubr.bf16.mxu0 %v747
        %1051 = vmatmul.mubr.bf16.gmra.mrb[0].mxu0 %v746
        %v1052 = vpop.f32.mrb[0].mxu0
        %v1053 = vadd.f32 0.0, %v1052
        %v1054 = vpop.f32.mrb[0].mxu0
        %v1055 = vadd.f32 0.0, %v1054
        %v1056 = vpop.f32.mrb[0].mxu0
        %v1057 = vadd.f32 0.0, %v1056
        %v1058 = vpop.f32.mrb[0].mxu0
        %v1059 = vadd.f32 0.0, %v1058
        %1060 = vmatprep.mubr.bf16.mxu0 %v749
        %1061 = vmatmul.mubr.bf16.gmra.mrb[0].mxu0 %v748
        %v1062 = vpop.f32.mrb[0].mxu0
        %v1063 = vadd.f32 0.0, %v1062
        %v1064 = vpop.f32.mrb[0].mxu0
        %v1065 = vadd.f32 0.0, %v1064
        %v1066 = vpop.f32.mrb[0].mxu0
        %v1067 = vadd.f32 0.0, %v1066
        %v1068 = vpop.f32.mrb[0].mxu0
        %v1069 = vadd.f32 0.0, %v1068
        %1070 = vmatprep.mubr.bf16.mxu0 %v751
        %1071 = vmatmul.mubr.bf16.gmra.mrb[0].mxu0 %v750
        %v1072 = vpop.f32.mrb[0].mxu0
        %v1073 = vadd.f32 0.0, %v1072
        %v1074 = vpop.f32.mrb[0].mxu0
        %v1075 = vadd.f32 0.0, %v1074
        %v1076 = vpop.f32.mrb[0].mxu0
        %v1077 = vadd.f32 0.0, %v1076
        %v1078 = vpop.f32.mrb[0].mxu0
        %v1079 = vadd.f32 0.0, %v1078
        %1080 = vmatprep.mubr.bf16.mxu0 %v753
        %1081 = vmatmul.mubr.bf16.gmra.mrb[0].mxu0 %v752
        %v1082 = vpop.f32.mrb[0].mxu0
        %v1083 = vadd.f32 0.0, %v1082
        %v1084 = vpop.f32.mrb[0].mxu0
        %v1085 = vadd.f32 0.0, %v1084
        %v1086 = vpop.f32.mrb[0].mxu0
        %v1087 = vadd.f32 0.0, %v1086
        %v1088 = vpop.f32.mrb[0].mxu0
        %v1089 = vadd.f32 0.0, %v1088
        %1090 = vdwg.mxu0
        %1091 = vmatprep.subr.bf16.mxu0 0
        %1092 = vmatpush1.bf16.msra.mxu0 %v924
        %1093 = vmatprep.subr.bf16.mxu0 0
        %1094 = vmatpush1.bf16.msra.mxu0 %v927
        %1095 = vmatprep.subr.bf16.mxu0 0
        %1096 = vmatpush1.bf16.msra.mxu0 %v930
        %1097 = vmatprep.subr.bf16.mxu0 0
        %1098 = vmatpush1.bf16.msra.mxu0 %v933
        %1099 = vmatprep.subr.bf16.mxu0 0
        %1100 = vmatpush1.bf16.msra.mxu0 %v936
        %1101 = vmatprep.subr.bf16.mxu0 0
        %1102 = vmatpush1.bf16.msra.mxu0 %v939
        %1103 = vmatprep.subr.bf16.mxu0 0
        %1104 = vmatpush1.bf16.msra.mxu0 %v942
        %1105 = vmatprep.subr.bf16.mxu0 0
        %1106 = vmatpush1.bf16.msra.mxu0 %v945
        %1107 = vmatprep.subr.bf16.mxu0 0
        %1108 = vmatpush1.bf16.msra.mxu0 %v948
        %1109 = vmatprep.subr.bf16.mxu0 0
        %1110 = vmatpush1.bf16.msra.mxu0 %v951
        %1111 = vmatprep.subr.bf16.mxu0 0
        %1112 = vmatpush1.bf16.msra.mxu0 %v954
        %1113 = vmatprep.subr.bf16.mxu0 0
        %1114 = vmatpush1.bf16.msra.mxu0 %v957
        %1115 = vmatprep.subr.bf16.mxu0 0
        %1116 = vmatpush1.bf16.msra.mxu0 %v960
        %1117 = vmatprep.subr.bf16.mxu0 0
        %1118 = vmatpush1.bf16.msra.mxu0 %v963
        %1119 = vmatprep.subr.bf16.mxu0 0
        %1120 = vmatpush1.bf16.msra.mxu0 %v966
        %1121 = vmatprep.subr.bf16.mxu0 0
        %1122 = vmatpush1.bf16.msra.mxu0 %v969
        %1123 = vmatprep.mubr.bf16.mxu0 %v747
        %1124 = vmatmul.mubr.bf16.gmra.mrb[0].mxu0 %v746
        %v1125 = vpop.f32.mrb[0].mxu0
        %v1126 = vadd.f32 0.0, %v1125
        %v1127 = vpop.f32.mrb[0].mxu0
        %v1128 = vpop.f32.mrb[0].mxu0
        %v1129 = vadd.f32 0.0, %v1128
        %v1130 = vpop.f32.mrb[0].mxu0
        %1131 = vmatprep.mubr.bf16.mxu0 %v749
        %1132 = vmatmul.mubr.bf16.gmra.mrb[0].mxu0 %v748
        %v1133 = vpop.f32.mrb[0].mxu0
        %v1134 = vadd.f32 0.0, %v1133
        %v1135 = vpop.f32.mrb[0].mxu0
        %v1136 = vpop.f32.mrb[0].mxu0
        %v1137 = vadd.f32 0.0, %v1136
        %v1138 = vpop.f32.mrb[0].mxu0
        %1139 = vmatprep.mubr.bf16.mxu0 %v751
        %1140 = vmatmul.mubr.bf16.gmra.mrb[0].mxu0 %v750
        %v1141 = vpop.f32.mrb[0].mxu0
        %v1142 = vadd.f32 0.0, %v1141
        %v1143 = vpop.f32.mrb[0].mxu0
        %v1144 = vpop.f32.mrb[0].mxu0
        %v1145 = vadd.f32 0.0, %v1144
        %v1146 = vpop.f32.mrb[0].mxu0
        %1147 = vmatprep.mubr.bf16.mxu0 %v753
        %1148 = vmatmul.mubr.bf16.gmra.mrb[0].mxu0 %v752
        %v1149 = vpop.f32.mrb[0].mxu0
        %v1150 = vadd.f32 0.0, %v1149
        %v1151 = vpop.f32.mrb[0].mxu0
        %v1152 = vpop.f32.mrb[0].mxu0
        %v1153 = vadd.f32 0.0, %v1152
        %v1154 = vpop.f32.mrb[0].mxu0
        %1155 = vdwg.mxu0
        %v1156 = vadd.f32 %v634, %v1053
        %v1157 = vadd.f32 %v635, %v1055
        %v1158 = vadd.f32 %v636, %v1126
        %v1159 = vadd.f32 %v637, %v1057
        %v1160 = vadd.f32 %v638, %v1059
        %v1161 = vadd.f32 %v639, %v1129
        %v1162 = vadd.f32 %v640, %v1063
        %v1163 = vadd.f32 %v641, %v1065
        %v1164 = vadd.f32 %v642, %v1134
        %v1165 = vadd.f32 %v643, %v1067
        %v1166 = vadd.f32 %v644, %v1069
        %v1167 = vadd.f32 %v645, %v1137
        %v1168 = vadd.f32 %v646, %v1073
        %v1169 = vadd.f32 %v647, %v1075
        %v1170 = vadd.f32 %v648, %v1142
        %v1171 = vadd.f32 %v649, %v1077
        %v1172 = vadd.f32 %v650, %v1079
        %v1173 = vadd.f32 %v651, %v1145
        %v1174 = vadd.f32 %v652, %v1083
        %v1175 = vadd.f32 %v653, %v1085
        %v1176 = vadd.f32 %v654, %v1150
        %v1177 = vadd.f32 %v655, %v1087
        %v1178 = vadd.f32 %v656, %v1089
        %v1179 = vadd.f32 %v657, %v1153
        %1180 = vst [vmem:[#allocation2] sm:$0xff] %v1156
        %1181 = vst [vmem:[#allocation2 + $0x8] sm:$0xff] %v1157
        %1182 = vst [vmem:[#allocation2 + $0x10] sm:$0xff] %v1158
        %1183 = vst [vmem:[#allocation2 + $0x18] sm:$0xff] %v1159
        %1184 = vst [vmem:[#allocation2 + $0x20] sm:$0xff] %v1160
        %1185 = vst [vmem:[#allocation2 + $0x28] sm:$0xff] %v1161
        %1186 = vst [vmem:[#allocation2 + $0x30] sm:$0xff] %v1162
        %1187 = vst [vmem:[#allocation2 + $0x38] sm:$0xff] %v1163
        %1188 = vst [vmem:[#allocation2 + $0x40] sm:$0xff] %v1164
        %1189 = vst [vmem:[#allocation2 + $0x48] sm:$0xff] %v1165
        %1190 = vst [vmem:[#allocation2 + $0x50] sm:$0xff] %v1166
        %1191 = vst [vmem:[#allocation2 + $0x58] sm:$0xff] %v1167
        %1192 = vst [vmem:[#allocation2 + $0x60] sm:$0xff] %v1168
        %1193 = vst [vmem:[#allocation2 + $0x68] sm:$0xff] %v1169
        %1194 = vst [vmem:[#allocation2 + $0x70] sm:$0xff] %v1170
        %1195 = vst [vmem:[#allocation2 + $0x78] sm:$0xff] %v1171
        %1196 = vst [vmem:[#allocation2 + $0x80] sm:$0xff] %v1172
        %1197 = vst [vmem:[#allocation2 + $0x88] sm:$0xff] %v1173
        %1198 = vst [vmem:[#allocation2 + $0x90] sm:$0xff] %v1174
        %1199 = vst [vmem:[#allocation2 + $0x98] sm:$0xff] %v1175
        %1200 = vst [vmem:[#allocation2 + $0xa0] sm:$0xff] %v1176
        %1201 = vst [vmem:[#allocation2 + $0xa8] sm:$0xff] %v1177
        %1202 = vst [vmem:[#allocation2 + $0xb0] sm:$0xff] %v1178
        %1203 = vst [vmem:[#allocation2 + $0xb8] sm:$0xff] %v1179
        %v1204 = vld [vmem:[#allocation3] sm:$0xff]
        %v1205 = vld [vmem:[#allocation3 + $0x8] sm:$0xff]
        %v1206 = vld [vmem:[#allocation3 + $0x10] sm:$0xff]
        %v1207 = vld [vmem:[#allocation3 + $0x18] sm:$0xff]
        %v1208 = vld [vmem:[#allocation3 + $0x20] sm:$0xff]
        %v1209 = vld [vmem:[#allocation3 + $0x28] sm:$0xff]
        %v1210 = vld [vmem:[#allocation3 + $0x30] sm:$0xff]
        %v1211 = vld [vmem:[#allocation3 + $0x38] sm:$0xff]
        %v1212 = vld [vmem:[#allocation3 + $0x40] sm:$0xff]
        %v1213 = vld [vmem:[#allocation3 + $0x48] sm:$0xff]
        %v1214 = vld [vmem:[#allocation3 + $0x50] sm:$0xff]
        %v1215 = vld [vmem:[#allocation3 + $0x58] sm:$0xff]
        %v1216 = vld [vmem:[#allocation3 + $0x60] sm:$0xff]
        %v1217 = vld [vmem:[#allocation3 + $0x68] sm:$0xff]
        %v1218 = vld [vmem:[#allocation3 + $0x70] sm:$0xff]
        %v1219 = vld [vmem:[#allocation3 + $0x78] sm:$0xff]
        %v1220 = vld [vmem:[#allocation3 + $0x80] sm:$0xff]
        %v1221 = vld [vmem:[#allocation3 + $0x88] sm:$0xff]
        %v1222 = vld [vmem:[#allocation3 + $0x90] sm:$0xff]
        %v1223 = vld [vmem:[#allocation3 + $0x98] sm:$0xff]
        %v1224 = vld [vmem:[#allocation3 + $0xa0] sm:$0xff]
        %v1225 = vld [vmem:[#allocation3 + $0xa8] sm:$0xff]
        %v1226 = vld [vmem:[#allocation3 + $0xb0] sm:$0xff]
        %v1227 = vld [vmem:[#allocation3 + $0xb8] sm:$0xff]
        %v1228 = vld [vmem:[%s521] sm:$0xff]
        %v1229 = vld [vmem:[%s521 + $0x8] sm:$0xf]
        %v1230 = vld [vmem:[%s521 + $0xc] sm:$0xff]
        %v1231 = vld [vmem:[%s521 + $0x14] sm:$0xf]
        %v1232 = vld [vmem:[%s521 + $0x18] sm:$0xff]
        %v1233 = vld [vmem:[%s521 + $0x20] sm:$0xf]
        %v1234 = vld [vmem:[%s521 + $0x24] sm:$0xff]
        %v1235 = vld [vmem:[%s521 + $0x2c] sm:$0xf]
        %v1236 = vld [vmem:[%s521 + $0x30] sm:$0xff]
        %v1237 = vld [vmem:[%s521 + $0x38] sm:$0xf]
        %v1238 = vld [vmem:[%s521 + $0x3c] sm:$0xff]
        %v1239 = vld [vmem:[%s521 + $0x44] sm:$0xf]
        %v1240 = vld [vmem:[%s521 + $0x48] sm:$0xff]
        %v1241 = vld [vmem:[%s521 + $0x50] sm:$0xf]
        %v1242 = vld [vmem:[%s521 + $0x54] sm:$0xff]
        %v1243 = vld [vmem:[%s521 + $0x5c] sm:$0xf]
        %v1244 = vld [vmem:[%s521 + $0x60] sm:$0xff]
        %v1245 = vld [vmem:[%s521 + $0x68] sm:$0xf]
        %v1246 = vld [vmem:[%s521 + $0x6c] sm:$0xff]
        %v1247 = vld [vmem:[%s521 + $0x74] sm:$0xf]
        %v1248 = vld [vmem:[%s521 + $0x78] sm:$0xff]
        %v1249 = vld [vmem:[%s521 + $0x80] sm:$0xf]
        %v1250 = vld [vmem:[%s521 + $0x84] sm:$0xff]
        %v1251 = vld [vmem:[%s521 + $0x8c] sm:$0xf]
        %v1252 = vld [vmem:[%s521 + $0x90] sm:$0xff]
        %v1253 = vld [vmem:[%s521 + $0x98] sm:$0xf]
        %v1254 = vld [vmem:[%s521 + $0x9c] sm:$0xff]
        %v1255 = vld [vmem:[%s521 + $0xa4] sm:$0xf]
        %v1256 = vld [vmem:[%s521 + $0xa8] sm:$0xff]
        %v1257 = vld [vmem:[%s521 + $0xb0] sm:$0xf]
        %v1258 = vld [vmem:[%s521 + $0xb4] sm:$0xff]
        %v1259 = vld [vmem:[%s521 + $0xbc] sm:$0xf]
        %v1260 = vld [vmem:[%s521 + $0xc0] sm:$0xff]
        %v1261 = vld [vmem:[%s521 + $0xc8] sm:$0xf]
        %v1262 = vld [vmem:[%s521 + $0xcc] sm:$0xff]
        %v1263 = vld [vmem:[%s521 + $0xd4] sm:$0xf]
        %v1264 = vld [vmem:[%s521 + $0xd8] sm:$0xff]
        %v1265 = vld [vmem:[%s521 + $0xe0] sm:$0xf]
        %v1266 = vld [vmem:[%s521 + $0xe4] sm:$0xff]
        %v1267 = vld [vmem:[%s521 + $0xec] sm:$0xf]
        %v1268 = vld [vmem:[%s521 + $0xf0] sm:$0xff]
        %v1269 = vld [vmem:[%s521 + $0xf8] sm:$0xf]
        %v1270 = vld [vmem:[%s521 + $0xfc] sm:$0xff]
        %v1271 = vld [vmem:[%s521 + $0x104] sm:$0xf]
        %v1272 = vld [vmem:[%s521 + $0x108] sm:$0xff]
        %v1273 = vld [vmem:[%s521 + $0x110] sm:$0xf]
        %v1274 = vld [vmem:[%s521 + $0x114] sm:$0xff]
        %v1275 = vld [vmem:[%s521 + $0x11c] sm:$0xf]
        %v1276 = vld [vmem:[%s521 + $0x120] sm:$0xff]
        %v1277 = vld [vmem:[%s521 + $0x128] sm:$0xf]
        %v1278 = vld [vmem:[%s521 + $0x12c] sm:$0xff]
        %v1279 = vld [vmem:[%s521 + $0x134] sm:$0xf]
        %v1280 = vld [vmem:[%s521 + $0x138] sm:$0xff]
        %v1281 = vld [vmem:[%s521 + $0x140] sm:$0xf]
        %v1282 = vld [vmem:[%s521 + $0x144] sm:$0xff]
        %v1283 = vld [vmem:[%s521 + $0x14c] sm:$0xf]
        %v1284 = vld [vmem:[%s521 + $0x150] sm:$0xff]
        %v1285 = vld [vmem:[%s521 + $0x158] sm:$0xf]
        %v1286 = vld [vmem:[%s521 + $0x15c] sm:$0xff]
        %v1287 = vld [vmem:[%s521 + $0x164] sm:$0xf]
        %v1288 = vld [vmem:[%s521 + $0x168] sm:$0xff]
        %v1289 = vld [vmem:[%s521 + $0x170] sm:$0xf]
        %v1290 = vld [vmem:[%s521 + $0x174] sm:$0xff]
        %v1291 = vld [vmem:[%s521 + $0x17c] sm:$0xf]
        %v1356 = vunpack.c.l.b16 %v1228
        %v1357 = vunpack.c.h.b16 %v1228
        %v1358 = vunpack.c.l.b16 %v1229
        %v1359 = vunpack.c.l.b16 %v1230
        %v1360 = vunpack.c.h.b16 %v1230
        %v1361 = vunpack.c.l.b16 %v1231
        %v1362 = vunpack.c.l.b16 %v1232
        %v1363 = vunpack.c.h.b16 %v1232
        %v1364 = vunpack.c.l.b16 %v1233
        %v1365 = vunpack.c.l.b16 %v1234
        %v1366 = vunpack.c.h.b16 %v1234
        %v1367 = vunpack.c.l.b16 %v1235
        %v1368 = vunpack.c.l.b16 %v1236
        %v1369 = vunpack.c.h.b16 %v1236
        %v1370 = vunpack.c.l.b16 %v1237
        %v1371 = vunpack.c.l.b16 %v1238
        %v1372 = vunpack.c.h.b16 %v1238
        %v1373 = vunpack.c.l.b16 %v1239
        %v1374 = vunpack.c.l.b16 %v1240
        %v1375 = vunpack.c.h.b16 %v1240
        %v1376 = vunpack.c.l.b16 %v1241
        %v1377 = vunpack.c.l.b16 %v1242
        %v1378 = vunpack.c.h.b16 %v1242
        %v1379 = vunpack.c.l.b16 %v1243
        %v1380 = vunpack.c.l.b16 %v1244
        %v1381 = vunpack.c.h.b16 %v1244
        %v1382 = vunpack.c.l.b16 %v1245
        %v1383 = vunpack.c.l.b16 %v1246
        %v1384 = vunpack.c.h.b16 %v1246
        %v1385 = vunpack.c.l.b16 %v1247
        %v1386 = vunpack.c.l.b16 %v1248
        %v1387 = vunpack.c.h.b16 %v1248
        %v1388 = vunpack.c.l.b16 %v1249
        %v1389 = vunpack.c.l.b16 %v1250
        %v1390 = vunpack.c.h.b16 %v1250
        %v1391 = vunpack.c.l.b16 %v1251
        %v1392 = vunpack.c.l.b16 %v1252
        %v1393 = vunpack.c.h.b16 %v1252
        %v1394 = vunpack.c.l.b16 %v1253
        %v1395 = vunpack.c.l.b16 %v1254
        %v1396 = vunpack.c.h.b16 %v1254
        %v1397 = vunpack.c.l.b16 %v1255
        %v1398 = vunpack.c.l.b16 %v1256
        %v1399 = vunpack.c.h.b16 %v1256
        %v1400 = vunpack.c.l.b16 %v1257
        %v1401 = vunpack.c.l.b16 %v1258
        %v1402 = vunpack.c.h.b16 %v1258
        %v1403 = vunpack.c.l.b16 %v1259
        %v1404 = vunpack.c.l.b16 %v1260
        %v1405 = vunpack.c.h.b16 %v1260
        %v1406 = vunpack.c.l.b16 %v1261
        %v1407 = vunpack.c.l.b16 %v1262
        %v1408 = vunpack.c.h.b16 %v1262
        %v1409 = vunpack.c.l.b16 %v1263
        %v1410 = vunpack.c.l.b16 %v1264
        %v1411 = vunpack.c.h.b16 %v1264
        %v1412 = vunpack.c.l.b16 %v1265
        %v1413 = vunpack.c.l.b16 %v1266
        %v1414 = vunpack.c.h.b16 %v1266
        %v1415 = vunpack.c.l.b16 %v1267
        %v1416 = vunpack.c.l.b16 %v1268
        %v1417 = vunpack.c.h.b16 %v1268
        %v1418 = vunpack.c.l.b16 %v1269
        %v1419 = vunpack.c.l.b16 %v1270
        %v1420 = vunpack.c.h.b16 %v1270
        %v1421 = vunpack.c.l.b16 %v1271
        %v1422 = vunpack.c.l.b16 %v1272
        %v1423 = vunpack.c.h.b16 %v1272
        %v1424 = vunpack.c.l.b16 %v1273
        %v1425 = vunpack.c.l.b16 %v1274
        %v1426 = vunpack.c.h.b16 %v1274
        %v1427 = vunpack.c.l.b16 %v1275
        %v1428 = vunpack.c.l.b16 %v1276
        %v1429 = vunpack.c.h.b16 %v1276
        %v1430 = vunpack.c.l.b16 %v1277
        %v1431 = vunpack.c.l.b16 %v1278
        %v1432 = vunpack.c.h.b16 %v1278
        %v1433 = vunpack.c.l.b16 %v1279
        %v1434 = vunpack.c.l.b16 %v1280
        %v1435 = vunpack.c.h.b16 %v1280
        %v1436 = vunpack.c.l.b16 %v1281
        %v1437 = vunpack.c.l.b16 %v1282
        %v1438 = vunpack.c.h.b16 %v1282
        %v1439 = vunpack.c.l.b16 %v1283
        %v1440 = vunpack.c.l.b16 %v1284
        %v1441 = vunpack.c.h.b16 %v1284
        %v1442 = vunpack.c.l.b16 %v1285
        %v1443 = vunpack.c.l.b16 %v1286
        %v1444 = vunpack.c.h.b16 %v1286
        %v1445 = vunpack.c.l.b16 %v1287
        %v1446 = vunpack.c.l.b16 %v1288
        %v1447 = vunpack.c.h.b16 %v1288
        %v1448 = vunpack.c.l.b16 %v1289
        %v1449 = vunpack.c.l.b16 %v1290
        %v1450 = vunpack.c.h.b16 %v1290
        %v1451 = vunpack.c.l.b16 %v1291
        %v1452 = vpack.c.b16 %v1359, %v1356
        %v1453 = vpack.c.b16 %v1360, %v1357
        %v1454 = vpack.c.b16 %v1361, %v1358
        %v1455 = vpack.c.b16 %v1365, %v1362
        %v1456 = vpack.c.b16 %v1366, %v1363
        %v1457 = vpack.c.b16 %v1367, %v1364
        %v1458 = vpack.c.b16 %v1371, %v1368
        %v1459 = vpack.c.b16 %v1372, %v1369
        %v1460 = vpack.c.b16 %v1373, %v1370
        %v1461 = vpack.c.b16 %v1377, %v1374
        %v1462 = vpack.c.b16 %v1378, %v1375
        %v1463 = vpack.c.b16 %v1379, %v1376
        %v1464 = vpack.c.b16 %v1383, %v1380
        %v1465 = vpack.c.b16 %v1384, %v1381
        %v1466 = vpack.c.b16 %v1385, %v1382
        %v1467 = vpack.c.b16 %v1389, %v1386
        %v1468 = vpack.c.b16 %v1390, %v1387
        %v1469 = vpack.c.b16 %v1391, %v1388
        %v1470 = vpack.c.b16 %v1395, %v1392
        %v1471 = vpack.c.b16 %v1396, %v1393
        %v1472 = vpack.c.b16 %v1397, %v1394
        %v1473 = vpack.c.b16 %v1401, %v1398
        %v1474 = vpack.c.b16 %v1402, %v1399
        %v1475 = vpack.c.b16 %v1403, %v1400
        %v1476 = vpack.c.b16 %v1407, %v1404
        %v1477 = vpack.c.b16 %v1408, %v1405
        %v1478 = vpack.c.b16 %v1409, %v1406
        %v1479 = vpack.c.b16 %v1413, %v1410
        %v1480 = vpack.c.b16 %v1414, %v1411
        %v1481 = vpack.c.b16 %v1415, %v1412
        %v1482 = vpack.c.b16 %v1419, %v1416
        %v1483 = vpack.c.b16 %v1420, %v1417
        %v1484 = vpack.c.b16 %v1421, %v1418
        %v1485 = vpack.c.b16 %v1425, %v1422
        %v1486 = vpack.c.b16 %v1426, %v1423
        %v1487 = vpack.c.b16 %v1427, %v1424
        %v1488 = vpack.c.b16 %v1431, %v1428
        %v1489 = vpack.c.b16 %v1432, %v1429
        %v1490 = vpack.c.b16 %v1433, %v1430
        %v1491 = vpack.c.b16 %v1437, %v1434
        %v1492 = vpack.c.b16 %v1438, %v1435
        %v1493 = vpack.c.b16 %v1439, %v1436
        %v1494 = vpack.c.b16 %v1443, %v1440
        %v1495 = vpack.c.b16 %v1444, %v1441
        %v1496 = vpack.c.b16 %v1445, %v1442
        %v1497 = vpack.c.b16 %v1449, %v1446
        %v1498 = vpack.c.b16 %v1450, %v1447
        %v1499 = vpack.c.b16 %v1451, %v1448
        %1548 = vmatprep.subr.bf16.mxu0 %v1453
        %1549 = vmatpush1.bf16.msra.mxu0 %v1452
        %1550 = vmatprep.subr.bf16.mxu0 %v1456
        %1551 = vmatpush1.bf16.msra.mxu0 %v1455
        %1552 = vmatprep.subr.bf16.mxu0 %v1459
        %1553 = vmatpush1.bf16.msra.mxu0 %v1458
        %1554 = vmatprep.subr.bf16.mxu0 %v1462
        %1555 = vmatpush1.bf16.msra.mxu0 %v1461
        %1556 = vmatprep.subr.bf16.mxu0 %v1465
        %1557 = vmatpush1.bf16.msra.mxu0 %v1464
        %1558 = vmatprep.subr.bf16.mxu0 %v1468
        %1559 = vmatpush1.bf16.msra.mxu0 %v1467
        %1560 = vmatprep.subr.bf16.mxu0 %v1471
        %1561 = vmatpush1.bf16.msra.mxu0 %v1470
        %1562 = vmatprep.subr.bf16.mxu0 %v1474
        %1563 = vmatpush1.bf16.msra.mxu0 %v1473
        %1564 = vmatprep.subr.bf16.mxu0 %v1477
        %1565 = vmatpush1.bf16.msra.mxu0 %v1476
        %1566 = vmatprep.subr.bf16.mxu0 %v1480
        %1567 = vmatpush1.bf16.msra.mxu0 %v1479
        %1568 = vmatprep.subr.bf16.mxu0 %v1483
        %1569 = vmatpush1.bf16.msra.mxu0 %v1482
        %1570 = vmatprep.subr.bf16.mxu0 %v1486
        %1571 = vmatpush1.bf16.msra.mxu0 %v1485
        %1572 = vmatprep.subr.bf16.mxu0 %v1489
        %1573 = vmatpush1.bf16.msra.mxu0 %v1488
        %1574 = vmatprep.subr.bf16.mxu0 %v1492
        %1575 = vmatpush1.bf16.msra.mxu0 %v1491
        %1576 = vmatprep.subr.bf16.mxu0 %v1495
        %1577 = vmatpush1.bf16.msra.mxu0 %v1494
        %1578 = vmatprep.subr.bf16.mxu0 %v1498
        %1579 = vmatpush1.bf16.msra.mxu0 %v1497
        %1580 = vmatprep.mubr.bf16.mxu0 %v747
        %1581 = vmatmul.mubr.bf16.gmra.mrb[0].mxu0 %v746
        %v1582 = vpop.f32.mrb[0].mxu0
        %v1583 = vadd.f32 0.0, %v1582
        %v1584 = vpop.f32.mrb[0].mxu0
        %v1585 = vadd.f32 0.0, %v1584
        %v1586 = vpop.f32.mrb[0].mxu0
        %v1587 = vadd.f32 0.0, %v1586
        %v1588 = vpop.f32.mrb[0].mxu0
        %v1589 = vadd.f32 0.0, %v1588
        %1590 = vmatprep.mubr.bf16.mxu0 %v749
        %1591 = vmatmul.mubr.bf16.gmra.mrb[0].mxu0 %v748
        %v1592 = vpop.f32.mrb[0].mxu0
        %v1593 = vadd.f32 0.0, %v1592
        %v1594 = vpop.f32.mrb[0].mxu0
        %v1595 = vadd.f32 0.0, %v1594
        %v1596 = vpop.f32.mrb[0].mxu0
        %v1597 = vadd.f32 0.0, %v1596
        %v1598 = vpop.f32.mrb[0].mxu0
        %v1599 = vadd.f32 0.0, %v1598
        %1600 = vmatprep.mubr.bf16.mxu0 %v751
        %1601 = vmatmul.mubr.bf16.gmra.mrb[0].mxu0 %v750
        %v1602 = vpop.f32.mrb[0].mxu0
        %v1603 = vadd.f32 0.0, %v1602
        %v1604 = vpop.f32.mrb[0].mxu0
        %v1605 = vadd.f32 0.0, %v1604
        %v1606 = vpop.f32.mrb[0].mxu0
        %v1607 = vadd.f32 0.0, %v1606
        %v1608 = vpop.f32.mrb[0].mxu0
        %v1609 = vadd.f32 0.0, %v1608
        %1610 = vmatprep.mubr.bf16.mxu0 %v753
        %1611 = vmatmul.mubr.bf16.gmra.mrb[0].mxu0 %v752
        %v1612 = vpop.f32.mrb[0].mxu0
        %v1613 = vadd.f32 0.0, %v1612
        %v1614 = vpop.f32.mrb[0].mxu0
        %v1615 = vadd.f32 0.0, %v1614
        %v1616 = vpop.f32.mrb[0].mxu0
        %v1617 = vadd.f32 0.0, %v1616
        %v1618 = vpop.f32.mrb[0].mxu0
        %v1619 = vadd.f32 0.0, %v1618
        %1620 = vdwg.mxu0
        %1621 = vmatprep.subr.bf16.mxu0 0
        %1622 = vmatpush1.bf16.msra.mxu0 %v1454
        %1623 = vmatprep.subr.bf16.mxu0 0
        %1624 = vmatpush1.bf16.msra.mxu0 %v1457
        %1625 = vmatprep.subr.bf16.mxu0 0
        %1626 = vmatpush1.bf16.msra.mxu0 %v1460
        %1627 = vmatprep.subr.bf16.mxu0 0
        %1628 = vmatpush1.bf16.msra.mxu0 %v1463
        %1629 = vmatprep.subr.bf16.mxu0 0
        %1630 = vmatpush1.bf16.msra.mxu0 %v1466
        %1631 = vmatprep.subr.bf16.mxu0 0
        %1632 = vmatpush1.bf16.msra.mxu0 %v1469
        %1633 = vmatprep.subr.bf16.mxu0 0
        %1634 = vmatpush1.bf16.msra.mxu0 %v1472
        %1635 = vmatprep.subr.bf16.mxu0 0
        %1636 = vmatpush1.bf16.msra.mxu0 %v1475
        %1637 = vmatprep.subr.bf16.mxu0 0
        %1638 = vmatpush1.bf16.msra.mxu0 %v1478
        %1639 = vmatprep.subr.bf16.mxu0 0
        %1640 = vmatpush1.bf16.msra.mxu0 %v1481
        %1641 = vmatprep.subr.bf16.mxu0 0
        %1642 = vmatpush1.bf16.msra.mxu0 %v1484
        %1643 = vmatprep.subr.bf16.mxu0 0
        %1644 = vmatpush1.bf16.msra.mxu0 %v1487
        %1645 = vmatprep.subr.bf16.mxu0 0
        %1646 = vmatpush1.bf16.msra.mxu0 %v1490
        %1647 = vmatprep.subr.bf16.mxu0 0
        %1648 = vmatpush1.bf16.msra.mxu0 %v1493
        %1649 = vmatprep.subr.bf16.mxu0 0
        %1650 = vmatpush1.bf16.msra.mxu0 %v1496
        %1651 = vmatprep.subr.bf16.mxu0 0
        %1652 = vmatpush1.bf16.msra.mxu0 %v1499
        %1653 = vmatprep.mubr.bf16.mxu0 %v747
        %1654 = vmatmul.mubr.bf16.gmra.mrb[0].mxu0 %v746
        %v1655 = vpop.f32.mrb[0].mxu0
        %v1656 = vadd.f32 0.0, %v1655
        %v1657 = vpop.f32.mrb[0].mxu0
        %v1658 = vpop.f32.mrb[0].mxu0
        %v1659 = vadd.f32 0.0, %v1658
        %v1660 = vpop.f32.mrb[0].mxu0
        %1661 = vmatprep.mubr.bf16.mxu0 %v749
        %1662 = vmatmul.mubr.bf16.gmra.mrb[0].mxu0 %v748
        %v1663 = vpop.f32.mrb[0].mxu0
        %v1664 = vadd.f32 0.0, %v1663
        %v1665 = vpop.f32.mrb[0].mxu0
        %v1666 = vpop.f32.mrb[0].mxu0
        %v1667 = vadd.f32 0.0, %v1666
        %v1668 = vpop.f32.mrb[0].mxu0
        %1669 = vmatprep.mubr.bf16.mxu0 %v751
        %1670 = vmatmul.mubr.bf16.gmra.mrb[0].mxu0 %v750
        %v1671 = vpop.f32.mrb[0].mxu0
        %v1672 = vadd.f32 0.0, %v1671
        %v1673 = vpop.f32.mrb[0].mxu0
        %v1674 = vpop.f32.mrb[0].mxu0
        %v1675 = vadd.f32 0.0, %v1674
        %v1676 = vpop.f32.mrb[0].mxu0
        %1677 = vmatprep.mubr.bf16.mxu0 %v753
        %1678 = vmatmul.mubr.bf16.gmra.mrb[0].mxu0 %v752
        %v1679 = vpop.f32.mrb[0].mxu0
        %v1680 = vadd.f32 0.0, %v1679
        %v1681 = vpop.f32.mrb[0].mxu0
        %v1682 = vpop.f32.mrb[0].mxu0
        %v1683 = vadd.f32 0.0, %v1682
        %v1684 = vpop.f32.mrb[0].mxu0
        %1685 = vdwg.mxu0
        %v1686 = vadd.f32 %v1204, %v1583
        %v1687 = vadd.f32 %v1205, %v1585
        %v1688 = vadd.f32 %v1206, %v1656
        %v1689 = vadd.f32 %v1207, %v1587
        %v1690 = vadd.f32 %v1208, %v1589
        %v1691 = vadd.f32 %v1209, %v1659
        %v1692 = vadd.f32 %v1210, %v1593
        %v1693 = vadd.f32 %v1211, %v1595
        %v1694 = vadd.f32 %v1212, %v1664
        %v1695 = vadd.f32 %v1213, %v1597
        %v1696 = vadd.f32 %v1214, %v1599
        %v1697 = vadd.f32 %v1215, %v1667
        %v1698 = vadd.f32 %v1216, %v1603
        %v1699 = vadd.f32 %v1217, %v1605
        %v1700 = vadd.f32 %v1218, %v1672
        %v1701 = vadd.f32 %v1219, %v1607
        %v1702 = vadd.f32 %v1220, %v1609
        %v1703 = vadd.f32 %v1221, %v1675
        %v1704 = vadd.f32 %v1222, %v1613
        %v1705 = vadd.f32 %v1223, %v1615
        %v1706 = vadd.f32 %v1224, %v1680
        %v1707 = vadd.f32 %v1225, %v1617
        %v1708 = vadd.f32 %v1226, %v1619
        %v1709 = vadd.f32 %v1227, %v1683
        %1710 = vst [vmem:[#allocation3] sm:$0xff] %v1686
        %1711 = vst [vmem:[#allocation3 + $0x8] sm:$0xff] %v1687
        %1712 = vst [vmem:[#allocation3 + $0x10] sm:$0xff] %v1688
        %1713 = vst [vmem:[#allocation3 + $0x18] sm:$0xff] %v1689
        %1714 = vst [vmem:[#allocation3 + $0x20] sm:$0xff] %v1690
        %1715 = vst [vmem:[#allocation3 + $0x28] sm:$0xff] %v1691
        %1716 = vst [vmem:[#allocation3 + $0x30] sm:$0xff] %v1692
        %1717 = vst [vmem:[#allocation3 + $0x38] sm:$0xff] %v1693
        %1718 = vst [vmem:[#allocation3 + $0x40] sm:$0xff] %v1694
        %1719 = vst [vmem:[#allocation3 + $0x48] sm:$0xff] %v1695
        %1720 = vst [vmem:[#allocation3 + $0x50] sm:$0xff] %v1696
        %1721 = vst [vmem:[#allocation3 + $0x58] sm:$0xff] %v1697
        %1722 = vst [vmem:[#allocation3 + $0x60] sm:$0xff] %v1698
        %1723 = vst [vmem:[#allocation3 + $0x68] sm:$0xff] %v1699
        %1724 = vst [vmem:[#allocation3 + $0x70] sm:$0xff] %v1700
        %1725 = vst [vmem:[#allocation3 + $0x78] sm:$0xff] %v1701
        %1726 = vst [vmem:[#allocation3 + $0x80] sm:$0xff] %v1702
        %1727 = vst [vmem:[#allocation3 + $0x88] sm:$0xff] %v1703
        %1728 = vst [vmem:[#allocation3 + $0x90] sm:$0xff] %v1704
        %1729 = vst [vmem:[#allocation3 + $0x98] sm:$0xff] %v1705
        %1730 = vst [vmem:[#allocation3 + $0xa0] sm:$0xff] %v1706
        %1731 = vst [vmem:[#allocation3 + $0xa8] sm:$0xff] %v1707
        %1732 = vst [vmem:[#allocation3 + $0xb0] sm:$0xff] %v1708
        %1733 = vst [vmem:[#allocation3 + $0xb8] sm:$0xff] %v1709
        // Predicated region
        $region89: #{transformer_block_forward.14} parent=75 // pred_check
          %p1734 = pneg %p574
        $region90: #{transformer_block_forward.14} parent=75 // pred_check_branch
          %1736 = sbr.rel (%p1734) target = $region92
        $region91: #{transformer_block_forward.14} parent=75 // pred_region
          %v1737 = vld [vmem:[#allocation2] sm:$0xff]
          %v1738 = vld [vmem:[#allocation2 + $0x8] sm:$0xff]
          %v1739 = vld [vmem:[#allocation2 + $0x10] sm:$0xff]
          %v1740 = vld [vmem:[#allocation2 + $0x18] sm:$0xff]
          %v1741 = vld [vmem:[#allocation2 + $0x20] sm:$0xff]
          %v1742 = vld [vmem:[#allocation2 + $0x28] sm:$0xff]
          %v1743 = vld [vmem:[#allocation2 + $0x30] sm:$0xff]
          %v1744 = vld [vmem:[#allocation2 + $0x38] sm:$0xff]
          %v1745 = vld [vmem:[#allocation2 + $0x40] sm:$0xff]
          %v1746 = vld [vmem:[#allocation2 + $0x48] sm:$0xff]
          %v1747 = vld [vmem:[#allocation2 + $0x50] sm:$0xff]
          %v1748 = vld [vmem:[#allocation2 + $0x58] sm:$0xff]
          %v1749 = vld [vmem:[#allocation2 + $0x60] sm:$0xff]
          %v1750 = vld [vmem:[#allocation2 + $0x68] sm:$0xff]
          %v1751 = vld [vmem:[#allocation2 + $0x70] sm:$0xff]
          %v1752 = vld [vmem:[#allocation2 + $0x78] sm:$0xff]
          %v1753 = vld [vmem:[#allocation2 + $0x80] sm:$0xff]
          %v1754 = vld [vmem:[#allocation2 + $0x88] sm:$0xff]
          %v1755 = vld [vmem:[#allocation2 + $0x90] sm:$0xff]
          %v1756 = vld [vmem:[#allocation2 + $0x98] sm:$0xff]
          %v1757 = vld [vmem:[#allocation2 + $0xa0] sm:$0xff]
          %v1758 = vld [vmem:[#allocation2 + $0xa8] sm:$0xff]
          %v1759 = vld [vmem:[#allocation2 + $0xb0] sm:$0xff]
          %v1760 = vld [vmem:[#allocation2 + $0xb8] sm:$0xff]
          %v1761 = vxor.u32 %v1737, 2147483648
          %v1762 = vxor.u32 %v1738, 2147483648
          %v1763 = vxor.u32 %v1739, 2147483648
          %v1764 = vxor.u32 %v1740, 2147483648
          %v1765 = vxor.u32 %v1741, 2147483648
          %v1766 = vxor.u32 %v1742, 2147483648
          %v1767 = vxor.u32 %v1743, 2147483648
          %v1768 = vxor.u32 %v1744, 2147483648
          %v1769 = vxor.u32 %v1745, 2147483648
          %v1770 = vxor.u32 %v1746, 2147483648
          %v1771 = vxor.u32 %v1747, 2147483648
          %v1772 = vxor.u32 %v1748, 2147483648
          %v1773 = vxor.u32 %v1749, 2147483648
          %v1774 = vxor.u32 %v1750, 2147483648
          %v1775 = vxor.u32 %v1751, 2147483648
          %v1776 = vxor.u32 %v1752, 2147483648
          %v1777 = vxor.u32 %v1753, 2147483648
          %v1778 = vxor.u32 %v1754, 2147483648
          %v1779 = vxor.u32 %v1755, 2147483648
          %v1780 = vxor.u32 %v1756, 2147483648
          %v1781 = vxor.u32 %v1757, 2147483648
          %v1782 = vxor.u32 %v1758, 2147483648
          %v1783 = vxor.u32 %v1759, 2147483648
          %v1784 = vxor.u32 %v1760, 2147483648
          %v1785 = vmul.f32 %v1761, 1.442695
          %v1786 = vpow.pop %v1785
          %v1787 = vmul.f32 %v1762, 1.442695
          %v1788 = vpow.pop %v1787
          %v1789 = vmul.f32 %v1763, 1.442695
          %v1790 = vpow.pop %v1789
          %v1791 = vmul.f32 %v1764, 1.442695
          %v1792 = vpow.pop %v1791
          %v1793 = vmul.f32 %v1765, 1.442695
          %v1794 = vpow.pop %v1793
          %v1795 = vmul.f32 %v1766, 1.442695
          %v1796 = vpow.pop %v1795
          %v1797 = vmul.f32 %v1767, 1.442695
          %v1798 = vpow.pop %v1797
          %v1799 = vmul.f32 %v1768, 1.442695
          %v1800 = vpow.pop %v1799
          %v1801 = vmul.f32 %v1769, 1.442695
          %v1802 = vpow.pop %v1801
          %v1803 = vmul.f32 %v1770, 1.442695
          %v1804 = vpow.pop %v1803
          %v1805 = vmul.f32 %v1771, 1.442695
          %v1806 = vpow.pop %v1805
          %v1807 = vmul.f32 %v1772, 1.442695
          %v1808 = vpow.pop %v1807
          %v1809 = vmul.f32 %v1773, 1.442695
          %v1810 = vpow.pop %v1809
          %v1811 = vmul.f32 %v1774, 1.442695
          %v1812 = vpow.pop %v1811
          %v1813 = vmul.f32 %v1775, 1.442695
          %v1814 = vpow.pop %v1813
          %v1815 = vmul.f32 %v1776, 1.442695
          %v1816 = vpow.pop %v1815
          %v1817 = vmul.f32 %v1777, 1.442695
          %v1818 = vpow.pop %v1817
          %v1819 = vmul.f32 %v1778, 1.442695
          %v1820 = vpow.pop %v1819
          %v1821 = vmul.f32 %v1779, 1.442695
          %v1822 = vpow.pop %v1821
          %v1823 = vmul.f32 %v1780, 1.442695
          %v1824 = vpow.pop %v1823
          %v1825 = vmul.f32 %v1781, 1.442695
          %v1826 = vpow.pop %v1825
          %v1827 = vmul.f32 %v1782, 1.442695
          %v1828 = vpow.pop %v1827
          %v1829 = vmul.f32 %v1783, 1.442695
          %v1830 = vpow.pop %v1829
          %v1831 = vmul.f32 %v1784, 1.442695
          %v1832 = vpow.pop %v1831
          %v1833 = vadd.f32 %v1786, 1.0
          %v1834 = vadd.f32 %v1788, 1.0
          %v1835 = vadd.f32 %v1790, 1.0
          %v1836 = vadd.f32 %v1792, 1.0
          %v1837 = vadd.f32 %v1794, 1.0
          %v1838 = vadd.f32 %v1796, 1.0
          %v1839 = vadd.f32 %v1798, 1.0
          %v1840 = vadd.f32 %v1800, 1.0
          %v1841 = vadd.f32 %v1802, 1.0
          %v1842 = vadd.f32 %v1804, 1.0
          %v1843 = vadd.f32 %v1806, 1.0
          %v1844 = vadd.f32 %v1808, 1.0
          %v1845 = vadd.f32 %v1810, 1.0
          %v1846 = vadd.f32 %v1812, 1.0
          %v1847 = vadd.f32 %v1814, 1.0
          %v1848 = vadd.f32 %v1816, 1.0
          %v1849 = vadd.f32 %v1818, 1.0
          %v1850 = vadd.f32 %v1820, 1.0
          %v1851 = vadd.f32 %v1822, 1.0
          %v1852 = vadd.f32 %v1824, 1.0
          %v1853 = vadd.f32 %v1826, 1.0
          %v1854 = vadd.f32 %v1828, 1.0
          %v1855 = vadd.f32 %v1830, 1.0
          %v1856 = vadd.f32 %v1832, 1.0
          %v1857 = vrcp.pop %v1833
          %v1858 = vmul.f32 1.0, %v1857
          %v1859 = vrcp.pop %v1834
          %v1860 = vmul.f32 1.0, %v1859
          %v1861 = vrcp.pop %v1835
          %v1862 = vmul.f32 1.0, %v1861
          %v1863 = vrcp.pop %v1836
          %v1864 = vmul.f32 1.0, %v1863
          %v1865 = vrcp.pop %v1837
          %v1866 = vmul.f32 1.0, %v1865
          %v1867 = vrcp.pop %v1838
          %v1868 = vmul.f32 1.0, %v1867
          %v1869 = vrcp.pop %v1839
          %v1870 = vmul.f32 1.0, %v1869
          %v1871 = vrcp.pop %v1840
          %v1872 = vmul.f32 1.0, %v1871
          %v1873 = vrcp.pop %v1841
          %v1874 = vmul.f32 1.0, %v1873
          %v1875 = vrcp.pop %v1842
          %v1876 = vmul.f32 1.0, %v1875
          %v1877 = vrcp.pop %v1843
          %v1878 = vmul.f32 1.0, %v1877
          %v1879 = vrcp.pop %v1844
          %v1880 = vmul.f32 1.0, %v1879
          %v1881 = vrcp.pop %v1845
          %v1882 = vmul.f32 1.0, %v1881
          %v1883 = vrcp.pop %v1846
          %v1884 = vmul.f32 1.0, %v1883
          %v1885 = vrcp.pop %v1847
          %v1886 = vmul.f32 1.0, %v1885
          %v1887 = vrcp.pop %v1848
          %v1888 = vmul.f32 1.0, %v1887
          %v1889 = vrcp.pop %v1849
          %v1890 = vmul.f32 1.0, %v1889
          %v1891 = vrcp.pop %v1850
          %v1892 = vmul.f32 1.0, %v1891
          %v1893 = vrcp.pop %v1851
          %v1894 = vmul.f32 1.0, %v1893
          %v1895 = vrcp.pop %v1852
          %v1896 = vmul.f32 1.0, %v1895
          %v1897 = vrcp.pop %v1853
          %v1898 = vmul.f32 1.0, %v1897
          %v1899 = vrcp.pop %v1854
          %v1900 = vmul.f32 1.0, %v1899
          %v1901 = vrcp.pop %v1855
          %v1902 = vmul.f32 1.0, %v1901
          %v1903 = vrcp.pop %v1856
          %v1904 = vmul.f32 1.0, %v1903
          %v1905 = vmul.f32 %v1737, %v1858
          %v1906 = vmul.f32 %v1738, %v1860
          %v1907 = vmul.f32 %v1739, %v1862
          %v1908 = vmul.f32 %v1740, %v1864
          %v1909 = vmul.f32 %v1741, %v1866
          %v1910 = vmul.f32 %v1742, %v1868
          %v1911 = vmul.f32 %v1743, %v1870
          %v1912 = vmul.f32 %v1744, %v1872
          %v1913 = vmul.f32 %v1745, %v1874
          %v1914 = vmul.f32 %v1746, %v1876
          %v1915 = vmul.f32 %v1747, %v1878
          %v1916 = vmul.f32 %v1748, %v1880
          %v1917 = vmul.f32 %v1749, %v1882
          %v1918 = vmul.f32 %v1750, %v1884
          %v1919 = vmul.f32 %v1751, %v1886
          %v1920 = vmul.f32 %v1752, %v1888
          %v1921 = vmul.f32 %v1753, %v1890
          %v1922 = vmul.f32 %v1754, %v1892
          %v1923 = vmul.f32 %v1755, %v1894
          %v1924 = vmul.f32 %v1756, %v1896
          %v1925 = vmul.f32 %v1757, %v1898
          %v1926 = vmul.f32 %v1758, %v1900
          %v1927 = vmul.f32 %v1759, %v1902
          %v1928 = vmul.f32 %v1760, %v1904
          %v1929 = vld [vmem:[#allocation3] sm:$0xff]
          %v1930 = vld [vmem:[#allocation3 + $0x8] sm:$0xff]
          %v1931 = vld [vmem:[#allocation3 + $0x10] sm:$0xff]
          %v1932 = vld [vmem:[#allocation3 + $0x18] sm:$0xff]
          %v1933 = vld [vmem:[#allocation3 + $0x20] sm:$0xff]
          %v1934 = vld [vmem:[#allocation3 + $0x28] sm:$0xff]
          %v1935 = vld [vmem:[#allocation3 + $0x30] sm:$0xff]
          %v1936 = vld [vmem:[#allocation3 + $0x38] sm:$0xff]
          %v1937 = vld [vmem:[#allocation3 + $0x40] sm:$0xff]
          %v1938 = vld [vmem:[#allocation3 + $0x48] sm:$0xff]
          %v1939 = vld [vmem:[#allocation3 + $0x50] sm:$0xff]
          %v1940 = vld [vmem:[#allocation3 + $0x58] sm:$0xff]
          %v1941 = vld [vmem:[#allocation3 + $0x60] sm:$0xff]
          %v1942 = vld [vmem:[#allocation3 + $0x68] sm:$0xff]
          %v1943 = vld [vmem:[#allocation3 + $0x70] sm:$0xff]
          %v1944 = vld [vmem:[#allocation3 + $0x78] sm:$0xff]
          %v1945 = vld [vmem:[#allocation3 + $0x80] sm:$0xff]
          %v1946 = vld [vmem:[#allocation3 + $0x88] sm:$0xff]
          %v1947 = vld [vmem:[#allocation3 + $0x90] sm:$0xff]
          %v1948 = vld [vmem:[#allocation3 + $0x98] sm:$0xff]
          %v1949 = vld [vmem:[#allocation3 + $0xa0] sm:$0xff]
          %v1950 = vld [vmem:[#allocation3 + $0xa8] sm:$0xff]
          %v1951 = vld [vmem:[#allocation3 + $0xb0] sm:$0xff]
          %v1952 = vld [vmem:[#allocation3 + $0xb8] sm:$0xff]
          %v1953 = vmul.f32 %v1905, %v1929
          %v1954 = vmul.f32 %v1906, %v1930
          %v1955 = vmul.f32 %v1907, %v1931
          %v1956 = vmul.f32 %v1908, %v1932
          %v1957 = vmul.f32 %v1909, %v1933
          %v1958 = vmul.f32 %v1910, %v1934
          %v1959 = vmul.f32 %v1911, %v1935
          %v1960 = vmul.f32 %v1912, %v1936
          %v1961 = vmul.f32 %v1913, %v1937
          %v1962 = vmul.f32 %v1914, %v1938
          %v1963 = vmul.f32 %v1915, %v1939
          %v1964 = vmul.f32 %v1916, %v1940
          %v1965 = vmul.f32 %v1917, %v1941
          %v1966 = vmul.f32 %v1918, %v1942
          %v1967 = vmul.f32 %v1919, %v1943
          %v1968 = vmul.f32 %v1920, %v1944
          %v1969 = vmul.f32 %v1921, %v1945
          %v1970 = vmul.f32 %v1922, %v1946
          %v1971 = vmul.f32 %v1923, %v1947
          %v1972 = vmul.f32 %v1924, %v1948
          %v1973 = vmul.f32 %v1925, %v1949
          %v1974 = vmul.f32 %v1926, %v1950
          %v1975 = vmul.f32 %v1927, %v1951
          %v1976 = vmul.f32 %v1928, %v1952
          %v1977 = vpack.c.bf16 %v1956, %v1953
          %v1978 = vpack.c.bf16 %v1957, %v1954
          %v1979 = vpack.c.bf16 %v1958, %v1955
          %v1980 = vpack.c.bf16 %v1962, %v1959
          %v1981 = vpack.c.bf16 %v1963, %v1960
          %v1982 = vpack.c.bf16 %v1964, %v1961
          %v1983 = vpack.c.bf16 %v1968, %v1965
          %v1984 = vpack.c.bf16 %v1969, %v1966
          %v1985 = vpack.c.bf16 %v1970, %v1967
          %v1986 = vpack.c.bf16 %v1974, %v1971
          %v1987 = vpack.c.bf16 %v1975, %v1972
          %v1988 = vpack.c.bf16 %v1976, %v1973
          %v2001 = vunpack.c.l.b16 %v1977
          %v2002 = vunpack.c.l.b16 %v1978
          %v2003 = vunpack.c.l.b16 %v1979
          %v2004 = vunpack.c.h.b16 %v1977
          %v2005 = vunpack.c.h.b16 %v1978
          %v2006 = vunpack.c.h.b16 %v1979
          %v2007 = vunpack.c.l.b16 %v1980
          %v2008 = vunpack.c.l.b16 %v1981
          %v2009 = vunpack.c.l.b16 %v1982
          %v2010 = vunpack.c.h.b16 %v1980
          %v2011 = vunpack.c.h.b16 %v1981
          %v2012 = vunpack.c.h.b16 %v1982
          %v2013 = vunpack.c.l.b16 %v1983
          %v2014 = vunpack.c.l.b16 %v1984
          %v2015 = vunpack.c.l.b16 %v1985
          %v2016 = vunpack.c.h.b16 %v1983
          %v2017 = vunpack.c.h.b16 %v1984
          %v2018 = vunpack.c.h.b16 %v1985
          %v2019 = vunpack.c.l.b16 %v1986
          %v2020 = vunpack.c.l.b16 %v1987
          %v2021 = vunpack.c.l.b16 %v1988
          %v2022 = vunpack.c.h.b16 %v1986
          %v2023 = vunpack.c.h.b16 %v1987
          %v2024 = vunpack.c.h.b16 %v1988
          %v2025 = vpack.c.b16 %v2002, %v2001
          %v2026 = vpack.c.b16 %v2003, %v2003
          %v2027 = vpack.c.b16 %v2005, %v2004
          %v2028 = vpack.c.b16 %v2006, %v2006
          %v2029 = vpack.c.b16 %v2008, %v2007
          %v2030 = vpack.c.b16 %v2009, %v2009
          %v2031 = vpack.c.b16 %v2011, %v2010
          %v2032 = vpack.c.b16 %v2012, %v2012
          %v2033 = vpack.c.b16 %v2014, %v2013
          %v2034 = vpack.c.b16 %v2015, %v2015
          %v2035 = vpack.c.b16 %v2017, %v2016
          %v2036 = vpack.c.b16 %v2018, %v2018
          %v2037 = vpack.c.b16 %v2020, %v2019
          %v2038 = vpack.c.b16 %v2021, %v2021
          %v2039 = vpack.c.b16 %v2023, %v2022
          %v2040 = vpack.c.b16 %v2024, %v2024
          %2057 = vst [vmem:[%s554] sm:$0xff] %v2025
          %2058 = vst [vmem:[%s554 + $0x8] sm:$0xf] %v2026
          %2059 = vst [vmem:[%s554 + $0xc] sm:$0xff] %v2027
          %2060 = vst [vmem:[%s554 + $0x14] sm:$0xf] %v2028
          %2061 = vst [vmem:[%s554 + $0x18] sm:$0xff] %v2029
          %2062 = vst [vmem:[%s554 + $0x20] sm:$0xf] %v2030
          %2063 = vst [vmem:[%s554 + $0x24] sm:$0xff] %v2031
          %2064 = vst [vmem:[%s554 + $0x2c] sm:$0xf] %v2032
          %2065 = vst [vmem:[%s554 + $0x30] sm:$0xff] %v2033
          %2066 = vst [vmem:[%s554 + $0x38] sm:$0xf] %v2034
          %2067 = vst [vmem:[%s554 + $0x3c] sm:$0xff] %v2035
          %2068 = vst [vmem:[%s554 + $0x44] sm:$0xf] %v2036
          %2069 = vst [vmem:[%s554 + $0x48] sm:$0xff] %v2037
          %2070 = vst [vmem:[%s554 + $0x50] sm:$0xf] %v2038
          %2071 = vst [vmem:[%s554 + $0x54] sm:$0xff] %v2039
          %2072 = vst [vmem:[%s554 + $0x5c] sm:$0xf] %v2040
        $region92: #{transformer_block_forward.14} parent=75 // pred_fallthru
          _
        %s2073 = sand.u32 %s127, 1
        %s2074 = sand.u32 %s127, 1
        %s2075 = smul.addr %s2074, 96
        %s2076 = scalar_lea.vmem [#allocation6], %s2075
        // Predicated region
        $region93: #{transformer_block_forward.14} parent=75 // pred_check
          %p2077 = pneg %p137
        $region94: #{transformer_block_forward.14} parent=75 // pred_check_branch
          %2079 = sbr.rel (%p2077) target = $region96
        $region95: #{transformer_block_forward.14} parent=75 // pred_region
          %s2080 = smul.u32 8, %s19
          %s2081 = smul.u32 3, %s20
          %s2082 = smul.addr %s2080, 6
          %s2083 = sadd.s32 %s2081, %s2082
          %s2084 = smul.addr %s2083, 4
          %s2085 = scalar_lea.vmem %s3, %s2084
          // Predicated region
          $region97: #{transformer_block_forward.14} parent=95 // pred_check
            _
          $region98: #{transformer_block_forward.14} parent=95 // pred_check_branch
            %2087 = sbr.rel (0) target = $region100
          $region99: #{transformer_block_forward.14} parent=95 // pred_region
            // Predicated region
            $region101: #{transformer_block_forward.14} parent=99 // pred_check
              _
            $region102: #{transformer_block_forward.14} parent=99 // pred_check_branch
              %2089 = sbr.rel (0) target = $region104
            $region103: #{transformer_block_forward.14} parent=99 // pred_region
              %s2090 = scalar_lea.vmem %s2076, 8 [#allocation6]
              %s2091 = scalar_lea.vmem %s2085, 8
              loop: start=0, step=1, limit=1
              $region105: #{transformer_block_forward.14} parent=103 // loop_pre_header
                _
              $region106: #{transformer_block_forward.14} parent=103 // loop_header
                %s2093 = sphi 0, %s2097
                %p2094 = scmp.ge.s32.totalorder %s2093, 1
                %s2098 = sphi %s2076, %s2076
                %s2099 = sphi %s2085, %s2085
              $region107: #{transformer_block_forward.14} parent=103 // loop_header_branch
                %2096 = sbr.rel (%p2094) target = $region111
              $region108: #{transformer_block_forward.14} parent=103 // loop_body
                %v2100 = vld [vmem:[%s2098] sm:$0xff]
                %2101 = vst [vmem:[%s2099] sm:$0xff] %v2100
                %v2102 = vld [vmem:[%s2098 + $0xc] sm:$0xff]
                %2103 = vst [vmem:[%s2099 + $0x18] sm:$0xff] %v2102
                %v2104 = vld [vmem:[%s2098 + $0x18] sm:$0xff]
                %2105 = vst [vmem:[%s2099 + $0x30] sm:$0xff] %v2104
                %v2106 = vld [vmem:[%s2098 + $0x24] sm:$0xff]
                %2107 = vst [vmem:[%s2099 + $0x48] sm:$0xff] %v2106
                %v2108 = vld [vmem:[%s2098 + $0x30] sm:$0xff]
                %2109 = vst [vmem:[%s2099 + $0x60] sm:$0xff] %v2108
                %v2110 = vld [vmem:[%s2098 + $0x3c] sm:$0xff]
                %2111 = vst [vmem:[%s2099 + $0x78] sm:$0xff] %v2110
                %v2112 = vld [vmem:[%s2098 + $0x48] sm:$0xff]
                %2113 = vst [vmem:[%s2099 + $0x90] sm:$0xff] %v2112
                %v2114 = vld [vmem:[%s2098 + $0x54] sm:$0xff]
                %2115 = vst [vmem:[%s2099 + $0xa8] sm:$0xff] %v2114
              $region109: #{transformer_block_forward.14} parent=103 // loop_footer
                %s2097 = sadd.s32 1, %s2093
              $region110: #{transformer_block_forward.14} parent=103 // loop_footer_branch
                %2092 = sbr.rel target = $region106
              $region111: #{transformer_block_forward.14} parent=103 // loop_exit
                _
              loop: start=0, step=1, limit=1
              $region112: #{transformer_block_forward.14} parent=103 // loop_pre_header
                _
              $region113: #{transformer_block_forward.14} parent=103 // loop_header
                %s2118 = sphi 0, %s2122
                %p2119 = scmp.ge.s32.totalorder %s2118, 1
                %s2123 = sphi %s2090, %s2090
                %s2124 = sphi %s2091, %s2091
              $region114: #{transformer_block_forward.14} parent=103 // loop_header_branch
                %2121 = sbr.rel (%p2119) target = $region118
              $region115: #{transformer_block_forward.14} parent=103 // loop_body
                %v2125 = vld [vmem:[%s2123] sm:$0xf]
                %2126 = vst [vmem:[%s2124] sm:$0xf] %v2125
                %v2127 = vld [vmem:[%s2123 + $0xc] sm:$0xf]
                %2128 = vst [vmem:[%s2124 + $0x18] sm:$0xf] %v2127
                %v2129 = vld [vmem:[%s2123 + $0x18] sm:$0xf]
                %2130 = vst [vmem:[%s2124 + $0x30] sm:$0xf] %v2129
                %v2131 = vld [vmem:[%s2123 + $0x24] sm:$0xf]
                %2132 = vst [vmem:[%s2124 + $0x48] sm:$0xf] %v2131
                %v2133 = vld [vmem:[%s2123 + $0x30] sm:$0xf]
                %2134 = vst [vmem:[%s2124 + $0x60] sm:$0xf] %v2133
                %v2135 = vld [vmem:[%s2123 + $0x3c] sm:$0xf]
                %2136 = vst [vmem:[%s2124 + $0x78] sm:$0xf] %v2135
                %v2137 = vld [vmem:[%s2123 + $0x48] sm:$0xf]
                %2138 = vst [vmem:[%s2124 + $0x90] sm:$0xf] %v2137
                %v2139 = vld [vmem:[%s2123 + $0x54] sm:$0xf]
                %2140 = vst [vmem:[%s2124 + $0xa8] sm:$0xf] %v2139
              $region116: #{transformer_block_forward.14} parent=103 // loop_footer
                %s2122 = sadd.s32 1, %s2118
              $region117: #{transformer_block_forward.14} parent=103 // loop_footer_branch
                %2117 = sbr.rel target = $region113
              $region118: #{transformer_block_forward.14} parent=103 // loop_exit
                _
            $region104: #{transformer_block_forward.14} parent=99 // pred_fallthru
              _
          $region100: #{transformer_block_forward.14} parent=95 // pred_fallthru
            _
          %2141 = vnop
        $region96: #{transformer_block_forward.14} parent=75 // pred_fallthru
          _
      $region76: #{transformer_block_forward.14} parent=5 // pred_fallthru
        _
      %p2142 = scmp.le.s32.totalorder 2, %s9
      // Predicated region
      $region119: #{transformer_block_forward.14} parent=5 // pred_check
        %p2143 = pneg %p2142
      $region120: #{transformer_block_forward.14} parent=5 // pred_check_branch
        %2145 = sbr.rel (%p2143) target = $region122
      $region121: #{transformer_block_forward.14} parent=5 // pred_region
        %s2146 = ssub.s32 %s9, 2
        // Predicated region
        $region123: #{transformer_block_forward.14} parent=121 // pred_check
          %p2147 = pneg %p143
        $region124: #{transformer_block_forward.14} parent=121 // pred_check_branch
          %2149 = sbr.rel (%p2147) target = $region126
        $region125: #{transformer_block_forward.14} parent=121 // pred_region
          %s2150 = sand.u32 %s128, 1
          %s2151 = sand.u32 %s128, 1
          %s2152 = smul.addr %s2151, 96
          %s2153 = scalar_lea.vmem [#allocation6], %s2152
        $region126: #{transformer_block_forward.14} parent=121 // pred_fallthru
          _
      $region122: #{transformer_block_forward.14} parent=5 // pred_fallthru
        _
    $region6: #{transformer_block_forward.14} parent=1 // loop_footer
      %s13 = sadd.s32 1, %s9
    $region7: #{transformer_block_forward.14} parent=1 // loop_footer_branch
      %8 = sbr.rel target = $region3
    $region8: #{transformer_block_forward.14} parent=1 // loop_exit
      _

</llo_original>
